<compile_context>
chip_gen: v7x
topology: tpu7x:2x2x1
jax: 0.10.0
libtpu: 0.0.40
codegen_flags: <defaults>
</compile_context>

<pallas_src>
import functools

import jax
import jax.numpy as jnp
from jax import lax
from jax.experimental import pallas as pl
from jax.experimental.pallas import tpu as pltpu


# ----------------------------------------------------------------------------
# Fused kernel: [TemporalShift + 1x1 Conv2d] x num_blocks, one grid step per
# (batch, HW-tile).  All block weights stay resident in VMEM.
# ----------------------------------------------------------------------------
def _fused_stage_kernel(x_ref, w_ref, b_ref, o_ref, cur_ref, shf_ref, *, fold):
    # x_ref:   (T, HWt, C)          channel-last activation tile (C on lanes)
    # w_ref:   (num_blocks, C, C)   per-block 1x1-conv weights (constant index)
    # b_ref:   (num_blocks, 1, C)   per-block bias rows, already f32
    # o_ref:   (T, HWt, C)
    # cur_ref: (T, HWt, C) scratch  chained activation between blocks
    # shf_ref: (T, HWt, C) scratch  temporally shifted activation for the GEMM
    t, hw_t, c = x_ref.shape
    num_blocks = w_ref.shape[0]

    # Lane-axis fold masks, computed once per kernel (no full-block iota).
    c_idx = lax.broadcasted_iota(jnp.int32, (1, c), 1)
    m_next = c_idx < fold                                        # future -> now
    m_prev = jnp.logical_and(c_idx >= fold, c_idx < 2 * fold)    # past   -> now

    src = x_ref  # block 0 reads the input tile directly (no extra copy)
    for i in range(num_blocks):
        # Temporal shift: per-frame lane select from src[t-1]/src[t]/src[t+1],
        # zero-padded at the sequence ends (matches torch.zeros_like init).
        for tt in range(t):
            v = src[tt]
            v = jnp.where(m_prev, src[tt - 1] if tt > 0 else 0.0, v)
            v = jnp.where(m_next, src[tt + 1] if tt + 1 < t else 0.0, v)
            shf_ref[tt] = v

        # 1x1 conv as one lane-dense MXU GEMM over the whole (T*HWt, C) tile,
        # f32 accumulation, f32 bias add.
        y = jnp.dot(shf_ref[...].reshape(t * hw_t, c), w_ref[i],
                    preferred_element_type=jnp.float32)
        y = (y + b_ref[i]).reshape(t, hw_t, c)

        if i + 1 < num_blocks:
            cur_ref[...] = y.astype(cur_ref.dtype)
            src = cur_ref
        else:
            o_ref[...] = y.astype(o_ref.dtype)


def _vmem_capacity_bytes():
    """Best-effort per-core VMEM capacity; conservative fallback = v7x (64 MiB)."""
    try:
        info = pltpu.get_tpu_info()
        for name in ("vmem_capacity_bytes", "vmem_bytes", "vmem_size_bytes"):
            v = getattr(info, name, None)
            if v:
                return int(v)
    except Exception:
        pass
    return 64 << 20


def temporal_shift_stage(x, weights, biases, *, n_segment, n_div=8, hw_tile=None):
    """Fused TSM stage: (TemporalShift -> 1x1 Conv2d) for every block, one kernel.

    x:       (n_batch * n_segment, C, H, W)   NCHW, like the PyTorch module
    weights: (num_blocks, C_in, C_out)        stacked per-block 1x1-conv weights
    biases:  (num_blocks, 1, C_out) float32   stacked per-block biases
    returns  (n_batch * n_segment, C_out, H, W)
    """
    nt, c, h, w = x.shape
    assert nt % n_segment == 0, (nt, n_segment)
    n_batch = nt // n_segment
    hw = h * w
    num_blocks, c_in, c_out = weights.shape
    assert c_in == c and c_out == c, "fused chain needs channel-preserving blocks"
    fold = c // n_div
    itemsize = x.dtype.itemsize

    # ----- tile / VMEM sizing (generation-aware) ----------------------------
    vmem_cap = _vmem_capacity_bytes()
    budget = max(2 << 20, vmem_cap // 32)         # per-step x-tile target

    if hw_tile is None:
        hw_tile = hw
        if n_segment * hw * c * itemsize > budget:
            divs = [d for d in range(8, hw, 8) if hw % d == 0]
            fit = [d for d in divs if n_segment * d * c * itemsize <= budget]
            if fit:
                hw_tile = max(fit)
            elif divs:
                hw_tile = min(divs)
            # else: no multiple-of-8 divisor of HW exists; keep full HW.
            # TODO(synk): pad HW to a multiple of 8 instead of full-HW fallback.
        # v7x has 2 TensorCores: make sure the grid has >= 2 steps when possible.
        if n_batch * (hw // hw_tile) < 2:
            divs = [d for d in range(8, hw, 8) if hw % d == 0]
            if divs:
                hw_tile = max(divs)
    assert hw % hw_tile == 0 and (hw_tile % 8 == 0 or hw_tile == hw), (hw, hw_tile)
    n_hw = hw // hw_tile

    # Explicit VMEM limit with headroom (covers v5e 16 MiB scoped default,
    # stays well inside v7x's 64 MiB physical VMEM).
    blk_in = n_segment * hw_tile * c * itemsize
    blk_out = n_segment * hw_tile * c_out * itemsize
    wgt_bytes = (weights.size * weights.dtype.itemsize
                 + biases.size * biases.dtype.itemsize)
    scratch_bytes = 2 * n_segment * hw_tile * c * itemsize
    need = 2 * (blk_in + blk_out) + 2 * wgt_bytes + scratch_bytes
    cap = int(0.75 * vmem_cap)
    vmem_limit = max(need + (4 << 20), 32 << 20)
    if vmem_limit > cap:
        vmem_limit = max(cap, need + (1 << 20))

    # Channel-last re-layout once per stage call (layout plumbing only).
    x_cl = jnp.transpose(x.reshape(n_batch, n_segment, c, hw), (0, 1, 3, 2))

    cost = pl.CostEstimate(
        flops=2 * nt * hw * c * c_out * num_blocks,
        transcendentals=0,
        bytes_accessed=(x_cl.size + n_batch * n_segment * hw * c_out) * itemsize
                       + wgt_bytes,
    )

    out_cl = pl.pallas_call(
        functools.partial(_fused_stage_kernel, fold=fold),
        out_shape=jax.ShapeDtypeStruct((n_batch, n_segment, hw, c_out), x.dtype),
        grid_spec=pltpu.PrefetchScalarGridSpec(
            num_scalar_prefetch=0,
            grid=(n_batch, n_hw),
            in_specs=[
                pl.BlockSpec((pl.Squeezed(), n_segment, hw_tile, c),
                             lambda b, s: (b, 0, s, 0)),
                pl.BlockSpec((num_blocks, c, c_out), lambda b, s: (0, 0, 0)),
                pl.BlockSpec((num_blocks, 1, c_out), lambda b, s: (0, 0, 0)),
            ],
            out_specs=pl.BlockSpec((pl.Squeezed(), n_segment, hw_tile, c_out),
                                   lambda b, s: (b, 0, s, 0)),
            scratch_shapes=[
                pltpu.VMEM((n_segment, hw_tile, c), x.dtype),   # chained activation
                pltpu.VMEM((n_segment, hw_tile, c), x.dtype),   # shifted activation
            ],
        ),
        compiler_params=pltpu.CompilerParams(
            dimension_semantics=("parallel", "parallel"),
            vmem_limit_bytes=int(vmem_limit)),
        cost_estimate=cost,
    )(x_cl, weights, biases)

    # Back to NCHW (once per stage call).
    return jnp.transpose(out_cl, (0, 1, 3, 2)).reshape(nt, c_out, h, w)


# ----------------------------------------------------------------------------
# Module-equivalent wrapper: for each block, shift then (stubbed) block,
# all fused into one pallas_call.
# ----------------------------------------------------------------------------
class MakeBlockTemporalPallas:
    def __init__(self, block_params, this_segment=3, n_div=8, second_segments=2):
        # block_params: list of (weight (C_in, C_out), bias (C_out,)) stubs,
        # one per block of the original stage (all channel-preserving).
        ws = jnp.stack([w for w, _ in block_params])             # (nb, C, C)
        bs = jnp.stack([b for _, b in block_params])             # (nb, C)
        assert ws.shape[1] == ws.shape[2], "channel-preserving blocks required"
        self.weights = ws
        self.biases = bs.reshape(ws.shape[0], 1, ws.shape[2]).astype(jnp.float32)
        self.n_segment = this_segment
        self.n_div = n_div
        self.second_segments = second_segments

    def __call__(self, x, unlabeled=False):
        seg = self.second_segments if unlabeled else self.n_segment
        return temporal_shift_stage(x, self.weights, self.biases,
                                    n_segment=seg, n_div=self.n_div)


# ----------------------------------------------------------------------------
# Pure-JAX reference (for verification)
# ----------------------------------------------------------------------------
def temporal_shift_ref(x, n_segment, n_div):
    nt, c, h, w = x.shape
    n_batch = nt // n_segment
    fold = c // n_div
    x5 = x.reshape(n_batch, n_segment, c, h, w)
    out = jnp.zeros_like(x5)
    out = out.at[:, :-1, :fold].set(x5[:, 1:, :fold])
    out = out.at[:, 1:, fold:2 * fold].set(x5[:, :-1, fold:2 * fold])
    out = out.at[:, :, 2 * fold:].set(x5[:, :, 2 * fold:])
    return out.reshape(nt, c, h, w)


def conv1x1_ref(x, weight, bias):
    # weight: (C_in, C_out)
    y = jnp.einsum("nchw,co->nohw", x, weight,
                   precision=jax.lax.Precision.HIGHEST)
    return y + bias[None, :, None, None]


if __name__ == "__main__":
    n_batch, n_segment, C, H, W = 2, 8, 128, 16, 16
    n_div = 8
    num_blocks = 2
    nt = n_batch * n_segment

    key = jax.random.PRNGKey(0)
    keys = jax.random.split(key, 1 + 2 * num_blocks)
    x = jax.random.normal(keys[0], (nt, C, H, W), dtype=jnp.float32)

    block_params = []
    for i in range(num_blocks):
        wgt = jax.random.normal(keys[1 + 2 * i], (C, C),
                                dtype=jnp.float32) * (1.0 / (C ** 0.5))
        b = jax.random.normal(keys[2 + 2 * i], (C,), dtype=jnp.float32) * 0.1
        block_params.append((wgt, b))

    module = MakeBlockTemporalPallas(block_params, this_segment=n_segment,
                                     n_div=n_div, second_segments=2)

    # Labeled path (T = n_segment = 8).
    out = jax.block_until_ready(module(x, unlabeled=False))
    ref = x
    for wgt, b in block_params:
        ref = conv1x1_ref(temporal_shift_ref(ref, n_segment, n_div), wgt, b)
    assert out.shape == (nt, C, H, W), out.shape
    assert jnp.allclose(out, ref, atol=2e-3, rtol=2e-3), "labeled mismatch vs reference"

    # Unlabeled path (T = second_segments = 2) exercises the short-sequence edge.
    out_u = jax.block_until_ready(module(x, unlabeled=True))
    ref_u = x
    for wgt, b in block_params:
        ref_u = conv1x1_ref(temporal_shift_ref(ref_u, 2, n_div), wgt, b)
    assert jnp.allclose(out_u, ref_u, atol=2e-3, rtol=2e-3), "unlabeled mismatch vs reference"

    print("KERNEL_OK")
</pallas_src>

<mosaic_0001>
module attributes {stable_mosaic.version = 11 : i64} {
  func.func @_fused_stage_kernel(%arg0: i32, %arg1: i32, %arg2: memref<1x8x256x128xf32, #tpu.memory_space<vmem>>, %arg3: memref<2x128x128xf32, #tpu.memory_space<vmem>>, %arg4: memref<2x1x128xf32, #tpu.memory_space<vmem>>, %arg5: memref<1x8x256x128xf32, #tpu.memory_space<vmem>>, %arg6: memref<8x256x128xf32, #tpu.memory_space<vmem>>, %arg7: memref<8x256x128xf32, #tpu.memory_space<vmem>>) attributes {dimension_semantics = [#tpu.dimension_semantics<parallel>, #tpu.dimension_semantics<parallel>], iteration_bounds = array<i64: 2, 1>, scalar_prefetch = 0 : i64, scratch_operands = 2 : i64, tpu.core_type = #tpu.core_type<tc>, window_params = [{transform_indices = @transform_0, window_bounds = array<i64: 1, 8, 256, 128>}, {pipeline_mode = #tpu.pipeline_mode<synchronous>, transform_indices = @transform_1, window_bounds = array<i64: 2, 128, 128>}, {pipeline_mode = #tpu.pipeline_mode<synchronous>, transform_indices = @transform_2, window_bounds = array<i64: 2, 1, 128>}, {transform_indices = @transform_3, window_bounds = array<i64: 1, 8, 256, 128>}]} {
    %0 = tpu.iota {dimensions = array<i32: 1>} : vector<1x128xi32>
    %c16_i32 = arith.constant 16 : i32
    %1 = vector.broadcast %c16_i32 : i32 to vector<1x128xi32>
    %2 = arith.cmpi slt, %0, %1 : vector<1x128xi32>
    %c16_i32_0 = arith.constant 16 : i32
    %3 = vector.broadcast %c16_i32_0 : i32 to vector<1x128xi32>
    %4 = arith.cmpi sge, %0, %3 : vector<1x128xi32>
    %c32_i32 = arith.constant 32 : i32
    %5 = vector.broadcast %c32_i32 : i32 to vector<1x128xi32>
    %6 = arith.cmpi slt, %0, %5 : vector<1x128xi32>
    %7 = arith.andi %4, %6 : vector<1x128xi1>
    %c0 = arith.constant 0 : index
    %c0_1 = arith.constant 0 : index
    %c0_2 = arith.constant 0 : index
    %c0_3 = arith.constant 0 : index
    %8 = vector.load %arg2[%c0, %c0_1, %c0_2, %c0_3] : memref<1x8x256x128xf32, #tpu.memory_space<vmem>>, vector<1x1x256x128xf32>
    %9 = vector.shape_cast %8 : vector<1x1x256x128xf32> to vector<256x128xf32>
    %cst = arith.constant 0.000000e+00 : f32
    %10 = vector.shape_cast %7 : vector<1x128xi1> to vector<1x128xi1>
    %11 = vector.broadcast %10 : vector<1x128xi1> to vector<256x128xi1>
    %12 = vector.broadcast %cst : f32 to vector<256x128xf32>
    %13 = arith.select %11, %12, %9 : vector<256x128xi1>, vector<256x128xf32>
    %c0_4 = arith.constant 0 : index
    %c1 = arith.constant 1 : index
    %c0_5 = arith.constant 0 : index
    %c0_6 = arith.constant 0 : index
    %14 = vector.load %arg2[%c0_4, %c1, %c0_5, %c0_6] : memref<1x8x256x128xf32, #tpu.memory_space<vmem>>, vector<1x1x256x128xf32>
    %15 = vector.shape_cast %14 : vector<1x1x256x128xf32> to vector<256x128xf32>
    %16 = vector.shape_cast %2 : vector<1x128xi1> to vector<1x128xi1>
    %17 = vector.broadcast %16 : vector<1x128xi1> to vector<256x128xi1>
    %18 = arith.select %17, %15, %13 : vector<256x128xi1>, vector<256x128xf32>
    %c0_7 = arith.constant 0 : index
    %c0_8 = arith.constant 0 : index
    %c0_9 = arith.constant 0 : index
    %19 = vector.load %arg7[%c0_7, %c0_8, %c0_9] : memref<8x256x128xf32, #tpu.memory_space<vmem>>, vector<1x256x128xf32>
    %20 = vector.shape_cast %19 : vector<1x256x128xf32> to vector<256x128xf32>
    %21 = vector.shape_cast %18 : vector<256x128xf32> to vector<1x256x128xf32>
    tpu.vector_store %arg7[%c0_7, %c0_8, %c0_9], %21 {strides = array<i32>} : memref<8x256x128xf32, #tpu.memory_space<vmem>>, vector<1x256x128xf32>,
    %c0_10 = arith.constant 0 : index
    %c1_11 = arith.constant 1 : index
    %c0_12 = arith.constant 0 : index
    %c0_13 = arith.constant 0 : index
    %22 = vector.load %arg2[%c0_10, %c1_11, %c0_12, %c0_13] : memref<1x8x256x128xf32, #tpu.memory_space<vmem>>, vector<1x1x256x128xf32>
    %23 = vector.shape_cast %22 : vector<1x1x256x128xf32> to vector<256x128xf32>
    %c0_14 = arith.constant 0 : index
    %c0_15 = arith.constant 0 : index
    %c0_16 = arith.constant 0 : index
    %c0_17 = arith.constant 0 : index
    %24 = vector.load %arg2[%c0_14, %c0_15, %c0_16, %c0_17] : memref<1x8x256x128xf32, #tpu.memory_space<vmem>>, vector<1x1x256x128xf32>
    %25 = vector.shape_cast %24 : vector<1x1x256x128xf32> to vector<256x128xf32>
    %26 = vector.shape_cast %7 : vector<1x128xi1> to vector<1x128xi1>
    %27 = vector.broadcast %26 : vector<1x128xi1> to vector<256x128xi1>
    %28 = arith.select %27, %25, %23 : vector<256x128xi1>, vector<256x128xf32>
    %c0_18 = arith.constant 0 : index
    %c2 = arith.constant 2 : index
    %c0_19 = arith.constant 0 : index
    %c0_20 = arith.constant 0 : index
    %29 = vector.load %arg2[%c0_18, %c2, %c0_19, %c0_20] : memref<1x8x256x128xf32, #tpu.memory_space<vmem>>, vector<1x1x256x128xf32>
    %30 = vector.shape_cast %29 : vector<1x1x256x128xf32> to vector<256x128xf32>
    %31 = vector.shape_cast %2 : vector<1x128xi1> to vector<1x128xi1>
    %32 = vector.broadcast %31 : vector<1x128xi1> to vector<256x128xi1>
    %33 = arith.select %32, %30, %28 : vector<256x128xi1>, vector<256x128xf32>
    %c1_21 = arith.constant 1 : index
    %c0_22 = arith.constant 0 : index
    %c0_23 = arith.constant 0 : index
    %34 = vector.load %arg7[%c1_21, %c0_22, %c0_23] : memref<8x256x128xf32, #tpu.memory_space<vmem>>, vector<1x256x128xf32>
    %35 = vector.shape_cast %34 : vector<1x256x128xf32> to vector<256x128xf32>
    %36 = vector.shape_cast %33 : vector<256x128xf32> to vector<1x256x128xf32>
    tpu.vector_store %arg7[%c1_21, %c0_22, %c0_23], %36 {strides = array<i32>} : memref<8x256x128xf32, #tpu.memory_space<vmem>>, vector<1x256x128xf32>,
    %c0_24 = arith.constant 0 : index
    %c2_25 = arith.constant 2 : index
    %c0_26 = arith.constant 0 : index
    %c0_27 = arith.constant 0 : index
    %37 = vector.load %arg2[%c0_24, %c2_25, %c0_26, %c0_27] : memref<1x8x256x128xf32, #tpu.memory_space<vmem>>, vector<1x1x256x128xf32>
    %38 = vector.shape_cast %37 : vector<1x1x256x128xf32> to vector<256x128xf32>
    %c0_28 = arith.constant 0 : index
    %c1_29 = arith.constant 1 : index
    %c0_30 = arith.constant 0 : index
    %c0_31 = arith.constant 0 : index
    %39 = vector.load %arg2[%c0_28, %c1_29, %c0_30, %c0_31] : memref<1x8x256x128xf32, #tpu.memory_space<vmem>>, vector<1x1x256x128xf32>
    %40 = vector.shape_cast %39 : vector<1x1x256x128xf32> to vector<256x128xf32>
    %41 = vector.shape_cast %7 : vector<1x128xi1> to vector<1x128xi1>
    %42 = vector.broadcast %41 : vector<1x128xi1> to vector<256x128xi1>
    %43 = arith.select %42, %40, %38 : vector<256x128xi1>, vector<256x128xf32>
    %c0_32 = arith.constant 0 : index
    %c3 = arith.constant 3 : index
    %c0_33 = arith.constant 0 : index
    %c0_34 = arith.constant 0 : index
    %44 = vector.load %arg2[%c0_32, %c3, %c0_33, %c0_34] : memref<1x8x256x128xf32, #tpu.memory_space<vmem>>, vector<1x1x256x128xf32>
    %45 = vector.shape_cast %44 : vector<1x1x256x128xf32> to vector<256x128xf32>
    %46 = vector.shape_cast %2 : vector<1x128xi1> to vector<1x128xi1>
    %47 = vector.broadcast %46 : vector<1x128xi1> to vector<256x128xi1>
    %48 = arith.select %47, %45, %43 : vector<256x128xi1>, vector<256x128xf32>
    %c2_35 = arith.constant 2 : index
    %c0_36 = arith.constant 0 : index
    %c0_37 = arith.constant 0 : index
    %49 = vector.load %arg7[%c2_35, %c0_36, %c0_37] : memref<8x256x128xf32, #tpu.memory_space<vmem>>, vector<1x256x128xf32>
    %50 = vector.shape_cast %49 : vector<1x256x128xf32> to vector<256x128xf32>
    %51 = vector.shape_cast %48 : vector<256x128xf32> to vector<1x256x128xf32>
    tpu.vector_store %arg7[%c2_35, %c0_36, %c0_37], %51 {strides = array<i32>} : memref<8x256x128xf32, #tpu.memory_space<vmem>>, vector<1x256x128xf32>,
    %c0_38 = arith.constant 0 : index
    %c3_39 = arith.constant 3 : index
    %c0_40 = arith.constant 0 : index
    %c0_41 = arith.constant 0 : index
    %52 = vector.load %arg2[%c0_38, %c3_39, %c0_40, %c0_41] : memref<1x8x256x128xf32, #tpu.memory_space<vmem>>, vector<1x1x256x128xf32>
    %53 = vector.shape_cast %52 : vector<1x1x256x128xf32> to vector<256x128xf32>
    %c0_42 = arith.constant 0 : index
    %c2_43 = arith.constant 2 : index
    %c0_44 = arith.constant 0 : index
    %c0_45 = arith.constant 0 : index
    %54 = vector.load %arg2[%c0_42, %c2_43, %c0_44, %c0_45] : memref<1x8x256x128xf32, #tpu.memory_space<vmem>>, vector<1x1x256x128xf32>
    %55 = vector.shape_cast %54 : vector<1x1x256x128xf32> to vector<256x128xf32>
    %56 = vector.shape_cast %7 : vector<1x128xi1> to vector<1x128xi1>
    %57 = vector.broadcast %56 : vector<1x128xi1> to vector<256x128xi1>
    %58 = arith.select %57, %55, %53 : vector<256x128xi1>, vector<256x128xf32>
    %c0_46 = arith.constant 0 : index
    %c4 = arith.constant 4 : index
    %c0_47 = arith.constant 0 : index
    %c0_48 = arith.constant 0 : index
    %59 = vector.load %arg2[%c0_46, %c4, %c0_47, %c0_48] : memref<1x8x256x128xf32, #tpu.memory_space<vmem>>, vector<1x1x256x128xf32>
    %60 = vector.shape_cast %59 : vector<1x1x256x128xf32> to vector<256x128xf32>
    %61 = vector.shape_cast %2 : vector<1x128xi1> to vector<1x128xi1>
    %62 = vector.broadcast %61 : vector<1x128xi1> to vector<256x128xi1>
    %63 = arith.select %62, %60, %58 : vector<256x128xi1>, vector<256x128xf32>
    %c3_49 = arith.constant 3 : index
    %c0_50 = arith.constant 0 : index
    %c0_51 = arith.constant 0 : index
    %64 = vector.load %arg7[%c3_49, %c0_50, %c0_51] : memref<8x256x128xf32, #tpu.memory_space<vmem>>, vector<1x256x128xf32>
    %65 = vector.shape_cast %64 : vector<1x256x128xf32> to vector<256x128xf32>
    %66 = vector.shape_cast %63 : vector<256x128xf32> to vector<1x256x128xf32>
    tpu.vector_store %arg7[%c3_49, %c0_50, %c0_51], %66 {strides = array<i32>} : memref<8x256x128xf32, #tpu.memory_space<vmem>>, vector<1x256x128xf32>,
    %c0_52 = arith.constant 0 : index
    %c4_53 = arith.constant 4 : index
    %c0_54 = arith.constant 0 : index
    %c0_55 = arith.constant 0 : index
    %67 = vector.load %arg2[%c0_52, %c4_53, %c0_54, %c0_55] : memref<1x8x256x128xf32, #tpu.memory_space<vmem>>, vector<1x1x256x128xf32>
    %68 = vector.shape_cast %67 : vector<1x1x256x128xf32> to vector<256x128xf32>
    %c0_56 = arith.constant 0 : index
    %c3_57 = arith.constant 3 : index
    %c0_58 = arith.constant 0 : index
    %c0_59 = arith.constant 0 : index
    %69 = vector.load %arg2[%c0_56, %c3_57, %c0_58, %c0_59] : memref<1x8x256x128xf32, #tpu.memory_space<vmem>>, vector<1x1x256x128xf32>
    %70 = vector.shape_cast %69 : vector<1x1x256x128xf32> to vector<256x128xf32>
    %71 = vector.shape_cast %7 : vector<1x128xi1> to vector<1x128xi1>
    %72 = vector.broadcast %71 : vector<1x128xi1> to vector<256x128xi1>
    %73 = arith.select %72, %70, %68 : vector<256x128xi1>, vector<256x128xf32>
    %c0_60 = arith.constant 0 : index
    %c5 = arith.constant 5 : index
    %c0_61 = arith.constant 0 : index
    %c0_62 = arith.constant 0 : index
    %74 = vector.load %arg2[%c0_60, %c5, %c0_61, %c0_62] : memref<1x8x256x128xf32, #tpu.memory_space<vmem>>, vector<1x1x256x128xf32>
    %75 = vector.shape_cast %74 : vector<1x1x256x128xf32> to vector<256x128xf32>
    %76 = vector.shape_cast %2 : vector<1x128xi1> to vector<1x128xi1>
    %77 = vector.broadcast %76 : vector<1x128xi1> to vector<256x128xi1>
    %78 = arith.select %77, %75, %73 : vector<256x128xi1>, vector<256x128xf32>
    %c4_63 = arith.constant 4 : index
    %c0_64 = arith.constant 0 : index
    %c0_65 = arith.constant 0 : index
    %79 = vector.load %arg7[%c4_63, %c0_64, %c0_65] : memref<8x256x128xf32, #tpu.memory_space<vmem>>, vector<1x256x128xf32>
    %80 = vector.shape_cast %79 : vector<1x256x128xf32> to vector<256x128xf32>
    %81 = vector.shape_cast %78 : vector<256x128xf32> to vector<1x256x128xf32>
    tpu.vector_store %arg7[%c4_63, %c0_64, %c0_65], %81 {strides = array<i32>} : memref<8x256x128xf32, #tpu.memory_space<vmem>>, vector<1x256x128xf32>,
    %c0_66 = arith.constant 0 : index
    %c5_67 = arith.constant 5 : index
    %c0_68 = arith.constant 0 : index
    %c0_69 = arith.constant 0 : index
    %82 = vector.load %arg2[%c0_66, %c5_67, %c0_68, %c0_69] : memref<1x8x256x128xf32, #tpu.memory_space<vmem>>, vector<1x1x256x128xf32>
    %83 = vector.shape_cast %82 : vector<1x1x256x128xf32> to vector<256x128xf32>
    %c0_70 = arith.constant 0 : index
    %c4_71 = arith.constant 4 : index
    %c0_72 = arith.constant 0 : index
    %c0_73 = arith.constant 0 : index
    %84 = vector.load %arg2[%c0_70, %c4_71, %c0_72, %c0_73] : memref<1x8x256x128xf32, #tpu.memory_space<vmem>>, vector<1x1x256x128xf32>
    %85 = vector.shape_cast %84 : vector<1x1x256x128xf32> to vector<256x128xf32>
    %86 = vector.shape_cast %7 : vector<1x128xi1> to vector<1x128xi1>
    %87 = vector.broadcast %86 : vector<1x128xi1> to vector<256x128xi1>
    %88 = arith.select %87, %85, %83 : vector<256x128xi1>, vector<256x128xf32>
    %c0_74 = arith.constant 0 : index
    %c6 = arith.constant 6 : index
    %c0_75 = arith.constant 0 : index
    %c0_76 = arith.constant 0 : index
    %89 = vector.load %arg2[%c0_74, %c6, %c0_75, %c0_76] : memref<1x8x256x128xf32, #tpu.memory_space<vmem>>, vector<1x1x256x128xf32>
    %90 = vector.shape_cast %89 : vector<1x1x256x128xf32> to vector<256x128xf32>
    %91 = vector.shape_cast %2 : vector<1x128xi1> to vector<1x128xi1>
    %92 = vector.broadcast %91 : vector<1x128xi1> to vector<256x128xi1>
    %93 = arith.select %92, %90, %88 : vector<256x128xi1>, vector<256x128xf32>
    %c5_77 = arith.constant 5 : index
    %c0_78 = arith.constant 0 : index
    %c0_79 = arith.constant 0 : index
    %94 = vector.load %arg7[%c5_77, %c0_78, %c0_79] : memref<8x256x128xf32, #tpu.memory_space<vmem>>, vector<1x256x128xf32>
    %95 = vector.shape_cast %94 : vector<1x256x128xf32> to vector<256x128xf32>
    %96 = vector.shape_cast %93 : vector<256x128xf32> to vector<1x256x128xf32>
    tpu.vector_store %arg7[%c5_77, %c0_78, %c0_79], %96 {strides = array<i32>} : memref<8x256x128xf32, #tpu.memory_space<vmem>>, vector<1x256x128xf32>,
    %c0_80 = arith.constant 0 : index
    %c6_81 = arith.constant 6 : index
    %c0_82 = arith.constant 0 : index
    %c0_83 = arith.constant 0 : index
    %97 = vector.load %arg2[%c0_80, %c6_81, %c0_82, %c0_83] : memref<1x8x256x128xf32, #tpu.memory_space<vmem>>, vector<1x1x256x128xf32>
    %98 = vector.shape_cast %97 : vector<1x1x256x128xf32> to vector<256x128xf32>
    %c0_84 = arith.constant 0 : index
    %c5_85 = arith.constant 5 : index
    %c0_86 = arith.constant 0 : index
    %c0_87 = arith.constant 0 : index
    %99 = vector.load %arg2[%c0_84, %c5_85, %c0_86, %c0_87] : memref<1x8x256x128xf32, #tpu.memory_space<vmem>>, vector<1x1x256x128xf32>
    %100 = vector.shape_cast %99 : vector<1x1x256x128xf32> to vector<256x128xf32>
    %101 = vector.shape_cast %7 : vector<1x128xi1> to vector<1x128xi1>
    %102 = vector.broadcast %101 : vector<1x128xi1> to vector<256x128xi1>
    %103 = arith.select %102, %100, %98 : vector<256x128xi1>, vector<256x128xf32>
    %c0_88 = arith.constant 0 : index
    %c7 = arith.constant 7 : index
    %c0_89 = arith.constant 0 : index
    %c0_90 = arith.constant 0 : index
    %104 = vector.load %arg2[%c0_88, %c7, %c0_89, %c0_90] : memref<1x8x256x128xf32, #tpu.memory_space<vmem>>, vector<1x1x256x128xf32>
    %105 = vector.shape_cast %104 : vector<1x1x256x128xf32> to vector<256x128xf32>
    %106 = vector.shape_cast %2 : vector<1x128xi1> to vector<1x128xi1>
    %107 = vector.broadcast %106 : vector<1x128xi1> to vector<256x128xi1>
    %108 = arith.select %107, %105, %103 : vector<256x128xi1>, vector<256x128xf32>
    %c6_91 = arith.constant 6 : index
    %c0_92 = arith.constant 0 : index
    %c0_93 = arith.constant 0 : index
    %109 = vector.load %arg7[%c6_91, %c0_92, %c0_93] : memref<8x256x128xf32, #tpu.memory_space<vmem>>, vector<1x256x128xf32>
    %110 = vector.shape_cast %109 : vector<1x256x128xf32> to vector<256x128xf32>
    %111 = vector.shape_cast %108 : vector<256x128xf32> to vector<1x256x128xf32>
    tpu.vector_store %arg7[%c6_91, %c0_92, %c0_93], %111 {strides = array<i32>} : memref<8x256x128xf32, #tpu.memory_space<vmem>>, vector<1x256x128xf32>,
    %c0_94 = arith.constant 0 : index
    %c7_95 = arith.constant 7 : index
    %c0_96 = arith.constant 0 : index
    %c0_97 = arith.constant 0 : index
    %112 = vector.load %arg2[%c0_94, %c7_95, %c0_96, %c0_97] : memref<1x8x256x128xf32, #tpu.memory_space<vmem>>, vector<1x1x256x128xf32>
    %113 = vector.shape_cast %112 : vector<1x1x256x128xf32> to vector<256x128xf32>
    %c0_98 = arith.constant 0 : index
    %c6_99 = arith.constant 6 : index
    %c0_100 = arith.constant 0 : index
    %c0_101 = arith.constant 0 : index
    %114 = vector.load %arg2[%c0_98, %c6_99, %c0_100, %c0_101] : memref<1x8x256x128xf32, #tpu.memory_space<vmem>>, vector<1x1x256x128xf32>
    %115 = vector.shape_cast %114 : vector<1x1x256x128xf32> to vector<256x128xf32>
    %116 = vector.shape_cast %7 : vector<1x128xi1> to vector<1x128xi1>
    %117 = vector.broadcast %116 : vector<1x128xi1> to vector<256x128xi1>
    %118 = arith.select %117, %115, %113 : vector<256x128xi1>, vector<256x128xf32>
    %cst_102 = arith.constant 0.000000e+00 : f32
    %119 = vector.shape_cast %2 : vector<1x128xi1> to vector<1x128xi1>
    %120 = vector.broadcast %119 : vector<1x128xi1> to vector<256x128xi1>
    %121 = vector.broadcast %cst_102 : f32 to vector<256x128xf32>
    %122 = arith.select %120, %121, %118 : vector<256x128xi1>, vector<256x128xf32>
    %c7_103 = arith.constant 7 : index
    %c0_104 = arith.constant 0 : index
    %c0_105 = arith.constant 0 : index
    %123 = vector.load %arg7[%c7_103, %c0_104, %c0_105] : memref<8x256x128xf32, #tpu.memory_space<vmem>>, vector<1x256x128xf32>
    %124 = vector.shape_cast %123 : vector<1x256x128xf32> to vector<256x128xf32>
    %125 = vector.shape_cast %122 : vector<256x128xf32> to vector<1x256x128xf32>
    tpu.vector_store %arg7[%c7_103, %c0_104, %c0_105], %125 {strides = array<i32>} : memref<8x256x128xf32, #tpu.memory_space<vmem>>, vector<1x256x128xf32>,
    %c0_106 = arith.constant 0 : index
    %c0_107 = arith.constant 0 : index
    %c0_108 = arith.constant 0 : index
    %126 = vector.load %arg7[%c0_106, %c0_107, %c0_108] : memref<8x256x128xf32, #tpu.memory_space<vmem>>, vector<8x256x128xf32>
    %127 = vector.shape_cast %126 : vector<8x256x128xf32> to vector<2048x128xf32>
    %c0_109 = arith.constant 0 : index
    %c0_110 = arith.constant 0 : index
    %c0_111 = arith.constant 0 : index
    %128 = vector.load %arg3[%c0_109, %c0_110, %c0_111] : memref<2x128x128xf32, #tpu.memory_space<vmem>>, vector<1x128x128xf32>
    %129 = vector.shape_cast %128 : vector<1x128x128xf32> to vector<128x128xf32>
    %cst_112 = arith.constant dense<0.000000e+00> : vector<2048x128xf32>
    %130 = tpu.matmul %127, %129, %cst_112 {dimension_numbers = #tpu.dot_dimension_numbers<[1], [0], [0], [1], [0, 0, 1, 1], [], []>} : vector<2048x128xf32>, vector<128x128xf32>, vector<2048x128xf32> -> vector<2048x128xf32>
    %c0_113 = arith.constant 0 : index
    %c0_114 = arith.constant 0 : index
    %c0_115 = arith.constant 0 : index
    %131 = vector.load %arg4[%c0_113, %c0_114, %c0_115] : memref<2x1x128xf32, #tpu.memory_space<vmem>>, vector<1x1x128xf32>
    %132 = vector.shape_cast %131 : vector<1x1x128xf32> to vector<1x128xf32>
    %133 = vector.broadcast %132 : vector<1x128xf32> to vector<2048x128xf32>
    %134 = arith.addf %130, %133 : vector<2048x128xf32>
    %135 = vector.shape_cast %134 : vector<2048x128xf32> to vector<8x256x128xf32>
    %c0_116 = arith.constant 0 : index
    %c0_117 = arith.constant 0 : index
    %c0_118 = arith.constant 0 : index
    %136 = vector.load %arg6[%c0_116, %c0_117, %c0_118] : memref<8x256x128xf32, #tpu.memory_space<vmem>>, vector<8x256x128xf32>
    tpu.vector_store %arg6[%c0_116, %c0_117, %c0_118], %135 {strides = array<i32>} : memref<8x256x128xf32, #tpu.memory_space<vmem>>, vector<8x256x128xf32>,
    %c0_119 = arith.constant 0 : index
    %c0_120 = arith.constant 0 : index
    %c0_121 = arith.constant 0 : index
    %137 = vector.load %arg6[%c0_119, %c0_120, %c0_121] : memref<8x256x128xf32, #tpu.memory_space<vmem>>, vector<1x256x128xf32>
    %138 = vector.shape_cast %137 : vector<1x256x128xf32> to vector<256x128xf32>
    %cst_122 = arith.constant 0.000000e+00 : f32
    %139 = vector.shape_cast %7 : vector<1x128xi1> to vector<1x128xi1>
    %140 = vector.broadcast %139 : vector<1x128xi1> to vector<256x128xi1>
    %141 = vector.broadcast %cst_122 : f32 to vector<256x128xf32>
    %142 = arith.select %140, %141, %138 : vector<256x128xi1>, vector<256x128xf32>
    %c1_123 = arith.constant 1 : index
    %c0_124 = arith.constant 0 : index
    %c0_125 = arith.constant 0 : index
    %143 = vector.load %arg6[%c1_123, %c0_124, %c0_125] : memref<8x256x128xf32, #tpu.memory_space<vmem>>, vector<1x256x128xf32>
    %144 = vector.shape_cast %143 : vector<1x256x128xf32> to vector<256x128xf32>
    %145 = vector.shape_cast %2 : vector<1x128xi1> to vector<1x128xi1>
    %146 = vector.broadcast %145 : vector<1x128xi1> to vector<256x128xi1>
    %147 = arith.select %146, %144, %142 : vector<256x128xi1>, vector<256x128xf32>
    %c0_126 = arith.constant 0 : index
    %c0_127 = arith.constant 0 : index
    %c0_128 = arith.constant 0 : index
    %148 = vector.load %arg7[%c0_126, %c0_127, %c0_128] : memref<8x256x128xf32, #tpu.memory_space<vmem>>, vector<1x256x128xf32>
    %149 = vector.shape_cast %148 : vector<1x256x128xf32> to vector<256x128xf32>
    %150 = vector.shape_cast %147 : vector<256x128xf32> to vector<1x256x128xf32>
    tpu.vector_store %arg7[%c0_126, %c0_127, %c0_128], %150 {strides = array<i32>} : memref<8x256x128xf32, #tpu.memory_space<vmem>>, vector<1x256x128xf32>,
    %c1_129 = arith.constant 1 : index
    %c0_130 = arith.constant 0 : index
    %c0_131 = arith.constant 0 : index
    %151 = vector.load %arg6[%c1_129, %c0_130, %c0_131] : memref<8x256x128xf32, #tpu.memory_space<vmem>>, vector<1x256x128xf32>
    %152 = vector.shape_cast %151 : vector<1x256x128xf32> to vector<256x128xf32>
    %c0_132 = arith.constant 0 : index
    %c0_133 = arith.constant 0 : index
    %c0_134 = arith.constant 0 : index
    %153 = vector.load %arg6[%c0_132, %c0_133, %c0_134] : memref<8x256x128xf32, #tpu.memory_space<vmem>>, vector<1x256x128xf32>
    %154 = vector.shape_cast %153 : vector<1x256x128xf32> to vector<256x128xf32>
    %155 = vector.shape_cast %7 : vector<1x128xi1> to vector<1x128xi1>
    %156 = vector.broadcast %155 : vector<1x128xi1> to vector<256x128xi1>
    %157 = arith.select %156, %154, %152 : vector<256x128xi1>, vector<256x128xf32>
    %c2_135 = arith.constant 2 : index
    %c0_136 = arith.constant 0 : index
    %c0_137 = arith.constant 0 : index
    %158 = vector.load %arg6[%c2_135, %c0_136, %c0_137] : memref<8x256x128xf32, #tpu.memory_space<vmem>>, vector<1x256x128xf32>
    %159 = vector.shape_cast %158 : vector<1x256x128xf32> to vector<256x128xf32>
    %160 = vector.shape_cast %2 : vector<1x128xi1> to vector<1x128xi1>
    %161 = vector.broadcast %160 : vector<1x128xi1> to vector<256x128xi1>
    %162 = arith.select %161, %159, %157 : vector<256x128xi1>, vector<256x128xf32>
    %c1_138 = arith.constant 1 : index
    %c0_139 = arith.constant 0 : index
    %c0_140 = arith.constant 0 : index
    %163 = vector.load %arg7[%c1_138, %c0_139, %c0_140] : memref<8x256x128xf32, #tpu.memory_space<vmem>>, vector<1x256x128xf32>
    %164 = vector.shape_cast %163 : vector<1x256x128xf32> to vector<256x128xf32>
    %165 = vector.shape_cast %162 : vector<256x128xf32> to vector<1x256x128xf32>
    tpu.vector_store %arg7[%c1_138, %c0_139, %c0_140], %165 {strides = array<i32>} : memref<8x256x128xf32, #tpu.memory_space<vmem>>, vector<1x256x128xf32>,
    %c2_141 = arith.constant 2 : index
    %c0_142 = arith.constant 0 : index
    %c0_143 = arith.constant 0 : index
    %166 = vector.load %arg6[%c2_141, %c0_142, %c0_143] : memref<8x256x128xf32, #tpu.memory_space<vmem>>, vector<1x256x128xf32>
    %167 = vector.shape_cast %166 : vector<1x256x128xf32> to vector<256x128xf32>
    %c1_144 = arith.constant 1 : index
    %c0_145 = arith.constant 0 : index
    %c0_146 = arith.constant 0 : index
    %168 = vector.load %arg6[%c1_144, %c0_145, %c0_146] : memref<8x256x128xf32, #tpu.memory_space<vmem>>, vector<1x256x128xf32>
    %169 = vector.shape_cast %168 : vector<1x256x128xf32> to vector<256x128xf32>
    %170 = vector.shape_cast %7 : vector<1x128xi1> to vector<1x128xi1>
    %171 = vector.broadcast %170 : vector<1x128xi1> to vector<256x128xi1>
    %172 = arith.select %171, %169, %167 : vector<256x128xi1>, vector<256x128xf32>
    %c3_147 = arith.constant 3 : index
    %c0_148 = arith.constant 0 : index
    %c0_149 = arith.constant 0 : index
    %173 = vector.load %arg6[%c3_147, %c0_148, %c0_149] : memref<8x256x128xf32, #tpu.memory_space<vmem>>, vector<1x256x128xf32>
    %174 = vector.shape_cast %173 : vector<1x256x128xf32> to vector<256x128xf32>
    %175 = vector.shape_cast %2 : vector<1x128xi1> to vector<1x128xi1>
    %176 = vector.broadcast %175 : vector<1x128xi1> to vector<256x128xi1>
    %177 = arith.select %176, %174, %172 : vector<256x128xi1>, vector<256x128xf32>
    %c2_150 = arith.constant 2 : index
    %c0_151 = arith.constant 0 : index
    %c0_152 = arith.constant 0 : index
    %178 = vector.load %arg7[%c2_150, %c0_151, %c0_152] : memref<8x256x128xf32, #tpu.memory_space<vmem>>, vector<1x256x128xf32>
    %179 = vector.shape_cast %178 : vector<1x256x128xf32> to vector<256x128xf32>
    %180 = vector.shape_cast %177 : vector<256x128xf32> to vector<1x256x128xf32>
    tpu.vector_store %arg7[%c2_150, %c0_151, %c0_152], %180 {strides = array<i32>} : memref<8x256x128xf32, #tpu.memory_space<vmem>>, vector<1x256x128xf32>,
    %c3_153 = arith.constant 3 : index
    %c0_154 = arith.constant 0 : index
    %c0_155 = arith.constant 0 : index
    %181 = vector.load %arg6[%c3_153, %c0_154, %c0_155] : memref<8x256x128xf32, #tpu.memory_space<vmem>>, vector<1x256x128xf32>
    %182 = vector.shape_cast %181 : vector<1x256x128xf32> to vector<256x128xf32>
    %c2_156 = arith.constant 2 : index
    %c0_157 = arith.constant 0 : index
    %c0_158 = arith.constant 0 : index
    %183 = vector.load %arg6[%c2_156, %c0_157, %c0_158] : memref<8x256x128xf32, #tpu.memory_space<vmem>>, vector<1x256x128xf32>
    %184 = vector.shape_cast %183 : vector<1x256x128xf32> to vector<256x128xf32>
    %185 = vector.shape_cast %7 : vector<1x128xi1> to vector<1x128xi1>
    %186 = vector.broadcast %185 : vector<1x128xi1> to vector<256x128xi1>
    %187 = arith.select %186, %184, %182 : vector<256x128xi1>, vector<256x128xf32>
    %c4_159 = arith.constant 4 : index
    %c0_160 = arith.constant 0 : index
    %c0_161 = arith.constant 0 : index
    %188 = vector.load %arg6[%c4_159, %c0_160, %c0_161] : memref<8x256x128xf32, #tpu.memory_space<vmem>>, vector<1x256x128xf32>
    %189 = vector.shape_cast %188 : vector<1x256x128xf32> to vector<256x128xf32>
    %190 = vector.shape_cast %2 : vector<1x128xi1> to vector<1x128xi1>
    %191 = vector.broadcast %190 : vector<1x128xi1> to vector<256x128xi1>
    %192 = arith.select %191, %189, %187 : vector<256x128xi1>, vector<256x128xf32>
    %c3_162 = arith.constant 3 : index
    %c0_163 = arith.constant 0 : index
    %c0_164 = arith.constant 0 : index
    %193 = vector.load %arg7[%c3_162, %c0_163, %c0_164] : memref<8x256x128xf32, #tpu.memory_space<vmem>>, vector<1x256x128xf32>
    %194 = vector.shape_cast %193 : vector<1x256x128xf32> to vector<256x128xf32>
    %195 = vector.shape_cast %192 : vector<256x128xf32> to vector<1x256x128xf32>
    tpu.vector_store %arg7[%c3_162, %c0_163, %c0_164], %195 {strides = array<i32>} : memref<8x256x128xf32, #tpu.memory_space<vmem>>, vector<1x256x128xf32>,
    %c4_165 = arith.constant 4 : index
    %c0_166 = arith.constant 0 : index
    %c0_167 = arith.constant 0 : index
    %196 = vector.load %arg6[%c4_165, %c0_166, %c0_167] : memref<8x256x128xf32, #tpu.memory_space<vmem>>, vector<1x256x128xf32>
    %197 = vector.shape_cast %196 : vector<1x256x128xf32> to vector<256x128xf32>
    %c3_168 = arith.constant 3 : index
    %c0_169 = arith.constant 0 : index
    %c0_170 = arith.constant 0 : index
    %198 = vector.load %arg6[%c3_168, %c0_169, %c0_170] : memref<8x256x128xf32, #tpu.memory_space<vmem>>, vector<1x256x128xf32>
    %199 = vector.shape_cast %198 : vector<1x256x128xf32> to vector<256x128xf32>
    %200 = vector.shape_cast %7 : vector<1x128xi1> to vector<1x128xi1>
    %201 = vector.broadcast %200 : vector<1x128xi1> to vector<256x128xi1>
    %202 = arith.select %201, %199, %197 : vector<256x128xi1>, vector<256x128xf32>
    %c5_171 = arith.constant 5 : index
    %c0_172 = arith.constant 0 : index
    %c0_173 = arith.constant 0 : index
    %203 = vector.load %arg6[%c5_171, %c0_172, %c0_173] : memref<8x256x128xf32, #tpu.memory_space<vmem>>, vector<1x256x128xf32>
    %204 = vector.shape_cast %203 : vector<1x256x128xf32> to vector<256x128xf32>
    %205 = vector.shape_cast %2 : vector<1x128xi1> to vector<1x128xi1>
    %206 = vector.broadcast %205 : vector<1x128xi1> to vector<256x128xi1>
    %207 = arith.select %206, %204, %202 : vector<256x128xi1>, vector<256x128xf32>
    %c4_174 = arith.constant 4 : index
    %c0_175 = arith.constant 0 : index
    %c0_176 = arith.constant 0 : index
    %208 = vector.load %arg7[%c4_174, %c0_175, %c0_176] : memref<8x256x128xf32, #tpu.memory_space<vmem>>, vector<1x256x128xf32>
    %209 = vector.shape_cast %208 : vector<1x256x128xf32> to vector<256x128xf32>
    %210 = vector.shape_cast %207 : vector<256x128xf32> to vector<1x256x128xf32>
    tpu.vector_store %arg7[%c4_174, %c0_175, %c0_176], %210 {strides = array<i32>} : memref<8x256x128xf32, #tpu.memory_space<vmem>>, vector<1x256x128xf32>,
    %c5_177 = arith.constant 5 : index
    %c0_178 = arith.constant 0 : index
    %c0_179 = arith.constant 0 : index
    %211 = vector.load %arg6[%c5_177, %c0_178, %c0_179] : memref<8x256x128xf32, #tpu.memory_space<vmem>>, vector<1x256x128xf32>
    %212 = vector.shape_cast %211 : vector<1x256x128xf32> to vector<256x128xf32>
    %c4_180 = arith.constant 4 : index
    %c0_181 = arith.constant 0 : index
    %c0_182 = arith.constant 0 : index
    %213 = vector.load %arg6[%c4_180, %c0_181, %c0_182] : memref<8x256x128xf32, #tpu.memory_space<vmem>>, vector<1x256x128xf32>
    %214 = vector.shape_cast %213 : vector<1x256x128xf32> to vector<256x128xf32>
    %215 = vector.shape_cast %7 : vector<1x128xi1> to vector<1x128xi1>
    %216 = vector.broadcast %215 : vector<1x128xi1> to vector<256x128xi1>
    %217 = arith.select %216, %214, %212 : vector<256x128xi1>, vector<256x128xf32>
    %c6_183 = arith.constant 6 : index
    %c0_184 = arith.constant 0 : index
    %c0_185 = arith.constant 0 : index
    %218 = vector.load %arg6[%c6_183, %c0_184, %c0_185] : memref<8x256x128xf32, #tpu.memory_space<vmem>>, vector<1x256x128xf32>
    %219 = vector.shape_cast %218 : vector<1x256x128xf32> to vector<256x128xf32>
    %220 = vector.shape_cast %2 : vector<1x128xi1> to vector<1x128xi1>
    %221 = vector.broadcast %220 : vector<1x128xi1> to vector<256x128xi1>
    %222 = arith.select %221, %219, %217 : vector<256x128xi1>, vector<256x128xf32>
    %c5_186 = arith.constant 5 : index
    %c0_187 = arith.constant 0 : index
    %c0_188 = arith.constant 0 : index
    %223 = vector.load %arg7[%c5_186, %c0_187, %c0_188] : memref<8x256x128xf32, #tpu.memory_space<vmem>>, vector<1x256x128xf32>
    %224 = vector.shape_cast %223 : vector<1x256x128xf32> to vector<256x128xf32>
    %225 = vector.shape_cast %222 : vector<256x128xf32> to vector<1x256x128xf32>
    tpu.vector_store %arg7[%c5_186, %c0_187, %c0_188], %225 {strides = array<i32>} : memref<8x256x128xf32, #tpu.memory_space<vmem>>, vector<1x256x128xf32>,
    %c6_189 = arith.constant 6 : index
    %c0_190 = arith.constant 0 : index
    %c0_191 = arith.constant 0 : index
    %226 = vector.load %arg6[%c6_189, %c0_190, %c0_191] : memref<8x256x128xf32, #tpu.memory_space<vmem>>, vector<1x256x128xf32>
    %227 = vector.shape_cast %226 : vector<1x256x128xf32> to vector<256x128xf32>
    %c5_192 = arith.constant 5 : index
    %c0_193 = arith.constant 0 : index
    %c0_194 = arith.constant 0 : index
    %228 = vector.load %arg6[%c5_192, %c0_193, %c0_194] : memref<8x256x128xf32, #tpu.memory_space<vmem>>, vector<1x256x128xf32>
    %229 = vector.shape_cast %228 : vector<1x256x128xf32> to vector<256x128xf32>
    %230 = vector.shape_cast %7 : vector<1x128xi1> to vector<1x128xi1>
    %231 = vector.broadcast %230 : vector<1x128xi1> to vector<256x128xi1>
    %232 = arith.select %231, %229, %227 : vector<256x128xi1>, vector<256x128xf32>
    %c7_195 = arith.constant 7 : index
    %c0_196 = arith.constant 0 : index
    %c0_197 = arith.constant 0 : index
    %233 = vector.load %arg6[%c7_195, %c0_196, %c0_197] : memref<8x256x128xf32, #tpu.memory_space<vmem>>, vector<1x256x128xf32>
    %234 = vector.shape_cast %233 : vector<1x256x128xf32> to vector<256x128xf32>
    %235 = vector.shape_cast %2 : vector<1x128xi1> to vector<1x128xi1>
    %236 = vector.broadcast %235 : vector<1x128xi1> to vector<256x128xi1>
    %237 = arith.select %236, %234, %232 : vector<256x128xi1>, vector<256x128xf32>
    %c6_198 = arith.constant 6 : index
    %c0_199 = arith.constant 0 : index
    %c0_200 = arith.constant 0 : index
    %238 = vector.load %arg7[%c6_198, %c0_199, %c0_200] : memref<8x256x128xf32, #tpu.memory_space<vmem>>, vector<1x256x128xf32>
    %239 = vector.shape_cast %238 : vector<1x256x128xf32> to vector<256x128xf32>
    %240 = vector.shape_cast %237 : vector<256x128xf32> to vector<1x256x128xf32>
    tpu.vector_store %arg7[%c6_198, %c0_199, %c0_200], %240 {strides = array<i32>} : memref<8x256x128xf32, #tpu.memory_space<vmem>>, vector<1x256x128xf32>,
    %c7_201 = arith.constant 7 : index
    %c0_202 = arith.constant 0 : index
    %c0_203 = arith.constant 0 : index
    %241 = vector.load %arg6[%c7_201, %c0_202, %c0_203] : memref<8x256x128xf32, #tpu.memory_space<vmem>>, vector<1x256x128xf32>
    %242 = vector.shape_cast %241 : vector<1x256x128xf32> to vector<256x128xf32>
    %c6_204 = arith.constant 6 : index
    %c0_205 = arith.constant 0 : index
    %c0_206 = arith.constant 0 : index
    %243 = vector.load %arg6[%c6_204, %c0_205, %c0_206] : memref<8x256x128xf32, #tpu.memory_space<vmem>>, vector<1x256x128xf32>
    %244 = vector.shape_cast %243 : vector<1x256x128xf32> to vector<256x128xf32>
    %245 = vector.shape_cast %7 : vector<1x128xi1> to vector<1x128xi1>
    %246 = vector.broadcast %245 : vector<1x128xi1> to vector<256x128xi1>
    %247 = arith.select %246, %244, %242 : vector<256x128xi1>, vector<256x128xf32>
    %cst_207 = arith.constant 0.000000e+00 : f32
    %248 = vector.shape_cast %2 : vector<1x128xi1> to vector<1x128xi1>
    %249 = vector.broadcast %248 : vector<1x128xi1> to vector<256x128xi1>
    %250 = vector.broadcast %cst_207 : f32 to vector<256x128xf32>
    %251 = arith.select %249, %250, %247 : vector<256x128xi1>, vector<256x128xf32>
    %c7_208 = arith.constant 7 : index
    %c0_209 = arith.constant 0 : index
    %c0_210 = arith.constant 0 : index
    %252 = vector.load %arg7[%c7_208, %c0_209, %c0_210] : memref<8x256x128xf32, #tpu.memory_space<vmem>>, vector<1x256x128xf32>
    %253 = vector.shape_cast %252 : vector<1x256x128xf32> to vector<256x128xf32>
    %254 = vector.shape_cast %251 : vector<256x128xf32> to vector<1x256x128xf32>
    tpu.vector_store %arg7[%c7_208, %c0_209, %c0_210], %254 {strides = array<i32>} : memref<8x256x128xf32, #tpu.memory_space<vmem>>, vector<1x256x128xf32>,
    %c0_211 = arith.constant 0 : index
    %c0_212 = arith.constant 0 : index
    %c0_213 = arith.constant 0 : index
    %255 = vector.load %arg7[%c0_211, %c0_212, %c0_213] : memref<8x256x128xf32, #tpu.memory_space<vmem>>, vector<8x256x128xf32>
    %256 = vector.shape_cast %255 : vector<8x256x128xf32> to vector<2048x128xf32>
    %c1_214 = arith.constant 1 : index
    %c0_215 = arith.constant 0 : index
    %c0_216 = arith.constant 0 : index
    %257 = vector.load %arg3[%c1_214, %c0_215, %c0_216] : memref<2x128x128xf32, #tpu.memory_space<vmem>>, vector<1x128x128xf32>
    %258 = vector.shape_cast %257 : vector<1x128x128xf32> to vector<128x128xf32>
    %cst_217 = arith.constant dense<0.000000e+00> : vector<2048x128xf32>
    %259 = tpu.matmul %256, %258, %cst_217 {dimension_numbers = #tpu.dot_dimension_numbers<[1], [0], [0], [1], [0, 0, 1, 1], [], []>} : vector<2048x128xf32>, vector<128x128xf32>, vector<2048x128xf32> -> vector<2048x128xf32>
    %c1_218 = arith.constant 1 : index
    %c0_219 = arith.constant 0 : index
    %c0_220 = arith.constant 0 : index
    %260 = vector.load %arg4[%c1_218, %c0_219, %c0_220] : memref<2x1x128xf32, #tpu.memory_space<vmem>>, vector<1x1x128xf32>
    %261 = vector.shape_cast %260 : vector<1x1x128xf32> to vector<1x128xf32>
    %262 = vector.broadcast %261 : vector<1x128xf32> to vector<2048x128xf32>
    %263 = arith.addf %259, %262 : vector<2048x128xf32>
    %264 = vector.shape_cast %263 : vector<2048x128xf32> to vector<8x256x128xf32>
    %c0_221 = arith.constant 0 : index
    %c0_222 = arith.constant 0 : index
    %c0_223 = arith.constant 0 : index
    %c0_224 = arith.constant 0 : index
    %265 = vector.load %arg5[%c0_221, %c0_222, %c0_223, %c0_224] : memref<1x8x256x128xf32, #tpu.memory_space<vmem>>, vector<1x8x256x128xf32>
    %266 = vector.shape_cast %265 : vector<1x8x256x128xf32> to vector<8x256x128xf32>
    %267 = vector.shape_cast %264 : vector<8x256x128xf32> to vector<1x8x256x128xf32>
    tpu.vector_store %arg5[%c0_221, %c0_222, %c0_223, %c0_224], %267 {strides = array<i32>} : memref<1x8x256x128xf32, #tpu.memory_space<vmem>>, vector<1x8x256x128xf32>,
    return
  }
  func.func @transform_0(%arg0: i32, %arg1: i32) -> (i32, i32, i32, i32) {
    %c0_i32 = arith.constant 0 : i32
    %c0_i32_0 = arith.constant 0 : i32
    %c0_i32_1 = arith.constant 0 : i32
    return %arg0, %c0_i32, %arg1, %c0_i32_0 : i32, i32, i32, i32
  }
  func.func @transform_1(%arg0: i32, %arg1: i32) -> (i32, i32, i32) {
    %c0_i32 = arith.constant 0 : i32
    %c0_i32_0 = arith.constant 0 : i32
    %c0_i32_1 = arith.constant 0 : i32
    %c0_i32_2 = arith.constant 0 : i32
    return %c0_i32, %c0_i32_0, %c0_i32_1 : i32, i32, i32
  }
  func.func @transform_2(%arg0: i32, %arg1: i32) -> (i32, i32, i32) {
    %c0_i32 = arith.constant 0 : i32
    %c0_i32_0 = arith.constant 0 : i32
    %c0_i32_1 = arith.constant 0 : i32
    %c0_i32_2 = arith.constant 0 : i32
    return %c0_i32, %c0_i32_0, %c0_i32_1 : i32, i32, i32
  }
  func.func @transform_3(%arg0: i32, %arg1: i32) -> (i32, i32, i32, i32) {
    %c0_i32 = arith.constant 0 : i32
    %c0_i32_0 = arith.constant 0 : i32
    %c0_i32_1 = arith.constant 0 : i32
    return %arg0, %c0_i32, %arg1, %c0_i32_0 : i32, i32, i32, i32
  }
}

</mosaic_0001>

<llo_original>
// kernel: tpu_custom_call.1
$region0: #{tpu_custom_call.1}
  #allocation0 [shape = 'u32[]', space=smem, size = 0x4, offset = 0x4, fixed_abs, tag = 'smem constant byte address 0x4 - core index']
  #allocation1 [shape = 'u32[144,128]{1,0:T(1,128)}', space=vmem, size = 0x12000, scoped, tag = 'internal scratch']
  #allocation2 [shape = 'f32[8,256,128]{2,1,0:T(8,128)}', space=vmem, size = 0x100000, scoped, tag = 'scratch operand']
  #allocation3 [shape = 'f32[8,256,128]{2,1,0:T(8,128)}', space=vmem, size = 0x100000, scoped, tag = 'scratch operand']
  %s0 = inlined_call_operand.hbm [shape: f32[2,8,256,128], index: 0, kind: input, shape index: {}]
  %s1 = inlined_call_operand.hbm [shape: f32[2,128,128], index: 1, kind: input, shape index: {}]
  %s2 = inlined_call_operand.hbm [shape: f32[2,1,128], index: 2, kind: input, shape index: {}]
  %s3 = inlined_call_operand.hbm [shape: f32[2,8,256,128], index: 3, kind: output, shape index: {}]
  %s4 = sld [smem:[#allocation0]]
  $region57: #{tpu_custom_call.1} parent=0
    _
  %s6 = ssub.s32 1, %s4
  %s7 = scalar_select 0, %s6, %s4
  $region1: #{tpu_custom_call.1} parent=0
    #allocation4 [shape = 'u8[2097152]{0}', space=vmem, size = 0x200000, scoped, tag = 'input window, operand 0']
    #allocation5 [shape = 's32[2]{0}', space=sflag, size = 0x8, scoped, tag = 'scoped memory for tpu_custom_call.1']
    #allocation6 [shape = 's32[2]{0}', space=sflag, size = 0x8, scoped, tag = 'scoped memory for tpu_custom_call.1']
    #allocation7 [shape = 'u8[131072]{0}', space=vmem, size = 0x20000, scoped, tag = 'input window, operand 1, single buffered']
    #allocation8 [shape = 's32[1]{0}', space=sflag, size = 0x4, scoped, tag = 'scoped memory for tpu_custom_call.1']
    #allocation9 [shape = 'u8[1024]{0}', space=vmem, size = 0x400, scoped, tag = 'input window, operand 2, single buffered']
    #allocation10 [shape = 'u8[2097152]{0}', space=vmem, size = 0x200000, scoped, tag = 'output window, operand 0']
    %8 = vsyncpa [#allocation5], 0
    %s9 = scalar_lea.sflag [#allocation5], 1
    %10 = vsyncpa %s9, 0
    %11 = vsyncpa [#allocation8], 0
    %12 = vsyncpa [#allocation6], 0
    %s13 = scalar_lea.sflag [#allocation6], 1
    %14 = vsyncpa %s13, 0
    loop: start=0, step=1, limit=4
    $region2: #{tpu_custom_call.1} parent=1 // loop_pre_header
      _
    $region3: #{tpu_custom_call.1} parent=1 // loop_header
      %s16 = sphi 0, %s20
      %p17 = scmp.ge.s32.totalorder %s16, 4
      %s23 = sphi 0, %s35
      %s24 = sphi 0, %s31
      %s25 = sphi 0, %s23
      %s26 = sphi 0, %s24
      %s27 = sphi 0, %s25
      %s28 = sphi 0, %s26
      %s40 = sphi 0, %s42
      %s43 = sphi 0, %s40
      %s44 = sphi 0, %s43
      %s60 = sphi 0, %s44
      %s64 = sphi 0, %s64
      %s66 = sphi 0, %s64
      %s67 = sphi 0, %s66
      %s81 = sphi 0, %s67
      %s85 = sphi 0, %s85
      %s87 = sphi 0, %s85
      %s88 = sphi 0, %s87
      %s102 = sphi 0, %s88
      %s110 = sphi 0, %s112
      %s113 = sphi 0, %s110
      %s114 = sphi 0, %s113
      %s130 = sphi 0, %s114
    $region4: #{tpu_custom_call.1} parent=1 // loop_header_branch
      %19 = sbr.rel (%p17) target = $region8
    $region5: #{tpu_custom_call.1} parent=1 // loop_body
      %s21 = ssub.s32 %s16, 1
      %s22 = ssub.s32 %s16, 2
      %s29 = sadd.s32 1, %s24
      %p30 = scmp.ge.s32.totalorder %s29, 1
      %s31 = scalar_select %p30, 0, %s29
      %s32 = sadd.s32 1, %s23
      %s33 = scalar_select %p30, %s32, %s23
      %p34 = scmp.ge.s32.totalorder %s33, 2
      %s35 = scalar_select %p34, 0, %s33
      %s36 = ssub.s32 %s23, %s35
      %s37 = ssub.s32 %s24, %s31
      %s38 = sor.u32 %s36, %s37
      %p39 = scmp.eq.s32.totalorder %s38, 0
      %s41 = sadd.s32 %s40, 1
      %s42 = scalar_select %p39, %s40, %s41
      %p45 = pneg %p39
      %p46 = scmp.eq.s32.totalorder %s16, 1
      %p47 = por %p45, %p46
      %p48 = scmp.ne.s32.totalorder %s40, %s43
      %p49 = scmp.eq.s32.totalorder %s16, 0
      %p50 = por %p48, %p49
      %p51 = scmp.ne.s32.totalorder %s40, %s43
      %p52 = scmp.eq.s32.totalorder %s21, 1
      %p53 = por %p51, %p52
      %p54 = scmp.ne.s32.totalorder %s43, %s44
      %p55 = scmp.eq.s32.totalorder %s21, 0
      %p56 = por %p54, %p55
      %p57 = scmp.ne.s32.totalorder %s43, %s44
      %p58 = scmp.eq.s32.totalorder %s22, 1
      %p59 = por %p57, %p58
      %p61 = scmp.ne.s32.totalorder %s44, %s60
      %p62 = scmp.eq.s32.totalorder %s22, 0
      %p63 = por %p61, %p62
      %s65 = sadd.s32 %s64, 1
      %p68 = scmp.eq.s32.totalorder %s16, 1
      %p69 = scmp.ne.s32.totalorder %s64, %s66
      %p70 = scmp.eq.s32.totalorder %s16, 0
      %p71 = por %p69, %p70
      %p72 = scmp.ne.s32.totalorder %s64, %s66
      %p73 = scmp.eq.s32.totalorder %s21, 1
      %p74 = por %p72, %p73
      %p75 = scmp.ne.s32.totalorder %s66, %s67
      %p76 = scmp.eq.s32.totalorder %s21, 0
      %p77 = por %p75, %p76
      %p78 = scmp.ne.s32.totalorder %s66, %s67
      %p79 = scmp.eq.s32.totalorder %s22, 1
      %p80 = por %p78, %p79
      %p82 = scmp.ne.s32.totalorder %s67, %s81
      %p83 = scmp.eq.s32.totalorder %s22, 0
      %p84 = por %p82, %p83
      %s86 = sadd.s32 %s85, 1
      %p89 = scmp.eq.s32.totalorder %s16, 1
      %p90 = scmp.ne.s32.totalorder %s85, %s87
      %p91 = scmp.eq.s32.totalorder %s16, 0
      %p92 = por %p90, %p91
      %p93 = scmp.ne.s32.totalorder %s85, %s87
      %p94 = scmp.eq.s32.totalorder %s21, 1
      %p95 = por %p93, %p94
      %p96 = scmp.ne.s32.totalorder %s87, %s88
      %p97 = scmp.eq.s32.totalorder %s21, 0
      %p98 = por %p96, %p97
      %p99 = scmp.ne.s32.totalorder %s87, %s88
      %p100 = scmp.eq.s32.totalorder %s22, 1
      %p101 = por %p99, %p100
      %p103 = scmp.ne.s32.totalorder %s88, %s102
      %p104 = scmp.eq.s32.totalorder %s22, 0
      %p105 = por %p103, %p104
      %s106 = ssub.s32 %s23, %s35
      %s107 = ssub.s32 %s24, %s31
      %s108 = sor.u32 %s106, %s107
      %p109 = scmp.eq.s32.totalorder %s108, 0
      %s111 = sadd.s32 %s110, 1
      %s112 = scalar_select %p109, %s110, %s111
      %p115 = pneg %p109
      %p116 = scmp.eq.s32.totalorder %s16, 1
      %p117 = por %p115, %p116
      %p118 = scmp.ne.s32.totalorder %s110, %s113
      %p119 = scmp.eq.s32.totalorder %s16, 0
      %p120 = por %p118, %p119
      %p121 = scmp.ne.s32.totalorder %s110, %s113
      %p122 = scmp.eq.s32.totalorder %s21, 1
      %p123 = por %p121, %p122
      %p124 = scmp.ne.s32.totalorder %s113, %s114
      %p125 = scmp.eq.s32.totalorder %s21, 0
      %p126 = por %p124, %p125
      %p127 = scmp.ne.s32.totalorder %s113, %s114
      %p128 = scmp.eq.s32.totalorder %s22, 1
      %p129 = por %p127, %p128
      %p131 = scmp.ne.s32.totalorder %s114, %s130
      %p132 = scmp.eq.s32.totalorder %s22, 0
      %p133 = por %p131, %p132
      %p134 = scmp.le.s32.totalorder 1, %s16
      %p135 = scmp.lt.s32.totalorder %s16, 3
      %p136 = pnand %p134, %p135
      %p137 = pneg %p136
      // Predicated region
      $region9: #{tpu_custom_call.1} parent=5 // pred_check
        _
      $region10: #{tpu_custom_call.1} parent=5 // pred_check_branch
        %139 = sbr.rel (%p136) target = $region12
      $region11: #{tpu_custom_call.1} parent=5 // pred_region
        %s140 = ssub.s32 %s16, 1
        // Predicated region
        $region13: #{tpu_custom_call.1} parent=11 // pred_check
          %p141 = pneg %p77
        $region14: #{tpu_custom_call.1} parent=11 // pred_check_branch
          %143 = sbr.rel (%p141) target = $region16
        $region15: #{tpu_custom_call.1} parent=11 // pred_region
          %s145 = ssub.s32 4096, 4096
          %146 = vsyncadd [#allocation8], %s145
          %s147 = sshll.u32 [#allocation7], 4
          %s148 = int_to_ptr.vmem [resolvable:$true] %s147
          %153 = dma.hbm_to_vmem [thread:$0]  %s1, 4096, %s148, [#allocation8], 128, 128, 8
        $region16: #{tpu_custom_call.1} parent=11 // pred_fallthru
          _
        // Predicated region
        $region17: #{tpu_custom_call.1} parent=11 // pred_check
          %p154 = pneg %p98
        $region18: #{tpu_custom_call.1} parent=11 // pred_check_branch
          %156 = sbr.rel (%p154) target = $region20
        $region19: #{tpu_custom_call.1} parent=11 // pred_region
          %s158 = ssub.s32 32, 32
          %159 = vsyncadd [#allocation8], %s158
          %s160 = sshll.u32 [#allocation9], 4
          %s161 = int_to_ptr.vmem [resolvable:$true] %s160
          %166 = dma.hbm_to_vmem [thread:$0]  %s2, 32, %s161, [#allocation8], 16, 16, 1
        $region20: #{tpu_custom_call.1} parent=11 // pred_fallthru
          _
      $region12: #{tpu_custom_call.1} parent=5 // pred_fallthru
        _
      %p167 = scmp.lt.s32.totalorder %s16, 2
      // Predicated region
      $region21: #{tpu_custom_call.1} parent=5 // pred_check
        %p168 = pneg %p167
      $region22: #{tpu_custom_call.1} parent=5 // pred_check_branch
        %170 = sbr.rel (%p168) target = $region24
      $region23: #{tpu_custom_call.1} parent=5 // pred_region
        // Predicated region
        $region25: #{tpu_custom_call.1} parent=23 // pred_check
          %p171 = pneg %p50
        $region26: #{tpu_custom_call.1} parent=23 // pred_check_branch
          %173 = sbr.rel (%p171) target = $region28
        $region27: #{tpu_custom_call.1} parent=23 // pred_region
          %s174 = sand.u32 %s40, 1
          %s175 = scalar_lea.sflag [#allocation5], %s174
          %s176 = sand.u32 %s40, 1
          %s177 = smul.addr %s176, 2048
          %s178 = scalar_lea.vmem [#allocation4], %s177
          %s179 = smul.u32 32, %s24
          %s181 = ssub.s32 32768, 32768
          %182 = vsyncadd %s175, %s181
          %s183 = smul.addr %s23, 256
          %s184 = sadd.s32 %s179, %s183
          %s185 = smul.addr %s184, 128
          %s186 = scalar_lea.hbm %s0, %s185
          %s187 = sshll.u32 %s178, 4
          %s188 = int_to_ptr.vmem [resolvable:$true] %s187
          %193 = dma.hbm_to_vmem [thread:$0]  %s186, 32768, %s188, %s175, 128, 128, 8
        $region28: #{tpu_custom_call.1} parent=23 // pred_fallthru
          _
      $region24: #{tpu_custom_call.1} parent=5 // pred_fallthru
        _
      %p194 = scmp.le.s32.totalorder 1, %s16
      %p195 = scmp.lt.s32.totalorder %s16, 3
      %p196 = pnand %p194, %p195
      %p197 = pneg %p196
      // Predicated region
      $region29: #{tpu_custom_call.1} parent=5 // pred_check
        _
      $region30: #{tpu_custom_call.1} parent=5 // pred_check_branch
        %199 = sbr.rel (%p196) target = $region32
      $region31: #{tpu_custom_call.1} parent=5 // pred_region
        %s200 = ssub.s32 %s16, 1
        %s201 = sand.u32 %s43, 1
        %s202 = scalar_lea.sflag [#allocation5], %s201
        %s203 = sand.u32 %s43, 1
        %s204 = smul.addr %s203, 2048
        %s205 = scalar_lea.vmem [#allocation4], %s204
        // Predicated region
        $region33: #{tpu_custom_call.1} parent=31 // pred_check
          %p206 = pneg %p56
        $region34: #{tpu_custom_call.1} parent=31 // pred_check_branch
          %208 = sbr.rel (%p206) target = $region36
        $region35: #{tpu_custom_call.1} parent=31 // pred_region
          %209 = dma.done %s202, 32768
        $region36: #{tpu_custom_call.1} parent=31 // pred_fallthru
          _
        // Predicated region
        $region37: #{tpu_custom_call.1} parent=31 // pred_check
          %p210 = pneg %p77
        $region38: #{tpu_custom_call.1} parent=31 // pred_check_branch
          %212 = sbr.rel (%p210) target = $region40
        $region39: #{tpu_custom_call.1} parent=31 // pred_region
          %213 = dma.done [#allocation8], 4096
        $region40: #{tpu_custom_call.1} parent=31 // pred_fallthru
          _
        // Predicated region
        $region41: #{tpu_custom_call.1} parent=31 // pred_check
          %p214 = pneg %p98
        $region42: #{tpu_custom_call.1} parent=31 // pred_check_branch
          %216 = sbr.rel (%p214) target = $region44
        $region43: #{tpu_custom_call.1} parent=31 // pred_region
          %217 = dma.done [#allocation8], 32
        $region44: #{tpu_custom_call.1} parent=31 // pred_fallthru
          _
        %s218 = sand.u32 %s43, 1
        %s219 = scalar_lea.sflag [#allocation5], %s218
        %s220 = sand.u32 %s43, 1
        %s221 = smul.addr %s220, 2048
        %s222 = scalar_lea.vmem [#allocation4], %s221
        %p223 = pneg %p56
        %p224 = pneg %p53
        %p225 = pneg %p77
        %p226 = pneg %p74
        %p227 = pneg %p98
        %p228 = pneg %p95
        %p229 = pneg %p126
        %p230 = pneg %p123
        %s231 = sand.u32 %s113, 1
        %s232 = scalar_lea.sflag [#allocation6], %s231
        %s233 = sand.u32 %s113, 1
        %s234 = smul.addr %s233, 2048
        %s235 = scalar_lea.vmem [#allocation10], %s234
        %s236 = smul.u32 32, %s26
        %s237 = smul.u32 32, %s26
        %v238 = vlaneseq
        %v239 = vand.u32 %v238, 127
        %vm240 = vcmp.lt.s32.totalorder %v239, 16
        %vm241 = vcmp.ge.s32.totalorder %v239, 16
        %vm242 = vcmp.lt.s32.totalorder %v239, 32
        %vm243 = vmand %vm241, %vm242
        %v244 = vld [vmem:[%s205] sm:$0xff]
        %v245 = vld [vmem:[%s205 + $0x8] sm:$0xff]
        %v246 = vld [vmem:[%s205 + $0x10] sm:$0xff]
        %v247 = vld [vmem:[%s205 + $0x18] sm:$0xff]
        %v248 = vld [vmem:[%s205 + $0x20] sm:$0xff]
        %v249 = vld [vmem:[%s205 + $0x28] sm:$0xff]
        %v250 = vld [vmem:[%s205 + $0x30] sm:$0xff]
        %v251 = vld [vmem:[%s205 + $0x38] sm:$0xff]
        %v252 = vld [vmem:[%s205 + $0x40] sm:$0xff]
        %v253 = vld [vmem:[%s205 + $0x48] sm:$0xff]
        %v254 = vld [vmem:[%s205 + $0x50] sm:$0xff]
        %v255 = vld [vmem:[%s205 + $0x58] sm:$0xff]
        %v256 = vld [vmem:[%s205 + $0x60] sm:$0xff]
        %v257 = vld [vmem:[%s205 + $0x68] sm:$0xff]
        %v258 = vld [vmem:[%s205 + $0x70] sm:$0xff]
        %v259 = vld [vmem:[%s205 + $0x78] sm:$0xff]
        %v260 = vld [vmem:[%s205 + $0x80] sm:$0xff]
        %v261 = vld [vmem:[%s205 + $0x88] sm:$0xff]
        %v262 = vld [vmem:[%s205 + $0x90] sm:$0xff]
        %v263 = vld [vmem:[%s205 + $0x98] sm:$0xff]
        %v264 = vld [vmem:[%s205 + $0xa0] sm:$0xff]
        %v265 = vld [vmem:[%s205 + $0xa8] sm:$0xff]
        %v266 = vld [vmem:[%s205 + $0xb0] sm:$0xff]
        %v267 = vld [vmem:[%s205 + $0xb8] sm:$0xff]
        %v268 = vld [vmem:[%s205 + $0xc0] sm:$0xff]
        %v269 = vld [vmem:[%s205 + $0xc8] sm:$0xff]
        %v270 = vld [vmem:[%s205 + $0xd0] sm:$0xff]
        %v271 = vld [vmem:[%s205 + $0xd8] sm:$0xff]
        %v272 = vld [vmem:[%s205 + $0xe0] sm:$0xff]
        %v273 = vld [vmem:[%s205 + $0xe8] sm:$0xff]
        %v274 = vld [vmem:[%s205 + $0xf0] sm:$0xff]
        %v275 = vld [vmem:[%s205 + $0xf8] sm:$0xff]
        %v276 = vsel %vm243, 1, 0
        %vm277 = vcmp.eq.s32.totalorder %v276, 1
        %v278 = vsel %vm277, 0.0, %v244
        %v279 = vsel %vm277, 0.0, %v245
        %v280 = vsel %vm277, 0.0, %v246
        %v281 = vsel %vm277, 0.0, %v247
        %v282 = vsel %vm277, 0.0, %v248
        %v283 = vsel %vm277, 0.0, %v249
        %v284 = vsel %vm277, 0.0, %v250
        %v285 = vsel %vm277, 0.0, %v251
        %v286 = vsel %vm277, 0.0, %v252
        %v287 = vsel %vm277, 0.0, %v253
        %v288 = vsel %vm277, 0.0, %v254
        %v289 = vsel %vm277, 0.0, %v255
        %v290 = vsel %vm277, 0.0, %v256
        %v291 = vsel %vm277, 0.0, %v257
        %v292 = vsel %vm277, 0.0, %v258
        %v293 = vsel %vm277, 0.0, %v259
        %v294 = vsel %vm277, 0.0, %v260
        %v295 = vsel %vm277, 0.0, %v261
        %v296 = vsel %vm277, 0.0, %v262
        %v297 = vsel %vm277, 0.0, %v263
        %v298 = vsel %vm277, 0.0, %v264
        %v299 = vsel %vm277, 0.0, %v265
        %v300 = vsel %vm277, 0.0, %v266
        %v301 = vsel %vm277, 0.0, %v267
        %v302 = vsel %vm277, 0.0, %v268
        %v303 = vsel %vm277, 0.0, %v269
        %v304 = vsel %vm277, 0.0, %v270
        %v305 = vsel %vm277, 0.0, %v271
        %v306 = vsel %vm277, 0.0, %v272
        %v307 = vsel %vm277, 0.0, %v273
        %v308 = vsel %vm277, 0.0, %v274
        %v309 = vsel %vm277, 0.0, %v275
        %s310 = scalar_lea.vmem %s205, 256 [#allocation4]
        %v311 = vld [vmem:[%s310] sm:$0xff]
        %v312 = vld [vmem:[%s310 + $0x8] sm:$0xff]
        %v313 = vld [vmem:[%s310 + $0x10] sm:$0xff]
        %v314 = vld [vmem:[%s310 + $0x18] sm:$0xff]
        %v315 = vld [vmem:[%s310 + $0x20] sm:$0xff]
        %v316 = vld [vmem:[%s310 + $0x28] sm:$0xff]
        %v317 = vld [vmem:[%s310 + $0x30] sm:$0xff]
        %v318 = vld [vmem:[%s310 + $0x38] sm:$0xff]
        %v319 = vld [vmem:[%s310 + $0x40] sm:$0xff]
        %v320 = vld [vmem:[%s310 + $0x48] sm:$0xff]
        %v321 = vld [vmem:[%s310 + $0x50] sm:$0xff]
        %v322 = vld [vmem:[%s310 + $0x58] sm:$0xff]
        %v323 = vld [vmem:[%s310 + $0x60] sm:$0xff]
        %v324 = vld [vmem:[%s310 + $0x68] sm:$0xff]
        %v325 = vld [vmem:[%s310 + $0x70] sm:$0xff]
        %v326 = vld [vmem:[%s310 + $0x78] sm:$0xff]
        %v327 = vld [vmem:[%s310 + $0x80] sm:$0xff]
        %v328 = vld [vmem:[%s310 + $0x88] sm:$0xff]
        %v329 = vld [vmem:[%s310 + $0x90] sm:$0xff]
        %v330 = vld [vmem:[%s310 + $0x98] sm:$0xff]
        %v331 = vld [vmem:[%s310 + $0xa0] sm:$0xff]
        %v332 = vld [vmem:[%s310 + $0xa8] sm:$0xff]
        %v333 = vld [vmem:[%s310 + $0xb0] sm:$0xff]
        %v334 = vld [vmem:[%s310 + $0xb8] sm:$0xff]
        %v335 = vld [vmem:[%s310 + $0xc0] sm:$0xff]
        %v336 = vld [vmem:[%s310 + $0xc8] sm:$0xff]
        %v337 = vld [vmem:[%s310 + $0xd0] sm:$0xff]
        %v338 = vld [vmem:[%s310 + $0xd8] sm:$0xff]
        %v339 = vld [vmem:[%s310 + $0xe0] sm:$0xff]
        %v340 = vld [vmem:[%s310 + $0xe8] sm:$0xff]
        %v341 = vld [vmem:[%s310 + $0xf0] sm:$0xff]
        %v342 = vld [vmem:[%s310 + $0xf8] sm:$0xff]
        %v343 = vsel %vm240, 1, 0
        %vm344 = vcmp.eq.s32.totalorder %v343, 1
        %v345 = vsel %vm344, %v311, %v278
        %v346 = vsel %vm344, %v312, %v279
        %v347 = vsel %vm344, %v313, %v280
        %v348 = vsel %vm344, %v314, %v281
        %v349 = vsel %vm344, %v315, %v282
        %v350 = vsel %vm344, %v316, %v283
        %v351 = vsel %vm344, %v317, %v284
        %v352 = vsel %vm344, %v318, %v285
        %v353 = vsel %vm344, %v319, %v286
        %v354 = vsel %vm344, %v320, %v287
        %v355 = vsel %vm344, %v321, %v288
        %v356 = vsel %vm344, %v322, %v289
        %v357 = vsel %vm344, %v323, %v290
        %v358 = vsel %vm344, %v324, %v291
        %v359 = vsel %vm344, %v325, %v292
        %v360 = vsel %vm344, %v326, %v293
        %v361 = vsel %vm344, %v327, %v294
        %v362 = vsel %vm344, %v328, %v295
        %v363 = vsel %vm344, %v329, %v296
        %v364 = vsel %vm344, %v330, %v297
        %v365 = vsel %vm344, %v331, %v298
        %v366 = vsel %vm344, %v332, %v299
        %v367 = vsel %vm344, %v333, %v300
        %v368 = vsel %vm344, %v334, %v301
        %v369 = vsel %vm344, %v335, %v302
        %v370 = vsel %vm344, %v336, %v303
        %v371 = vsel %vm344, %v337, %v304
        %v372 = vsel %vm344, %v338, %v305
        %v373 = vsel %vm344, %v339, %v306
        %v374 = vsel %vm344, %v340, %v307
        %v375 = vsel %vm344, %v341, %v308
        %v376 = vsel %vm344, %v342, %v309
        %377 = vst [vmem:[#allocation3] sm:$0xff] %v345
        %378 = vst [vmem:[#allocation3 + $0x8] sm:$0xff] %v346
        %379 = vst [vmem:[#allocation3 + $0x10] sm:$0xff] %v347
        %380 = vst [vmem:[#allocation3 + $0x18] sm:$0xff] %v348
        %381 = vst [vmem:[#allocation3 + $0x20] sm:$0xff] %v349
        %382 = vst [vmem:[#allocation3 + $0x28] sm:$0xff] %v350
        %383 = vst [vmem:[#allocation3 + $0x30] sm:$0xff] %v351
        %384 = vst [vmem:[#allocation3 + $0x38] sm:$0xff] %v352
        %385 = vst [vmem:[#allocation3 + $0x40] sm:$0xff] %v353
        %386 = vst [vmem:[#allocation3 + $0x48] sm:$0xff] %v354
        %387 = vst [vmem:[#allocation3 + $0x50] sm:$0xff] %v355
        %388 = vst [vmem:[#allocation3 + $0x58] sm:$0xff] %v356
        %389 = vst [vmem:[#allocation3 + $0x60] sm:$0xff] %v357
        %390 = vst [vmem:[#allocation3 + $0x68] sm:$0xff] %v358
        %391 = vst [vmem:[#allocation3 + $0x70] sm:$0xff] %v359
        %392 = vst [vmem:[#allocation3 + $0x78] sm:$0xff] %v360
        %393 = vst [vmem:[#allocation3 + $0x80] sm:$0xff] %v361
        %394 = vst [vmem:[#allocation3 + $0x88] sm:$0xff] %v362
        %395 = vst [vmem:[#allocation3 + $0x90] sm:$0xff] %v363
        %396 = vst [vmem:[#allocation3 + $0x98] sm:$0xff] %v364
        %397 = vst [vmem:[#allocation3 + $0xa0] sm:$0xff] %v365
        %398 = vst [vmem:[#allocation3 + $0xa8] sm:$0xff] %v366
        %399 = vst [vmem:[#allocation3 + $0xb0] sm:$0xff] %v367
        %400 = vst [vmem:[#allocation3 + $0xb8] sm:$0xff] %v368
        %401 = vst [vmem:[#allocation3 + $0xc0] sm:$0xff] %v369
        %402 = vst [vmem:[#allocation3 + $0xc8] sm:$0xff] %v370
        %403 = vst [vmem:[#allocation3 + $0xd0] sm:$0xff] %v371
        %404 = vst [vmem:[#allocation3 + $0xd8] sm:$0xff] %v372
        %405 = vst [vmem:[#allocation3 + $0xe0] sm:$0xff] %v373
        %406 = vst [vmem:[#allocation3 + $0xe8] sm:$0xff] %v374
        %407 = vst [vmem:[#allocation3 + $0xf0] sm:$0xff] %v375
        %408 = vst [vmem:[#allocation3 + $0xf8] sm:$0xff] %v376
        %v409 = vld [vmem:[%s310] sm:$0xff]
        %v410 = vld [vmem:[%s310 + $0x8] sm:$0xff]
        %v411 = vld [vmem:[%s310 + $0x10] sm:$0xff]
        %v412 = vld [vmem:[%s310 + $0x18] sm:$0xff]
        %v413 = vld [vmem:[%s310 + $0x20] sm:$0xff]
        %v414 = vld [vmem:[%s310 + $0x28] sm:$0xff]
        %v415 = vld [vmem:[%s310 + $0x30] sm:$0xff]
        %v416 = vld [vmem:[%s310 + $0x38] sm:$0xff]
        %v417 = vld [vmem:[%s310 + $0x40] sm:$0xff]
        %v418 = vld [vmem:[%s310 + $0x48] sm:$0xff]
        %v419 = vld [vmem:[%s310 + $0x50] sm:$0xff]
        %v420 = vld [vmem:[%s310 + $0x58] sm:$0xff]
        %v421 = vld [vmem:[%s310 + $0x60] sm:$0xff]
        %v422 = vld [vmem:[%s310 + $0x68] sm:$0xff]
        %v423 = vld [vmem:[%s310 + $0x70] sm:$0xff]
        %v424 = vld [vmem:[%s310 + $0x78] sm:$0xff]
        %v425 = vld [vmem:[%s310 + $0x80] sm:$0xff]
        %v426 = vld [vmem:[%s310 + $0x88] sm:$0xff]
        %v427 = vld [vmem:[%s310 + $0x90] sm:$0xff]
        %v428 = vld [vmem:[%s310 + $0x98] sm:$0xff]
        %v429 = vld [vmem:[%s310 + $0xa0] sm:$0xff]
        %v430 = vld [vmem:[%s310 + $0xa8] sm:$0xff]
        %v431 = vld [vmem:[%s310 + $0xb0] sm:$0xff]
        %v432 = vld [vmem:[%s310 + $0xb8] sm:$0xff]
        %v433 = vld [vmem:[%s310 + $0xc0] sm:$0xff]
        %v434 = vld [vmem:[%s310 + $0xc8] sm:$0xff]
        %v435 = vld [vmem:[%s310 + $0xd0] sm:$0xff]
        %v436 = vld [vmem:[%s310 + $0xd8] sm:$0xff]
        %v437 = vld [vmem:[%s310 + $0xe0] sm:$0xff]
        %v438 = vld [vmem:[%s310 + $0xe8] sm:$0xff]
        %v439 = vld [vmem:[%s310 + $0xf0] sm:$0xff]
        %v440 = vld [vmem:[%s310 + $0xf8] sm:$0xff]
        %v441 = vld [vmem:[%s205] sm:$0xff]
        %v442 = vld [vmem:[%s205 + $0x8] sm:$0xff]
        %v443 = vld [vmem:[%s205 + $0x10] sm:$0xff]
        %v444 = vld [vmem:[%s205 + $0x18] sm:$0xff]
        %v445 = vld [vmem:[%s205 + $0x20] sm:$0xff]
        %v446 = vld [vmem:[%s205 + $0x28] sm:$0xff]
        %v447 = vld [vmem:[%s205 + $0x30] sm:$0xff]
        %v448 = vld [vmem:[%s205 + $0x38] sm:$0xff]
        %v449 = vld [vmem:[%s205 + $0x40] sm:$0xff]
        %v450 = vld [vmem:[%s205 + $0x48] sm:$0xff]
        %v451 = vld [vmem:[%s205 + $0x50] sm:$0xff]
        %v452 = vld [vmem:[%s205 + $0x58] sm:$0xff]
        %v453 = vld [vmem:[%s205 + $0x60] sm:$0xff]
        %v454 = vld [vmem:[%s205 + $0x68] sm:$0xff]
        %v455 = vld [vmem:[%s205 + $0x70] sm:$0xff]
        %v456 = vld [vmem:[%s205 + $0x78] sm:$0xff]
        %v457 = vld [vmem:[%s205 + $0x80] sm:$0xff]
        %v458 = vld [vmem:[%s205 + $0x88] sm:$0xff]
        %v459 = vld [vmem:[%s205 + $0x90] sm:$0xff]
        %v460 = vld [vmem:[%s205 + $0x98] sm:$0xff]
        %v461 = vld [vmem:[%s205 + $0xa0] sm:$0xff]
        %v462 = vld [vmem:[%s205 + $0xa8] sm:$0xff]
        %v463 = vld [vmem:[%s205 + $0xb0] sm:$0xff]
        %v464 = vld [vmem:[%s205 + $0xb8] sm:$0xff]
        %v465 = vld [vmem:[%s205 + $0xc0] sm:$0xff]
        %v466 = vld [vmem:[%s205 + $0xc8] sm:$0xff]
        %v467 = vld [vmem:[%s205 + $0xd0] sm:$0xff]
        %v468 = vld [vmem:[%s205 + $0xd8] sm:$0xff]
        %v469 = vld [vmem:[%s205 + $0xe0] sm:$0xff]
        %v470 = vld [vmem:[%s205 + $0xe8] sm:$0xff]
        %v471 = vld [vmem:[%s205 + $0xf0] sm:$0xff]
        %v472 = vld [vmem:[%s205 + $0xf8] sm:$0xff]
        %v473 = vsel %vm277, %v441, %v409
        %v474 = vsel %vm277, %v442, %v410
        %v475 = vsel %vm277, %v443, %v411
        %v476 = vsel %vm277, %v444, %v412
        %v477 = vsel %vm277, %v445, %v413
        %v478 = vsel %vm277, %v446, %v414
        %v479 = vsel %vm277, %v447, %v415
        %v480 = vsel %vm277, %v448, %v416
        %v481 = vsel %vm277, %v449, %v417
        %v482 = vsel %vm277, %v450, %v418
        %v483 = vsel %vm277, %v451, %v419
        %v484 = vsel %vm277, %v452, %v420
        %v485 = vsel %vm277, %v453, %v421
        %v486 = vsel %vm277, %v454, %v422
        %v487 = vsel %vm277, %v455, %v423
        %v488 = vsel %vm277, %v456, %v424
        %v489 = vsel %vm277, %v457, %v425
        %v490 = vsel %vm277, %v458, %v426
        %v491 = vsel %vm277, %v459, %v427
        %v492 = vsel %vm277, %v460, %v428
        %v493 = vsel %vm277, %v461, %v429
        %v494 = vsel %vm277, %v462, %v430
        %v495 = vsel %vm277, %v463, %v431
        %v496 = vsel %vm277, %v464, %v432
        %v497 = vsel %vm277, %v465, %v433
        %v498 = vsel %vm277, %v466, %v434
        %v499 = vsel %vm277, %v467, %v435
        %v500 = vsel %vm277, %v468, %v436
        %v501 = vsel %vm277, %v469, %v437
        %v502 = vsel %vm277, %v470, %v438
        %v503 = vsel %vm277, %v471, %v439
        %v504 = vsel %vm277, %v472, %v440
        %s505 = scalar_lea.vmem %s205, 512 [#allocation4]
        %v506 = vld [vmem:[%s505] sm:$0xff]
        %v507 = vld [vmem:[%s505 + $0x8] sm:$0xff]
        %v508 = vld [vmem:[%s505 + $0x10] sm:$0xff]
        %v509 = vld [vmem:[%s505 + $0x18] sm:$0xff]
        %v510 = vld [vmem:[%s505 + $0x20] sm:$0xff]
        %v511 = vld [vmem:[%s505 + $0x28] sm:$0xff]
        %v512 = vld [vmem:[%s505 + $0x30] sm:$0xff]
        %v513 = vld [vmem:[%s505 + $0x38] sm:$0xff]
        %v514 = vld [vmem:[%s505 + $0x40] sm:$0xff]
        %v515 = vld [vmem:[%s505 + $0x48] sm:$0xff]
        %v516 = vld [vmem:[%s505 + $0x50] sm:$0xff]
        %v517 = vld [vmem:[%s505 + $0x58] sm:$0xff]
        %v518 = vld [vmem:[%s505 + $0x60] sm:$0xff]
        %v519 = vld [vmem:[%s505 + $0x68] sm:$0xff]
        %v520 = vld [vmem:[%s505 + $0x70] sm:$0xff]
        %v521 = vld [vmem:[%s505 + $0x78] sm:$0xff]
        %v522 = vld [vmem:[%s505 + $0x80] sm:$0xff]
        %v523 = vld [vmem:[%s505 + $0x88] sm:$0xff]
        %v524 = vld [vmem:[%s505 + $0x90] sm:$0xff]
        %v525 = vld [vmem:[%s505 + $0x98] sm:$0xff]
        %v526 = vld [vmem:[%s505 + $0xa0] sm:$0xff]
        %v527 = vld [vmem:[%s505 + $0xa8] sm:$0xff]
        %v528 = vld [vmem:[%s505 + $0xb0] sm:$0xff]
        %v529 = vld [vmem:[%s505 + $0xb8] sm:$0xff]
        %v530 = vld [vmem:[%s505 + $0xc0] sm:$0xff]
        %v531 = vld [vmem:[%s505 + $0xc8] sm:$0xff]
        %v532 = vld [vmem:[%s505 + $0xd0] sm:$0xff]
        %v533 = vld [vmem:[%s505 + $0xd8] sm:$0xff]
        %v534 = vld [vmem:[%s505 + $0xe0] sm:$0xff]
        %v535 = vld [vmem:[%s505 + $0xe8] sm:$0xff]
        %v536 = vld [vmem:[%s505 + $0xf0] sm:$0xff]
        %v537 = vld [vmem:[%s505 + $0xf8] sm:$0xff]
        %v538 = vsel %vm344, %v506, %v473
        %v539 = vsel %vm344, %v507, %v474
        %v540 = vsel %vm344, %v508, %v475
        %v541 = vsel %vm344, %v509, %v476
        %v542 = vsel %vm344, %v510, %v477
        %v543 = vsel %vm344, %v511, %v478
        %v544 = vsel %vm344, %v512, %v479
        %v545 = vsel %vm344, %v513, %v480
        %v546 = vsel %vm344, %v514, %v481
        %v547 = vsel %vm344, %v515, %v482
        %v548 = vsel %vm344, %v516, %v483
        %v549 = vsel %vm344, %v517, %v484
        %v550 = vsel %vm344, %v518, %v485
        %v551 = vsel %vm344, %v519, %v486
        %v552 = vsel %vm344, %v520, %v487
        %v553 = vsel %vm344, %v521, %v488
        %v554 = vsel %vm344, %v522, %v489
        %v555 = vsel %vm344, %v523, %v490
        %v556 = vsel %vm344, %v524, %v491
        %v557 = vsel %vm344, %v525, %v492
        %v558 = vsel %vm344, %v526, %v493
        %v559 = vsel %vm344, %v527, %v494
        %v560 = vsel %vm344, %v528, %v495
        %v561 = vsel %vm344, %v529, %v496
        %v562 = vsel %vm344, %v530, %v497
        %v563 = vsel %vm344, %v531, %v498
        %v564 = vsel %vm344, %v532, %v499
        %v565 = vsel %vm344, %v533, %v500
        %v566 = vsel %vm344, %v534, %v501
        %v567 = vsel %vm344, %v535, %v502
        %v568 = vsel %vm344, %v536, %v503
        %v569 = vsel %vm344, %v537, %v504
        %s570 = scalar_lea.vmem [#allocation3], 256
        %571 = vst [vmem:[%s570] sm:$0xff] %v538
        %572 = vst [vmem:[%s570 + $0x8] sm:$0xff] %v539
        %573 = vst [vmem:[%s570 + $0x10] sm:$0xff] %v540
        %574 = vst [vmem:[%s570 + $0x18] sm:$0xff] %v541
        %575 = vst [vmem:[%s570 + $0x20] sm:$0xff] %v542
        %576 = vst [vmem:[%s570 + $0x28] sm:$0xff] %v543
        %577 = vst [vmem:[%s570 + $0x30] sm:$0xff] %v544
        %578 = vst [vmem:[%s570 + $0x38] sm:$0xff] %v545
        %579 = vst [vmem:[%s570 + $0x40] sm:$0xff] %v546
        %580 = vst [vmem:[%s570 + $0x48] sm:$0xff] %v547
        %581 = vst [vmem:[%s570 + $0x50] sm:$0xff] %v548
        %582 = vst [vmem:[%s570 + $0x58] sm:$0xff] %v549
        %583 = vst [vmem:[%s570 + $0x60] sm:$0xff] %v550
        %584 = vst [vmem:[%s570 + $0x68] sm:$0xff] %v551
        %585 = vst [vmem:[%s570 + $0x70] sm:$0xff] %v552
        %586 = vst [vmem:[%s570 + $0x78] sm:$0xff] %v553
        %587 = vst [vmem:[%s570 + $0x80] sm:$0xff] %v554
        %588 = vst [vmem:[%s570 + $0x88] sm:$0xff] %v555
        %589 = vst [vmem:[%s570 + $0x90] sm:$0xff] %v556
        %590 = vst [vmem:[%s570 + $0x98] sm:$0xff] %v557
        %591 = vst [vmem:[%s570 + $0xa0] sm:$0xff] %v558
        %592 = vst [vmem:[%s570 + $0xa8] sm:$0xff] %v559
        %593 = vst [vmem:[%s570 + $0xb0] sm:$0xff] %v560
        %594 = vst [vmem:[%s570 + $0xb8] sm:$0xff] %v561
        %595 = vst [vmem:[%s570 + $0xc0] sm:$0xff] %v562
        %596 = vst [vmem:[%s570 + $0xc8] sm:$0xff] %v563
        %597 = vst [vmem:[%s570 + $0xd0] sm:$0xff] %v564
        %598 = vst [vmem:[%s570 + $0xd8] sm:$0xff] %v565
        %599 = vst [vmem:[%s570 + $0xe0] sm:$0xff] %v566
        %600 = vst [vmem:[%s570 + $0xe8] sm:$0xff] %v567
        %601 = vst [vmem:[%s570 + $0xf0] sm:$0xff] %v568
        %602 = vst [vmem:[%s570 + $0xf8] sm:$0xff] %v569
        %v603 = vld [vmem:[%s505] sm:$0xff]
        %v604 = vld [vmem:[%s505 + $0x8] sm:$0xff]
        %v605 = vld [vmem:[%s505 + $0x10] sm:$0xff]
        %v606 = vld [vmem:[%s505 + $0x18] sm:$0xff]
        %v607 = vld [vmem:[%s505 + $0x20] sm:$0xff]
        %v608 = vld [vmem:[%s505 + $0x28] sm:$0xff]
        %v609 = vld [vmem:[%s505 + $0x30] sm:$0xff]
        %v610 = vld [vmem:[%s505 + $0x38] sm:$0xff]
        %v611 = vld [vmem:[%s505 + $0x40] sm:$0xff]
        %v612 = vld [vmem:[%s505 + $0x48] sm:$0xff]
        %v613 = vld [vmem:[%s505 + $0x50] sm:$0xff]
        %v614 = vld [vmem:[%s505 + $0x58] sm:$0xff]
        %v615 = vld [vmem:[%s505 + $0x60] sm:$0xff]
        %v616 = vld [vmem:[%s505 + $0x68] sm:$0xff]
        %v617 = vld [vmem:[%s505 + $0x70] sm:$0xff]
        %v618 = vld [vmem:[%s505 + $0x78] sm:$0xff]
        %v619 = vld [vmem:[%s505 + $0x80] sm:$0xff]
        %v620 = vld [vmem:[%s505 + $0x88] sm:$0xff]
        %v621 = vld [vmem:[%s505 + $0x90] sm:$0xff]
        %v622 = vld [vmem:[%s505 + $0x98] sm:$0xff]
        %v623 = vld [vmem:[%s505 + $0xa0] sm:$0xff]
        %v624 = vld [vmem:[%s505 + $0xa8] sm:$0xff]
        %v625 = vld [vmem:[%s505 + $0xb0] sm:$0xff]
        %v626 = vld [vmem:[%s505 + $0xb8] sm:$0xff]
        %v627 = vld [vmem:[%s505 + $0xc0] sm:$0xff]
        %v628 = vld [vmem:[%s505 + $0xc8] sm:$0xff]
        %v629 = vld [vmem:[%s505 + $0xd0] sm:$0xff]
        %v630 = vld [vmem:[%s505 + $0xd8] sm:$0xff]
        %v631 = vld [vmem:[%s505 + $0xe0] sm:$0xff]
        %v632 = vld [vmem:[%s505 + $0xe8] sm:$0xff]
        %v633 = vld [vmem:[%s505 + $0xf0] sm:$0xff]
        %v634 = vld [vmem:[%s505 + $0xf8] sm:$0xff]
        %v635 = vld [vmem:[%s310] sm:$0xff]
        %v636 = vld [vmem:[%s310 + $0x8] sm:$0xff]
        %v637 = vld [vmem:[%s310 + $0x10] sm:$0xff]
        %v638 = vld [vmem:[%s310 + $0x18] sm:$0xff]
        %v639 = vld [vmem:[%s310 + $0x20] sm:$0xff]
        %v640 = vld [vmem:[%s310 + $0x28] sm:$0xff]
        %v641 = vld [vmem:[%s310 + $0x30] sm:$0xff]
        %v642 = vld [vmem:[%s310 + $0x38] sm:$0xff]
        %v643 = vld [vmem:[%s310 + $0x40] sm:$0xff]
        %v644 = vld [vmem:[%s310 + $0x48] sm:$0xff]
        %v645 = vld [vmem:[%s310 + $0x50] sm:$0xff]
        %v646 = vld [vmem:[%s310 + $0x58] sm:$0xff]
        %v647 = vld [vmem:[%s310 + $0x60] sm:$0xff]
        %v648 = vld [vmem:[%s310 + $0x68] sm:$0xff]
        %v649 = vld [vmem:[%s310 + $0x70] sm:$0xff]
        %v650 = vld [vmem:[%s310 + $0x78] sm:$0xff]
        %v651 = vld [vmem:[%s310 + $0x80] sm:$0xff]
        %v652 = vld [vmem:[%s310 + $0x88] sm:$0xff]
        %v653 = vld [vmem:[%s310 + $0x90] sm:$0xff]
        %v654 = vld [vmem:[%s310 + $0x98] sm:$0xff]
        %v655 = vld [vmem:[%s310 + $0xa0] sm:$0xff]
        %v656 = vld [vmem:[%s310 + $0xa8] sm:$0xff]
        %v657 = vld [vmem:[%s310 + $0xb0] sm:$0xff]
        %v658 = vld [vmem:[%s310 + $0xb8] sm:$0xff]
        %v659 = vld [vmem:[%s310 + $0xc0] sm:$0xff]
        %v660 = vld [vmem:[%s310 + $0xc8] sm:$0xff]
        %v661 = vld [vmem:[%s310 + $0xd0] sm:$0xff]
        %v662 = vld [vmem:[%s310 + $0xd8] sm:$0xff]
        %v663 = vld [vmem:[%s310 + $0xe0] sm:$0xff]
        %v664 = vld [vmem:[%s310 + $0xe8] sm:$0xff]
        %v665 = vld [vmem:[%s310 + $0xf0] sm:$0xff]
        %v666 = vld [vmem:[%s310 + $0xf8] sm:$0xff]
        %v667 = vsel %vm277, %v635, %v603
        %v668 = vsel %vm277, %v636, %v604
        %v669 = vsel %vm277, %v637, %v605
        %v670 = vsel %vm277, %v638, %v606
        %v671 = vsel %vm277, %v639, %v607
        %v672 = vsel %vm277, %v640, %v608
        %v673 = vsel %vm277, %v641, %v609
        %v674 = vsel %vm277, %v642, %v610
        %v675 = vsel %vm277, %v643, %v611
        %v676 = vsel %vm277, %v644, %v612
        %v677 = vsel %vm277, %v645, %v613
        %v678 = vsel %vm277, %v646, %v614
        %v679 = vsel %vm277, %v647, %v615
        %v680 = vsel %vm277, %v648, %v616
        %v681 = vsel %vm277, %v649, %v617
        %v682 = vsel %vm277, %v650, %v618
        %v683 = vsel %vm277, %v651, %v619
        %v684 = vsel %vm277, %v652, %v620
        %v685 = vsel %vm277, %v653, %v621
        %v686 = vsel %vm277, %v654, %v622
        %v687 = vsel %vm277, %v655, %v623
        %v688 = vsel %vm277, %v656, %v624
        %v689 = vsel %vm277, %v657, %v625
        %v690 = vsel %vm277, %v658, %v626
        %v691 = vsel %vm277, %v659, %v627
        %v692 = vsel %vm277, %v660, %v628
        %v693 = vsel %vm277, %v661, %v629
        %v694 = vsel %vm277, %v662, %v630
        %v695 = vsel %vm277, %v663, %v631
        %v696 = vsel %vm277, %v664, %v632
        %v697 = vsel %vm277, %v665, %v633
        %v698 = vsel %vm277, %v666, %v634
        %s699 = scalar_lea.vmem %s205, 768 [#allocation4]
        %v700 = vld [vmem:[%s699] sm:$0xff]
        %v701 = vld [vmem:[%s699 + $0x8] sm:$0xff]
        %v702 = vld [vmem:[%s699 + $0x10] sm:$0xff]
        %v703 = vld [vmem:[%s699 + $0x18] sm:$0xff]
        %v704 = vld [vmem:[%s699 + $0x20] sm:$0xff]
        %v705 = vld [vmem:[%s699 + $0x28] sm:$0xff]
        %v706 = vld [vmem:[%s699 + $0x30] sm:$0xff]
        %v707 = vld [vmem:[%s699 + $0x38] sm:$0xff]
        %v708 = vld [vmem:[%s699 + $0x40] sm:$0xff]
        %v709 = vld [vmem:[%s699 + $0x48] sm:$0xff]
        %v710 = vld [vmem:[%s699 + $0x50] sm:$0xff]
        %v711 = vld [vmem:[%s699 + $0x58] sm:$0xff]
        %v712 = vld [vmem:[%s699 + $0x60] sm:$0xff]
        %v713 = vld [vmem:[%s699 + $0x68] sm:$0xff]
        %v714 = vld [vmem:[%s699 + $0x70] sm:$0xff]
        %v715 = vld [vmem:[%s699 + $0x78] sm:$0xff]
        %v716 = vld [vmem:[%s699 + $0x80] sm:$0xff]
        %v717 = vld [vmem:[%s699 + $0x88] sm:$0xff]
        %v718 = vld [vmem:[%s699 + $0x90] sm:$0xff]
        %v719 = vld [vmem:[%s699 + $0x98] sm:$0xff]
        %v720 = vld [vmem:[%s699 + $0xa0] sm:$0xff]
        %v721 = vld [vmem:[%s699 + $0xa8] sm:$0xff]
        %v722 = vld [vmem:[%s699 + $0xb0] sm:$0xff]
        %v723 = vld [vmem:[%s699 + $0xb8] sm:$0xff]
        %v724 = vld [vmem:[%s699 + $0xc0] sm:$0xff]
        %v725 = vld [vmem:[%s699 + $0xc8] sm:$0xff]
        %v726 = vld [vmem:[%s699 + $0xd0] sm:$0xff]
        %v727 = vld [vmem:[%s699 + $0xd8] sm:$0xff]
        %v728 = vld [vmem:[%s699 + $0xe0] sm:$0xff]
        %v729 = vld [vmem:[%s699 + $0xe8] sm:$0xff]
        %v730 = vld [vmem:[%s699 + $0xf0] sm:$0xff]
        %v731 = vld [vmem:[%s699 + $0xf8] sm:$0xff]
        %v732 = vsel %vm344, %v700, %v667
        %v733 = vsel %vm344, %v701, %v668
        %v734 = vsel %vm344, %v702, %v669
        %v735 = vsel %vm344, %v703, %v670
        %v736 = vsel %vm344, %v704, %v671
        %v737 = vsel %vm344, %v705, %v672
        %v738 = vsel %vm344, %v706, %v673
        %v739 = vsel %vm344, %v707, %v674
        %v740 = vsel %vm344, %v708, %v675
        %v741 = vsel %vm344, %v709, %v676
        %v742 = vsel %vm344, %v710, %v677
        %v743 = vsel %vm344, %v711, %v678
        %v744 = vsel %vm344, %v712, %v679
        %v745 = vsel %vm344, %v713, %v680
        %v746 = vsel %vm344, %v714, %v681
        %v747 = vsel %vm344, %v715, %v682
        %v748 = vsel %vm344, %v716, %v683
        %v749 = vsel %vm344, %v717, %v684
        %v750 = vsel %vm344, %v718, %v685
        %v751 = vsel %vm344, %v719, %v686
        %v752 = vsel %vm344, %v720, %v687
        %v753 = vsel %vm344, %v721, %v688
        %v754 = vsel %vm344, %v722, %v689
        %v755 = vsel %vm344, %v723, %v690
        %v756 = vsel %vm344, %v724, %v691
        %v757 = vsel %vm344, %v725, %v692
        %v758 = vsel %vm344, %v726, %v693
        %v759 = vsel %vm344, %v727, %v694
        %v760 = vsel %vm344, %v728, %v695
        %v761 = vsel %vm344, %v729, %v696
        %v762 = vsel %vm344, %v730, %v697
        %v763 = vsel %vm344, %v731, %v698
        %s764 = scalar_lea.vmem [#allocation3], 512
        %765 = vst [vmem:[%s764] sm:$0xff] %v732
        %766 = vst [vmem:[%s764 + $0x8] sm:$0xff] %v733
        %767 = vst [vmem:[%s764 + $0x10] sm:$0xff] %v734
        %768 = vst [vmem:[%s764 + $0x18] sm:$0xff] %v735
        %769 = vst [vmem:[%s764 + $0x20] sm:$0xff] %v736
        %770 = vst [vmem:[%s764 + $0x28] sm:$0xff] %v737
        %771 = vst [vmem:[%s764 + $0x30] sm:$0xff] %v738
        %772 = vst [vmem:[%s764 + $0x38] sm:$0xff] %v739
        %773 = vst [vmem:[%s764 + $0x40] sm:$0xff] %v740
        %774 = vst [vmem:[%s764 + $0x48] sm:$0xff] %v741
        %775 = vst [vmem:[%s764 + $0x50] sm:$0xff] %v742
        %776 = vst [vmem:[%s764 + $0x58] sm:$0xff] %v743
        %777 = vst [vmem:[%s764 + $0x60] sm:$0xff] %v744
        %778 = vst [vmem:[%s764 + $0x68] sm:$0xff] %v745
        %779 = vst [vmem:[%s764 + $0x70] sm:$0xff] %v746
        %780 = vst [vmem:[%s764 + $0x78] sm:$0xff] %v747
        %781 = vst [vmem:[%s764 + $0x80] sm:$0xff] %v748
        %782 = vst [vmem:[%s764 + $0x88] sm:$0xff] %v749
        %783 = vst [vmem:[%s764 + $0x90] sm:$0xff] %v750
        %784 = vst [vmem:[%s764 + $0x98] sm:$0xff] %v751
        %785 = vst [vmem:[%s764 + $0xa0] sm:$0xff] %v752
        %786 = vst [vmem:[%s764 + $0xa8] sm:$0xff] %v753
        %787 = vst [vmem:[%s764 + $0xb0] sm:$0xff] %v754
        %788 = vst [vmem:[%s764 + $0xb8] sm:$0xff] %v755
        %789 = vst [vmem:[%s764 + $0xc0] sm:$0xff] %v756
        %790 = vst [vmem:[%s764 + $0xc8] sm:$0xff] %v757
        %791 = vst [vmem:[%s764 + $0xd0] sm:$0xff] %v758
        %792 = vst [vmem:[%s764 + $0xd8] sm:$0xff] %v759
        %793 = vst [vmem:[%s764 + $0xe0] sm:$0xff] %v760
        %794 = vst [vmem:[%s764 + $0xe8] sm:$0xff] %v761
        %795 = vst [vmem:[%s764 + $0xf0] sm:$0xff] %v762
        %796 = vst [vmem:[%s764 + $0xf8] sm:$0xff] %v763
        %v797 = vld [vmem:[%s699] sm:$0xff]
        %v798 = vld [vmem:[%s699 + $0x8] sm:$0xff]
        %v799 = vld [vmem:[%s699 + $0x10] sm:$0xff]
        %v800 = vld [vmem:[%s699 + $0x18] sm:$0xff]
        %v801 = vld [vmem:[%s699 + $0x20] sm:$0xff]
        %v802 = vld [vmem:[%s699 + $0x28] sm:$0xff]
        %v803 = vld [vmem:[%s699 + $0x30] sm:$0xff]
        %v804 = vld [vmem:[%s699 + $0x38] sm:$0xff]
        %v805 = vld [vmem:[%s699 + $0x40] sm:$0xff]
        %v806 = vld [vmem:[%s699 + $0x48] sm:$0xff]
        %v807 = vld [vmem:[%s699 + $0x50] sm:$0xff]
        %v808 = vld [vmem:[%s699 + $0x58] sm:$0xff]
        %v809 = vld [vmem:[%s699 + $0x60] sm:$0xff]
        %v810 = vld [vmem:[%s699 + $0x68] sm:$0xff]
        %v811 = vld [vmem:[%s699 + $0x70] sm:$0xff]
        %v812 = vld [vmem:[%s699 + $0x78] sm:$0xff]
        %v813 = vld [vmem:[%s699 + $0x80] sm:$0xff]
        %v814 = vld [vmem:[%s699 + $0x88] sm:$0xff]
        %v815 = vld [vmem:[%s699 + $0x90] sm:$0xff]
        %v816 = vld [vmem:[%s699 + $0x98] sm:$0xff]
        %v817 = vld [vmem:[%s699 + $0xa0] sm:$0xff]
        %v818 = vld [vmem:[%s699 + $0xa8] sm:$0xff]
        %v819 = vld [vmem:[%s699 + $0xb0] sm:$0xff]
        %v820 = vld [vmem:[%s699 + $0xb8] sm:$0xff]
        %v821 = vld [vmem:[%s699 + $0xc0] sm:$0xff]
        %v822 = vld [vmem:[%s699 + $0xc8] sm:$0xff]
        %v823 = vld [vmem:[%s699 + $0xd0] sm:$0xff]
        %v824 = vld [vmem:[%s699 + $0xd8] sm:$0xff]
        %v825 = vld [vmem:[%s699 + $0xe0] sm:$0xff]
        %v826 = vld [vmem:[%s699 + $0xe8] sm:$0xff]
        %v827 = vld [vmem:[%s699 + $0xf0] sm:$0xff]
        %v828 = vld [vmem:[%s699 + $0xf8] sm:$0xff]
        %v829 = vld [vmem:[%s505] sm:$0xff]
        %v830 = vld [vmem:[%s505 + $0x8] sm:$0xff]
        %v831 = vld [vmem:[%s505 + $0x10] sm:$0xff]
        %v832 = vld [vmem:[%s505 + $0x18] sm:$0xff]
        %v833 = vld [vmem:[%s505 + $0x20] sm:$0xff]
        %v834 = vld [vmem:[%s505 + $0x28] sm:$0xff]
        %v835 = vld [vmem:[%s505 + $0x30] sm:$0xff]
        %v836 = vld [vmem:[%s505 + $0x38] sm:$0xff]
        %v837 = vld [vmem:[%s505 + $0x40] sm:$0xff]
        %v838 = vld [vmem:[%s505 + $0x48] sm:$0xff]
        %v839 = vld [vmem:[%s505 + $0x50] sm:$0xff]
        %v840 = vld [vmem:[%s505 + $0x58] sm:$0xff]
        %v841 = vld [vmem:[%s505 + $0x60] sm:$0xff]
        %v842 = vld [vmem:[%s505 + $0x68] sm:$0xff]
        %v843 = vld [vmem:[%s505 + $0x70] sm:$0xff]
        %v844 = vld [vmem:[%s505 + $0x78] sm:$0xff]
        %v845 = vld [vmem:[%s505 + $0x80] sm:$0xff]
        %v846 = vld [vmem:[%s505 + $0x88] sm:$0xff]
        %v847 = vld [vmem:[%s505 + $0x90] sm:$0xff]
        %v848 = vld [vmem:[%s505 + $0x98] sm:$0xff]
        %v849 = vld [vmem:[%s505 + $0xa0] sm:$0xff]
        %v850 = vld [vmem:[%s505 + $0xa8] sm:$0xff]
        %v851 = vld [vmem:[%s505 + $0xb0] sm:$0xff]
        %v852 = vld [vmem:[%s505 + $0xb8] sm:$0xff]
        %v853 = vld [vmem:[%s505 + $0xc0] sm:$0xff]
        %v854 = vld [vmem:[%s505 + $0xc8] sm:$0xff]
        %v855 = vld [vmem:[%s505 + $0xd0] sm:$0xff]
        %v856 = vld [vmem:[%s505 + $0xd8] sm:$0xff]
        %v857 = vld [vmem:[%s505 + $0xe0] sm:$0xff]
        %v858 = vld [vmem:[%s505 + $0xe8] sm:$0xff]
        %v859 = vld [vmem:[%s505 + $0xf0] sm:$0xff]
        %v860 = vld [vmem:[%s505 + $0xf8] sm:$0xff]
        %v861 = vsel %vm277, %v829, %v797
        %v862 = vsel %vm277, %v830, %v798
        %v863 = vsel %vm277, %v831, %v799
        %v864 = vsel %vm277, %v832, %v800
        %v865 = vsel %vm277, %v833, %v801
        %v866 = vsel %vm277, %v834, %v802
        %v867 = vsel %vm277, %v835, %v803
        %v868 = vsel %vm277, %v836, %v804
        %v869 = vsel %vm277, %v837, %v805
        %v870 = vsel %vm277, %v838, %v806
        %v871 = vsel %vm277, %v839, %v807
        %v872 = vsel %vm277, %v840, %v808
        %v873 = vsel %vm277, %v841, %v809
        %v874 = vsel %vm277, %v842, %v810
        %v875 = vsel %vm277, %v843, %v811
        %v876 = vsel %vm277, %v844, %v812
        %v877 = vsel %vm277, %v845, %v813
        %v878 = vsel %vm277, %v846, %v814
        %v879 = vsel %vm277, %v847, %v815
        %v880 = vsel %vm277, %v848, %v816
        %v881 = vsel %vm277, %v849, %v817
        %v882 = vsel %vm277, %v850, %v818
        %v883 = vsel %vm277, %v851, %v819
        %v884 = vsel %vm277, %v852, %v820
        %v885 = vsel %vm277, %v853, %v821
        %v886 = vsel %vm277, %v854, %v822
        %v887 = vsel %vm277, %v855, %v823
        %v888 = vsel %vm277, %v856, %v824
        %v889 = vsel %vm277, %v857, %v825
        %v890 = vsel %vm277, %v858, %v826
        %v891 = vsel %vm277, %v859, %v827
        %v892 = vsel %vm277, %v860, %v828
        %s893 = scalar_lea.vmem %s205, 1024 [#allocation4]
        %v894 = vld [vmem:[%s893] sm:$0xff]
        %v895 = vld [vmem:[%s893 + $0x8] sm:$0xff]
        %v896 = vld [vmem:[%s893 + $0x10] sm:$0xff]
        %v897 = vld [vmem:[%s893 + $0x18] sm:$0xff]
        %v898 = vld [vmem:[%s893 + $0x20] sm:$0xff]
        %v899 = vld [vmem:[%s893 + $0x28] sm:$0xff]
        %v900 = vld [vmem:[%s893 + $0x30] sm:$0xff]
        %v901 = vld [vmem:[%s893 + $0x38] sm:$0xff]
        %v902 = vld [vmem:[%s893 + $0x40] sm:$0xff]
        %v903 = vld [vmem:[%s893 + $0x48] sm:$0xff]
        %v904 = vld [vmem:[%s893 + $0x50] sm:$0xff]
        %v905 = vld [vmem:[%s893 + $0x58] sm:$0xff]
        %v906 = vld [vmem:[%s893 + $0x60] sm:$0xff]
        %v907 = vld [vmem:[%s893 + $0x68] sm:$0xff]
        %v908 = vld [vmem:[%s893 + $0x70] sm:$0xff]
        %v909 = vld [vmem:[%s893 + $0x78] sm:$0xff]
        %v910 = vld [vmem:[%s893 + $0x80] sm:$0xff]
        %v911 = vld [vmem:[%s893 + $0x88] sm:$0xff]
        %v912 = vld [vmem:[%s893 + $0x90] sm:$0xff]
        %v913 = vld [vmem:[%s893 + $0x98] sm:$0xff]
        %v914 = vld [vmem:[%s893 + $0xa0] sm:$0xff]
        %v915 = vld [vmem:[%s893 + $0xa8] sm:$0xff]
        %v916 = vld [vmem:[%s893 + $0xb0] sm:$0xff]
        %v917 = vld [vmem:[%s893 + $0xb8] sm:$0xff]
        %v918 = vld [vmem:[%s893 + $0xc0] sm:$0xff]
        %v919 = vld [vmem:[%s893 + $0xc8] sm:$0xff]
        %v920 = vld [vmem:[%s893 + $0xd0] sm:$0xff]
        %v921 = vld [vmem:[%s893 + $0xd8] sm:$0xff]
        %v922 = vld [vmem:[%s893 + $0xe0] sm:$0xff]
        %v923 = vld [vmem:[%s893 + $0xe8] sm:$0xff]
        %v924 = vld [vmem:[%s893 + $0xf0] sm:$0xff]
        %v925 = vld [vmem:[%s893 + $0xf8] sm:$0xff]
        %v926 = vsel %vm344, %v894, %v861
        %v927 = vsel %vm344, %v895, %v862
        %v928 = vsel %vm344, %v896, %v863
        %v929 = vsel %vm344, %v897, %v864
        %v930 = vsel %vm344, %v898, %v865
        %v931 = vsel %vm344, %v899, %v866
        %v932 = vsel %vm344, %v900, %v867
        %v933 = vsel %vm344, %v901, %v868
        %v934 = vsel %vm344, %v902, %v869
        %v935 = vsel %vm344, %v903, %v870
        %v936 = vsel %vm344, %v904, %v871
        %v937 = vsel %vm344, %v905, %v872
        %v938 = vsel %vm344, %v906, %v873
        %v939 = vsel %vm344, %v907, %v874
        %v940 = vsel %vm344, %v908, %v875
        %v941 = vsel %vm344, %v909, %v876
        %v942 = vsel %vm344, %v910, %v877
        %v943 = vsel %vm344, %v911, %v878
        %v944 = vsel %vm344, %v912, %v879
        %v945 = vsel %vm344, %v913, %v880
        %v946 = vsel %vm344, %v914, %v881
        %v947 = vsel %vm344, %v915, %v882
        %v948 = vsel %vm344, %v916, %v883
        %v949 = vsel %vm344, %v917, %v884
        %v950 = vsel %vm344, %v918, %v885
        %v951 = vsel %vm344, %v919, %v886
        %v952 = vsel %vm344, %v920, %v887
        %v953 = vsel %vm344, %v921, %v888
        %v954 = vsel %vm344, %v922, %v889
        %v955 = vsel %vm344, %v923, %v890
        %v956 = vsel %vm344, %v924, %v891
        %v957 = vsel %vm344, %v925, %v892
        %s958 = scalar_lea.vmem [#allocation3], 768
        %959 = vst [vmem:[%s958] sm:$0xff] %v926
        %960 = vst [vmem:[%s958 + $0x8] sm:$0xff] %v927
        %961 = vst [vmem:[%s958 + $0x10] sm:$0xff] %v928
        %962 = vst [vmem:[%s958 + $0x18] sm:$0xff] %v929
        %963 = vst [vmem:[%s958 + $0x20] sm:$0xff] %v930
        %964 = vst [vmem:[%s958 + $0x28] sm:$0xff] %v931
        %965 = vst [vmem:[%s958 + $0x30] sm:$0xff] %v932
        %966 = vst [vmem:[%s958 + $0x38] sm:$0xff] %v933
        %967 = vst [vmem:[%s958 + $0x40] sm:$0xff] %v934
        %968 = vst [vmem:[%s958 + $0x48] sm:$0xff] %v935
        %969 = vst [vmem:[%s958 + $0x50] sm:$0xff] %v936
        %970 = vst [vmem:[%s958 + $0x58] sm:$0xff] %v937
        %971 = vst [vmem:[%s958 + $0x60] sm:$0xff] %v938
        %972 = vst [vmem:[%s958 + $0x68] sm:$0xff] %v939
        %973 = vst [vmem:[%s958 + $0x70] sm:$0xff] %v940
        %974 = vst [vmem:[%s958 + $0x78] sm:$0xff] %v941
        %975 = vst [vmem:[%s958 + $0x80] sm:$0xff] %v942
        %976 = vst [vmem:[%s958 + $0x88] sm:$0xff] %v943
        %977 = vst [vmem:[%s958 + $0x90] sm:$0xff] %v944
        %978 = vst [vmem:[%s958 + $0x98] sm:$0xff] %v945
        %979 = vst [vmem:[%s958 + $0xa0] sm:$0xff] %v946
        %980 = vst [vmem:[%s958 + $0xa8] sm:$0xff] %v947
        %981 = vst [vmem:[%s958 + $0xb0] sm:$0xff] %v948
        %982 = vst [vmem:[%s958 + $0xb8] sm:$0xff] %v949
        %983 = vst [vmem:[%s958 + $0xc0] sm:$0xff] %v950
        %984 = vst [vmem:[%s958 + $0xc8] sm:$0xff] %v951
        %985 = vst [vmem:[%s958 + $0xd0] sm:$0xff] %v952
        %986 = vst [vmem:[%s958 + $0xd8] sm:$0xff] %v953
        %987 = vst [vmem:[%s958 + $0xe0] sm:$0xff] %v954
        %988 = vst [vmem:[%s958 + $0xe8] sm:$0xff] %v955
        %989 = vst [vmem:[%s958 + $0xf0] sm:$0xff] %v956
        %990 = vst [vmem:[%s958 + $0xf8] sm:$0xff] %v957
        %v991 = vld [vmem:[%s893] sm:$0xff]
        %v992 = vld [vmem:[%s893 + $0x8] sm:$0xff]
        %v993 = vld [vmem:[%s893 + $0x10] sm:$0xff]
        %v994 = vld [vmem:[%s893 + $0x18] sm:$0xff]
        %v995 = vld [vmem:[%s893 + $0x20] sm:$0xff]
        %v996 = vld [vmem:[%s893 + $0x28] sm:$0xff]
        %v997 = vld [vmem:[%s893 + $0x30] sm:$0xff]
        %v998 = vld [vmem:[%s893 + $0x38] sm:$0xff]
        %v999 = vld [vmem:[%s893 + $0x40] sm:$0xff]
        %v1000 = vld [vmem:[%s893 + $0x48] sm:$0xff]
        %v1001 = vld [vmem:[%s893 + $0x50] sm:$0xff]
        %v1002 = vld [vmem:[%s893 + $0x58] sm:$0xff]
        %v1003 = vld [vmem:[%s893 + $0x60] sm:$0xff]
        %v1004 = vld [vmem:[%s893 + $0x68] sm:$0xff]
        %v1005 = vld [vmem:[%s893 + $0x70] sm:$0xff]
        %v1006 = vld [vmem:[%s893 + $0x78] sm:$0xff]
        %v1007 = vld [vmem:[%s893 + $0x80] sm:$0xff]
        %v1008 = vld [vmem:[%s893 + $0x88] sm:$0xff]
        %v1009 = vld [vmem:[%s893 + $0x90] sm:$0xff]
        %v1010 = vld [vmem:[%s893 + $0x98] sm:$0xff]
        %v1011 = vld [vmem:[%s893 + $0xa0] sm:$0xff]
        %v1012 = vld [vmem:[%s893 + $0xa8] sm:$0xff]
        %v1013 = vld [vmem:[%s893 + $0xb0] sm:$0xff]
        %v1014 = vld [vmem:[%s893 + $0xb8] sm:$0xff]
        %v1015 = vld [vmem:[%s893 + $0xc0] sm:$0xff]
        %v1016 = vld [vmem:[%s893 + $0xc8] sm:$0xff]
        %v1017 = vld [vmem:[%s893 + $0xd0] sm:$0xff]
        %v1018 = vld [vmem:[%s893 + $0xd8] sm:$0xff]
        %v1019 = vld [vmem:[%s893 + $0xe0] sm:$0xff]
        %v1020 = vld [vmem:[%s893 + $0xe8] sm:$0xff]
        %v1021 = vld [vmem:[%s893 + $0xf0] sm:$0xff]
        %v1022 = vld [vmem:[%s893 + $0xf8] sm:$0xff]
        %v1023 = vld [vmem:[%s699] sm:$0xff]
        %v1024 = vld [vmem:[%s699 + $0x8] sm:$0xff]
        %v1025 = vld [vmem:[%s699 + $0x10] sm:$0xff]
        %v1026 = vld [vmem:[%s699 + $0x18] sm:$0xff]
        %v1027 = vld [vmem:[%s699 + $0x20] sm:$0xff]
        %v1028 = vld [vmem:[%s699 + $0x28] sm:$0xff]
        %v1029 = vld [vmem:[%s699 + $0x30] sm:$0xff]
        %v1030 = vld [vmem:[%s699 + $0x38] sm:$0xff]
        %v1031 = vld [vmem:[%s699 + $0x40] sm:$0xff]
        %v1032 = vld [vmem:[%s699 + $0x48] sm:$0xff]
        %v1033 = vld [vmem:[%s699 + $0x50] sm:$0xff]
        %v1034 = vld [vmem:[%s699 + $0x58] sm:$0xff]
        %v1035 = vld [vmem:[%s699 + $0x60] sm:$0xff]
        %v1036 = vld [vmem:[%s699 + $0x68] sm:$0xff]
        %v1037 = vld [vmem:[%s699 + $0x70] sm:$0xff]
        %v1038 = vld [vmem:[%s699 + $0x78] sm:$0xff]
        %v1039 = vld [vmem:[%s699 + $0x80] sm:$0xff]
        %v1040 = vld [vmem:[%s699 + $0x88] sm:$0xff]
        %v1041 = vld [vmem:[%s699 + $0x90] sm:$0xff]
        %v1042 = vld [vmem:[%s699 + $0x98] sm:$0xff]
        %v1043 = vld [vmem:[%s699 + $0xa0] sm:$0xff]
        %v1044 = vld [vmem:[%s699 + $0xa8] sm:$0xff]
        %v1045 = vld [vmem:[%s699 + $0xb0] sm:$0xff]
        %v1046 = vld [vmem:[%s699 + $0xb8] sm:$0xff]
        %v1047 = vld [vmem:[%s699 + $0xc0] sm:$0xff]
        %v1048 = vld [vmem:[%s699 + $0xc8] sm:$0xff]
        %v1049 = vld [vmem:[%s699 + $0xd0] sm:$0xff]
        %v1050 = vld [vmem:[%s699 + $0xd8] sm:$0xff]
        %v1051 = vld [vmem:[%s699 + $0xe0] sm:$0xff]
        %v1052 = vld [vmem:[%s699 + $0xe8] sm:$0xff]
        %v1053 = vld [vmem:[%s699 + $0xf0] sm:$0xff]
        %v1054 = vld [vmem:[%s699 + $0xf8] sm:$0xff]
        %v1055 = vsel %vm277, %v1023, %v991
        %v1056 = vsel %vm277, %v1024, %v992
        %v1057 = vsel %vm277, %v1025, %v993
        %v1058 = vsel %vm277, %v1026, %v994
        %v1059 = vsel %vm277, %v1027, %v995
        %v1060 = vsel %vm277, %v1028, %v996
        %v1061 = vsel %vm277, %v1029, %v997
        %v1062 = vsel %vm277, %v1030, %v998
        %v1063 = vsel %vm277, %v1031, %v999
        %v1064 = vsel %vm277, %v1032, %v1000
        %v1065 = vsel %vm277, %v1033, %v1001
        %v1066 = vsel %vm277, %v1034, %v1002
        %v1067 = vsel %vm277, %v1035, %v1003
        %v1068 = vsel %vm277, %v1036, %v1004
        %v1069 = vsel %vm277, %v1037, %v1005
        %v1070 = vsel %vm277, %v1038, %v1006
        %v1071 = vsel %vm277, %v1039, %v1007
        %v1072 = vsel %vm277, %v1040, %v1008
        %v1073 = vsel %vm277, %v1041, %v1009
        %v1074 = vsel %vm277, %v1042, %v1010
        %v1075 = vsel %vm277, %v1043, %v1011
        %v1076 = vsel %vm277, %v1044, %v1012
        %v1077 = vsel %vm277, %v1045, %v1013
        %v1078 = vsel %vm277, %v1046, %v1014
        %v1079 = vsel %vm277, %v1047, %v1015
        %v1080 = vsel %vm277, %v1048, %v1016
        %v1081 = vsel %vm277, %v1049, %v1017
        %v1082 = vsel %vm277, %v1050, %v1018
        %v1083 = vsel %vm277, %v1051, %v1019
        %v1084 = vsel %vm277, %v1052, %v1020
        %v1085 = vsel %vm277, %v1053, %v1021
        %v1086 = vsel %vm277, %v1054, %v1022
        %s1087 = scalar_lea.vmem %s205, 1280 [#allocation4]
        %v1088 = vld [vmem:[%s1087] sm:$0xff]
        %v1089 = vld [vmem:[%s1087 + $0x8] sm:$0xff]
        %v1090 = vld [vmem:[%s1087 + $0x10] sm:$0xff]
        %v1091 = vld [vmem:[%s1087 + $0x18] sm:$0xff]
        %v1092 = vld [vmem:[%s1087 + $0x20] sm:$0xff]
        %v1093 = vld [vmem:[%s1087 + $0x28] sm:$0xff]
        %v1094 = vld [vmem:[%s1087 + $0x30] sm:$0xff]
        %v1095 = vld [vmem:[%s1087 + $0x38] sm:$0xff]
        %v1096 = vld [vmem:[%s1087 + $0x40] sm:$0xff]
        %v1097 = vld [vmem:[%s1087 + $0x48] sm:$0xff]
        %v1098 = vld [vmem:[%s1087 + $0x50] sm:$0xff]
        %v1099 = vld [vmem:[%s1087 + $0x58] sm:$0xff]
        %v1100 = vld [vmem:[%s1087 + $0x60] sm:$0xff]
        %v1101 = vld [vmem:[%s1087 + $0x68] sm:$0xff]
        %v1102 = vld [vmem:[%s1087 + $0x70] sm:$0xff]
        %v1103 = vld [vmem:[%s1087 + $0x78] sm:$0xff]
        %v1104 = vld [vmem:[%s1087 + $0x80] sm:$0xff]
        %v1105 = vld [vmem:[%s1087 + $0x88] sm:$0xff]
        %v1106 = vld [vmem:[%s1087 + $0x90] sm:$0xff]
        %v1107 = vld [vmem:[%s1087 + $0x98] sm:$0xff]
        %v1108 = vld [vmem:[%s1087 + $0xa0] sm:$0xff]
        %v1109 = vld [vmem:[%s1087 + $0xa8] sm:$0xff]
        %v1110 = vld [vmem:[%s1087 + $0xb0] sm:$0xff]
        %v1111 = vld [vmem:[%s1087 + $0xb8] sm:$0xff]
        %v1112 = vld [vmem:[%s1087 + $0xc0] sm:$0xff]
        %v1113 = vld [vmem:[%s1087 + $0xc8] sm:$0xff]
        %v1114 = vld [vmem:[%s1087 + $0xd0] sm:$0xff]
        %v1115 = vld [vmem:[%s1087 + $0xd8] sm:$0xff]
        %v1116 = vld [vmem:[%s1087 + $0xe0] sm:$0xff]
        %v1117 = vld [vmem:[%s1087 + $0xe8] sm:$0xff]
        %v1118 = vld [vmem:[%s1087 + $0xf0] sm:$0xff]
        %v1119 = vld [vmem:[%s1087 + $0xf8] sm:$0xff]
        %v1120 = vsel %vm344, %v1088, %v1055
        %v1121 = vsel %vm344, %v1089, %v1056
        %v1122 = vsel %vm344, %v1090, %v1057
        %v1123 = vsel %vm344, %v1091, %v1058
        %v1124 = vsel %vm344, %v1092, %v1059
        %v1125 = vsel %vm344, %v1093, %v1060
        %v1126 = vsel %vm344, %v1094, %v1061
        %v1127 = vsel %vm344, %v1095, %v1062
        %v1128 = vsel %vm344, %v1096, %v1063
        %v1129 = vsel %vm344, %v1097, %v1064
        %v1130 = vsel %vm344, %v1098, %v1065
        %v1131 = vsel %vm344, %v1099, %v1066
        %v1132 = vsel %vm344, %v1100, %v1067
        %v1133 = vsel %vm344, %v1101, %v1068
        %v1134 = vsel %vm344, %v1102, %v1069
        %v1135 = vsel %vm344, %v1103, %v1070
        %v1136 = vsel %vm344, %v1104, %v1071
        %v1137 = vsel %vm344, %v1105, %v1072
        %v1138 = vsel %vm344, %v1106, %v1073
        %v1139 = vsel %vm344, %v1107, %v1074
        %v1140 = vsel %vm344, %v1108, %v1075
        %v1141 = vsel %vm344, %v1109, %v1076
        %v1142 = vsel %vm344, %v1110, %v1077
        %v1143 = vsel %vm344, %v1111, %v1078
        %v1144 = vsel %vm344, %v1112, %v1079
        %v1145 = vsel %vm344, %v1113, %v1080
        %v1146 = vsel %vm344, %v1114, %v1081
        %v1147 = vsel %vm344, %v1115, %v1082
        %v1148 = vsel %vm344, %v1116, %v1083
        %v1149 = vsel %vm344, %v1117, %v1084
        %v1150 = vsel %vm344, %v1118, %v1085
        %v1151 = vsel %vm344, %v1119, %v1086
        %s1152 = scalar_lea.vmem [#allocation3], 1024
        %1153 = vst [vmem:[%s1152] sm:$0xff] %v1120
        %1154 = vst [vmem:[%s1152 + $0x8] sm:$0xff] %v1121
        %1155 = vst [vmem:[%s1152 + $0x10] sm:$0xff] %v1122
        %1156 = vst [vmem:[%s1152 + $0x18] sm:$0xff] %v1123
        %1157 = vst [vmem:[%s1152 + $0x20] sm:$0xff] %v1124
        %1158 = vst [vmem:[%s1152 + $0x28] sm:$0xff] %v1125
        %1159 = vst [vmem:[%s1152 + $0x30] sm:$0xff] %v1126
        %1160 = vst [vmem:[%s1152 + $0x38] sm:$0xff] %v1127
        %1161 = vst [vmem:[%s1152 + $0x40] sm:$0xff] %v1128
        %1162 = vst [vmem:[%s1152 + $0x48] sm:$0xff] %v1129
        %1163 = vst [vmem:[%s1152 + $0x50] sm:$0xff] %v1130
        %1164 = vst [vmem:[%s1152 + $0x58] sm:$0xff] %v1131
        %1165 = vst [vmem:[%s1152 + $0x60] sm:$0xff] %v1132
        %1166 = vst [vmem:[%s1152 + $0x68] sm:$0xff] %v1133
        %1167 = vst [vmem:[%s1152 + $0x70] sm:$0xff] %v1134
        %1168 = vst [vmem:[%s1152 + $0x78] sm:$0xff] %v1135
        %1169 = vst [vmem:[%s1152 + $0x80] sm:$0xff] %v1136
        %1170 = vst [vmem:[%s1152 + $0x88] sm:$0xff] %v1137
        %1171 = vst [vmem:[%s1152 + $0x90] sm:$0xff] %v1138
        %1172 = vst [vmem:[%s1152 + $0x98] sm:$0xff] %v1139
        %1173 = vst [vmem:[%s1152 + $0xa0] sm:$0xff] %v1140
        %1174 = vst [vmem:[%s1152 + $0xa8] sm:$0xff] %v1141
        %1175 = vst [vmem:[%s1152 + $0xb0] sm:$0xff] %v1142
        %1176 = vst [vmem:[%s1152 + $0xb8] sm:$0xff] %v1143
        %1177 = vst [vmem:[%s1152 + $0xc0] sm:$0xff] %v1144
        %1178 = vst [vmem:[%s1152 + $0xc8] sm:$0xff] %v1145
        %1179 = vst [vmem:[%s1152 + $0xd0] sm:$0xff] %v1146
        %1180 = vst [vmem:[%s1152 + $0xd8] sm:$0xff] %v1147
        %1181 = vst [vmem:[%s1152 + $0xe0] sm:$0xff] %v1148
        %1182 = vst [vmem:[%s1152 + $0xe8] sm:$0xff] %v1149
        %1183 = vst [vmem:[%s1152 + $0xf0] sm:$0xff] %v1150
        %1184 = vst [vmem:[%s1152 + $0xf8] sm:$0xff] %v1151
        %v1185 = vld [vmem:[%s1087] sm:$0xff]
        %v1186 = vld [vmem:[%s1087 + $0x8] sm:$0xff]
        %v1187 = vld [vmem:[%s1087 + $0x10] sm:$0xff]
        %v1188 = vld [vmem:[%s1087 + $0x18] sm:$0xff]
        %v1189 = vld [vmem:[%s1087 + $0x20] sm:$0xff]
        %v1190 = vld [vmem:[%s1087 + $0x28] sm:$0xff]
        %v1191 = vld [vmem:[%s1087 + $0x30] sm:$0xff]
        %v1192 = vld [vmem:[%s1087 + $0x38] sm:$0xff]
        %v1193 = vld [vmem:[%s1087 + $0x40] sm:$0xff]
        %v1194 = vld [vmem:[%s1087 + $0x48] sm:$0xff]
        %v1195 = vld [vmem:[%s1087 + $0x50] sm:$0xff]
        %v1196 = vld [vmem:[%s1087 + $0x58] sm:$0xff]
        %v1197 = vld [vmem:[%s1087 + $0x60] sm:$0xff]
        %v1198 = vld [vmem:[%s1087 + $0x68] sm:$0xff]
        %v1199 = vld [vmem:[%s1087 + $0x70] sm:$0xff]
        %v1200 = vld [vmem:[%s1087 + $0x78] sm:$0xff]
        %v1201 = vld [vmem:[%s1087 + $0x80] sm:$0xff]
        %v1202 = vld [vmem:[%s1087 + $0x88] sm:$0xff]
        %v1203 = vld [vmem:[%s1087 + $0x90] sm:$0xff]
        %v1204 = vld [vmem:[%s1087 + $0x98] sm:$0xff]
        %v1205 = vld [vmem:[%s1087 + $0xa0] sm:$0xff]
        %v1206 = vld [vmem:[%s1087 + $0xa8] sm:$0xff]
        %v1207 = vld [vmem:[%s1087 + $0xb0] sm:$0xff]
        %v1208 = vld [vmem:[%s1087 + $0xb8] sm:$0xff]
        %v1209 = vld [vmem:[%s1087 + $0xc0] sm:$0xff]
        %v1210 = vld [vmem:[%s1087 + $0xc8] sm:$0xff]
        %v1211 = vld [vmem:[%s1087 + $0xd0] sm:$0xff]
        %v1212 = vld [vmem:[%s1087 + $0xd8] sm:$0xff]
        %v1213 = vld [vmem:[%s1087 + $0xe0] sm:$0xff]
        %v1214 = vld [vmem:[%s1087 + $0xe8] sm:$0xff]
        %v1215 = vld [vmem:[%s1087 + $0xf0] sm:$0xff]
        %v1216 = vld [vmem:[%s1087 + $0xf8] sm:$0xff]
        %v1217 = vld [vmem:[%s893] sm:$0xff]
        %v1218 = vld [vmem:[%s893 + $0x8] sm:$0xff]
        %v1219 = vld [vmem:[%s893 + $0x10] sm:$0xff]
        %v1220 = vld [vmem:[%s893 + $0x18] sm:$0xff]
        %v1221 = vld [vmem:[%s893 + $0x20] sm:$0xff]
        %v1222 = vld [vmem:[%s893 + $0x28] sm:$0xff]
        %v1223 = vld [vmem:[%s893 + $0x30] sm:$0xff]
        %v1224 = vld [vmem:[%s893 + $0x38] sm:$0xff]
        %v1225 = vld [vmem:[%s893 + $0x40] sm:$0xff]
        %v1226 = vld [vmem:[%s893 + $0x48] sm:$0xff]
        %v1227 = vld [vmem:[%s893 + $0x50] sm:$0xff]
        %v1228 = vld [vmem:[%s893 + $0x58] sm:$0xff]
        %v1229 = vld [vmem:[%s893 + $0x60] sm:$0xff]
        %v1230 = vld [vmem:[%s893 + $0x68] sm:$0xff]
        %v1231 = vld [vmem:[%s893 + $0x70] sm:$0xff]
        %v1232 = vld [vmem:[%s893 + $0x78] sm:$0xff]
        %v1233 = vld [vmem:[%s893 + $0x80] sm:$0xff]
        %v1234 = vld [vmem:[%s893 + $0x88] sm:$0xff]
        %v1235 = vld [vmem:[%s893 + $0x90] sm:$0xff]
        %v1236 = vld [vmem:[%s893 + $0x98] sm:$0xff]
        %v1237 = vld [vmem:[%s893 + $0xa0] sm:$0xff]
        %v1238 = vld [vmem:[%s893 + $0xa8] sm:$0xff]
        %v1239 = vld [vmem:[%s893 + $0xb0] sm:$0xff]
        %v1240 = vld [vmem:[%s893 + $0xb8] sm:$0xff]
        %v1241 = vld [vmem:[%s893 + $0xc0] sm:$0xff]
        %v1242 = vld [vmem:[%s893 + $0xc8] sm:$0xff]
        %v1243 = vld [vmem:[%s893 + $0xd0] sm:$0xff]
        %v1244 = vld [vmem:[%s893 + $0xd8] sm:$0xff]
        %v1245 = vld [vmem:[%s893 + $0xe0] sm:$0xff]
        %v1246 = vld [vmem:[%s893 + $0xe8] sm:$0xff]
        %v1247 = vld [vmem:[%s893 + $0xf0] sm:$0xff]
        %v1248 = vld [vmem:[%s893 + $0xf8] sm:$0xff]
        %v1249 = vsel %vm277, %v1217, %v1185
        %v1250 = vsel %vm277, %v1218, %v1186
        %v1251 = vsel %vm277, %v1219, %v1187
        %v1252 = vsel %vm277, %v1220, %v1188
        %v1253 = vsel %vm277, %v1221, %v1189
        %v1254 = vsel %vm277, %v1222, %v1190
        %v1255 = vsel %vm277, %v1223, %v1191
        %v1256 = vsel %vm277, %v1224, %v1192
        %v1257 = vsel %vm277, %v1225, %v1193
        %v1258 = vsel %vm277, %v1226, %v1194
        %v1259 = vsel %vm277, %v1227, %v1195
        %v1260 = vsel %vm277, %v1228, %v1196
        %v1261 = vsel %vm277, %v1229, %v1197
        %v1262 = vsel %vm277, %v1230, %v1198
        %v1263 = vsel %vm277, %v1231, %v1199
        %v1264 = vsel %vm277, %v1232, %v1200
        %v1265 = vsel %vm277, %v1233, %v1201
        %v1266 = vsel %vm277, %v1234, %v1202
        %v1267 = vsel %vm277, %v1235, %v1203
        %v1268 = vsel %vm277, %v1236, %v1204
        %v1269 = vsel %vm277, %v1237, %v1205
        %v1270 = vsel %vm277, %v1238, %v1206
        %v1271 = vsel %vm277, %v1239, %v1207
        %v1272 = vsel %vm277, %v1240, %v1208
        %v1273 = vsel %vm277, %v1241, %v1209
        %v1274 = vsel %vm277, %v1242, %v1210
        %v1275 = vsel %vm277, %v1243, %v1211
        %v1276 = vsel %vm277, %v1244, %v1212
        %v1277 = vsel %vm277, %v1245, %v1213
        %v1278 = vsel %vm277, %v1246, %v1214
        %v1279 = vsel %vm277, %v1247, %v1215
        %v1280 = vsel %vm277, %v1248, %v1216
        %s1281 = scalar_lea.vmem %s205, 1536 [#allocation4]
        %v1282 = vld [vmem:[%s1281] sm:$0xff]
        %v1283 = vld [vmem:[%s1281 + $0x8] sm:$0xff]
        %v1284 = vld [vmem:[%s1281 + $0x10] sm:$0xff]
        %v1285 = vld [vmem:[%s1281 + $0x18] sm:$0xff]
        %v1286 = vld [vmem:[%s1281 + $0x20] sm:$0xff]
        %v1287 = vld [vmem:[%s1281 + $0x28] sm:$0xff]
        %v1288 = vld [vmem:[%s1281 + $0x30] sm:$0xff]
        %v1289 = vld [vmem:[%s1281 + $0x38] sm:$0xff]
        %v1290 = vld [vmem:[%s1281 + $0x40] sm:$0xff]
        %v1291 = vld [vmem:[%s1281 + $0x48] sm:$0xff]
        %v1292 = vld [vmem:[%s1281 + $0x50] sm:$0xff]
        %v1293 = vld [vmem:[%s1281 + $0x58] sm:$0xff]
        %v1294 = vld [vmem:[%s1281 + $0x60] sm:$0xff]
        %v1295 = vld [vmem:[%s1281 + $0x68] sm:$0xff]
        %v1296 = vld [vmem:[%s1281 + $0x70] sm:$0xff]
        %v1297 = vld [vmem:[%s1281 + $0x78] sm:$0xff]
        %v1298 = vld [vmem:[%s1281 + $0x80] sm:$0xff]
        %v1299 = vld [vmem:[%s1281 + $0x88] sm:$0xff]
        %v1300 = vld [vmem:[%s1281 + $0x90] sm:$0xff]
        %v1301 = vld [vmem:[%s1281 + $0x98] sm:$0xff]
        %v1302 = vld [vmem:[%s1281 + $0xa0] sm:$0xff]
        %v1303 = vld [vmem:[%s1281 + $0xa8] sm:$0xff]
        %v1304 = vld [vmem:[%s1281 + $0xb0] sm:$0xff]
        %v1305 = vld [vmem:[%s1281 + $0xb8] sm:$0xff]
        %v1306 = vld [vmem:[%s1281 + $0xc0] sm:$0xff]
        %v1307 = vld [vmem:[%s1281 + $0xc8] sm:$0xff]
        %v1308 = vld [vmem:[%s1281 + $0xd0] sm:$0xff]
        %v1309 = vld [vmem:[%s1281 + $0xd8] sm:$0xff]
        %v1310 = vld [vmem:[%s1281 + $0xe0] sm:$0xff]
        %v1311 = vld [vmem:[%s1281 + $0xe8] sm:$0xff]
        %v1312 = vld [vmem:[%s1281 + $0xf0] sm:$0xff]
        %v1313 = vld [vmem:[%s1281 + $0xf8] sm:$0xff]
        %v1314 = vsel %vm344, %v1282, %v1249
        %v1315 = vsel %vm344, %v1283, %v1250
        %v1316 = vsel %vm344, %v1284, %v1251
        %v1317 = vsel %vm344, %v1285, %v1252
        %v1318 = vsel %vm344, %v1286, %v1253
        %v1319 = vsel %vm344, %v1287, %v1254
        %v1320 = vsel %vm344, %v1288, %v1255
        %v1321 = vsel %vm344, %v1289, %v1256
        %v1322 = vsel %vm344, %v1290, %v1257
        %v1323 = vsel %vm344, %v1291, %v1258
        %v1324 = vsel %vm344, %v1292, %v1259
        %v1325 = vsel %vm344, %v1293, %v1260
        %v1326 = vsel %vm344, %v1294, %v1261
        %v1327 = vsel %vm344, %v1295, %v1262
        %v1328 = vsel %vm344, %v1296, %v1263
        %v1329 = vsel %vm344, %v1297, %v1264
        %v1330 = vsel %vm344, %v1298, %v1265
        %v1331 = vsel %vm344, %v1299, %v1266
        %v1332 = vsel %vm344, %v1300, %v1267
        %v1333 = vsel %vm344, %v1301, %v1268
        %v1334 = vsel %vm344, %v1302, %v1269
        %v1335 = vsel %vm344, %v1303, %v1270
        %v1336 = vsel %vm344, %v1304, %v1271
        %v1337 = vsel %vm344, %v1305, %v1272
        %v1338 = vsel %vm344, %v1306, %v1273
        %v1339 = vsel %vm344, %v1307, %v1274
        %v1340 = vsel %vm344, %v1308, %v1275
        %v1341 = vsel %vm344, %v1309, %v1276
        %v1342 = vsel %vm344, %v1310, %v1277
        %v1343 = vsel %vm344, %v1311, %v1278
        %v1344 = vsel %vm344, %v1312, %v1279
        %v1345 = vsel %vm344, %v1313, %v1280
        %s1346 = scalar_lea.vmem [#allocation3], 1280
        %1347 = vst [vmem:[%s1346] sm:$0xff] %v1314
        %1348 = vst [vmem:[%s1346 + $0x8] sm:$0xff] %v1315
        %1349 = vst [vmem:[%s1346 + $0x10] sm:$0xff] %v1316
        %1350 = vst [vmem:[%s1346 + $0x18] sm:$0xff] %v1317
        %1351 = vst [vmem:[%s1346 + $0x20] sm:$0xff] %v1318
        %1352 = vst [vmem:[%s1346 + $0x28] sm:$0xff] %v1319
        %1353 = vst [vmem:[%s1346 + $0x30] sm:$0xff] %v1320
        %1354 = vst [vmem:[%s1346 + $0x38] sm:$0xff] %v1321
        %1355 = vst [vmem:[%s1346 + $0x40] sm:$0xff] %v1322
        %1356 = vst [vmem:[%s1346 + $0x48] sm:$0xff] %v1323
        %1357 = vst [vmem:[%s1346 + $0x50] sm:$0xff] %v1324
        %1358 = vst [vmem:[%s1346 + $0x58] sm:$0xff] %v1325
        %1359 = vst [vmem:[%s1346 + $0x60] sm:$0xff] %v1326
        %1360 = vst [vmem:[%s1346 + $0x68] sm:$0xff] %v1327
        %1361 = vst [vmem:[%s1346 + $0x70] sm:$0xff] %v1328
        %1362 = vst [vmem:[%s1346 + $0x78] sm:$0xff] %v1329
        %1363 = vst [vmem:[%s1346 + $0x80] sm:$0xff] %v1330
        %1364 = vst [vmem:[%s1346 + $0x88] sm:$0xff] %v1331
        %1365 = vst [vmem:[%s1346 + $0x90] sm:$0xff] %v1332
        %1366 = vst [vmem:[%s1346 + $0x98] sm:$0xff] %v1333
        %1367 = vst [vmem:[%s1346 + $0xa0] sm:$0xff] %v1334
        %1368 = vst [vmem:[%s1346 + $0xa8] sm:$0xff] %v1335
        %1369 = vst [vmem:[%s1346 + $0xb0] sm:$0xff] %v1336
        %1370 = vst [vmem:[%s1346 + $0xb8] sm:$0xff] %v1337
        %1371 = vst [vmem:[%s1346 + $0xc0] sm:$0xff] %v1338
        %1372 = vst [vmem:[%s1346 + $0xc8] sm:$0xff] %v1339
        %1373 = vst [vmem:[%s1346 + $0xd0] sm:$0xff] %v1340
        %1374 = vst [vmem:[%s1346 + $0xd8] sm:$0xff] %v1341
        %1375 = vst [vmem:[%s1346 + $0xe0] sm:$0xff] %v1342
        %1376 = vst [vmem:[%s1346 + $0xe8] sm:$0xff] %v1343
        %1377 = vst [vmem:[%s1346 + $0xf0] sm:$0xff] %v1344
        %1378 = vst [vmem:[%s1346 + $0xf8] sm:$0xff] %v1345
        %v1379 = vld [vmem:[%s1281] sm:$0xff]
        %v1380 = vld [vmem:[%s1281 + $0x8] sm:$0xff]
        %v1381 = vld [vmem:[%s1281 + $0x10] sm:$0xff]
        %v1382 = vld [vmem:[%s1281 + $0x18] sm:$0xff]
        %v1383 = vld [vmem:[%s1281 + $0x20] sm:$0xff]
        %v1384 = vld [vmem:[%s1281 + $0x28] sm:$0xff]
        %v1385 = vld [vmem:[%s1281 + $0x30] sm:$0xff]
        %v1386 = vld [vmem:[%s1281 + $0x38] sm:$0xff]
        %v1387 = vld [vmem:[%s1281 + $0x40] sm:$0xff]
        %v1388 = vld [vmem:[%s1281 + $0x48] sm:$0xff]
        %v1389 = vld [vmem:[%s1281 + $0x50] sm:$0xff]
        %v1390 = vld [vmem:[%s1281 + $0x58] sm:$0xff]
        %v1391 = vld [vmem:[%s1281 + $0x60] sm:$0xff]
        %v1392 = vld [vmem:[%s1281 + $0x68] sm:$0xff]
        %v1393 = vld [vmem:[%s1281 + $0x70] sm:$0xff]
        %v1394 = vld [vmem:[%s1281 + $0x78] sm:$0xff]
        %v1395 = vld [vmem:[%s1281 + $0x80] sm:$0xff]
        %v1396 = vld [vmem:[%s1281 + $0x88] sm:$0xff]
        %v1397 = vld [vmem:[%s1281 + $0x90] sm:$0xff]
        %v1398 = vld [vmem:[%s1281 + $0x98] sm:$0xff]
        %v1399 = vld [vmem:[%s1281 + $0xa0] sm:$0xff]
        %v1400 = vld [vmem:[%s1281 + $0xa8] sm:$0xff]
        %v1401 = vld [vmem:[%s1281 + $0xb0] sm:$0xff]
        %v1402 = vld [vmem:[%s1281 + $0xb8] sm:$0xff]
        %v1403 = vld [vmem:[%s1281 + $0xc0] sm:$0xff]
        %v1404 = vld [vmem:[%s1281 + $0xc8] sm:$0xff]
        %v1405 = vld [vmem:[%s1281 + $0xd0] sm:$0xff]
        %v1406 = vld [vmem:[%s1281 + $0xd8] sm:$0xff]
        %v1407 = vld [vmem:[%s1281 + $0xe0] sm:$0xff]
        %v1408 = vld [vmem:[%s1281 + $0xe8] sm:$0xff]
        %v1409 = vld [vmem:[%s1281 + $0xf0] sm:$0xff]
        %v1410 = vld [vmem:[%s1281 + $0xf8] sm:$0xff]
        %v1411 = vld [vmem:[%s1087] sm:$0xff]
        %v1412 = vld [vmem:[%s1087 + $0x8] sm:$0xff]
        %v1413 = vld [vmem:[%s1087 + $0x10] sm:$0xff]
        %v1414 = vld [vmem:[%s1087 + $0x18] sm:$0xff]
        %v1415 = vld [vmem:[%s1087 + $0x20] sm:$0xff]
        %v1416 = vld [vmem:[%s1087 + $0x28] sm:$0xff]
        %v1417 = vld [vmem:[%s1087 + $0x30] sm:$0xff]
        %v1418 = vld [vmem:[%s1087 + $0x38] sm:$0xff]
        %v1419 = vld [vmem:[%s1087 + $0x40] sm:$0xff]
        %v1420 = vld [vmem:[%s1087 + $0x48] sm:$0xff]
        %v1421 = vld [vmem:[%s1087 + $0x50] sm:$0xff]
        %v1422 = vld [vmem:[%s1087 + $0x58] sm:$0xff]
        %v1423 = vld [vmem:[%s1087 + $0x60] sm:$0xff]
        %v1424 = vld [vmem:[%s1087 + $0x68] sm:$0xff]
        %v1425 = vld [vmem:[%s1087 + $0x70] sm:$0xff]
        %v1426 = vld [vmem:[%s1087 + $0x78] sm:$0xff]
        %v1427 = vld [vmem:[%s1087 + $0x80] sm:$0xff]
        %v1428 = vld [vmem:[%s1087 + $0x88] sm:$0xff]
        %v1429 = vld [vmem:[%s1087 + $0x90] sm:$0xff]
        %v1430 = vld [vmem:[%s1087 + $0x98] sm:$0xff]
        %v1431 = vld [vmem:[%s1087 + $0xa0] sm:$0xff]
        %v1432 = vld [vmem:[%s1087 + $0xa8] sm:$0xff]
        %v1433 = vld [vmem:[%s1087 + $0xb0] sm:$0xff]
        %v1434 = vld [vmem:[%s1087 + $0xb8] sm:$0xff]
        %v1435 = vld [vmem:[%s1087 + $0xc0] sm:$0xff]
        %v1436 = vld [vmem:[%s1087 + $0xc8] sm:$0xff]
        %v1437 = vld [vmem:[%s1087 + $0xd0] sm:$0xff]
        %v1438 = vld [vmem:[%s1087 + $0xd8] sm:$0xff]
        %v1439 = vld [vmem:[%s1087 + $0xe0] sm:$0xff]
        %v1440 = vld [vmem:[%s1087 + $0xe8] sm:$0xff]
        %v1441 = vld [vmem:[%s1087 + $0xf0] sm:$0xff]
        %v1442 = vld [vmem:[%s1087 + $0xf8] sm:$0xff]
        %v1443 = vsel %vm277, %v1411, %v1379
        %v1444 = vsel %vm277, %v1412, %v1380
        %v1445 = vsel %vm277, %v1413, %v1381
        %v1446 = vsel %vm277, %v1414, %v1382
        %v1447 = vsel %vm277, %v1415, %v1383
        %v1448 = vsel %vm277, %v1416, %v1384
        %v1449 = vsel %vm277, %v1417, %v1385
        %v1450 = vsel %vm277, %v1418, %v1386
        %v1451 = vsel %vm277, %v1419, %v1387
        %v1452 = vsel %vm277, %v1420, %v1388
        %v1453 = vsel %vm277, %v1421, %v1389
        %v1454 = vsel %vm277, %v1422, %v1390
        %v1455 = vsel %vm277, %v1423, %v1391
        %v1456 = vsel %vm277, %v1424, %v1392
        %v1457 = vsel %vm277, %v1425, %v1393
        %v1458 = vsel %vm277, %v1426, %v1394
        %v1459 = vsel %vm277, %v1427, %v1395
        %v1460 = vsel %vm277, %v1428, %v1396
        %v1461 = vsel %vm277, %v1429, %v1397
        %v1462 = vsel %vm277, %v1430, %v1398
        %v1463 = vsel %vm277, %v1431, %v1399
        %v1464 = vsel %vm277, %v1432, %v1400
        %v1465 = vsel %vm277, %v1433, %v1401
        %v1466 = vsel %vm277, %v1434, %v1402
        %v1467 = vsel %vm277, %v1435, %v1403
        %v1468 = vsel %vm277, %v1436, %v1404
        %v1469 = vsel %vm277, %v1437, %v1405
        %v1470 = vsel %vm277, %v1438, %v1406
        %v1471 = vsel %vm277, %v1439, %v1407
        %v1472 = vsel %vm277, %v1440, %v1408
        %v1473 = vsel %vm277, %v1441, %v1409
        %v1474 = vsel %vm277, %v1442, %v1410
        %s1475 = scalar_lea.vmem %s205, 1792 [#allocation4]
        %v1476 = vld [vmem:[%s1475] sm:$0xff]
        %v1477 = vld [vmem:[%s1475 + $0x8] sm:$0xff]
        %v1478 = vld [vmem:[%s1475 + $0x10] sm:$0xff]
        %v1479 = vld [vmem:[%s1475 + $0x18] sm:$0xff]
        %v1480 = vld [vmem:[%s1475 + $0x20] sm:$0xff]
        %v1481 = vld [vmem:[%s1475 + $0x28] sm:$0xff]
        %v1482 = vld [vmem:[%s1475 + $0x30] sm:$0xff]
        %v1483 = vld [vmem:[%s1475 + $0x38] sm:$0xff]
        %v1484 = vld [vmem:[%s1475 + $0x40] sm:$0xff]
        %v1485 = vld [vmem:[%s1475 + $0x48] sm:$0xff]
        %v1486 = vld [vmem:[%s1475 + $0x50] sm:$0xff]
        %v1487 = vld [vmem:[%s1475 + $0x58] sm:$0xff]
        %v1488 = vld [vmem:[%s1475 + $0x60] sm:$0xff]
        %v1489 = vld [vmem:[%s1475 + $0x68] sm:$0xff]
        %v1490 = vld [vmem:[%s1475 + $0x70] sm:$0xff]
        %v1491 = vld [vmem:[%s1475 + $0x78] sm:$0xff]
        %v1492 = vld [vmem:[%s1475 + $0x80] sm:$0xff]
        %v1493 = vld [vmem:[%s1475 + $0x88] sm:$0xff]
        %v1494 = vld [vmem:[%s1475 + $0x90] sm:$0xff]
        %v1495 = vld [vmem:[%s1475 + $0x98] sm:$0xff]
        %v1496 = vld [vmem:[%s1475 + $0xa0] sm:$0xff]
        %v1497 = vld [vmem:[%s1475 + $0xa8] sm:$0xff]
        %v1498 = vld [vmem:[%s1475 + $0xb0] sm:$0xff]
        %v1499 = vld [vmem:[%s1475 + $0xb8] sm:$0xff]
        %v1500 = vld [vmem:[%s1475 + $0xc0] sm:$0xff]
        %v1501 = vld [vmem:[%s1475 + $0xc8] sm:$0xff]
        %v1502 = vld [vmem:[%s1475 + $0xd0] sm:$0xff]
        %v1503 = vld [vmem:[%s1475 + $0xd8] sm:$0xff]
        %v1504 = vld [vmem:[%s1475 + $0xe0] sm:$0xff]
        %v1505 = vld [vmem:[%s1475 + $0xe8] sm:$0xff]
        %v1506 = vld [vmem:[%s1475 + $0xf0] sm:$0xff]
        %v1507 = vld [vmem:[%s1475 + $0xf8] sm:$0xff]
        %v1508 = vsel %vm344, %v1476, %v1443
        %v1509 = vsel %vm344, %v1477, %v1444
        %v1510 = vsel %vm344, %v1478, %v1445
        %v1511 = vsel %vm344, %v1479, %v1446
        %v1512 = vsel %vm344, %v1480, %v1447
        %v1513 = vsel %vm344, %v1481, %v1448
        %v1514 = vsel %vm344, %v1482, %v1449
        %v1515 = vsel %vm344, %v1483, %v1450
        %v1516 = vsel %vm344, %v1484, %v1451
        %v1517 = vsel %vm344, %v1485, %v1452
        %v1518 = vsel %vm344, %v1486, %v1453
        %v1519 = vsel %vm344, %v1487, %v1454
        %v1520 = vsel %vm344, %v1488, %v1455
        %v1521 = vsel %vm344, %v1489, %v1456
        %v1522 = vsel %vm344, %v1490, %v1457
        %v1523 = vsel %vm344, %v1491, %v1458
        %v1524 = vsel %vm344, %v1492, %v1459
        %v1525 = vsel %vm344, %v1493, %v1460
        %v1526 = vsel %vm344, %v1494, %v1461
        %v1527 = vsel %vm344, %v1495, %v1462
        %v1528 = vsel %vm344, %v1496, %v1463
        %v1529 = vsel %vm344, %v1497, %v1464
        %v1530 = vsel %vm344, %v1498, %v1465
        %v1531 = vsel %vm344, %v1499, %v1466
        %v1532 = vsel %vm344, %v1500, %v1467
        %v1533 = vsel %vm344, %v1501, %v1468
        %v1534 = vsel %vm344, %v1502, %v1469
        %v1535 = vsel %vm344, %v1503, %v1470
        %v1536 = vsel %vm344, %v1504, %v1471
        %v1537 = vsel %vm344, %v1505, %v1472
        %v1538 = vsel %vm344, %v1506, %v1473
        %v1539 = vsel %vm344, %v1507, %v1474
        %s1540 = scalar_lea.vmem [#allocation3], 1536
        %1541 = vst [vmem:[%s1540] sm:$0xff] %v1508
        %1542 = vst [vmem:[%s1540 + $0x8] sm:$0xff] %v1509
        %1543 = vst [vmem:[%s1540 + $0x10] sm:$0xff] %v1510
        %1544 = vst [vmem:[%s1540 + $0x18] sm:$0xff] %v1511
        %1545 = vst [vmem:[%s1540 + $0x20] sm:$0xff] %v1512
        %1546 = vst [vmem:[%s1540 + $0x28] sm:$0xff] %v1513
        %1547 = vst [vmem:[%s1540 + $0x30] sm:$0xff] %v1514
        %1548 = vst [vmem:[%s1540 + $0x38] sm:$0xff] %v1515
        %1549 = vst [vmem:[%s1540 + $0x40] sm:$0xff] %v1516
        %1550 = vst [vmem:[%s1540 + $0x48] sm:$0xff] %v1517
        %1551 = vst [vmem:[%s1540 + $0x50] sm:$0xff] %v1518
        %1552 = vst [vmem:[%s1540 + $0x58] sm:$0xff] %v1519
        %1553 = vst [vmem:[%s1540 + $0x60] sm:$0xff] %v1520
        %1554 = vst [vmem:[%s1540 + $0x68] sm:$0xff] %v1521
        %1555 = vst [vmem:[%s1540 + $0x70] sm:$0xff] %v1522
        %1556 = vst [vmem:[%s1540 + $0x78] sm:$0xff] %v1523
        %1557 = vst [vmem:[%s1540 + $0x80] sm:$0xff] %v1524
        %1558 = vst [vmem:[%s1540 + $0x88] sm:$0xff] %v1525
        %1559 = vst [vmem:[%s1540 + $0x90] sm:$0xff] %v1526
        %1560 = vst [vmem:[%s1540 + $0x98] sm:$0xff] %v1527
        %1561 = vst [vmem:[%s1540 + $0xa0] sm:$0xff] %v1528
        %1562 = vst [vmem:[%s1540 + $0xa8] sm:$0xff] %v1529
        %1563 = vst [vmem:[%s1540 + $0xb0] sm:$0xff] %v1530
        %1564 = vst [vmem:[%s1540 + $0xb8] sm:$0xff] %v1531
        %1565 = vst [vmem:[%s1540 + $0xc0] sm:$0xff] %v1532
        %1566 = vst [vmem:[%s1540 + $0xc8] sm:$0xff] %v1533
        %1567 = vst [vmem:[%s1540 + $0xd0] sm:$0xff] %v1534
        %1568 = vst [vmem:[%s1540 + $0xd8] sm:$0xff] %v1535
        %1569 = vst [vmem:[%s1540 + $0xe0] sm:$0xff] %v1536
        %1570 = vst [vmem:[%s1540 + $0xe8] sm:$0xff] %v1537
        %1571 = vst [vmem:[%s1540 + $0xf0] sm:$0xff] %v1538
        %1572 = vst [vmem:[%s1540 + $0xf8] sm:$0xff] %v1539
        %v1573 = vld [vmem:[%s1475] sm:$0xff]
        %v1574 = vld [vmem:[%s1475 + $0x8] sm:$0xff]
        %v1575 = vld [vmem:[%s1475 + $0x10] sm:$0xff]
        %v1576 = vld [vmem:[%s1475 + $0x18] sm:$0xff]
        %v1577 = vld [vmem:[%s1475 + $0x20] sm:$0xff]
        %v1578 = vld [vmem:[%s1475 + $0x28] sm:$0xff]
        %v1579 = vld [vmem:[%s1475 + $0x30] sm:$0xff]
        %v1580 = vld [vmem:[%s1475 + $0x38] sm:$0xff]
        %v1581 = vld [vmem:[%s1475 + $0x40] sm:$0xff]
        %v1582 = vld [vmem:[%s1475 + $0x48] sm:$0xff]
        %v1583 = vld [vmem:[%s1475 + $0x50] sm:$0xff]
        %v1584 = vld [vmem:[%s1475 + $0x58] sm:$0xff]
        %v1585 = vld [vmem:[%s1475 + $0x60] sm:$0xff]
        %v1586 = vld [vmem:[%s1475 + $0x68] sm:$0xff]
        %v1587 = vld [vmem:[%s1475 + $0x70] sm:$0xff]
        %v1588 = vld [vmem:[%s1475 + $0x78] sm:$0xff]
        %v1589 = vld [vmem:[%s1475 + $0x80] sm:$0xff]
        %v1590 = vld [vmem:[%s1475 + $0x88] sm:$0xff]
        %v1591 = vld [vmem:[%s1475 + $0x90] sm:$0xff]
        %v1592 = vld [vmem:[%s1475 + $0x98] sm:$0xff]
        %v1593 = vld [vmem:[%s1475 + $0xa0] sm:$0xff]
        %v1594 = vld [vmem:[%s1475 + $0xa8] sm:$0xff]
        %v1595 = vld [vmem:[%s1475 + $0xb0] sm:$0xff]
        %v1596 = vld [vmem:[%s1475 + $0xb8] sm:$0xff]
        %v1597 = vld [vmem:[%s1475 + $0xc0] sm:$0xff]
        %v1598 = vld [vmem:[%s1475 + $0xc8] sm:$0xff]
        %v1599 = vld [vmem:[%s1475 + $0xd0] sm:$0xff]
        %v1600 = vld [vmem:[%s1475 + $0xd8] sm:$0xff]
        %v1601 = vld [vmem:[%s1475 + $0xe0] sm:$0xff]
        %v1602 = vld [vmem:[%s1475 + $0xe8] sm:$0xff]
        %v1603 = vld [vmem:[%s1475 + $0xf0] sm:$0xff]
        %v1604 = vld [vmem:[%s1475 + $0xf8] sm:$0xff]
        %v1605 = vld [vmem:[%s1281] sm:$0xff]
        %v1606 = vld [vmem:[%s1281 + $0x8] sm:$0xff]
        %v1607 = vld [vmem:[%s1281 + $0x10] sm:$0xff]
        %v1608 = vld [vmem:[%s1281 + $0x18] sm:$0xff]
        %v1609 = vld [vmem:[%s1281 + $0x20] sm:$0xff]
        %v1610 = vld [vmem:[%s1281 + $0x28] sm:$0xff]
        %v1611 = vld [vmem:[%s1281 + $0x30] sm:$0xff]
        %v1612 = vld [vmem:[%s1281 + $0x38] sm:$0xff]
        %v1613 = vld [vmem:[%s1281 + $0x40] sm:$0xff]
        %v1614 = vld [vmem:[%s1281 + $0x48] sm:$0xff]
        %v1615 = vld [vmem:[%s1281 + $0x50] sm:$0xff]
        %v1616 = vld [vmem:[%s1281 + $0x58] sm:$0xff]
        %v1617 = vld [vmem:[%s1281 + $0x60] sm:$0xff]
        %v1618 = vld [vmem:[%s1281 + $0x68] sm:$0xff]
        %v1619 = vld [vmem:[%s1281 + $0x70] sm:$0xff]
        %v1620 = vld [vmem:[%s1281 + $0x78] sm:$0xff]
        %v1621 = vld [vmem:[%s1281 + $0x80] sm:$0xff]
        %v1622 = vld [vmem:[%s1281 + $0x88] sm:$0xff]
        %v1623 = vld [vmem:[%s1281 + $0x90] sm:$0xff]
        %v1624 = vld [vmem:[%s1281 + $0x98] sm:$0xff]
        %v1625 = vld [vmem:[%s1281 + $0xa0] sm:$0xff]
        %v1626 = vld [vmem:[%s1281 + $0xa8] sm:$0xff]
        %v1627 = vld [vmem:[%s1281 + $0xb0] sm:$0xff]
        %v1628 = vld [vmem:[%s1281 + $0xb8] sm:$0xff]
        %v1629 = vld [vmem:[%s1281 + $0xc0] sm:$0xff]
        %v1630 = vld [vmem:[%s1281 + $0xc8] sm:$0xff]
        %v1631 = vld [vmem:[%s1281 + $0xd0] sm:$0xff]
        %v1632 = vld [vmem:[%s1281 + $0xd8] sm:$0xff]
        %v1633 = vld [vmem:[%s1281 + $0xe0] sm:$0xff]
        %v1634 = vld [vmem:[%s1281 + $0xe8] sm:$0xff]
        %v1635 = vld [vmem:[%s1281 + $0xf0] sm:$0xff]
        %v1636 = vld [vmem:[%s1281 + $0xf8] sm:$0xff]
        %v1637 = vsel %vm277, %v1605, %v1573
        %v1638 = vsel %vm277, %v1606, %v1574
        %v1639 = vsel %vm277, %v1607, %v1575
        %v1640 = vsel %vm277, %v1608, %v1576
        %v1641 = vsel %vm277, %v1609, %v1577
        %v1642 = vsel %vm277, %v1610, %v1578
        %v1643 = vsel %vm277, %v1611, %v1579
        %v1644 = vsel %vm277, %v1612, %v1580
        %v1645 = vsel %vm277, %v1613, %v1581
        %v1646 = vsel %vm277, %v1614, %v1582
        %v1647 = vsel %vm277, %v1615, %v1583
        %v1648 = vsel %vm277, %v1616, %v1584
        %v1649 = vsel %vm277, %v1617, %v1585
        %v1650 = vsel %vm277, %v1618, %v1586
        %v1651 = vsel %vm277, %v1619, %v1587
        %v1652 = vsel %vm277, %v1620, %v1588
        %v1653 = vsel %vm277, %v1621, %v1589
        %v1654 = vsel %vm277, %v1622, %v1590
        %v1655 = vsel %vm277, %v1623, %v1591
        %v1656 = vsel %vm277, %v1624, %v1592
        %v1657 = vsel %vm277, %v1625, %v1593
        %v1658 = vsel %vm277, %v1626, %v1594
        %v1659 = vsel %vm277, %v1627, %v1595
        %v1660 = vsel %vm277, %v1628, %v1596
        %v1661 = vsel %vm277, %v1629, %v1597
        %v1662 = vsel %vm277, %v1630, %v1598
        %v1663 = vsel %vm277, %v1631, %v1599
        %v1664 = vsel %vm277, %v1632, %v1600
        %v1665 = vsel %vm277, %v1633, %v1601
        %v1666 = vsel %vm277, %v1634, %v1602
        %v1667 = vsel %vm277, %v1635, %v1603
        %v1668 = vsel %vm277, %v1636, %v1604
        %v1669 = vsel %vm344, 0.0, %v1637
        %v1670 = vsel %vm344, 0.0, %v1638
        %v1671 = vsel %vm344, 0.0, %v1639
        %v1672 = vsel %vm344, 0.0, %v1640
        %v1673 = vsel %vm344, 0.0, %v1641
        %v1674 = vsel %vm344, 0.0, %v1642
        %v1675 = vsel %vm344, 0.0, %v1643
        %v1676 = vsel %vm344, 0.0, %v1644
        %v1677 = vsel %vm344, 0.0, %v1645
        %v1678 = vsel %vm344, 0.0, %v1646
        %v1679 = vsel %vm344, 0.0, %v1647
        %v1680 = vsel %vm344, 0.0, %v1648
        %v1681 = vsel %vm344, 0.0, %v1649
        %v1682 = vsel %vm344, 0.0, %v1650
        %v1683 = vsel %vm344, 0.0, %v1651
        %v1684 = vsel %vm344, 0.0, %v1652
        %v1685 = vsel %vm344, 0.0, %v1653
        %v1686 = vsel %vm344, 0.0, %v1654
        %v1687 = vsel %vm344, 0.0, %v1655
        %v1688 = vsel %vm344, 0.0, %v1656
        %v1689 = vsel %vm344, 0.0, %v1657
        %v1690 = vsel %vm344, 0.0, %v1658
        %v1691 = vsel %vm344, 0.0, %v1659
        %v1692 = vsel %vm344, 0.0, %v1660
        %v1693 = vsel %vm344, 0.0, %v1661
        %v1694 = vsel %vm344, 0.0, %v1662
        %v1695 = vsel %vm344, 0.0, %v1663
        %v1696 = vsel %vm344, 0.0, %v1664
        %v1697 = vsel %vm344, 0.0, %v1665
        %v1698 = vsel %vm344, 0.0, %v1666
        %v1699 = vsel %vm344, 0.0, %v1667
        %v1700 = vsel %vm344, 0.0, %v1668
        %s1701 = scalar_lea.vmem [#allocation3], 1792
        %1702 = vst [vmem:[%s1701] sm:$0xff] %v1669
        %1703 = vst [vmem:[%s1701 + $0x8] sm:$0xff] %v1670
        %1704 = vst [vmem:[%s1701 + $0x10] sm:$0xff] %v1671
        %1705 = vst [vmem:[%s1701 + $0x18] sm:$0xff] %v1672
        %1706 = vst [vmem:[%s1701 + $0x20] sm:$0xff] %v1673
        %1707 = vst [vmem:[%s1701 + $0x28] sm:$0xff] %v1674
        %1708 = vst [vmem:[%s1701 + $0x30] sm:$0xff] %v1675
        %1709 = vst [vmem:[%s1701 + $0x38] sm:$0xff] %v1676
        %1710 = vst [vmem:[%s1701 + $0x40] sm:$0xff] %v1677
        %1711 = vst [vmem:[%s1701 + $0x48] sm:$0xff] %v1678
        %1712 = vst [vmem:[%s1701 + $0x50] sm:$0xff] %v1679
        %1713 = vst [vmem:[%s1701 + $0x58] sm:$0xff] %v1680
        %1714 = vst [vmem:[%s1701 + $0x60] sm:$0xff] %v1681
        %1715 = vst [vmem:[%s1701 + $0x68] sm:$0xff] %v1682
        %1716 = vst [vmem:[%s1701 + $0x70] sm:$0xff] %v1683
        %1717 = vst [vmem:[%s1701 + $0x78] sm:$0xff] %v1684
        %1718 = vst [vmem:[%s1701 + $0x80] sm:$0xff] %v1685
        %1719 = vst [vmem:[%s1701 + $0x88] sm:$0xff] %v1686
        %1720 = vst [vmem:[%s1701 + $0x90] sm:$0xff] %v1687
        %1721 = vst [vmem:[%s1701 + $0x98] sm:$0xff] %v1688
        %1722 = vst [vmem:[%s1701 + $0xa0] sm:$0xff] %v1689
        %1723 = vst [vmem:[%s1701 + $0xa8] sm:$0xff] %v1690
        %1724 = vst [vmem:[%s1701 + $0xb0] sm:$0xff] %v1691
        %1725 = vst [vmem:[%s1701 + $0xb8] sm:$0xff] %v1692
        %1726 = vst [vmem:[%s1701 + $0xc0] sm:$0xff] %v1693
        %1727 = vst [vmem:[%s1701 + $0xc8] sm:$0xff] %v1694
        %1728 = vst [vmem:[%s1701 + $0xd0] sm:$0xff] %v1695
        %1729 = vst [vmem:[%s1701 + $0xd8] sm:$0xff] %v1696
        %1730 = vst [vmem:[%s1701 + $0xe0] sm:$0xff] %v1697
        %1731 = vst [vmem:[%s1701 + $0xe8] sm:$0xff] %v1698
        %1732 = vst [vmem:[%s1701 + $0xf0] sm:$0xff] %v1699
        %1733 = vst [vmem:[%s1701 + $0xf8] sm:$0xff] %v1700
        %v1734 = vld [vmem:[#allocation3] sm:$0xff]
        %v1735 = vld [vmem:[#allocation3 + $0x8] sm:$0xff]
        %v1736 = vld [vmem:[#allocation3 + $0x10] sm:$0xff]
        %v1737 = vld [vmem:[#allocation3 + $0x18] sm:$0xff]
        %v1738 = vld [vmem:[#allocation3 + $0x20] sm:$0xff]
        %v1739 = vld [vmem:[#allocation3 + $0x28] sm:$0xff]
        %v1740 = vld [vmem:[#allocation3 + $0x30] sm:$0xff]
        %v1741 = vld [vmem:[#allocation3 + $0x38] sm:$0xff]
        %v1742 = vld [vmem:[#allocation3 + $0x40] sm:$0xff]
        %v1743 = vld [vmem:[#allocation3 + $0x48] sm:$0xff]
        %v1744 = vld [vmem:[#allocation3 + $0x50] sm:$0xff]
        %v1745 = vld [vmem:[#allocation3 + $0x58] sm:$0xff]
        %v1746 = vld [vmem:[#allocation3 + $0x60] sm:$0xff]
        %v1747 = vld [vmem:[#allocation3 + $0x68] sm:$0xff]
        %v1748 = vld [vmem:[#allocation3 + $0x70] sm:$0xff]
        %v1749 = vld [vmem:[#allocation3 + $0x78] sm:$0xff]
        %v1750 = vld [vmem:[#allocation3 + $0x80] sm:$0xff]
        %v1751 = vld [vmem:[#allocation3 + $0x88] sm:$0xff]
        %v1752 = vld [vmem:[#allocation3 + $0x90] sm:$0xff]
        %v1753 = vld [vmem:[#allocation3 + $0x98] sm:$0xff]
        %v1754 = vld [vmem:[#allocation3 + $0xa0] sm:$0xff]
        %v1755 = vld [vmem:[#allocation3 + $0xa8] sm:$0xff]
        %v1756 = vld [vmem:[#allocation3 + $0xb0] sm:$0xff]
        %v1757 = vld [vmem:[#allocation3 + $0xb8] sm:$0xff]
        %v1758 = vld [vmem:[#allocation3 + $0xc0] sm:$0xff]
        %v1759 = vld [vmem:[#allocation3 + $0xc8] sm:$0xff]
        %v1760 = vld [vmem:[#allocation3 + $0xd0] sm:$0xff]
        %v1761 = vld [vmem:[#allocation3 + $0xd8] sm:$0xff]
        %v1762 = vld [vmem:[#allocation3 + $0xe0] sm:$0xff]
        %v1763 = vld [vmem:[#allocation3 + $0xe8] sm:$0xff]
        %v1764 = vld [vmem:[#allocation3 + $0xf0] sm:$0xff]
        %v1765 = vld [vmem:[#allocation3 + $0xf8] sm:$0xff]
        %v1766 = vld [vmem:[#allocation3 + $0x100] sm:$0xff]
        %v1767 = vld [vmem:[#allocation3 + $0x108] sm:$0xff]
        %v1768 = vld [vmem:[#allocation3 + $0x110] sm:$0xff]
        %v1769 = vld [vmem:[#allocation3 + $0x118] sm:$0xff]
        %v1770 = vld [vmem:[#allocation3 + $0x120] sm:$0xff]
        %v1771 = vld [vmem:[#allocation3 + $0x128] sm:$0xff]
        %v1772 = vld [vmem:[#allocation3 + $0x130] sm:$0xff]
        %v1773 = vld [vmem:[#allocation3 + $0x138] sm:$0xff]
        %v1774 = vld [vmem:[#allocation3 + $0x140] sm:$0xff]
        %v1775 = vld [vmem:[#allocation3 + $0x148] sm:$0xff]
        %v1776 = vld [vmem:[#allocation3 + $0x150] sm:$0xff]
        %v1777 = vld [vmem:[#allocation3 + $0x158] sm:$0xff]
        %v1778 = vld [vmem:[#allocation3 + $0x160] sm:$0xff]
        %v1779 = vld [vmem:[#allocation3 + $0x168] sm:$0xff]
        %v1780 = vld [vmem:[#allocation3 + $0x170] sm:$0xff]
        %v1781 = vld [vmem:[#allocation3 + $0x178] sm:$0xff]
        %v1782 = vld [vmem:[#allocation3 + $0x180] sm:$0xff]
        %v1783 = vld [vmem:[#allocation3 + $0x188] sm:$0xff]
        %v1784 = vld [vmem:[#allocation3 + $0x190] sm:$0xff]
        %v1785 = vld [vmem:[#allocation3 + $0x198] sm:$0xff]
        %v1786 = vld [vmem:[#allocation3 + $0x1a0] sm:$0xff]
        %v1787 = vld [vmem:[#allocation3 + $0x1a8] sm:$0xff]
        %v1788 = vld [vmem:[#allocation3 + $0x1b0] sm:$0xff]
        %v1789 = vld [vmem:[#allocation3 + $0x1b8] sm:$0xff]
        %v1790 = vld [vmem:[#allocation3 + $0x1c0] sm:$0xff]
        %v1791 = vld [vmem:[#allocation3 + $0x1c8] sm:$0xff]
        %v1792 = vld [vmem:[#allocation3 + $0x1d0] sm:$0xff]
        %v1793 = vld [vmem:[#allocation3 + $0x1d8] sm:$0xff]
        %v1794 = vld [vmem:[#allocation3 + $0x1e0] sm:$0xff]
        %v1795 = vld [vmem:[#allocation3 + $0x1e8] sm:$0xff]
        %v1796 = vld [vmem:[#allocation3 + $0x1f0] sm:$0xff]
        %v1797 = vld [vmem:[#allocation3 + $0x1f8] sm:$0xff]
        %v1798 = vld [vmem:[#allocation3 + $0x200] sm:$0xff]
        %v1799 = vld [vmem:[#allocation3 + $0x208] sm:$0xff]
        %v1800 = vld [vmem:[#allocation3 + $0x210] sm:$0xff]
        %v1801 = vld [vmem:[#allocation3 + $0x218] sm:$0xff]
        %v1802 = vld [vmem:[#allocation3 + $0x220] sm:$0xff]
        %v1803 = vld [vmem:[#allocation3 + $0x228] sm:$0xff]
        %v1804 = vld [vmem:[#allocation3 + $0x230] sm:$0xff]
        %v1805 = vld [vmem:[#allocation3 + $0x238] sm:$0xff]
        %v1806 = vld [vmem:[#allocation3 + $0x240] sm:$0xff]
        %v1807 = vld [vmem:[#allocation3 + $0x248] sm:$0xff]
        %v1808 = vld [vmem:[#allocation3 + $0x250] sm:$0xff]
        %v1809 = vld [vmem:[#allocation3 + $0x258] sm:$0xff]
        %v1810 = vld [vmem:[#allocation3 + $0x260] sm:$0xff]
        %v1811 = vld [vmem:[#allocation3 + $0x268] sm:$0xff]
        %v1812 = vld [vmem:[#allocation3 + $0x270] sm:$0xff]
        %v1813 = vld [vmem:[#allocation3 + $0x278] sm:$0xff]
        %v1814 = vld [vmem:[#allocation3 + $0x280] sm:$0xff]
        %v1815 = vld [vmem:[#allocation3 + $0x288] sm:$0xff]
        %v1816 = vld [vmem:[#allocation3 + $0x290] sm:$0xff]
        %v1817 = vld [vmem:[#allocation3 + $0x298] sm:$0xff]
        %v1818 = vld [vmem:[#allocation3 + $0x2a0] sm:$0xff]
        %v1819 = vld [vmem:[#allocation3 + $0x2a8] sm:$0xff]
        %v1820 = vld [vmem:[#allocation3 + $0x2b0] sm:$0xff]
        %v1821 = vld [vmem:[#allocation3 + $0x2b8] sm:$0xff]
        %v1822 = vld [vmem:[#allocation3 + $0x2c0] sm:$0xff]
        %v1823 = vld [vmem:[#allocation3 + $0x2c8] sm:$0xff]
        %v1824 = vld [vmem:[#allocation3 + $0x2d0] sm:$0xff]
        %v1825 = vld [vmem:[#allocation3 + $0x2d8] sm:$0xff]
        %v1826 = vld [vmem:[#allocation3 + $0x2e0] sm:$0xff]
        %v1827 = vld [vmem:[#allocation3 + $0x2e8] sm:$0xff]
        %v1828 = vld [vmem:[#allocation3 + $0x2f0] sm:$0xff]
        %v1829 = vld [vmem:[#allocation3 + $0x2f8] sm:$0xff]
        %v1830 = vld [vmem:[#allocation3 + $0x300] sm:$0xff]
        %v1831 = vld [vmem:[#allocation3 + $0x308] sm:$0xff]
        %v1832 = vld [vmem:[#allocation3 + $0x310] sm:$0xff]
        %v1833 = vld [vmem:[#allocation3 + $0x318] sm:$0xff]
        %v1834 = vld [vmem:[#allocation3 + $0x320] sm:$0xff]
        %v1835 = vld [vmem:[#allocation3 + $0x328] sm:$0xff]
        %v1836 = vld [vmem:[#allocation3 + $0x330] sm:$0xff]
        %v1837 = vld [vmem:[#allocation3 + $0x338] sm:$0xff]
        %v1838 = vld [vmem:[#allocation3 + $0x340] sm:$0xff]
        %v1839 = vld [vmem:[#allocation3 + $0x348] sm:$0xff]
        %v1840 = vld [vmem:[#allocation3 + $0x350] sm:$0xff]
        %v1841 = vld [vmem:[#allocation3 + $0x358] sm:$0xff]
        %v1842 = vld [vmem:[#allocation3 + $0x360] sm:$0xff]
        %v1843 = vld [vmem:[#allocation3 + $0x368] sm:$0xff]
        %v1844 = vld [vmem:[#allocation3 + $0x370] sm:$0xff]
        %v1845 = vld [vmem:[#allocation3 + $0x378] sm:$0xff]
        %v1846 = vld [vmem:[#allocation3 + $0x380] sm:$0xff]
        %v1847 = vld [vmem:[#allocation3 + $0x388] sm:$0xff]
        %v1848 = vld [vmem:[#allocation3 + $0x390] sm:$0xff]
        %v1849 = vld [vmem:[#allocation3 + $0x398] sm:$0xff]
        %v1850 = vld [vmem:[#allocation3 + $0x3a0] sm:$0xff]
        %v1851 = vld [vmem:[#allocation3 + $0x3a8] sm:$0xff]
        %v1852 = vld [vmem:[#allocation3 + $0x3b0] sm:$0xff]
        %v1853 = vld [vmem:[#allocation3 + $0x3b8] sm:$0xff]
        %v1854 = vld [vmem:[#allocation3 + $0x3c0] sm:$0xff]
        %v1855 = vld [vmem:[#allocation3 + $0x3c8] sm:$0xff]
        %v1856 = vld [vmem:[#allocation3 + $0x3d0] sm:$0xff]
        %v1857 = vld [vmem:[#allocation3 + $0x3d8] sm:$0xff]
        %v1858 = vld [vmem:[#allocation3 + $0x3e0] sm:$0xff]
        %v1859 = vld [vmem:[#allocation3 + $0x3e8] sm:$0xff]
        %v1860 = vld [vmem:[#allocation3 + $0x3f0] sm:$0xff]
        %v1861 = vld [vmem:[#allocation3 + $0x3f8] sm:$0xff]
        %v1862 = vld [vmem:[#allocation3 + $0x400] sm:$0xff]
        %v1863 = vld [vmem:[#allocation3 + $0x408] sm:$0xff]
        %v1864 = vld [vmem:[#allocation3 + $0x410] sm:$0xff]
        %v1865 = vld [vmem:[#allocation3 + $0x418] sm:$0xff]
        %v1866 = vld [vmem:[#allocation3 + $0x420] sm:$0xff]
        %v1867 = vld [vmem:[#allocation3 + $0x428] sm:$0xff]
        %v1868 = vld [vmem:[#allocation3 + $0x430] sm:$0xff]
        %v1869 = vld [vmem:[#allocation3 + $0x438] sm:$0xff]
        %v1870 = vld [vmem:[#allocation3 + $0x440] sm:$0xff]
        %v1871 = vld [vmem:[#allocation3 + $0x448] sm:$0xff]
        %v1872 = vld [vmem:[#allocation3 + $0x450] sm:$0xff]
        %v1873 = vld [vmem:[#allocation3 + $0x458] sm:$0xff]
        %v1874 = vld [vmem:[#allocation3 + $0x460] sm:$0xff]
        %v1875 = vld [vmem:[#allocation3 + $0x468] sm:$0xff]
        %v1876 = vld [vmem:[#allocation3 + $0x470] sm:$0xff]
        %v1877 = vld [vmem:[#allocation3 + $0x478] sm:$0xff]
        %v1878 = vld [vmem:[#allocation3 + $0x480] sm:$0xff]
        %v1879 = vld [vmem:[#allocation3 + $0x488] sm:$0xff]
        %v1880 = vld [vmem:[#allocation3 + $0x490] sm:$0xff]
        %v1881 = vld [vmem:[#allocation3 + $0x498] sm:$0xff]
        %v1882 = vld [vmem:[#allocation3 + $0x4a0] sm:$0xff]
        %v1883 = vld [vmem:[#allocation3 + $0x4a8] sm:$0xff]
        %v1884 = vld [vmem:[#allocation3 + $0x4b0] sm:$0xff]
        %v1885 = vld [vmem:[#allocation3 + $0x4b8] sm:$0xff]
        %v1886 = vld [vmem:[#allocation3 + $0x4c0] sm:$0xff]
        %v1887 = vld [vmem:[#allocation3 + $0x4c8] sm:$0xff]
        %v1888 = vld [vmem:[#allocation3 + $0x4d0] sm:$0xff]
        %v1889 = vld [vmem:[#allocation3 + $0x4d8] sm:$0xff]
        %v1890 = vld [vmem:[#allocation3 + $0x4e0] sm:$0xff]
        %v1891 = vld [vmem:[#allocation3 + $0x4e8] sm:$0xff]
        %v1892 = vld [vmem:[#allocation3 + $0x4f0] sm:$0xff]
        %v1893 = vld [vmem:[#allocation3 + $0x4f8] sm:$0xff]
        %v1894 = vld [vmem:[#allocation3 + $0x500] sm:$0xff]
        %v1895 = vld [vmem:[#allocation3 + $0x508] sm:$0xff]
        %v1896 = vld [vmem:[#allocation3 + $0x510] sm:$0xff]
        %v1897 = vld [vmem:[#allocation3 + $0x518] sm:$0xff]
        %v1898 = vld [vmem:[#allocation3 + $0x520] sm:$0xff]
        %v1899 = vld [vmem:[#allocation3 + $0x528] sm:$0xff]
        %v1900 = vld [vmem:[#allocation3 + $0x530] sm:$0xff]
        %v1901 = vld [vmem:[#allocation3 + $0x538] sm:$0xff]
        %v1902 = vld [vmem:[#allocation3 + $0x540] sm:$0xff]
        %v1903 = vld [vmem:[#allocation3 + $0x548] sm:$0xff]
        %v1904 = vld [vmem:[#allocation3 + $0x550] sm:$0xff]
        %v1905 = vld [vmem:[#allocation3 + $0x558] sm:$0xff]
        %v1906 = vld [vmem:[#allocation3 + $0x560] sm:$0xff]
        %v1907 = vld [vmem:[#allocation3 + $0x568] sm:$0xff]
        %v1908 = vld [vmem:[#allocation3 + $0x570] sm:$0xff]
        %v1909 = vld [vmem:[#allocation3 + $0x578] sm:$0xff]
        %v1910 = vld [vmem:[#allocation3 + $0x580] sm:$0xff]
        %v1911 = vld [vmem:[#allocation3 + $0x588] sm:$0xff]
        %v1912 = vld [vmem:[#allocation3 + $0x590] sm:$0xff]
        %v1913 = vld [vmem:[#allocation3 + $0x598] sm:$0xff]
        %v1914 = vld [vmem:[#allocation3 + $0x5a0] sm:$0xff]
        %v1915 = vld [vmem:[#allocation3 + $0x5a8] sm:$0xff]
        %v1916 = vld [vmem:[#allocation3 + $0x5b0] sm:$0xff]
        %v1917 = vld [vmem:[#allocation3 + $0x5b8] sm:$0xff]
        %v1918 = vld [vmem:[#allocation3 + $0x5c0] sm:$0xff]
        %v1919 = vld [vmem:[#allocation3 + $0x5c8] sm:$0xff]
        %v1920 = vld [vmem:[#allocation3 + $0x5d0] sm:$0xff]
        %v1921 = vld [vmem:[#allocation3 + $0x5d8] sm:$0xff]
        %v1922 = vld [vmem:[#allocation3 + $0x5e0] sm:$0xff]
        %v1923 = vld [vmem:[#allocation3 + $0x5e8] sm:$0xff]
        %v1924 = vld [vmem:[#allocation3 + $0x5f0] sm:$0xff]
        %v1925 = vld [vmem:[#allocation3 + $0x5f8] sm:$0xff]
        %v1926 = vld [vmem:[#allocation3 + $0x600] sm:$0xff]
        %v1927 = vld [vmem:[#allocation3 + $0x608] sm:$0xff]
        %v1928 = vld [vmem:[#allocation3 + $0x610] sm:$0xff]
        %v1929 = vld [vmem:[#allocation3 + $0x618] sm:$0xff]
        %v1930 = vld [vmem:[#allocation3 + $0x620] sm:$0xff]
        %v1931 = vld [vmem:[#allocation3 + $0x628] sm:$0xff]
        %v1932 = vld [vmem:[#allocation3 + $0x630] sm:$0xff]
        %v1933 = vld [vmem:[#allocation3 + $0x638] sm:$0xff]
        %v1934 = vld [vmem:[#allocation3 + $0x640] sm:$0xff]
        %v1935 = vld [vmem:[#allocation3 + $0x648] sm:$0xff]
        %v1936 = vld [vmem:[#allocation3 + $0x650] sm:$0xff]
        %v1937 = vld [vmem:[#allocation3 + $0x658] sm:$0xff]
        %v1938 = vld [vmem:[#allocation3 + $0x660] sm:$0xff]
        %v1939 = vld [vmem:[#allocation3 + $0x668] sm:$0xff]
        %v1940 = vld [vmem:[#allocation3 + $0x670] sm:$0xff]
        %v1941 = vld [vmem:[#allocation3 + $0x678] sm:$0xff]
        %v1942 = vld [vmem:[#allocation3 + $0x680] sm:$0xff]
        %v1943 = vld [vmem:[#allocation3 + $0x688] sm:$0xff]
        %v1944 = vld [vmem:[#allocation3 + $0x690] sm:$0xff]
        %v1945 = vld [vmem:[#allocation3 + $0x698] sm:$0xff]
        %v1946 = vld [vmem:[#allocation3 + $0x6a0] sm:$0xff]
        %v1947 = vld [vmem:[#allocation3 + $0x6a8] sm:$0xff]
        %v1948 = vld [vmem:[#allocation3 + $0x6b0] sm:$0xff]
        %v1949 = vld [vmem:[#allocation3 + $0x6b8] sm:$0xff]
        %v1950 = vld [vmem:[#allocation3 + $0x6c0] sm:$0xff]
        %v1951 = vld [vmem:[#allocation3 + $0x6c8] sm:$0xff]
        %v1952 = vld [vmem:[#allocation3 + $0x6d0] sm:$0xff]
        %v1953 = vld [vmem:[#allocation3 + $0x6d8] sm:$0xff]
        %v1954 = vld [vmem:[#allocation3 + $0x6e0] sm:$0xff]
        %v1955 = vld [vmem:[#allocation3 + $0x6e8] sm:$0xff]
        %v1956 = vld [vmem:[#allocation3 + $0x6f0] sm:$0xff]
        %v1957 = vld [vmem:[#allocation3 + $0x6f8] sm:$0xff]
        %v1958 = vld [vmem:[#allocation3 + $0x700] sm:$0xff]
        %v1959 = vld [vmem:[#allocation3 + $0x708] sm:$0xff]
        %v1960 = vld [vmem:[#allocation3 + $0x710] sm:$0xff]
        %v1961 = vld [vmem:[#allocation3 + $0x718] sm:$0xff]
        %v1962 = vld [vmem:[#allocation3 + $0x720] sm:$0xff]
        %v1963 = vld [vmem:[#allocation3 + $0x728] sm:$0xff]
        %v1964 = vld [vmem:[#allocation3 + $0x730] sm:$0xff]
        %v1965 = vld [vmem:[#allocation3 + $0x738] sm:$0xff]
        %v1966 = vld [vmem:[#allocation3 + $0x740] sm:$0xff]
        %v1967 = vld [vmem:[#allocation3 + $0x748] sm:$0xff]
        %v1968 = vld [vmem:[#allocation3 + $0x750] sm:$0xff]
        %v1969 = vld [vmem:[#allocation3 + $0x758] sm:$0xff]
        %v1970 = vld [vmem:[#allocation3 + $0x760] sm:$0xff]
        %v1971 = vld [vmem:[#allocation3 + $0x768] sm:$0xff]
        %v1972 = vld [vmem:[#allocation3 + $0x770] sm:$0xff]
        %v1973 = vld [vmem:[#allocation3 + $0x778] sm:$0xff]
        %v1974 = vld [vmem:[#allocation3 + $0x780] sm:$0xff]
        %v1975 = vld [vmem:[#allocation3 + $0x788] sm:$0xff]
        %v1976 = vld [vmem:[#allocation3 + $0x790] sm:$0xff]
        %v1977 = vld [vmem:[#allocation3 + $0x798] sm:$0xff]
        %v1978 = vld [vmem:[#allocation3 + $0x7a0] sm:$0xff]
        %v1979 = vld [vmem:[#allocation3 + $0x7a8] sm:$0xff]
        %v1980 = vld [vmem:[#allocation3 + $0x7b0] sm:$0xff]
        %v1981 = vld [vmem:[#allocation3 + $0x7b8] sm:$0xff]
        %v1982 = vld [vmem:[#allocation3 + $0x7c0] sm:$0xff]
        %v1983 = vld [vmem:[#allocation3 + $0x7c8] sm:$0xff]
        %v1984 = vld [vmem:[#allocation3 + $0x7d0] sm:$0xff]
        %v1985 = vld [vmem:[#allocation3 + $0x7d8] sm:$0xff]
        %v1986 = vld [vmem:[#allocation3 + $0x7e0] sm:$0xff]
        %v1987 = vld [vmem:[#allocation3 + $0x7e8] sm:$0xff]
        %v1988 = vld [vmem:[#allocation3 + $0x7f0] sm:$0xff]
        %v1989 = vld [vmem:[#allocation3 + $0x7f8] sm:$0xff]
        %v1990 = vld [vmem:[#allocation7] sm:$0xff]
        %v1991 = vld [vmem:[#allocation7 + $0x8] sm:$0xff]
        %v1992 = vld [vmem:[#allocation7 + $0x10] sm:$0xff]
        %v1993 = vld [vmem:[#allocation7 + $0x18] sm:$0xff]
        %v1994 = vld [vmem:[#allocation7 + $0x20] sm:$0xff]
        %v1995 = vld [vmem:[#allocation7 + $0x28] sm:$0xff]
        %v1996 = vld [vmem:[#allocation7 + $0x30] sm:$0xff]
        %v1997 = vld [vmem:[#allocation7 + $0x38] sm:$0xff]
        %v1998 = vld [vmem:[#allocation7 + $0x40] sm:$0xff]
        %v1999 = vld [vmem:[#allocation7 + $0x48] sm:$0xff]
        %v2000 = vld [vmem:[#allocation7 + $0x50] sm:$0xff]
        %v2001 = vld [vmem:[#allocation7 + $0x58] sm:$0xff]
        %v2002 = vld [vmem:[#allocation7 + $0x60] sm:$0xff]
        %v2003 = vld [vmem:[#allocation7 + $0x68] sm:$0xff]
        %v2004 = vld [vmem:[#allocation7 + $0x70] sm:$0xff]
        %v2005 = vld [vmem:[#allocation7 + $0x78] sm:$0xff]
        %v2006 = vld [vmem:[#allocation9] sm:$0x1]
        %v2008 = vlaneseq
        %v2009 = vshrl.u32 %v2008, 7
        %v2010 = vsub.s32 0, %v2009
        %v2011 = vrot.slane %v2006, %v2010
        %2013 = vmatprep.subr.mxu0 0.0
        %2014 = vmatpush1.msra.mxu0 %v1990
        %2015 = vmatprep.subr.mxu0 0.0
        %2016 = vmatpush1.msra.mxu0 %v1991
        %2017 = vmatprep.subr.mxu0 0.0
        %2018 = vmatpush1.msra.mxu0 %v1992
        %2019 = vmatprep.subr.mxu0 0.0
        %2020 = vmatpush1.msra.mxu0 %v1993
        %2021 = vmatprep.subr.mxu0 0.0
        %2022 = vmatpush1.msra.mxu0 %v1994
        %2023 = vmatprep.subr.mxu0 0.0
        %2024 = vmatpush1.msra.mxu0 %v1995
        %2025 = vmatprep.subr.mxu0 0.0
        %2026 = vmatpush1.msra.mxu0 %v1996
        %2027 = vmatprep.subr.mxu0 0.0
        %2028 = vmatpush1.msra.mxu0 %v1997
        %2029 = vmatprep.subr.mxu0 0.0
        %2030 = vmatpush1.msra.mxu0 %v1998
        %2031 = vmatprep.subr.mxu0 0.0
        %2032 = vmatpush1.msra.mxu0 %v1999
        %2033 = vmatprep.subr.mxu0 0.0
        %2034 = vmatpush1.msra.mxu0 %v2000
        %2035 = vmatprep.subr.mxu0 0.0
        %2036 = vmatpush1.msra.mxu0 %v2001
        %2037 = vmatprep.subr.mxu0 0.0
        %2038 = vmatpush1.msra.mxu0 %v2002
        %2039 = vmatprep.subr.mxu0 0.0
        %2040 = vmatpush1.msra.mxu0 %v2003
        %2041 = vmatprep.subr.mxu0 0.0
        %2042 = vmatpush1.msra.mxu0 %v2004
        %2043 = vmatprep.subr.mxu0 0.0
        %2044 = vmatpush1.msra.mxu0 %v2005
        %2045 = vmatprep.subr.mxu0 0.0
        %2046 = vmatpush1.msra.mxu0 0.0
        %2047 = vmatprep.subr.mxu0 0.0
        %2048 = vmatpush1.msra.mxu0 0.0
        %2049 = vmatprep.subr.mxu0 0.0
        %2050 = vmatpush1.msra.mxu0 0.0
        %2051 = vmatprep.subr.mxu0 0.0
        %2052 = vmatpush1.msra.mxu0 0.0
        %2053 = vmatprep.subr.mxu0 0.0
        %2054 = vmatpush1.msra.mxu0 0.0
        %2055 = vmatprep.subr.mxu0 0.0
        %2056 = vmatpush1.msra.mxu0 0.0
        %2057 = vmatprep.subr.mxu0 0.0
        %2058 = vmatpush1.msra.mxu0 0.0
        %2059 = vmatprep.subr.mxu0 0.0
        %2060 = vmatpush1.msra.mxu0 0.0
        %2061 = vmatprep.subr.mxu0 0.0
        %2062 = vmatpush1.msra.mxu0 0.0
        %2063 = vmatprep.subr.mxu0 0.0
        %2064 = vmatpush1.msra.mxu0 0.0
        %2065 = vmatprep.subr.mxu0 0.0
        %2066 = vmatpush1.msra.mxu0 0.0
        %2067 = vmatprep.subr.mxu0 0.0
        %2068 = vmatpush1.msra.mxu0 0.0
        %2069 = vmatprep.subr.mxu0 0.0
        %2070 = vmatpush1.msra.mxu0 0.0
        %2071 = vmatprep.subr.mxu0 0.0
        %2072 = vmatpush1.msra.mxu0 0.0
        %2073 = vmatprep.subr.mxu0 0.0
        %2074 = vmatpush1.msra.mxu0 0.0
        %2075 = vmatprep.subr.mxu0 0.0
        %2076 = vmatpush1.msra.mxu0 0.0
        %2077 = vmatprep.mubr.f32.mxu0 0.0
        %2078 = vmatmul.mubr.f32.gmra.mrb[0].mxu0 %v1734
        %v2079 = vpop.f32.mrb[0].mxu0
        %v2080 = vadd.f32 %v2011, %v2079
        %v2081 = vpop.f32.mrb[0].mxu0
        %2082 = vmatprep.mubr.f32.mxu0 0.0
        %2083 = vmatmul.mubr.f32.gmra.mrb[0].mxu0 %v1735
        %v2084 = vpop.f32.mrb[0].mxu0
        %v2085 = vadd.f32 %v2011, %v2084
        %v2086 = vpop.f32.mrb[0].mxu0
        %2087 = vmatprep.mubr.f32.mxu0 0.0
        %2088 = vmatmul.mubr.f32.gmra.mrb[0].mxu0 %v1736
        %v2089 = vpop.f32.mrb[0].mxu0
        %v2090 = vadd.f32 %v2011, %v2089
        %v2091 = vpop.f32.mrb[0].mxu0
        %2092 = vmatprep.mubr.f32.mxu0 0.0
        %2093 = vmatmul.mubr.f32.gmra.mrb[0].mxu0 %v1737
        %v2094 = vpop.f32.mrb[0].mxu0
        %v2095 = vadd.f32 %v2011, %v2094
        %v2096 = vpop.f32.mrb[0].mxu0
        %2097 = vmatprep.mubr.f32.mxu0 0.0
        %2098 = vmatmul.mubr.f32.gmra.mrb[0].mxu0 %v1738
        %v2099 = vpop.f32.mrb[0].mxu0
        %v2100 = vadd.f32 %v2011, %v2099
        %v2101 = vpop.f32.mrb[0].mxu0
        %2102 = vmatprep.mubr.f32.mxu0 0.0
        %2103 = vmatmul.mubr.f32.gmra.mrb[0].mxu0 %v1739
        %v2104 = vpop.f32.mrb[0].mxu0
        %v2105 = vadd.f32 %v2011, %v2104
        %v2106 = vpop.f32.mrb[0].mxu0
        %2107 = vmatprep.mubr.f32.mxu0 0.0
        %2108 = vmatmul.mubr.f32.gmra.mrb[0].mxu0 %v1740
        %v2109 = vpop.f32.mrb[0].mxu0
        %v2110 = vadd.f32 %v2011, %v2109
        %v2111 = vpop.f32.mrb[0].mxu0
        %2112 = vmatprep.mubr.f32.mxu0 0.0
        %2113 = vmatmul.mubr.f32.gmra.mrb[0].mxu0 %v1741
        %v2114 = vpop.f32.mrb[0].mxu0
        %v2115 = vadd.f32 %v2011, %v2114
        %v2116 = vpop.f32.mrb[0].mxu0
        %2117 = vmatprep.mubr.f32.mxu0 0.0
        %2118 = vmatmul.mubr.f32.gmra.mrb[0].mxu0 %v1742
        %v2119 = vpop.f32.mrb[0].mxu0
        %v2120 = vadd.f32 %v2011, %v2119
        %v2121 = vpop.f32.mrb[0].mxu0
        %2122 = vmatprep.mubr.f32.mxu0 0.0
        %2123 = vmatmul.mubr.f32.gmra.mrb[0].mxu0 %v1743
        %v2124 = vpop.f32.mrb[0].mxu0
        %v2125 = vadd.f32 %v2011, %v2124
        %v2126 = vpop.f32.mrb[0].mxu0
        %2127 = vmatprep.mubr.f32.mxu0 0.0
        %2128 = vmatmul.mubr.f32.gmra.mrb[0].mxu0 %v1744
        %v2129 = vpop.f32.mrb[0].mxu0
        %v2130 = vadd.f32 %v2011, %v2129
        %v2131 = vpop.f32.mrb[0].mxu0
        %2132 = vmatprep.mubr.f32.mxu0 0.0
        %2133 = vmatmul.mubr.f32.gmra.mrb[0].mxu0 %v1745
        %v2134 = vpop.f32.mrb[0].mxu0
        %v2135 = vadd.f32 %v2011, %v2134
        %v2136 = vpop.f32.mrb[0].mxu0
        %2137 = vmatprep.mubr.f32.mxu0 0.0
        %2138 = vmatmul.mubr.f32.gmra.mrb[0].mxu0 %v1746
        %v2139 = vpop.f32.mrb[0].mxu0
        %v2140 = vadd.f32 %v2011, %v2139
        %v2141 = vpop.f32.mrb[0].mxu0
        %2142 = vmatprep.mubr.f32.mxu0 0.0
        %2143 = vmatmul.mubr.f32.gmra.mrb[0].mxu0 %v1747
        %v2144 = vpop.f32.mrb[0].mxu0
        %v2145 = vadd.f32 %v2011, %v2144
        %v2146 = vpop.f32.mrb[0].mxu0
        %2147 = vmatprep.mubr.f32.mxu0 0.0
        %2148 = vmatmul.mubr.f32.gmra.mrb[0].mxu0 %v1748
        %v2149 = vpop.f32.mrb[0].mxu0
        %v2150 = vadd.f32 %v2011, %v2149
        %v2151 = vpop.f32.mrb[0].mxu0
        %2152 = vmatprep.mubr.f32.mxu0 0.0
        %2153 = vmatmul.mubr.f32.gmra.mrb[0].mxu0 %v1749
        %v2154 = vpop.f32.mrb[0].mxu0
        %v2155 = vadd.f32 %v2011, %v2154
        %v2156 = vpop.f32.mrb[0].mxu0
        %2157 = vmatprep.mubr.f32.mxu0 0.0
        %2158 = vmatmul.mubr.f32.gmra.mrb[0].mxu0 %v1750
        %v2159 = vpop.f32.mrb[0].mxu0
        %v2160 = vadd.f32 %v2011, %v2159
        %v2161 = vpop.f32.mrb[0].mxu0
        %2162 = vmatprep.mubr.f32.mxu0 0.0
        %2163 = vmatmul.mubr.f32.gmra.mrb[0].mxu0 %v1751
        %v2164 = vpop.f32.mrb[0].mxu0
        %v2165 = vadd.f32 %v2011, %v2164
        %v2166 = vpop.f32.mrb[0].mxu0
        %2167 = vmatprep.mubr.f32.mxu0 0.0
        %2168 = vmatmul.mubr.f32.gmra.mrb[0].mxu0 %v1752
        %v2169 = vpop.f32.mrb[0].mxu0
        %v2170 = vadd.f32 %v2011, %v2169
        %v2171 = vpop.f32.mrb[0].mxu0
        %2172 = vmatprep.mubr.f32.mxu0 0.0
        %2173 = vmatmul.mubr.f32.gmra.mrb[0].mxu0 %v1753
        %v2174 = vpop.f32.mrb[0].mxu0
        %v2175 = vadd.f32 %v2011, %v2174
        %v2176 = vpop.f32.mrb[0].mxu0
        %2177 = vmatprep.mubr.f32.mxu0 0.0
        %2178 = vmatmul.mubr.f32.gmra.mrb[0].mxu0 %v1754
        %v2179 = vpop.f32.mrb[0].mxu0
        %v2180 = vadd.f32 %v2011, %v2179
        %v2181 = vpop.f32.mrb[0].mxu0
        %2182 = vmatprep.mubr.f32.mxu0 0.0
        %2183 = vmatmul.mubr.f32.gmra.mrb[0].mxu0 %v1755
        %v2184 = vpop.f32.mrb[0].mxu0
        %v2185 = vadd.f32 %v2011, %v2184
        %v2186 = vpop.f32.mrb[0].mxu0
        %2187 = vmatprep.mubr.f32.mxu0 0.0
        %2188 = vmatmul.mubr.f32.gmra.mrb[0].mxu0 %v1756
        %v2189 = vpop.f32.mrb[0].mxu0
        %v2190 = vadd.f32 %v2011, %v2189
        %v2191 = vpop.f32.mrb[0].mxu0
        %2192 = vmatprep.mubr.f32.mxu0 0.0
        %2193 = vmatmul.mubr.f32.gmra.mrb[0].mxu0 %v1757
        %v2194 = vpop.f32.mrb[0].mxu0
        %v2195 = vadd.f32 %v2011, %v2194
        %v2196 = vpop.f32.mrb[0].mxu0
        %2197 = vmatprep.mubr.f32.mxu0 0.0
        %2198 = vmatmul.mubr.f32.gmra.mrb[0].mxu0 %v1758
        %v2199 = vpop.f32.mrb[0].mxu0
        %v2200 = vadd.f32 %v2011, %v2199
        %v2201 = vpop.f32.mrb[0].mxu0
        %2202 = vmatprep.mubr.f32.mxu0 0.0
        %2203 = vmatmul.mubr.f32.gmra.mrb[0].mxu0 %v1759
        %v2204 = vpop.f32.mrb[0].mxu0
        %v2205 = vadd.f32 %v2011, %v2204
        %v2206 = vpop.f32.mrb[0].mxu0
        %2207 = vmatprep.mubr.f32.mxu0 0.0
        %2208 = vmatmul.mubr.f32.gmra.mrb[0].mxu0 %v1760
        %v2209 = vpop.f32.mrb[0].mxu0
        %v2210 = vadd.f32 %v2011, %v2209
        %v2211 = vpop.f32.mrb[0].mxu0
        %2212 = vmatprep.mubr.f32.mxu0 0.0
        %2213 = vmatmul.mubr.f32.gmra.mrb[0].mxu0 %v1761
        %v2214 = vpop.f32.mrb[0].mxu0
        %v2215 = vadd.f32 %v2011, %v2214
        %v2216 = vpop.f32.mrb[0].mxu0
        %2217 = vmatprep.mubr.f32.mxu0 0.0
        %2218 = vmatmul.mubr.f32.gmra.mrb[0].mxu0 %v1762
        %v2219 = vpop.f32.mrb[0].mxu0
        %v2220 = vadd.f32 %v2011, %v2219
        %v2221 = vpop.f32.mrb[0].mxu0
        %2222 = vmatprep.mubr.f32.mxu0 0.0
        %2223 = vmatmul.mubr.f32.gmra.mrb[0].mxu0 %v1763
        %v2224 = vpop.f32.mrb[0].mxu0
        %v2225 = vadd.f32 %v2011, %v2224
        %v2226 = vpop.f32.mrb[0].mxu0
        %2227 = vmatprep.mubr.f32.mxu0 0.0
        %2228 = vmatmul.mubr.f32.gmra.mrb[0].mxu0 %v1764
        %v2229 = vpop.f32.mrb[0].mxu0
        %v2230 = vadd.f32 %v2011, %v2229
        %v2231 = vpop.f32.mrb[0].mxu0
        %2232 = vmatprep.mubr.f32.mxu0 0.0
        %2233 = vmatmul.mubr.f32.gmra.mrb[0].mxu0 %v1765
        %v2234 = vpop.f32.mrb[0].mxu0
        %v2235 = vadd.f32 %v2011, %v2234
        %v2236 = vpop.f32.mrb[0].mxu0
        %2237 = vmatprep.mubr.f32.mxu0 0.0
        %2238 = vmatmul.mubr.f32.gmra.mrb[0].mxu0 %v1766
        %v2239 = vpop.f32.mrb[0].mxu0
        %v2240 = vadd.f32 %v2011, %v2239
        %v2241 = vpop.f32.mrb[0].mxu0
        %2242 = vmatprep.mubr.f32.mxu0 0.0
        %2243 = vmatmul.mubr.f32.gmra.mrb[0].mxu0 %v1767
        %v2244 = vpop.f32.mrb[0].mxu0
        %v2245 = vadd.f32 %v2011, %v2244
        %v2246 = vpop.f32.mrb[0].mxu0
        %2247 = vmatprep.mubr.f32.mxu0 0.0
        %2248 = vmatmul.mubr.f32.gmra.mrb[0].mxu0 %v1768
        %v2249 = vpop.f32.mrb[0].mxu0
        %v2250 = vadd.f32 %v2011, %v2249
        %v2251 = vpop.f32.mrb[0].mxu0
        %2252 = vmatprep.mubr.f32.mxu0 0.0
        %2253 = vmatmul.mubr.f32.gmra.mrb[0].mxu0 %v1769
        %v2254 = vpop.f32.mrb[0].mxu0
        %v2255 = vadd.f32 %v2011, %v2254
        %v2256 = vpop.f32.mrb[0].mxu0
        %2257 = vmatprep.mubr.f32.mxu0 0.0
        %2258 = vmatmul.mubr.f32.gmra.mrb[0].mxu0 %v1770
        %v2259 = vpop.f32.mrb[0].mxu0
        %v2260 = vadd.f32 %v2011, %v2259
        %v2261 = vpop.f32.mrb[0].mxu0
        %2262 = vmatprep.mubr.f32.mxu0 0.0
        %2263 = vmatmul.mubr.f32.gmra.mrb[0].mxu0 %v1771
        %v2264 = vpop.f32.mrb[0].mxu0
        %v2265 = vadd.f32 %v2011, %v2264
        %v2266 = vpop.f32.mrb[0].mxu0
        %2267 = vmatprep.mubr.f32.mxu0 0.0
        %2268 = vmatmul.mubr.f32.gmra.mrb[0].mxu0 %v1772
        %v2269 = vpop.f32.mrb[0].mxu0
        %v2270 = vadd.f32 %v2011, %v2269
        %v2271 = vpop.f32.mrb[0].mxu0
        %2272 = vmatprep.mubr.f32.mxu0 0.0
        %2273 = vmatmul.mubr.f32.gmra.mrb[0].mxu0 %v1773
        %v2274 = vpop.f32.mrb[0].mxu0
        %v2275 = vadd.f32 %v2011, %v2274
        %v2276 = vpop.f32.mrb[0].mxu0
        %2277 = vmatprep.mubr.f32.mxu0 0.0
        %2278 = vmatmul.mubr.f32.gmra.mrb[0].mxu0 %v1774
        %v2279 = vpop.f32.mrb[0].mxu0
        %v2280 = vadd.f32 %v2011, %v2279
        %v2281 = vpop.f32.mrb[0].mxu0
        %2282 = vmatprep.mubr.f32.mxu0 0.0
        %2283 = vmatmul.mubr.f32.gmra.mrb[0].mxu0 %v1775
        %v2284 = vpop.f32.mrb[0].mxu0
        %v2285 = vadd.f32 %v2011, %v2284
        %v2286 = vpop.f32.mrb[0].mxu0
        %2287 = vmatprep.mubr.f32.mxu0 0.0
        %2288 = vmatmul.mubr.f32.gmra.mrb[0].mxu0 %v1776
        %v2289 = vpop.f32.mrb[0].mxu0
        %v2290 = vadd.f32 %v2011, %v2289
        %v2291 = vpop.f32.mrb[0].mxu0
        %2292 = vmatprep.mubr.f32.mxu0 0.0
        %2293 = vmatmul.mubr.f32.gmra.mrb[0].mxu0 %v1777
        %v2294 = vpop.f32.mrb[0].mxu0
        %v2295 = vadd.f32 %v2011, %v2294
        %v2296 = vpop.f32.mrb[0].mxu0
        %2297 = vmatprep.mubr.f32.mxu0 0.0
        %2298 = vmatmul.mubr.f32.gmra.mrb[0].mxu0 %v1778
        %v2299 = vpop.f32.mrb[0].mxu0
        %v2300 = vadd.f32 %v2011, %v2299
        %v2301 = vpop.f32.mrb[0].mxu0
        %2302 = vmatprep.mubr.f32.mxu0 0.0
        %2303 = vmatmul.mubr.f32.gmra.mrb[0].mxu0 %v1779
        %v2304 = vpop.f32.mrb[0].mxu0
        %v2305 = vadd.f32 %v2011, %v2304
        %v2306 = vpop.f32.mrb[0].mxu0
        %2307 = vmatprep.mubr.f32.mxu0 0.0
        %2308 = vmatmul.mubr.f32.gmra.mrb[0].mxu0 %v1780
        %v2309 = vpop.f32.mrb[0].mxu0
        %v2310 = vadd.f32 %v2011, %v2309
        %v2311 = vpop.f32.mrb[0].mxu0
        %2312 = vmatprep.mubr.f32.mxu0 0.0
        %2313 = vmatmul.mubr.f32.gmra.mrb[0].mxu0 %v1781
        %v2314 = vpop.f32.mrb[0].mxu0
        %v2315 = vadd.f32 %v2011, %v2314
        %v2316 = vpop.f32.mrb[0].mxu0
        %2317 = vmatprep.mubr.f32.mxu0 0.0
        %2318 = vmatmul.mubr.f32.gmra.mrb[0].mxu0 %v1782
        %v2319 = vpop.f32.mrb[0].mxu0
        %v2320 = vadd.f32 %v2011, %v2319
        %v2321 = vpop.f32.mrb[0].mxu0
        %2322 = vmatprep.mubr.f32.mxu0 0.0
        %2323 = vmatmul.mubr.f32.gmra.mrb[0].mxu0 %v1783
        %v2324 = vpop.f32.mrb[0].mxu0
        %v2325 = vadd.f32 %v2011, %v2324
        %v2326 = vpop.f32.mrb[0].mxu0
        %2327 = vmatprep.mubr.f32.mxu0 0.0
        %2328 = vmatmul.mubr.f32.gmra.mrb[0].mxu0 %v1784
        %v2329 = vpop.f32.mrb[0].mxu0
        %v2330 = vadd.f32 %v2011, %v2329
        %v2331 = vpop.f32.mrb[0].mxu0
        %2332 = vmatprep.mubr.f32.mxu0 0.0
        %2333 = vmatmul.mubr.f32.gmra.mrb[0].mxu0 %v1785
        %v2334 = vpop.f32.mrb[0].mxu0
        %v2335 = vadd.f32 %v2011, %v2334
        %v2336 = vpop.f32.mrb[0].mxu0
        %2337 = vmatprep.mubr.f32.mxu0 0.0
        %2338 = vmatmul.mubr.f32.gmra.mrb[0].mxu0 %v1786
        %v2339 = vpop.f32.mrb[0].mxu0
        %v2340 = vadd.f32 %v2011, %v2339
        %v2341 = vpop.f32.mrb[0].mxu0
        %2342 = vmatprep.mubr.f32.mxu0 0.0
        %2343 = vmatmul.mubr.f32.gmra.mrb[0].mxu0 %v1787
        %v2344 = vpop.f32.mrb[0].mxu0
        %v2345 = vadd.f32 %v2011, %v2344
        %v2346 = vpop.f32.mrb[0].mxu0
        %2347 = vmatprep.mubr.f32.mxu0 0.0
        %2348 = vmatmul.mubr.f32.gmra.mrb[0].mxu0 %v1788
        %v2349 = vpop.f32.mrb[0].mxu0
        %v2350 = vadd.f32 %v2011, %v2349
        %v2351 = vpop.f32.mrb[0].mxu0
        %2352 = vmatprep.mubr.f32.mxu0 0.0
        %2353 = vmatmul.mubr.f32.gmra.mrb[0].mxu0 %v1789
        %v2354 = vpop.f32.mrb[0].mxu0
        %v2355 = vadd.f32 %v2011, %v2354
        %v2356 = vpop.f32.mrb[0].mxu0
        %2357 = vmatprep.mubr.f32.mxu0 0.0
        %2358 = vmatmul.mubr.f32.gmra.mrb[0].mxu0 %v1790
        %v2359 = vpop.f32.mrb[0].mxu0
        %v2360 = vadd.f32 %v2011, %v2359
        %v2361 = vpop.f32.mrb[0].mxu0
        %2362 = vmatprep.mubr.f32.mxu0 0.0
        %2363 = vmatmul.mubr.f32.gmra.mrb[0].mxu0 %v1791
        %v2364 = vpop.f32.mrb[0].mxu0
        %v2365 = vadd.f32 %v2011, %v2364
        %v2366 = vpop.f32.mrb[0].mxu0
        %2367 = vmatprep.mubr.f32.mxu0 0.0
        %2368 = vmatmul.mubr.f32.gmra.mrb[0].mxu0 %v1792
        %v2369 = vpop.f32.mrb[0].mxu0
        %v2370 = vadd.f32 %v2011, %v2369
        %v2371 = vpop.f32.mrb[0].mxu0
        %2372 = vmatprep.mubr.f32.mxu0 0.0
        %2373 = vmatmul.mubr.f32.gmra.mrb[0].mxu0 %v1793
        %v2374 = vpop.f32.mrb[0].mxu0
        %v2375 = vadd.f32 %v2011, %v2374
        %v2376 = vpop.f32.mrb[0].mxu0
        %2377 = vmatprep.mubr.f32.mxu0 0.0
        %2378 = vmatmul.mubr.f32.gmra.mrb[0].mxu0 %v1794
        %v2379 = vpop.f32.mrb[0].mxu0
        %v2380 = vadd.f32 %v2011, %v2379
        %v2381 = vpop.f32.mrb[0].mxu0
        %2382 = vmatprep.mubr.f32.mxu0 0.0
        %2383 = vmatmul.mubr.f32.gmra.mrb[0].mxu0 %v1795
        %v2384 = vpop.f32.mrb[0].mxu0
        %v2385 = vadd.f32 %v2011, %v2384
        %v2386 = vpop.f32.mrb[0].mxu0
        %2387 = vmatprep.mubr.f32.mxu0 0.0
        %2388 = vmatmul.mubr.f32.gmra.mrb[0].mxu0 %v1796
        %v2389 = vpop.f32.mrb[0].mxu0
        %v2390 = vadd.f32 %v2011, %v2389
        %v2391 = vpop.f32.mrb[0].mxu0
        %2392 = vmatprep.mubr.f32.mxu0 0.0
        %2393 = vmatmul.mubr.f32.gmra.mrb[0].mxu0 %v1797
        %v2394 = vpop.f32.mrb[0].mxu0
        %v2395 = vadd.f32 %v2011, %v2394
        %v2396 = vpop.f32.mrb[0].mxu0
        %2397 = vmatprep.mubr.f32.mxu0 0.0
        %2398 = vmatmul.mubr.f32.gmra.mrb[0].mxu0 %v1798
        %v2399 = vpop.f32.mrb[0].mxu0
        %v2400 = vadd.f32 %v2011, %v2399
        %v2401 = vpop.f32.mrb[0].mxu0
        %2402 = vmatprep.mubr.f32.mxu0 0.0
        %2403 = vmatmul.mubr.f32.gmra.mrb[0].mxu0 %v1799
        %v2404 = vpop.f32.mrb[0].mxu0
        %v2405 = vadd.f32 %v2011, %v2404
        %v2406 = vpop.f32.mrb[0].mxu0
        %2407 = vmatprep.mubr.f32.mxu0 0.0
        %2408 = vmatmul.mubr.f32.gmra.mrb[0].mxu0 %v1800
        %v2409 = vpop.f32.mrb[0].mxu0
        %v2410 = vadd.f32 %v2011, %v2409
        %v2411 = vpop.f32.mrb[0].mxu0
        %2412 = vmatprep.mubr.f32.mxu0 0.0
        %2413 = vmatmul.mubr.f32.gmra.mrb[0].mxu0 %v1801
        %v2414 = vpop.f32.mrb[0].mxu0
        %v2415 = vadd.f32 %v2011, %v2414
        %v2416 = vpop.f32.mrb[0].mxu0
        %2417 = vmatprep.mubr.f32.mxu0 0.0
        %2418 = vmatmul.mubr.f32.gmra.mrb[0].mxu0 %v1802
        %v2419 = vpop.f32.mrb[0].mxu0
        %v2420 = vadd.f32 %v2011, %v2419
        %v2421 = vpop.f32.mrb[0].mxu0
        %2422 = vmatprep.mubr.f32.mxu0 0.0
        %2423 = vmatmul.mubr.f32.gmra.mrb[0].mxu0 %v1803
        %v2424 = vpop.f32.mrb[0].mxu0
        %v2425 = vadd.f32 %v2011, %v2424
        %v2426 = vpop.f32.mrb[0].mxu0
        %2427 = vmatprep.mubr.f32.mxu0 0.0
        %2428 = vmatmul.mubr.f32.gmra.mrb[0].mxu0 %v1804
        %v2429 = vpop.f32.mrb[0].mxu0
        %v2430 = vadd.f32 %v2011, %v2429
        %v2431 = vpop.f32.mrb[0].mxu0
        %2432 = vmatprep.mubr.f32.mxu0 0.0
        %2433 = vmatmul.mubr.f32.gmra.mrb[0].mxu0 %v1805
        %v2434 = vpop.f32.mrb[0].mxu0
        %v2435 = vadd.f32 %v2011, %v2434
        %v2436 = vpop.f32.mrb[0].mxu0
        %2437 = vmatprep.mubr.f32.mxu0 0.0
        %2438 = vmatmul.mubr.f32.gmra.mrb[0].mxu0 %v1806
        %v2439 = vpop.f32.mrb[0].mxu0
        %v2440 = vadd.f32 %v2011, %v2439
        %v2441 = vpop.f32.mrb[0].mxu0
        %2442 = vmatprep.mubr.f32.mxu0 0.0
        %2443 = vmatmul.mubr.f32.gmra.mrb[0].mxu0 %v1807
        %v2444 = vpop.f32.mrb[0].mxu0
        %v2445 = vadd.f32 %v2011, %v2444
        %v2446 = vpop.f32.mrb[0].mxu0
        %2447 = vmatprep.mubr.f32.mxu0 0.0
        %2448 = vmatmul.mubr.f32.gmra.mrb[0].mxu0 %v1808
        %v2449 = vpop.f32.mrb[0].mxu0
        %v2450 = vadd.f32 %v2011, %v2449
        %v2451 = vpop.f32.mrb[0].mxu0
        %2452 = vmatprep.mubr.f32.mxu0 0.0
        %2453 = vmatmul.mubr.f32.gmra.mrb[0].mxu0 %v1809
        %v2454 = vpop.f32.mrb[0].mxu0
        %v2455 = vadd.f32 %v2011, %v2454
        %v2456 = vpop.f32.mrb[0].mxu0
        %2457 = vmatprep.mubr.f32.mxu0 0.0
        %2458 = vmatmul.mubr.f32.gmra.mrb[0].mxu0 %v1810
        %v2459 = vpop.f32.mrb[0].mxu0
        %v2460 = vadd.f32 %v2011, %v2459
        %v2461 = vpop.f32.mrb[0].mxu0
        %2462 = vmatprep.mubr.f32.mxu0 0.0
        %2463 = vmatmul.mubr.f32.gmra.mrb[0].mxu0 %v1811
        %v2464 = vpop.f32.mrb[0].mxu0
        %v2465 = vadd.f32 %v2011, %v2464
        %v2466 = vpop.f32.mrb[0].mxu0
        %2467 = vmatprep.mubr.f32.mxu0 0.0
        %2468 = vmatmul.mubr.f32.gmra.mrb[0].mxu0 %v1812
        %v2469 = vpop.f32.mrb[0].mxu0
        %v2470 = vadd.f32 %v2011, %v2469
        %v2471 = vpop.f32.mrb[0].mxu0
        %2472 = vmatprep.mubr.f32.mxu0 0.0
        %2473 = vmatmul.mubr.f32.gmra.mrb[0].mxu0 %v1813
        %v2474 = vpop.f32.mrb[0].mxu0
        %v2475 = vadd.f32 %v2011, %v2474
        %v2476 = vpop.f32.mrb[0].mxu0
        %2477 = vmatprep.mubr.f32.mxu0 0.0
        %2478 = vmatmul.mubr.f32.gmra.mrb[0].mxu0 %v1814
        %v2479 = vpop.f32.mrb[0].mxu0
        %v2480 = vadd.f32 %v2011, %v2479
        %v2481 = vpop.f32.mrb[0].mxu0
        %2482 = vmatprep.mubr.f32.mxu0 0.0
        %2483 = vmatmul.mubr.f32.gmra.mrb[0].mxu0 %v1815
        %v2484 = vpop.f32.mrb[0].mxu0
        %v2485 = vadd.f32 %v2011, %v2484
        %v2486 = vpop.f32.mrb[0].mxu0
        %2487 = vmatprep.mubr.f32.mxu0 0.0
        %2488 = vmatmul.mubr.f32.gmra.mrb[0].mxu0 %v1816
        %v2489 = vpop.f32.mrb[0].mxu0
        %v2490 = vadd.f32 %v2011, %v2489
        %v2491 = vpop.f32.mrb[0].mxu0
        %2492 = vmatprep.mubr.f32.mxu0 0.0
        %2493 = vmatmul.mubr.f32.gmra.mrb[0].mxu0 %v1817
        %v2494 = vpop.f32.mrb[0].mxu0
        %v2495 = vadd.f32 %v2011, %v2494
        %v2496 = vpop.f32.mrb[0].mxu0
        %2497 = vmatprep.mubr.f32.mxu0 0.0
        %2498 = vmatmul.mubr.f32.gmra.mrb[0].mxu0 %v1818
        %v2499 = vpop.f32.mrb[0].mxu0
        %v2500 = vadd.f32 %v2011, %v2499
        %v2501 = vpop.f32.mrb[0].mxu0
        %2502 = vmatprep.mubr.f32.mxu0 0.0
        %2503 = vmatmul.mubr.f32.gmra.mrb[0].mxu0 %v1819
        %v2504 = vpop.f32.mrb[0].mxu0
        %v2505 = vadd.f32 %v2011, %v2504
        %v2506 = vpop.f32.mrb[0].mxu0
        %2507 = vmatprep.mubr.f32.mxu0 0.0
        %2508 = vmatmul.mubr.f32.gmra.mrb[0].mxu0 %v1820
        %v2509 = vpop.f32.mrb[0].mxu0
        %v2510 = vadd.f32 %v2011, %v2509
        %v2511 = vpop.f32.mrb[0].mxu0
        %2512 = vmatprep.mubr.f32.mxu0 0.0
        %2513 = vmatmul.mubr.f32.gmra.mrb[0].mxu0 %v1821
        %v2514 = vpop.f32.mrb[0].mxu0
        %v2515 = vadd.f32 %v2011, %v2514
        %v2516 = vpop.f32.mrb[0].mxu0
        %2517 = vmatprep.mubr.f32.mxu0 0.0
        %2518 = vmatmul.mubr.f32.gmra.mrb[0].mxu0 %v1822
        %v2519 = vpop.f32.mrb[0].mxu0
        %v2520 = vadd.f32 %v2011, %v2519
        %v2521 = vpop.f32.mrb[0].mxu0
        %2522 = vmatprep.mubr.f32.mxu0 0.0
        %2523 = vmatmul.mubr.f32.gmra.mrb[0].mxu0 %v1823
        %v2524 = vpop.f32.mrb[0].mxu0
        %v2525 = vadd.f32 %v2011, %v2524
        %v2526 = vpop.f32.mrb[0].mxu0
        %2527 = vmatprep.mubr.f32.mxu0 0.0
        %2528 = vmatmul.mubr.f32.gmra.mrb[0].mxu0 %v1824
        %v2529 = vpop.f32.mrb[0].mxu0
        %v2530 = vadd.f32 %v2011, %v2529
        %v2531 = vpop.f32.mrb[0].mxu0
        %2532 = vmatprep.mubr.f32.mxu0 0.0
        %2533 = vmatmul.mubr.f32.gmra.mrb[0].mxu0 %v1825
        %v2534 = vpop.f32.mrb[0].mxu0
        %v2535 = vadd.f32 %v2011, %v2534
        %v2536 = vpop.f32.mrb[0].mxu0
        %2537 = vmatprep.mubr.f32.mxu0 0.0
        %2538 = vmatmul.mubr.f32.gmra.mrb[0].mxu0 %v1826
        %v2539 = vpop.f32.mrb[0].mxu0
        %v2540 = vadd.f32 %v2011, %v2539
        %v2541 = vpop.f32.mrb[0].mxu0
        %2542 = vmatprep.mubr.f32.mxu0 0.0
        %2543 = vmatmul.mubr.f32.gmra.mrb[0].mxu0 %v1827
        %v2544 = vpop.f32.mrb[0].mxu0
        %v2545 = vadd.f32 %v2011, %v2544
        %v2546 = vpop.f32.mrb[0].mxu0
        %2547 = vmatprep.mubr.f32.mxu0 0.0
        %2548 = vmatmul.mubr.f32.gmra.mrb[0].mxu0 %v1828
        %v2549 = vpop.f32.mrb[0].mxu0
        %v2550 = vadd.f32 %v2011, %v2549
        %v2551 = vpop.f32.mrb[0].mxu0
        %2552 = vmatprep.mubr.f32.mxu0 0.0
        %2553 = vmatmul.mubr.f32.gmra.mrb[0].mxu0 %v1829
        %v2554 = vpop.f32.mrb[0].mxu0
        %v2555 = vadd.f32 %v2011, %v2554
        %v2556 = vpop.f32.mrb[0].mxu0
        %2557 = vmatprep.mubr.f32.mxu0 0.0
        %2558 = vmatmul.mubr.f32.gmra.mrb[0].mxu0 %v1830
        %v2559 = vpop.f32.mrb[0].mxu0
        %v2560 = vadd.f32 %v2011, %v2559
        %v2561 = vpop.f32.mrb[0].mxu0
        %2562 = vmatprep.mubr.f32.mxu0 0.0
        %2563 = vmatmul.mubr.f32.gmra.mrb[0].mxu0 %v1831
        %v2564 = vpop.f32.mrb[0].mxu0
        %v2565 = vadd.f32 %v2011, %v2564
        %v2566 = vpop.f32.mrb[0].mxu0
        %2567 = vmatprep.mubr.f32.mxu0 0.0
        %2568 = vmatmul.mubr.f32.gmra.mrb[0].mxu0 %v1832
        %v2569 = vpop.f32.mrb[0].mxu0
        %v2570 = vadd.f32 %v2011, %v2569
        %v2571 = vpop.f32.mrb[0].mxu0
        %2572 = vmatprep.mubr.f32.mxu0 0.0
        %2573 = vmatmul.mubr.f32.gmra.mrb[0].mxu0 %v1833
        %v2574 = vpop.f32.mrb[0].mxu0
        %v2575 = vadd.f32 %v2011, %v2574
        %v2576 = vpop.f32.mrb[0].mxu0
        %2577 = vmatprep.mubr.f32.mxu0 0.0
        %2578 = vmatmul.mubr.f32.gmra.mrb[0].mxu0 %v1834
        %v2579 = vpop.f32.mrb[0].mxu0
        %v2580 = vadd.f32 %v2011, %v2579
        %v2581 = vpop.f32.mrb[0].mxu0
        %2582 = vmatprep.mubr.f32.mxu0 0.0
        %2583 = vmatmul.mubr.f32.gmra.mrb[0].mxu0 %v1835
        %v2584 = vpop.f32.mrb[0].mxu0
        %v2585 = vadd.f32 %v2011, %v2584
        %v2586 = vpop.f32.mrb[0].mxu0
        %2587 = vmatprep.mubr.f32.mxu0 0.0
        %2588 = vmatmul.mubr.f32.gmra.mrb[0].mxu0 %v1836
        %v2589 = vpop.f32.mrb[0].mxu0
        %v2590 = vadd.f32 %v2011, %v2589
        %v2591 = vpop.f32.mrb[0].mxu0
        %2592 = vmatprep.mubr.f32.mxu0 0.0
        %2593 = vmatmul.mubr.f32.gmra.mrb[0].mxu0 %v1837
        %v2594 = vpop.f32.mrb[0].mxu0
        %v2595 = vadd.f32 %v2011, %v2594
        %v2596 = vpop.f32.mrb[0].mxu0
        %2597 = vmatprep.mubr.f32.mxu0 0.0
        %2598 = vmatmul.mubr.f32.gmra.mrb[0].mxu0 %v1838
        %v2599 = vpop.f32.mrb[0].mxu0
        %v2600 = vadd.f32 %v2011, %v2599
        %v2601 = vpop.f32.mrb[0].mxu0
        %2602 = vmatprep.mubr.f32.mxu0 0.0
        %2603 = vmatmul.mubr.f32.gmra.mrb[0].mxu0 %v1839
        %v2604 = vpop.f32.mrb[0].mxu0
        %v2605 = vadd.f32 %v2011, %v2604
        %v2606 = vpop.f32.mrb[0].mxu0
        %2607 = vmatprep.mubr.f32.mxu0 0.0
        %2608 = vmatmul.mubr.f32.gmra.mrb[0].mxu0 %v1840
        %v2609 = vpop.f32.mrb[0].mxu0
        %v2610 = vadd.f32 %v2011, %v2609
        %v2611 = vpop.f32.mrb[0].mxu0
        %2612 = vmatprep.mubr.f32.mxu0 0.0
        %2613 = vmatmul.mubr.f32.gmra.mrb[0].mxu0 %v1841
        %v2614 = vpop.f32.mrb[0].mxu0
        %v2615 = vadd.f32 %v2011, %v2614
        %v2616 = vpop.f32.mrb[0].mxu0
        %2617 = vmatprep.mubr.f32.mxu0 0.0
        %2618 = vmatmul.mubr.f32.gmra.mrb[0].mxu0 %v1842
        %v2619 = vpop.f32.mrb[0].mxu0
        %v2620 = vadd.f32 %v2011, %v2619
        %v2621 = vpop.f32.mrb[0].mxu0
        %2622 = vmatprep.mubr.f32.mxu0 0.0
        %2623 = vmatmul.mubr.f32.gmra.mrb[0].mxu0 %v1843
        %v2624 = vpop.f32.mrb[0].mxu0
        %v2625 = vadd.f32 %v2011, %v2624
        %v2626 = vpop.f32.mrb[0].mxu0
        %2627 = vmatprep.mubr.f32.mxu0 0.0
        %2628 = vmatmul.mubr.f32.gmra.mrb[0].mxu0 %v1844
        %v2629 = vpop.f32.mrb[0].mxu0
        %v2630 = vadd.f32 %v2011, %v2629
        %v2631 = vpop.f32.mrb[0].mxu0
        %2632 = vmatprep.mubr.f32.mxu0 0.0
        %2633 = vmatmul.mubr.f32.gmra.mrb[0].mxu0 %v1845
        %v2634 = vpop.f32.mrb[0].mxu0
        %v2635 = vadd.f32 %v2011, %v2634
        %v2636 = vpop.f32.mrb[0].mxu0
        %2637 = vmatprep.mubr.f32.mxu0 0.0
        %2638 = vmatmul.mubr.f32.gmra.mrb[0].mxu0 %v1846
        %v2639 = vpop.f32.mrb[0].mxu0
        %v2640 = vadd.f32 %v2011, %v2639
        %v2641 = vpop.f32.mrb[0].mxu0
        %2642 = vmatprep.mubr.f32.mxu0 0.0
        %2643 = vmatmul.mubr.f32.gmra.mrb[0].mxu0 %v1847
        %v2644 = vpop.f32.mrb[0].mxu0
        %v2645 = vadd.f32 %v2011, %v2644
        %v2646 = vpop.f32.mrb[0].mxu0
        %2647 = vmatprep.mubr.f32.mxu0 0.0
        %2648 = vmatmul.mubr.f32.gmra.mrb[0].mxu0 %v1848
        %v2649 = vpop.f32.mrb[0].mxu0
        %v2650 = vadd.f32 %v2011, %v2649
        %v2651 = vpop.f32.mrb[0].mxu0
        %2652 = vmatprep.mubr.f32.mxu0 0.0
        %2653 = vmatmul.mubr.f32.gmra.mrb[0].mxu0 %v1849
        %v2654 = vpop.f32.mrb[0].mxu0
        %v2655 = vadd.f32 %v2011, %v2654
        %v2656 = vpop.f32.mrb[0].mxu0
        %2657 = vmatprep.mubr.f32.mxu0 0.0
        %2658 = vmatmul.mubr.f32.gmra.mrb[0].mxu0 %v1850
        %v2659 = vpop.f32.mrb[0].mxu0
        %v2660 = vadd.f32 %v2011, %v2659
        %v2661 = vpop.f32.mrb[0].mxu0
        %2662 = vmatprep.mubr.f32.mxu0 0.0
        %2663 = vmatmul.mubr.f32.gmra.mrb[0].mxu0 %v1851
        %v2664 = vpop.f32.mrb[0].mxu0
        %v2665 = vadd.f32 %v2011, %v2664
        %v2666 = vpop.f32.mrb[0].mxu0
        %2667 = vmatprep.mubr.f32.mxu0 0.0
        %2668 = vmatmul.mubr.f32.gmra.mrb[0].mxu0 %v1852
        %v2669 = vpop.f32.mrb[0].mxu0
        %v2670 = vadd.f32 %v2011, %v2669
        %v2671 = vpop.f32.mrb[0].mxu0
        %2672 = vmatprep.mubr.f32.mxu0 0.0
        %2673 = vmatmul.mubr.f32.gmra.mrb[0].mxu0 %v1853
        %v2674 = vpop.f32.mrb[0].mxu0
        %v2675 = vadd.f32 %v2011, %v2674
        %v2676 = vpop.f32.mrb[0].mxu0
        %2677 = vmatprep.mubr.f32.mxu0 0.0
        %2678 = vmatmul.mubr.f32.gmra.mrb[0].mxu0 %v1854
        %v2679 = vpop.f32.mrb[0].mxu0
        %v2680 = vadd.f32 %v2011, %v2679
        %v2681 = vpop.f32.mrb[0].mxu0
        %2682 = vmatprep.mubr.f32.mxu0 0.0
        %2683 = vmatmul.mubr.f32.gmra.mrb[0].mxu0 %v1855
        %v2684 = vpop.f32.mrb[0].mxu0
        %v2685 = vadd.f32 %v2011, %v2684
        %v2686 = vpop.f32.mrb[0].mxu0
        %2687 = vmatprep.mubr.f32.mxu0 0.0
        %2688 = vmatmul.mubr.f32.gmra.mrb[0].mxu0 %v1856
        %v2689 = vpop.f32.mrb[0].mxu0
        %v2690 = vadd.f32 %v2011, %v2689
        %v2691 = vpop.f32.mrb[0].mxu0
        %2692 = vmatprep.mubr.f32.mxu0 0.0
        %2693 = vmatmul.mubr.f32.gmra.mrb[0].mxu0 %v1857
        %v2694 = vpop.f32.mrb[0].mxu0
        %v2695 = vadd.f32 %v2011, %v2694
        %v2696 = vpop.f32.mrb[0].mxu0
        %2697 = vmatprep.mubr.f32.mxu0 0.0
        %2698 = vmatmul.mubr.f32.gmra.mrb[0].mxu0 %v1858
        %v2699 = vpop.f32.mrb[0].mxu0
        %v2700 = vadd.f32 %v2011, %v2699
        %v2701 = vpop.f32.mrb[0].mxu0
        %2702 = vmatprep.mubr.f32.mxu0 0.0
        %2703 = vmatmul.mubr.f32.gmra.mrb[0].mxu0 %v1859
        %v2704 = vpop.f32.mrb[0].mxu0
        %v2705 = vadd.f32 %v2011, %v2704
        %v2706 = vpop.f32.mrb[0].mxu0
        %2707 = vmatprep.mubr.f32.mxu0 0.0
        %2708 = vmatmul.mubr.f32.gmra.mrb[0].mxu0 %v1860
        %v2709 = vpop.f32.mrb[0].mxu0
        %v2710 = vadd.f32 %v2011, %v2709
        %v2711 = vpop.f32.mrb[0].mxu0
        %2712 = vmatprep.mubr.f32.mxu0 0.0
        %2713 = vmatmul.mubr.f32.gmra.mrb[0].mxu0 %v1861
        %v2714 = vpop.f32.mrb[0].mxu0
        %v2715 = vadd.f32 %v2011, %v2714
        %v2716 = vpop.f32.mrb[0].mxu0
        %2717 = vmatprep.mubr.f32.mxu0 0.0
        %2718 = vmatmul.mubr.f32.gmra.mrb[0].mxu0 %v1862
        %v2719 = vpop.f32.mrb[0].mxu0
        %v2720 = vadd.f32 %v2011, %v2719
        %v2721 = vpop.f32.mrb[0].mxu0
        %2722 = vmatprep.mubr.f32.mxu0 0.0
        %2723 = vmatmul.mubr.f32.gmra.mrb[0].mxu0 %v1863
        %v2724 = vpop.f32.mrb[0].mxu0
        %v2725 = vadd.f32 %v2011, %v2724
        %v2726 = vpop.f32.mrb[0].mxu0
        %2727 = vmatprep.mubr.f32.mxu0 0.0
        %2728 = vmatmul.mubr.f32.gmra.mrb[0].mxu0 %v1864
        %v2729 = vpop.f32.mrb[0].mxu0
        %v2730 = vadd.f32 %v2011, %v2729
        %v2731 = vpop.f32.mrb[0].mxu0
        %2732 = vmatprep.mubr.f32.mxu0 0.0
        %2733 = vmatmul.mubr.f32.gmra.mrb[0].mxu0 %v1865
        %v2734 = vpop.f32.mrb[0].mxu0
        %v2735 = vadd.f32 %v2011, %v2734
        %v2736 = vpop.f32.mrb[0].mxu0
        %2737 = vmatprep.mubr.f32.mxu0 0.0
        %2738 = vmatmul.mubr.f32.gmra.mrb[0].mxu0 %v1866
        %v2739 = vpop.f32.mrb[0].mxu0
        %v2740 = vadd.f32 %v2011, %v2739
        %v2741 = vpop.f32.mrb[0].mxu0
        %2742 = vmatprep.mubr.f32.mxu0 0.0
        %2743 = vmatmul.mubr.f32.gmra.mrb[0].mxu0 %v1867
        %v2744 = vpop.f32.mrb[0].mxu0
        %v2745 = vadd.f32 %v2011, %v2744
        %v2746 = vpop.f32.mrb[0].mxu0
        %2747 = vmatprep.mubr.f32.mxu0 0.0
        %2748 = vmatmul.mubr.f32.gmra.mrb[0].mxu0 %v1868
        %v2749 = vpop.f32.mrb[0].mxu0
        %v2750 = vadd.f32 %v2011, %v2749
        %v2751 = vpop.f32.mrb[0].mxu0
        %2752 = vmatprep.mubr.f32.mxu0 0.0
        %2753 = vmatmul.mubr.f32.gmra.mrb[0].mxu0 %v1869
        %v2754 = vpop.f32.mrb[0].mxu0
        %v2755 = vadd.f32 %v2011, %v2754
        %v2756 = vpop.f32.mrb[0].mxu0
        %2757 = vmatprep.mubr.f32.mxu0 0.0
        %2758 = vmatmul.mubr.f32.gmra.mrb[0].mxu0 %v1870
        %v2759 = vpop.f32.mrb[0].mxu0
        %v2760 = vadd.f32 %v2011, %v2759
        %v2761 = vpop.f32.mrb[0].mxu0
        %2762 = vmatprep.mubr.f32.mxu0 0.0
        %2763 = vmatmul.mubr.f32.gmra.mrb[0].mxu0 %v1871
        %v2764 = vpop.f32.mrb[0].mxu0
        %v2765 = vadd.f32 %v2011, %v2764
        %v2766 = vpop.f32.mrb[0].mxu0
        %2767 = vmatprep.mubr.f32.mxu0 0.0
        %2768 = vmatmul.mubr.f32.gmra.mrb[0].mxu0 %v1872
        %v2769 = vpop.f32.mrb[0].mxu0
        %v2770 = vadd.f32 %v2011, %v2769
        %v2771 = vpop.f32.mrb[0].mxu0
        %2772 = vmatprep.mubr.f32.mxu0 0.0
        %2773 = vmatmul.mubr.f32.gmra.mrb[0].mxu0 %v1873
        %v2774 = vpop.f32.mrb[0].mxu0
        %v2775 = vadd.f32 %v2011, %v2774
        %v2776 = vpop.f32.mrb[0].mxu0
        %2777 = vmatprep.mubr.f32.mxu0 0.0
        %2778 = vmatmul.mubr.f32.gmra.mrb[0].mxu0 %v1874
        %v2779 = vpop.f32.mrb[0].mxu0
        %v2780 = vadd.f32 %v2011, %v2779
        %v2781 = vpop.f32.mrb[0].mxu0
        %2782 = vmatprep.mubr.f32.mxu0 0.0
        %2783 = vmatmul.mubr.f32.gmra.mrb[0].mxu0 %v1875
        %v2784 = vpop.f32.mrb[0].mxu0
        %v2785 = vadd.f32 %v2011, %v2784
        %v2786 = vpop.f32.mrb[0].mxu0
        %2787 = vmatprep.mubr.f32.mxu0 0.0
        %2788 = vmatmul.mubr.f32.gmra.mrb[0].mxu0 %v1876
        %v2789 = vpop.f32.mrb[0].mxu0
        %v2790 = vadd.f32 %v2011, %v2789
        %v2791 = vpop.f32.mrb[0].mxu0
        %2792 = vmatprep.mubr.f32.mxu0 0.0
        %2793 = vmatmul.mubr.f32.gmra.mrb[0].mxu0 %v1877
        %v2794 = vpop.f32.mrb[0].mxu0
        %v2795 = vadd.f32 %v2011, %v2794
        %v2796 = vpop.f32.mrb[0].mxu0
        %2797 = vmatprep.mubr.f32.mxu0 0.0
        %2798 = vmatmul.mubr.f32.gmra.mrb[0].mxu0 %v1878
        %v2799 = vpop.f32.mrb[0].mxu0
        %v2800 = vadd.f32 %v2011, %v2799
        %v2801 = vpop.f32.mrb[0].mxu0
        %2802 = vmatprep.mubr.f32.mxu0 0.0
        %2803 = vmatmul.mubr.f32.gmra.mrb[0].mxu0 %v1879
        %v2804 = vpop.f32.mrb[0].mxu0
        %v2805 = vadd.f32 %v2011, %v2804
        %v2806 = vpop.f32.mrb[0].mxu0
        %2807 = vmatprep.mubr.f32.mxu0 0.0
        %2808 = vmatmul.mubr.f32.gmra.mrb[0].mxu0 %v1880
        %v2809 = vpop.f32.mrb[0].mxu0
        %v2810 = vadd.f32 %v2011, %v2809
        %v2811 = vpop.f32.mrb[0].mxu0
        %2812 = vmatprep.mubr.f32.mxu0 0.0
        %2813 = vmatmul.mubr.f32.gmra.mrb[0].mxu0 %v1881
        %v2814 = vpop.f32.mrb[0].mxu0
        %v2815 = vadd.f32 %v2011, %v2814
        %v2816 = vpop.f32.mrb[0].mxu0
        %2817 = vmatprep.mubr.f32.mxu0 0.0
        %2818 = vmatmul.mubr.f32.gmra.mrb[0].mxu0 %v1882
        %v2819 = vpop.f32.mrb[0].mxu0
        %v2820 = vadd.f32 %v2011, %v2819
        %v2821 = vpop.f32.mrb[0].mxu0
        %2822 = vmatprep.mubr.f32.mxu0 0.0
        %2823 = vmatmul.mubr.f32.gmra.mrb[0].mxu0 %v1883
        %v2824 = vpop.f32.mrb[0].mxu0
        %v2825 = vadd.f32 %v2011, %v2824
        %v2826 = vpop.f32.mrb[0].mxu0
        %2827 = vmatprep.mubr.f32.mxu0 0.0
        %2828 = vmatmul.mubr.f32.gmra.mrb[0].mxu0 %v1884
        %v2829 = vpop.f32.mrb[0].mxu0
        %v2830 = vadd.f32 %v2011, %v2829
        %v2831 = vpop.f32.mrb[0].mxu0
        %2832 = vmatprep.mubr.f32.mxu0 0.0
        %2833 = vmatmul.mubr.f32.gmra.mrb[0].mxu0 %v1885
        %v2834 = vpop.f32.mrb[0].mxu0
        %v2835 = vadd.f32 %v2011, %v2834
        %v2836 = vpop.f32.mrb[0].mxu0
        %2837 = vmatprep.mubr.f32.mxu0 0.0
        %2838 = vmatmul.mubr.f32.gmra.mrb[0].mxu0 %v1886
        %v2839 = vpop.f32.mrb[0].mxu0
        %v2840 = vadd.f32 %v2011, %v2839
        %v2841 = vpop.f32.mrb[0].mxu0
        %2842 = vmatprep.mubr.f32.mxu0 0.0
        %2843 = vmatmul.mubr.f32.gmra.mrb[0].mxu0 %v1887
        %v2844 = vpop.f32.mrb[0].mxu0
        %v2845 = vadd.f32 %v2011, %v2844
        %v2846 = vpop.f32.mrb[0].mxu0
        %2847 = vmatprep.mubr.f32.mxu0 0.0
        %2848 = vmatmul.mubr.f32.gmra.mrb[0].mxu0 %v1888
        %v2849 = vpop.f32.mrb[0].mxu0
        %v2850 = vadd.f32 %v2011, %v2849
        %v2851 = vpop.f32.mrb[0].mxu0
        %2852 = vmatprep.mubr.f32.mxu0 0.0
        %2853 = vmatmul.mubr.f32.gmra.mrb[0].mxu0 %v1889
        %v2854 = vpop.f32.mrb[0].mxu0
        %v2855 = vadd.f32 %v2011, %v2854
        %v2856 = vpop.f32.mrb[0].mxu0
        %2857 = vmatprep.mubr.f32.mxu0 0.0
        %2858 = vmatmul.mubr.f32.gmra.mrb[0].mxu0 %v1890
        %v2859 = vpop.f32.mrb[0].mxu0
        %v2860 = vadd.f32 %v2011, %v2859
        %v2861 = vpop.f32.mrb[0].mxu0
        %2862 = vmatprep.mubr.f32.mxu0 0.0
        %2863 = vmatmul.mubr.f32.gmra.mrb[0].mxu0 %v1891
        %v2864 = vpop.f32.mrb[0].mxu0
        %v2865 = vadd.f32 %v2011, %v2864
        %v2866 = vpop.f32.mrb[0].mxu0
        %2867 = vmatprep.mubr.f32.mxu0 0.0
        %2868 = vmatmul.mubr.f32.gmra.mrb[0].mxu0 %v1892
        %v2869 = vpop.f32.mrb[0].mxu0
        %v2870 = vadd.f32 %v2011, %v2869
        %v2871 = vpop.f32.mrb[0].mxu0
        %2872 = vmatprep.mubr.f32.mxu0 0.0
        %2873 = vmatmul.mubr.f32.gmra.mrb[0].mxu0 %v1893
        %v2874 = vpop.f32.mrb[0].mxu0
        %v2875 = vadd.f32 %v2011, %v2874
        %v2876 = vpop.f32.mrb[0].mxu0
        %2877 = vmatprep.mubr.f32.mxu0 0.0
        %2878 = vmatmul.mubr.f32.gmra.mrb[0].mxu0 %v1894
        %v2879 = vpop.f32.mrb[0].mxu0
        %v2880 = vadd.f32 %v2011, %v2879
        %v2881 = vpop.f32.mrb[0].mxu0
        %2882 = vmatprep.mubr.f32.mxu0 0.0
        %2883 = vmatmul.mubr.f32.gmra.mrb[0].mxu0 %v1895
        %v2884 = vpop.f32.mrb[0].mxu0
        %v2885 = vadd.f32 %v2011, %v2884
        %v2886 = vpop.f32.mrb[0].mxu0
        %2887 = vmatprep.mubr.f32.mxu0 0.0
        %2888 = vmatmul.mubr.f32.gmra.mrb[0].mxu0 %v1896
        %v2889 = vpop.f32.mrb[0].mxu0
        %v2890 = vadd.f32 %v2011, %v2889
        %v2891 = vpop.f32.mrb[0].mxu0
        %2892 = vmatprep.mubr.f32.mxu0 0.0
        %2893 = vmatmul.mubr.f32.gmra.mrb[0].mxu0 %v1897
        %v2894 = vpop.f32.mrb[0].mxu0
        %v2895 = vadd.f32 %v2011, %v2894
        %v2896 = vpop.f32.mrb[0].mxu0
        %2897 = vmatprep.mubr.f32.mxu0 0.0
        %2898 = vmatmul.mubr.f32.gmra.mrb[0].mxu0 %v1898
        %v2899 = vpop.f32.mrb[0].mxu0
        %v2900 = vadd.f32 %v2011, %v2899
        %v2901 = vpop.f32.mrb[0].mxu0
        %2902 = vmatprep.mubr.f32.mxu0 0.0
        %2903 = vmatmul.mubr.f32.gmra.mrb[0].mxu0 %v1899
        %v2904 = vpop.f32.mrb[0].mxu0
        %v2905 = vadd.f32 %v2011, %v2904
        %v2906 = vpop.f32.mrb[0].mxu0
        %2907 = vmatprep.mubr.f32.mxu0 0.0
        %2908 = vmatmul.mubr.f32.gmra.mrb[0].mxu0 %v1900
        %v2909 = vpop.f32.mrb[0].mxu0
        %v2910 = vadd.f32 %v2011, %v2909
        %v2911 = vpop.f32.mrb[0].mxu0
        %2912 = vmatprep.mubr.f32.mxu0 0.0
        %2913 = vmatmul.mubr.f32.gmra.mrb[0].mxu0 %v1901
        %v2914 = vpop.f32.mrb[0].mxu0
        %v2915 = vadd.f32 %v2011, %v2914
        %v2916 = vpop.f32.mrb[0].mxu0
        %2917 = vmatprep.mubr.f32.mxu0 0.0
        %2918 = vmatmul.mubr.f32.gmra.mrb[0].mxu0 %v1902
        %v2919 = vpop.f32.mrb[0].mxu0
        %v2920 = vadd.f32 %v2011, %v2919
        %v2921 = vpop.f32.mrb[0].mxu0
        %2922 = vmatprep.mubr.f32.mxu0 0.0
        %2923 = vmatmul.mubr.f32.gmra.mrb[0].mxu0 %v1903
        %v2924 = vpop.f32.mrb[0].mxu0
        %v2925 = vadd.f32 %v2011, %v2924
        %v2926 = vpop.f32.mrb[0].mxu0
        %2927 = vmatprep.mubr.f32.mxu0 0.0
        %2928 = vmatmul.mubr.f32.gmra.mrb[0].mxu0 %v1904
        %v2929 = vpop.f32.mrb[0].mxu0
        %v2930 = vadd.f32 %v2011, %v2929
        %v2931 = vpop.f32.mrb[0].mxu0
        %2932 = vmatprep.mubr.f32.mxu0 0.0
        %2933 = vmatmul.mubr.f32.gmra.mrb[0].mxu0 %v1905
        %v2934 = vpop.f32.mrb[0].mxu0
        %v2935 = vadd.f32 %v2011, %v2934
        %v2936 = vpop.f32.mrb[0].mxu0
        %2937 = vmatprep.mubr.f32.mxu0 0.0
        %2938 = vmatmul.mubr.f32.gmra.mrb[0].mxu0 %v1906
        %v2939 = vpop.f32.mrb[0].mxu0
        %v2940 = vadd.f32 %v2011, %v2939
        %v2941 = vpop.f32.mrb[0].mxu0
        %2942 = vmatprep.mubr.f32.mxu0 0.0
        %2943 = vmatmul.mubr.f32.gmra.mrb[0].mxu0 %v1907
        %v2944 = vpop.f32.mrb[0].mxu0
        %v2945 = vadd.f32 %v2011, %v2944
        %v2946 = vpop.f32.mrb[0].mxu0
        %2947 = vmatprep.mubr.f32.mxu0 0.0
        %2948 = vmatmul.mubr.f32.gmra.mrb[0].mxu0 %v1908
        %v2949 = vpop.f32.mrb[0].mxu0
        %v2950 = vadd.f32 %v2011, %v2949
        %v2951 = vpop.f32.mrb[0].mxu0
        %2952 = vmatprep.mubr.f32.mxu0 0.0
        %2953 = vmatmul.mubr.f32.gmra.mrb[0].mxu0 %v1909
        %v2954 = vpop.f32.mrb[0].mxu0
        %v2955 = vadd.f32 %v2011, %v2954
        %v2956 = vpop.f32.mrb[0].mxu0
        %2957 = vmatprep.mubr.f32.mxu0 0.0
        %2958 = vmatmul.mubr.f32.gmra.mrb[0].mxu0 %v1910
        %v2959 = vpop.f32.mrb[0].mxu0
        %v2960 = vadd.f32 %v2011, %v2959
        %v2961 = vpop.f32.mrb[0].mxu0
        %2962 = vmatprep.mubr.f32.mxu0 0.0
        %2963 = vmatmul.mubr.f32.gmra.mrb[0].mxu0 %v1911
        %v2964 = vpop.f32.mrb[0].mxu0
        %v2965 = vadd.f32 %v2011, %v2964
        %v2966 = vpop.f32.mrb[0].mxu0
        %2967 = vmatprep.mubr.f32.mxu0 0.0
        %2968 = vmatmul.mubr.f32.gmra.mrb[0].mxu0 %v1912
        %v2969 = vpop.f32.mrb[0].mxu0
        %v2970 = vadd.f32 %v2011, %v2969
        %v2971 = vpop.f32.mrb[0].mxu0
        %2972 = vmatprep.mubr.f32.mxu0 0.0
        %2973 = vmatmul.mubr.f32.gmra.mrb[0].mxu0 %v1913
        %v2974 = vpop.f32.mrb[0].mxu0
        %v2975 = vadd.f32 %v2011, %v2974
        %v2976 = vpop.f32.mrb[0].mxu0
        %2977 = vmatprep.mubr.f32.mxu0 0.0
        %2978 = vmatmul.mubr.f32.gmra.mrb[0].mxu0 %v1914
        %v2979 = vpop.f32.mrb[0].mxu0
        %v2980 = vadd.f32 %v2011, %v2979
        %v2981 = vpop.f32.mrb[0].mxu0
        %2982 = vmatprep.mubr.f32.mxu0 0.0
        %2983 = vmatmul.mubr.f32.gmra.mrb[0].mxu0 %v1915
        %v2984 = vpop.f32.mrb[0].mxu0
        %v2985 = vadd.f32 %v2011, %v2984
        %v2986 = vpop.f32.mrb[0].mxu0
        %2987 = vmatprep.mubr.f32.mxu0 0.0
        %2988 = vmatmul.mubr.f32.gmra.mrb[0].mxu0 %v1916
        %v2989 = vpop.f32.mrb[0].mxu0
        %v2990 = vadd.f32 %v2011, %v2989
        %v2991 = vpop.f32.mrb[0].mxu0
        %2992 = vmatprep.mubr.f32.mxu0 0.0
        %2993 = vmatmul.mubr.f32.gmra.mrb[0].mxu0 %v1917
        %v2994 = vpop.f32.mrb[0].mxu0
        %v2995 = vadd.f32 %v2011, %v2994
        %v2996 = vpop.f32.mrb[0].mxu0
        %2997 = vmatprep.mubr.f32.mxu0 0.0
        %2998 = vmatmul.mubr.f32.gmra.mrb[0].mxu0 %v1918
        %v2999 = vpop.f32.mrb[0].mxu0
        %v3000 = vadd.f32 %v2011, %v2999
        %v3001 = vpop.f32.mrb[0].mxu0
        %3002 = vmatprep.mubr.f32.mxu0 0.0
        %3003 = vmatmul.mubr.f32.gmra.mrb[0].mxu0 %v1919
        %v3004 = vpop.f32.mrb[0].mxu0
        %v3005 = vadd.f32 %v2011, %v3004
        %v3006 = vpop.f32.mrb[0].mxu0
        %3007 = vmatprep.mubr.f32.mxu0 0.0
        %3008 = vmatmul.mubr.f32.gmra.mrb[0].mxu0 %v1920
        %v3009 = vpop.f32.mrb[0].mxu0
        %v3010 = vadd.f32 %v2011, %v3009
        %v3011 = vpop.f32.mrb[0].mxu0
        %3012 = vmatprep.mubr.f32.mxu0 0.0
        %3013 = vmatmul.mubr.f32.gmra.mrb[0].mxu0 %v1921
        %v3014 = vpop.f32.mrb[0].mxu0
        %v3015 = vadd.f32 %v2011, %v3014
        %v3016 = vpop.f32.mrb[0].mxu0
        %3017 = vmatprep.mubr.f32.mxu0 0.0
        %3018 = vmatmul.mubr.f32.gmra.mrb[0].mxu0 %v1922
        %v3019 = vpop.f32.mrb[0].mxu0
        %v3020 = vadd.f32 %v2011, %v3019
        %v3021 = vpop.f32.mrb[0].mxu0
        %3022 = vmatprep.mubr.f32.mxu0 0.0
        %3023 = vmatmul.mubr.f32.gmra.mrb[0].mxu0 %v1923
        %v3024 = vpop.f32.mrb[0].mxu0
        %v3025 = vadd.f32 %v2011, %v3024
        %v3026 = vpop.f32.mrb[0].mxu0
        %3027 = vmatprep.mubr.f32.mxu0 0.0
        %3028 = vmatmul.mubr.f32.gmra.mrb[0].mxu0 %v1924
        %v3029 = vpop.f32.mrb[0].mxu0
        %v3030 = vadd.f32 %v2011, %v3029
        %v3031 = vpop.f32.mrb[0].mxu0
        %3032 = vmatprep.mubr.f32.mxu0 0.0
        %3033 = vmatmul.mubr.f32.gmra.mrb[0].mxu0 %v1925
        %v3034 = vpop.f32.mrb[0].mxu0
        %v3035 = vadd.f32 %v2011, %v3034
        %v3036 = vpop.f32.mrb[0].mxu0
        %3037 = vmatprep.mubr.f32.mxu0 0.0
        %3038 = vmatmul.mubr.f32.gmra.mrb[0].mxu0 %v1926
        %v3039 = vpop.f32.mrb[0].mxu0
        %v3040 = vadd.f32 %v2011, %v3039
        %v3041 = vpop.f32.mrb[0].mxu0
        %3042 = vmatprep.mubr.f32.mxu0 0.0
        %3043 = vmatmul.mubr.f32.gmra.mrb[0].mxu0 %v1927
        %v3044 = vpop.f32.mrb[0].mxu0
        %v3045 = vadd.f32 %v2011, %v3044
        %v3046 = vpop.f32.mrb[0].mxu0
        %3047 = vmatprep.mubr.f32.mxu0 0.0
        %3048 = vmatmul.mubr.f32.gmra.mrb[0].mxu0 %v1928
        %v3049 = vpop.f32.mrb[0].mxu0
        %v3050 = vadd.f32 %v2011, %v3049
        %v3051 = vpop.f32.mrb[0].mxu0
        %3052 = vmatprep.mubr.f32.mxu0 0.0
        %3053 = vmatmul.mubr.f32.gmra.mrb[0].mxu0 %v1929
        %v3054 = vpop.f32.mrb[0].mxu0
        %v3055 = vadd.f32 %v2011, %v3054
        %v3056 = vpop.f32.mrb[0].mxu0
        %3057 = vmatprep.mubr.f32.mxu0 0.0
        %3058 = vmatmul.mubr.f32.gmra.mrb[0].mxu0 %v1930
        %v3059 = vpop.f32.mrb[0].mxu0
        %v3060 = vadd.f32 %v2011, %v3059
        %v3061 = vpop.f32.mrb[0].mxu0
        %3062 = vmatprep.mubr.f32.mxu0 0.0
        %3063 = vmatmul.mubr.f32.gmra.mrb[0].mxu0 %v1931
        %v3064 = vpop.f32.mrb[0].mxu0
        %v3065 = vadd.f32 %v2011, %v3064
        %v3066 = vpop.f32.mrb[0].mxu0
        %3067 = vmatprep.mubr.f32.mxu0 0.0
        %3068 = vmatmul.mubr.f32.gmra.mrb[0].mxu0 %v1932
        %v3069 = vpop.f32.mrb[0].mxu0
        %v3070 = vadd.f32 %v2011, %v3069
        %v3071 = vpop.f32.mrb[0].mxu0
        %3072 = vmatprep.mubr.f32.mxu0 0.0
        %3073 = vmatmul.mubr.f32.gmra.mrb[0].mxu0 %v1933
        %v3074 = vpop.f32.mrb[0].mxu0
        %v3075 = vadd.f32 %v2011, %v3074
        %v3076 = vpop.f32.mrb[0].mxu0
        %3077 = vmatprep.mubr.f32.mxu0 0.0
        %3078 = vmatmul.mubr.f32.gmra.mrb[0].mxu0 %v1934
        %v3079 = vpop.f32.mrb[0].mxu0
        %v3080 = vadd.f32 %v2011, %v3079
        %v3081 = vpop.f32.mrb[0].mxu0
        %3082 = vmatprep.mubr.f32.mxu0 0.0
        %3083 = vmatmul.mubr.f32.gmra.mrb[0].mxu0 %v1935
        %v3084 = vpop.f32.mrb[0].mxu0
        %v3085 = vadd.f32 %v2011, %v3084
        %v3086 = vpop.f32.mrb[0].mxu0
        %3087 = vmatprep.mubr.f32.mxu0 0.0
        %3088 = vmatmul.mubr.f32.gmra.mrb[0].mxu0 %v1936
        %v3089 = vpop.f32.mrb[0].mxu0
        %v3090 = vadd.f32 %v2011, %v3089
        %v3091 = vpop.f32.mrb[0].mxu0
        %3092 = vmatprep.mubr.f32.mxu0 0.0
        %3093 = vmatmul.mubr.f32.gmra.mrb[0].mxu0 %v1937
        %v3094 = vpop.f32.mrb[0].mxu0
        %v3095 = vadd.f32 %v2011, %v3094
        %v3096 = vpop.f32.mrb[0].mxu0
        %3097 = vmatprep.mubr.f32.mxu0 0.0
        %3098 = vmatmul.mubr.f32.gmra.mrb[0].mxu0 %v1938
        %v3099 = vpop.f32.mrb[0].mxu0
        %v3100 = vadd.f32 %v2011, %v3099
        %v3101 = vpop.f32.mrb[0].mxu0
        %3102 = vmatprep.mubr.f32.mxu0 0.0
        %3103 = vmatmul.mubr.f32.gmra.mrb[0].mxu0 %v1939
        %v3104 = vpop.f32.mrb[0].mxu0
        %v3105 = vadd.f32 %v2011, %v3104
        %v3106 = vpop.f32.mrb[0].mxu0
        %3107 = vmatprep.mubr.f32.mxu0 0.0
        %3108 = vmatmul.mubr.f32.gmra.mrb[0].mxu0 %v1940
        %v3109 = vpop.f32.mrb[0].mxu0
        %v3110 = vadd.f32 %v2011, %v3109
        %v3111 = vpop.f32.mrb[0].mxu0
        %3112 = vmatprep.mubr.f32.mxu0 0.0
        %3113 = vmatmul.mubr.f32.gmra.mrb[0].mxu0 %v1941
        %v3114 = vpop.f32.mrb[0].mxu0
        %v3115 = vadd.f32 %v2011, %v3114
        %v3116 = vpop.f32.mrb[0].mxu0
        %3117 = vmatprep.mubr.f32.mxu0 0.0
        %3118 = vmatmul.mubr.f32.gmra.mrb[0].mxu0 %v1942
        %v3119 = vpop.f32.mrb[0].mxu0
        %v3120 = vadd.f32 %v2011, %v3119
        %v3121 = vpop.f32.mrb[0].mxu0
        %3122 = vmatprep.mubr.f32.mxu0 0.0
        %3123 = vmatmul.mubr.f32.gmra.mrb[0].mxu0 %v1943
        %v3124 = vpop.f32.mrb[0].mxu0
        %v3125 = vadd.f32 %v2011, %v3124
        %v3126 = vpop.f32.mrb[0].mxu0
        %3127 = vmatprep.mubr.f32.mxu0 0.0
        %3128 = vmatmul.mubr.f32.gmra.mrb[0].mxu0 %v1944
        %v3129 = vpop.f32.mrb[0].mxu0
        %v3130 = vadd.f32 %v2011, %v3129
        %v3131 = vpop.f32.mrb[0].mxu0
        %3132 = vmatprep.mubr.f32.mxu0 0.0
        %3133 = vmatmul.mubr.f32.gmra.mrb[0].mxu0 %v1945
        %v3134 = vpop.f32.mrb[0].mxu0
        %v3135 = vadd.f32 %v2011, %v3134
        %v3136 = vpop.f32.mrb[0].mxu0
        %3137 = vmatprep.mubr.f32.mxu0 0.0
        %3138 = vmatmul.mubr.f32.gmra.mrb[0].mxu0 %v1946
        %v3139 = vpop.f32.mrb[0].mxu0
        %v3140 = vadd.f32 %v2011, %v3139
        %v3141 = vpop.f32.mrb[0].mxu0
        %3142 = vmatprep.mubr.f32.mxu0 0.0
        %3143 = vmatmul.mubr.f32.gmra.mrb[0].mxu0 %v1947
        %v3144 = vpop.f32.mrb[0].mxu0
        %v3145 = vadd.f32 %v2011, %v3144
        %v3146 = vpop.f32.mrb[0].mxu0
        %3147 = vmatprep.mubr.f32.mxu0 0.0
        %3148 = vmatmul.mubr.f32.gmra.mrb[0].mxu0 %v1948
        %v3149 = vpop.f32.mrb[0].mxu0
        %v3150 = vadd.f32 %v2011, %v3149
        %v3151 = vpop.f32.mrb[0].mxu0
        %3152 = vmatprep.mubr.f32.mxu0 0.0
        %3153 = vmatmul.mubr.f32.gmra.mrb[0].mxu0 %v1949
        %v3154 = vpop.f32.mrb[0].mxu0
        %v3155 = vadd.f32 %v2011, %v3154
        %v3156 = vpop.f32.mrb[0].mxu0
        %3157 = vmatprep.mubr.f32.mxu0 0.0
        %3158 = vmatmul.mubr.f32.gmra.mrb[0].mxu0 %v1950
        %v3159 = vpop.f32.mrb[0].mxu0
        %v3160 = vadd.f32 %v2011, %v3159
        %v3161 = vpop.f32.mrb[0].mxu0
        %3162 = vmatprep.mubr.f32.mxu0 0.0
        %3163 = vmatmul.mubr.f32.gmra.mrb[0].mxu0 %v1951
        %v3164 = vpop.f32.mrb[0].mxu0
        %v3165 = vadd.f32 %v2011, %v3164
        %v3166 = vpop.f32.mrb[0].mxu0
        %3167 = vmatprep.mubr.f32.mxu0 0.0
        %3168 = vmatmul.mubr.f32.gmra.mrb[0].mxu0 %v1952
        %v3169 = vpop.f32.mrb[0].mxu0
        %v3170 = vadd.f32 %v2011, %v3169
        %v3171 = vpop.f32.mrb[0].mxu0
        %3172 = vmatprep.mubr.f32.mxu0 0.0
        %3173 = vmatmul.mubr.f32.gmra.mrb[0].mxu0 %v1953
        %v3174 = vpop.f32.mrb[0].mxu0
        %v3175 = vadd.f32 %v2011, %v3174
        %v3176 = vpop.f32.mrb[0].mxu0
        %3177 = vmatprep.mubr.f32.mxu0 0.0
        %3178 = vmatmul.mubr.f32.gmra.mrb[0].mxu0 %v1954
        %v3179 = vpop.f32.mrb[0].mxu0
        %v3180 = vadd.f32 %v2011, %v3179
        %v3181 = vpop.f32.mrb[0].mxu0
        %3182 = vmatprep.mubr.f32.mxu0 0.0
        %3183 = vmatmul.mubr.f32.gmra.mrb[0].mxu0 %v1955
        %v3184 = vpop.f32.mrb[0].mxu0
        %v3185 = vadd.f32 %v2011, %v3184
        %v3186 = vpop.f32.mrb[0].mxu0
        %3187 = vmatprep.mubr.f32.mxu0 0.0
        %3188 = vmatmul.mubr.f32.gmra.mrb[0].mxu0 %v1956
        %v3189 = vpop.f32.mrb[0].mxu0
        %v3190 = vadd.f32 %v2011, %v3189
        %v3191 = vpop.f32.mrb[0].mxu0
        %3192 = vmatprep.mubr.f32.mxu0 0.0
        %3193 = vmatmul.mubr.f32.gmra.mrb[0].mxu0 %v1957
        %v3194 = vpop.f32.mrb[0].mxu0
        %v3195 = vadd.f32 %v2011, %v3194
        %v3196 = vpop.f32.mrb[0].mxu0
        %3197 = vmatprep.mubr.f32.mxu0 0.0
        %3198 = vmatmul.mubr.f32.gmra.mrb[0].mxu0 %v1958
        %v3199 = vpop.f32.mrb[0].mxu0
        %v3200 = vadd.f32 %v2011, %v3199
        %v3201 = vpop.f32.mrb[0].mxu0
        %3202 = vmatprep.mubr.f32.mxu0 0.0
        %3203 = vmatmul.mubr.f32.gmra.mrb[0].mxu0 %v1959
        %v3204 = vpop.f32.mrb[0].mxu0
        %v3205 = vadd.f32 %v2011, %v3204
        %v3206 = vpop.f32.mrb[0].mxu0
        %3207 = vmatprep.mubr.f32.mxu0 0.0
        %3208 = vmatmul.mubr.f32.gmra.mrb[0].mxu0 %v1960
        %v3209 = vpop.f32.mrb[0].mxu0
        %v3210 = vadd.f32 %v2011, %v3209
        %v3211 = vpop.f32.mrb[0].mxu0
        %3212 = vmatprep.mubr.f32.mxu0 0.0
        %3213 = vmatmul.mubr.f32.gmra.mrb[0].mxu0 %v1961
        %v3214 = vpop.f32.mrb[0].mxu0
        %v3215 = vadd.f32 %v2011, %v3214
        %v3216 = vpop.f32.mrb[0].mxu0
        %3217 = vmatprep.mubr.f32.mxu0 0.0
        %3218 = vmatmul.mubr.f32.gmra.mrb[0].mxu0 %v1962
        %v3219 = vpop.f32.mrb[0].mxu0
        %v3220 = vadd.f32 %v2011, %v3219
        %v3221 = vpop.f32.mrb[0].mxu0
        %3222 = vmatprep.mubr.f32.mxu0 0.0
        %3223 = vmatmul.mubr.f32.gmra.mrb[0].mxu0 %v1963
        %v3224 = vpop.f32.mrb[0].mxu0
        %v3225 = vadd.f32 %v2011, %v3224
        %v3226 = vpop.f32.mrb[0].mxu0
        %3227 = vmatprep.mubr.f32.mxu0 0.0
        %3228 = vmatmul.mubr.f32.gmra.mrb[0].mxu0 %v1964
        %v3229 = vpop.f32.mrb[0].mxu0
        %v3230 = vadd.f32 %v2011, %v3229
        %v3231 = vpop.f32.mrb[0].mxu0
        %3232 = vmatprep.mubr.f32.mxu0 0.0
        %3233 = vmatmul.mubr.f32.gmra.mrb[0].mxu0 %v1965
        %v3234 = vpop.f32.mrb[0].mxu0
        %v3235 = vadd.f32 %v2011, %v3234
        %v3236 = vpop.f32.mrb[0].mxu0
        %3237 = vmatprep.mubr.f32.mxu0 0.0
        %3238 = vmatmul.mubr.f32.gmra.mrb[0].mxu0 %v1966
        %v3239 = vpop.f32.mrb[0].mxu0
        %v3240 = vadd.f32 %v2011, %v3239
        %v3241 = vpop.f32.mrb[0].mxu0
        %3242 = vmatprep.mubr.f32.mxu0 0.0
        %3243 = vmatmul.mubr.f32.gmra.mrb[0].mxu0 %v1967
        %v3244 = vpop.f32.mrb[0].mxu0
        %v3245 = vadd.f32 %v2011, %v3244
        %v3246 = vpop.f32.mrb[0].mxu0
        %3247 = vmatprep.mubr.f32.mxu0 0.0
        %3248 = vmatmul.mubr.f32.gmra.mrb[0].mxu0 %v1968
        %v3249 = vpop.f32.mrb[0].mxu0
        %v3250 = vadd.f32 %v2011, %v3249
        %v3251 = vpop.f32.mrb[0].mxu0
        %3252 = vmatprep.mubr.f32.mxu0 0.0
        %3253 = vmatmul.mubr.f32.gmra.mrb[0].mxu0 %v1969
        %v3254 = vpop.f32.mrb[0].mxu0
        %v3255 = vadd.f32 %v2011, %v3254
        %v3256 = vpop.f32.mrb[0].mxu0
        %3257 = vmatprep.mubr.f32.mxu0 0.0
        %3258 = vmatmul.mubr.f32.gmra.mrb[0].mxu0 %v1970
        %v3259 = vpop.f32.mrb[0].mxu0
        %v3260 = vadd.f32 %v2011, %v3259
        %v3261 = vpop.f32.mrb[0].mxu0
        %3262 = vmatprep.mubr.f32.mxu0 0.0
        %3263 = vmatmul.mubr.f32.gmra.mrb[0].mxu0 %v1971
        %v3264 = vpop.f32.mrb[0].mxu0
        %v3265 = vadd.f32 %v2011, %v3264
        %v3266 = vpop.f32.mrb[0].mxu0
        %3267 = vmatprep.mubr.f32.mxu0 0.0
        %3268 = vmatmul.mubr.f32.gmra.mrb[0].mxu0 %v1972
        %v3269 = vpop.f32.mrb[0].mxu0
        %v3270 = vadd.f32 %v2011, %v3269
        %v3271 = vpop.f32.mrb[0].mxu0
        %3272 = vmatprep.mubr.f32.mxu0 0.0
        %3273 = vmatmul.mubr.f32.gmra.mrb[0].mxu0 %v1973
        %v3274 = vpop.f32.mrb[0].mxu0
        %v3275 = vadd.f32 %v2011, %v3274
        %v3276 = vpop.f32.mrb[0].mxu0
        %3277 = vmatprep.mubr.f32.mxu0 0.0
        %3278 = vmatmul.mubr.f32.gmra.mrb[0].mxu0 %v1974
        %v3279 = vpop.f32.mrb[0].mxu0
        %v3280 = vadd.f32 %v2011, %v3279
        %v3281 = vpop.f32.mrb[0].mxu0
        %3282 = vmatprep.mubr.f32.mxu0 0.0
        %3283 = vmatmul.mubr.f32.gmra.mrb[0].mxu0 %v1975
        %v3284 = vpop.f32.mrb[0].mxu0
        %v3285 = vadd.f32 %v2011, %v3284
        %v3286 = vpop.f32.mrb[0].mxu0
        %3287 = vmatprep.mubr.f32.mxu0 0.0
        %3288 = vmatmul.mubr.f32.gmra.mrb[0].mxu0 %v1976
        %v3289 = vpop.f32.mrb[0].mxu0
        %v3290 = vadd.f32 %v2011, %v3289
        %v3291 = vpop.f32.mrb[0].mxu0
        %3292 = vmatprep.mubr.f32.mxu0 0.0
        %3293 = vmatmul.mubr.f32.gmra.mrb[0].mxu0 %v1977
        %v3294 = vpop.f32.mrb[0].mxu0
        %v3295 = vadd.f32 %v2011, %v3294
        %v3296 = vpop.f32.mrb[0].mxu0
        %3297 = vmatprep.mubr.f32.mxu0 0.0
        %3298 = vmatmul.mubr.f32.gmra.mrb[0].mxu0 %v1978
        %v3299 = vpop.f32.mrb[0].mxu0
        %v3300 = vadd.f32 %v2011, %v3299
        %v3301 = vpop.f32.mrb[0].mxu0
        %3302 = vmatprep.mubr.f32.mxu0 0.0
        %3303 = vmatmul.mubr.f32.gmra.mrb[0].mxu0 %v1979
        %v3304 = vpop.f32.mrb[0].mxu0
        %v3305 = vadd.f32 %v2011, %v3304
        %v3306 = vpop.f32.mrb[0].mxu0
        %3307 = vmatprep.mubr.f32.mxu0 0.0
        %3308 = vmatmul.mubr.f32.gmra.mrb[0].mxu0 %v1980
        %v3309 = vpop.f32.mrb[0].mxu0
        %v3310 = vadd.f32 %v2011, %v3309
        %v3311 = vpop.f32.mrb[0].mxu0
        %3312 = vmatprep.mubr.f32.mxu0 0.0
        %3313 = vmatmul.mubr.f32.gmra.mrb[0].mxu0 %v1981
        %v3314 = vpop.f32.mrb[0].mxu0
        %v3315 = vadd.f32 %v2011, %v3314
        %v3316 = vpop.f32.mrb[0].mxu0
        %3317 = vmatprep.mubr.f32.mxu0 0.0
        %3318 = vmatmul.mubr.f32.gmra.mrb[0].mxu0 %v1982
        %v3319 = vpop.f32.mrb[0].mxu0
        %v3320 = vadd.f32 %v2011, %v3319
        %v3321 = vpop.f32.mrb[0].mxu0
        %3322 = vmatprep.mubr.f32.mxu0 0.0
        %3323 = vmatmul.mubr.f32.gmra.mrb[0].mxu0 %v1983
        %v3324 = vpop.f32.mrb[0].mxu0
        %v3325 = vadd.f32 %v2011, %v3324
        %v3326 = vpop.f32.mrb[0].mxu0
        %3327 = vmatprep.mubr.f32.mxu0 0.0
        %3328 = vmatmul.mubr.f32.gmra.mrb[0].mxu0 %v1984
        %v3329 = vpop.f32.mrb[0].mxu0
        %v3330 = vadd.f32 %v2011, %v3329
        %v3331 = vpop.f32.mrb[0].mxu0
        %3332 = vmatprep.mubr.f32.mxu0 0.0
        %3333 = vmatmul.mubr.f32.gmra.mrb[0].mxu0 %v1985
        %v3334 = vpop.f32.mrb[0].mxu0
        %v3335 = vadd.f32 %v2011, %v3334
        %v3336 = vpop.f32.mrb[0].mxu0
        %3337 = vmatprep.mubr.f32.mxu0 0.0
        %3338 = vmatmul.mubr.f32.gmra.mrb[0].mxu0 %v1986
        %v3339 = vpop.f32.mrb[0].mxu0
        %v3340 = vadd.f32 %v2011, %v3339
        %v3341 = vpop.f32.mrb[0].mxu0
        %3342 = vmatprep.mubr.f32.mxu0 0.0
        %3343 = vmatmul.mubr.f32.gmra.mrb[0].mxu0 %v1987
        %v3344 = vpop.f32.mrb[0].mxu0
        %v3345 = vadd.f32 %v2011, %v3344
        %v3346 = vpop.f32.mrb[0].mxu0
        %3347 = vmatprep.mubr.f32.mxu0 0.0
        %3348 = vmatmul.mubr.f32.gmra.mrb[0].mxu0 %v1988
        %v3349 = vpop.f32.mrb[0].mxu0
        %v3350 = vadd.f32 %v2011, %v3349
        %v3351 = vpop.f32.mrb[0].mxu0
        %3352 = vmatprep.mubr.f32.mxu0 0.0
        %3353 = vmatmul.mubr.f32.gmra.mrb[0].mxu0 %v1989
        %v3354 = vpop.f32.mrb[0].mxu0
        %v3355 = vadd.f32 %v2011, %v3354
        %v3356 = vpop.f32.mrb[0].mxu0
        %3357 = vdwg.mxu0
        %3358 = vst [vmem:[#allocation2] sm:$0xff] %v2080
        %3359 = vst [vmem:[#allocation2 + $0x8] sm:$0xff] %v2085
        %3360 = vst [vmem:[#allocation2 + $0x10] sm:$0xff] %v2090
        %3361 = vst [vmem:[#allocation2 + $0x18] sm:$0xff] %v2095
        %3362 = vst [vmem:[#allocation2 + $0x20] sm:$0xff] %v2100
        %3363 = vst [vmem:[#allocation2 + $0x28] sm:$0xff] %v2105
        %3364 = vst [vmem:[#allocation2 + $0x30] sm:$0xff] %v2110
        %3365 = vst [vmem:[#allocation2 + $0x38] sm:$0xff] %v2115
        %3366 = vst [vmem:[#allocation2 + $0x40] sm:$0xff] %v2120
        %3367 = vst [vmem:[#allocation2 + $0x48] sm:$0xff] %v2125
        %3368 = vst [vmem:[#allocation2 + $0x50] sm:$0xff] %v2130
        %3369 = vst [vmem:[#allocation2 + $0x58] sm:$0xff] %v2135
        %3370 = vst [vmem:[#allocation2 + $0x60] sm:$0xff] %v2140
        %3371 = vst [vmem:[#allocation2 + $0x68] sm:$0xff] %v2145
        %3372 = vst [vmem:[#allocation2 + $0x70] sm:$0xff] %v2150
        %3373 = vst [vmem:[#allocation2 + $0x78] sm:$0xff] %v2155
        %3374 = vst [vmem:[#allocation2 + $0x80] sm:$0xff] %v2160
        %3375 = vst [vmem:[#allocation2 + $0x88] sm:$0xff] %v2165
        %3376 = vst [vmem:[#allocation2 + $0x90] sm:$0xff] %v2170
        %3377 = vst [vmem:[#allocation2 + $0x98] sm:$0xff] %v2175
        %3378 = vst [vmem:[#allocation2 + $0xa0] sm:$0xff] %v2180
        %3379 = vst [vmem:[#allocation2 + $0xa8] sm:$0xff] %v2185
        %3380 = vst [vmem:[#allocation2 + $0xb0] sm:$0xff] %v2190
        %3381 = vst [vmem:[#allocation2 + $0xb8] sm:$0xff] %v2195
        %3382 = vst [vmem:[#allocation2 + $0xc0] sm:$0xff] %v2200
        %3383 = vst [vmem:[#allocation2 + $0xc8] sm:$0xff] %v2205
        %3384 = vst [vmem:[#allocation2 + $0xd0] sm:$0xff] %v2210
        %3385 = vst [vmem:[#allocation2 + $0xd8] sm:$0xff] %v2215
        %3386 = vst [vmem:[#allocation2 + $0xe0] sm:$0xff] %v2220
        %3387 = vst [vmem:[#allocation2 + $0xe8] sm:$0xff] %v2225
        %3388 = vst [vmem:[#allocation2 + $0xf0] sm:$0xff] %v2230
        %3389 = vst [vmem:[#allocation2 + $0xf8] sm:$0xff] %v2235
        %3390 = vst [vmem:[#allocation2 + $0x100] sm:$0xff] %v2240
        %3391 = vst [vmem:[#allocation2 + $0x108] sm:$0xff] %v2245
        %3392 = vst [vmem:[#allocation2 + $0x110] sm:$0xff] %v2250
        %3393 = vst [vmem:[#allocation2 + $0x118] sm:$0xff] %v2255
        %3394 = vst [vmem:[#allocation2 + $0x120] sm:$0xff] %v2260
        %3395 = vst [vmem:[#allocation2 + $0x128] sm:$0xff] %v2265
        %3396 = vst [vmem:[#allocation2 + $0x130] sm:$0xff] %v2270
        %3397 = vst [vmem:[#allocation2 + $0x138] sm:$0xff] %v2275
        %3398 = vst [vmem:[#allocation2 + $0x140] sm:$0xff] %v2280
        %3399 = vst [vmem:[#allocation2 + $0x148] sm:$0xff] %v2285
        %3400 = vst [vmem:[#allocation2 + $0x150] sm:$0xff] %v2290
        %3401 = vst [vmem:[#allocation2 + $0x158] sm:$0xff] %v2295
        %3402 = vst [vmem:[#allocation2 + $0x160] sm:$0xff] %v2300
        %3403 = vst [vmem:[#allocation2 + $0x168] sm:$0xff] %v2305
        %3404 = vst [vmem:[#allocation2 + $0x170] sm:$0xff] %v2310
        %3405 = vst [vmem:[#allocation2 + $0x178] sm:$0xff] %v2315
        %3406 = vst [vmem:[#allocation2 + $0x180] sm:$0xff] %v2320
        %3407 = vst [vmem:[#allocation2 + $0x188] sm:$0xff] %v2325
        %3408 = vst [vmem:[#allocation2 + $0x190] sm:$0xff] %v2330
        %3409 = vst [vmem:[#allocation2 + $0x198] sm:$0xff] %v2335
        %3410 = vst [vmem:[#allocation2 + $0x1a0] sm:$0xff] %v2340
        %3411 = vst [vmem:[#allocation2 + $0x1a8] sm:$0xff] %v2345
        %3412 = vst [vmem:[#allocation2 + $0x1b0] sm:$0xff] %v2350
        %3413 = vst [vmem:[#allocation2 + $0x1b8] sm:$0xff] %v2355
        %3414 = vst [vmem:[#allocation2 + $0x1c0] sm:$0xff] %v2360
        %3415 = vst [vmem:[#allocation2 + $0x1c8] sm:$0xff] %v2365
        %3416 = vst [vmem:[#allocation2 + $0x1d0] sm:$0xff] %v2370
        %3417 = vst [vmem:[#allocation2 + $0x1d8] sm:$0xff] %v2375
        %3418 = vst [vmem:[#allocation2 + $0x1e0] sm:$0xff] %v2380
        %3419 = vst [vmem:[#allocation2 + $0x1e8] sm:$0xff] %v2385
        %3420 = vst [vmem:[#allocation2 + $0x1f0] sm:$0xff] %v2390
        %3421 = vst [vmem:[#allocation2 + $0x1f8] sm:$0xff] %v2395
        %3422 = vst [vmem:[#allocation2 + $0x200] sm:$0xff] %v2400
        %3423 = vst [vmem:[#allocation2 + $0x208] sm:$0xff] %v2405
        %3424 = vst [vmem:[#allocation2 + $0x210] sm:$0xff] %v2410
        %3425 = vst [vmem:[#allocation2 + $0x218] sm:$0xff] %v2415
        %3426 = vst [vmem:[#allocation2 + $0x220] sm:$0xff] %v2420
        %3427 = vst [vmem:[#allocation2 + $0x228] sm:$0xff] %v2425
        %3428 = vst [vmem:[#allocation2 + $0x230] sm:$0xff] %v2430
        %3429 = vst [vmem:[#allocation2 + $0x238] sm:$0xff] %v2435
        %3430 = vst [vmem:[#allocation2 + $0x240] sm:$0xff] %v2440
        %3431 = vst [vmem:[#allocation2 + $0x248] sm:$0xff] %v2445
        %3432 = vst [vmem:[#allocation2 + $0x250] sm:$0xff] %v2450
        %3433 = vst [vmem:[#allocation2 + $0x258] sm:$0xff] %v2455
        %3434 = vst [vmem:[#allocation2 + $0x260] sm:$0xff] %v2460
        %3435 = vst [vmem:[#allocation2 + $0x268] sm:$0xff] %v2465
        %3436 = vst [vmem:[#allocation2 + $0x270] sm:$0xff] %v2470
        %3437 = vst [vmem:[#allocation2 + $0x278] sm:$0xff] %v2475
        %3438 = vst [vmem:[#allocation2 + $0x280] sm:$0xff] %v2480
        %3439 = vst [vmem:[#allocation2 + $0x288] sm:$0xff] %v2485
        %3440 = vst [vmem:[#allocation2 + $0x290] sm:$0xff] %v2490
        %3441 = vst [vmem:[#allocation2 + $0x298] sm:$0xff] %v2495
        %3442 = vst [vmem:[#allocation2 + $0x2a0] sm:$0xff] %v2500
        %3443 = vst [vmem:[#allocation2 + $0x2a8] sm:$0xff] %v2505
        %3444 = vst [vmem:[#allocation2 + $0x2b0] sm:$0xff] %v2510
        %3445 = vst [vmem:[#allocation2 + $0x2b8] sm:$0xff] %v2515
        %3446 = vst [vmem:[#allocation2 + $0x2c0] sm:$0xff] %v2520
        %3447 = vst [vmem:[#allocation2 + $0x2c8] sm:$0xff] %v2525
        %3448 = vst [vmem:[#allocation2 + $0x2d0] sm:$0xff] %v2530
        %3449 = vst [vmem:[#allocation2 + $0x2d8] sm:$0xff] %v2535
        %3450 = vst [vmem:[#allocation2 + $0x2e0] sm:$0xff] %v2540
        %3451 = vst [vmem:[#allocation2 + $0x2e8] sm:$0xff] %v2545
        %3452 = vst [vmem:[#allocation2 + $0x2f0] sm:$0xff] %v2550
        %3453 = vst [vmem:[#allocation2 + $0x2f8] sm:$0xff] %v2555
        %3454 = vst [vmem:[#allocation2 + $0x300] sm:$0xff] %v2560
        %3455 = vst [vmem:[#allocation2 + $0x308] sm:$0xff] %v2565
        %3456 = vst [vmem:[#allocation2 + $0x310] sm:$0xff] %v2570
        %3457 = vst [vmem:[#allocation2 + $0x318] sm:$0xff] %v2575
        %3458 = vst [vmem:[#allocation2 + $0x320] sm:$0xff] %v2580
        %3459 = vst [vmem:[#allocation2 + $0x328] sm:$0xff] %v2585
        %3460 = vst [vmem:[#allocation2 + $0x330] sm:$0xff] %v2590
        %3461 = vst [vmem:[#allocation2 + $0x338] sm:$0xff] %v2595
        %3462 = vst [vmem:[#allocation2 + $0x340] sm:$0xff] %v2600
        %3463 = vst [vmem:[#allocation2 + $0x348] sm:$0xff] %v2605
        %3464 = vst [vmem:[#allocation2 + $0x350] sm:$0xff] %v2610
        %3465 = vst [vmem:[#allocation2 + $0x358] sm:$0xff] %v2615
        %3466 = vst [vmem:[#allocation2 + $0x360] sm:$0xff] %v2620
        %3467 = vst [vmem:[#allocation2 + $0x368] sm:$0xff] %v2625
        %3468 = vst [vmem:[#allocation2 + $0x370] sm:$0xff] %v2630
        %3469 = vst [vmem:[#allocation2 + $0x378] sm:$0xff] %v2635
        %3470 = vst [vmem:[#allocation2 + $0x380] sm:$0xff] %v2640
        %3471 = vst [vmem:[#allocation2 + $0x388] sm:$0xff] %v2645
        %3472 = vst [vmem:[#allocation2 + $0x390] sm:$0xff] %v2650
        %3473 = vst [vmem:[#allocation2 + $0x398] sm:$0xff] %v2655
        %3474 = vst [vmem:[#allocation2 + $0x3a0] sm:$0xff] %v2660
        %3475 = vst [vmem:[#allocation2 + $0x3a8] sm:$0xff] %v2665
        %3476 = vst [vmem:[#allocation2 + $0x3b0] sm:$0xff] %v2670
        %3477 = vst [vmem:[#allocation2 + $0x3b8] sm:$0xff] %v2675
        %3478 = vst [vmem:[#allocation2 + $0x3c0] sm:$0xff] %v2680
        %3479 = vst [vmem:[#allocation2 + $0x3c8] sm:$0xff] %v2685
        %3480 = vst [vmem:[#allocation2 + $0x3d0] sm:$0xff] %v2690
        %3481 = vst [vmem:[#allocation2 + $0x3d8] sm:$0xff] %v2695
        %3482 = vst [vmem:[#allocation2 + $0x3e0] sm:$0xff] %v2700
        %3483 = vst [vmem:[#allocation2 + $0x3e8] sm:$0xff] %v2705
        %3484 = vst [vmem:[#allocation2 + $0x3f0] sm:$0xff] %v2710
        %3485 = vst [vmem:[#allocation2 + $0x3f8] sm:$0xff] %v2715
        %3486 = vst [vmem:[#allocation2 + $0x400] sm:$0xff] %v2720
        %3487 = vst [vmem:[#allocation2 + $0x408] sm:$0xff] %v2725
        %3488 = vst [vmem:[#allocation2 + $0x410] sm:$0xff] %v2730
        %3489 = vst [vmem:[#allocation2 + $0x418] sm:$0xff] %v2735
        %3490 = vst [vmem:[#allocation2 + $0x420] sm:$0xff] %v2740
        %3491 = vst [vmem:[#allocation2 + $0x428] sm:$0xff] %v2745
        %3492 = vst [vmem:[#allocation2 + $0x430] sm:$0xff] %v2750
        %3493 = vst [vmem:[#allocation2 + $0x438] sm:$0xff] %v2755
        %3494 = vst [vmem:[#allocation2 + $0x440] sm:$0xff] %v2760
        %3495 = vst [vmem:[#allocation2 + $0x448] sm:$0xff] %v2765
        %3496 = vst [vmem:[#allocation2 + $0x450] sm:$0xff] %v2770
        %3497 = vst [vmem:[#allocation2 + $0x458] sm:$0xff] %v2775
        %3498 = vst [vmem:[#allocation2 + $0x460] sm:$0xff] %v2780
        %3499 = vst [vmem:[#allocation2 + $0x468] sm:$0xff] %v2785
        %3500 = vst [vmem:[#allocation2 + $0x470] sm:$0xff] %v2790
        %3501 = vst [vmem:[#allocation2 + $0x478] sm:$0xff] %v2795
        %3502 = vst [vmem:[#allocation2 + $0x480] sm:$0xff] %v2800
        %3503 = vst [vmem:[#allocation2 + $0x488] sm:$0xff] %v2805
        %3504 = vst [vmem:[#allocation2 + $0x490] sm:$0xff] %v2810
        %3505 = vst [vmem:[#allocation2 + $0x498] sm:$0xff] %v2815
        %3506 = vst [vmem:[#allocation2 + $0x4a0] sm:$0xff] %v2820
        %3507 = vst [vmem:[#allocation2 + $0x4a8] sm:$0xff] %v2825
        %3508 = vst [vmem:[#allocation2 + $0x4b0] sm:$0xff] %v2830
        %3509 = vst [vmem:[#allocation2 + $0x4b8] sm:$0xff] %v2835
        %3510 = vst [vmem:[#allocation2 + $0x4c0] sm:$0xff] %v2840
        %3511 = vst [vmem:[#allocation2 + $0x4c8] sm:$0xff] %v2845
        %3512 = vst [vmem:[#allocation2 + $0x4d0] sm:$0xff] %v2850
        %3513 = vst [vmem:[#allocation2 + $0x4d8] sm:$0xff] %v2855
        %3514 = vst [vmem:[#allocation2 + $0x4e0] sm:$0xff] %v2860
        %3515 = vst [vmem:[#allocation2 + $0x4e8] sm:$0xff] %v2865
        %3516 = vst [vmem:[#allocation2 + $0x4f0] sm:$0xff] %v2870
        %3517 = vst [vmem:[#allocation2 + $0x4f8] sm:$0xff] %v2875
        %3518 = vst [vmem:[#allocation2 + $0x500] sm:$0xff] %v2880
        %3519 = vst [vmem:[#allocation2 + $0x508] sm:$0xff] %v2885
        %3520 = vst [vmem:[#allocation2 + $0x510] sm:$0xff] %v2890
        %3521 = vst [vmem:[#allocation2 + $0x518] sm:$0xff] %v2895
        %3522 = vst [vmem:[#allocation2 + $0x520] sm:$0xff] %v2900
        %3523 = vst [vmem:[#allocation2 + $0x528] sm:$0xff] %v2905
        %3524 = vst [vmem:[#allocation2 + $0x530] sm:$0xff] %v2910
        %3525 = vst [vmem:[#allocation2 + $0x538] sm:$0xff] %v2915
        %3526 = vst [vmem:[#allocation2 + $0x540] sm:$0xff] %v2920
        %3527 = vst [vmem:[#allocation2 + $0x548] sm:$0xff] %v2925
        %3528 = vst [vmem:[#allocation2 + $0x550] sm:$0xff] %v2930
        %3529 = vst [vmem:[#allocation2 + $0x558] sm:$0xff] %v2935
        %3530 = vst [vmem:[#allocation2 + $0x560] sm:$0xff] %v2940
        %3531 = vst [vmem:[#allocation2 + $0x568] sm:$0xff] %v2945
        %3532 = vst [vmem:[#allocation2 + $0x570] sm:$0xff] %v2950
        %3533 = vst [vmem:[#allocation2 + $0x578] sm:$0xff] %v2955
        %3534 = vst [vmem:[#allocation2 + $0x580] sm:$0xff] %v2960
        %3535 = vst [vmem:[#allocation2 + $0x588] sm:$0xff] %v2965
        %3536 = vst [vmem:[#allocation2 + $0x590] sm:$0xff] %v2970
        %3537 = vst [vmem:[#allocation2 + $0x598] sm:$0xff] %v2975
        %3538 = vst [vmem:[#allocation2 + $0x5a0] sm:$0xff] %v2980
        %3539 = vst [vmem:[#allocation2 + $0x5a8] sm:$0xff] %v2985
        %3540 = vst [vmem:[#allocation2 + $0x5b0] sm:$0xff] %v2990
        %3541 = vst [vmem:[#allocation2 + $0x5b8] sm:$0xff] %v2995
        %3542 = vst [vmem:[#allocation2 + $0x5c0] sm:$0xff] %v3000
        %3543 = vst [vmem:[#allocation2 + $0x5c8] sm:$0xff] %v3005
        %3544 = vst [vmem:[#allocation2 + $0x5d0] sm:$0xff] %v3010
        %3545 = vst [vmem:[#allocation2 + $0x5d8] sm:$0xff] %v3015
        %3546 = vst [vmem:[#allocation2 + $0x5e0] sm:$0xff] %v3020
        %3547 = vst [vmem:[#allocation2 + $0x5e8] sm:$0xff] %v3025
        %3548 = vst [vmem:[#allocation2 + $0x5f0] sm:$0xff] %v3030
        %3549 = vst [vmem:[#allocation2 + $0x5f8] sm:$0xff] %v3035
        %3550 = vst [vmem:[#allocation2 + $0x600] sm:$0xff] %v3040
        %3551 = vst [vmem:[#allocation2 + $0x608] sm:$0xff] %v3045
        %3552 = vst [vmem:[#allocation2 + $0x610] sm:$0xff] %v3050
        %3553 = vst [vmem:[#allocation2 + $0x618] sm:$0xff] %v3055
        %3554 = vst [vmem:[#allocation2 + $0x620] sm:$0xff] %v3060
        %3555 = vst [vmem:[#allocation2 + $0x628] sm:$0xff] %v3065
        %3556 = vst [vmem:[#allocation2 + $0x630] sm:$0xff] %v3070
        %3557 = vst [vmem:[#allocation2 + $0x638] sm:$0xff] %v3075
        %3558 = vst [vmem:[#allocation2 + $0x640] sm:$0xff] %v3080
        %3559 = vst [vmem:[#allocation2 + $0x648] sm:$0xff] %v3085
        %3560 = vst [vmem:[#allocation2 + $0x650] sm:$0xff] %v3090
        %3561 = vst [vmem:[#allocation2 + $0x658] sm:$0xff] %v3095
        %3562 = vst [vmem:[#allocation2 + $0x660] sm:$0xff] %v3100
        %3563 = vst [vmem:[#allocation2 + $0x668] sm:$0xff] %v3105
        %3564 = vst [vmem:[#allocation2 + $0x670] sm:$0xff] %v3110
        %3565 = vst [vmem:[#allocation2 + $0x678] sm:$0xff] %v3115
        %3566 = vst [vmem:[#allocation2 + $0x680] sm:$0xff] %v3120
        %3567 = vst [vmem:[#allocation2 + $0x688] sm:$0xff] %v3125
        %3568 = vst [vmem:[#allocation2 + $0x690] sm:$0xff] %v3130
        %3569 = vst [vmem:[#allocation2 + $0x698] sm:$0xff] %v3135
        %3570 = vst [vmem:[#allocation2 + $0x6a0] sm:$0xff] %v3140
        %3571 = vst [vmem:[#allocation2 + $0x6a8] sm:$0xff] %v3145
        %3572 = vst [vmem:[#allocation2 + $0x6b0] sm:$0xff] %v3150
        %3573 = vst [vmem:[#allocation2 + $0x6b8] sm:$0xff] %v3155
        %3574 = vst [vmem:[#allocation2 + $0x6c0] sm:$0xff] %v3160
        %3575 = vst [vmem:[#allocation2 + $0x6c8] sm:$0xff] %v3165
        %3576 = vst [vmem:[#allocation2 + $0x6d0] sm:$0xff] %v3170
        %3577 = vst [vmem:[#allocation2 + $0x6d8] sm:$0xff] %v3175
        %3578 = vst [vmem:[#allocation2 + $0x6e0] sm:$0xff] %v3180
        %3579 = vst [vmem:[#allocation2 + $0x6e8] sm:$0xff] %v3185
        %3580 = vst [vmem:[#allocation2 + $0x6f0] sm:$0xff] %v3190
        %3581 = vst [vmem:[#allocation2 + $0x6f8] sm:$0xff] %v3195
        %3582 = vst [vmem:[#allocation2 + $0x700] sm:$0xff] %v3200
        %3583 = vst [vmem:[#allocation2 + $0x708] sm:$0xff] %v3205
        %3584 = vst [vmem:[#allocation2 + $0x710] sm:$0xff] %v3210
        %3585 = vst [vmem:[#allocation2 + $0x718] sm:$0xff] %v3215
        %3586 = vst [vmem:[#allocation2 + $0x720] sm:$0xff] %v3220
        %3587 = vst [vmem:[#allocation2 + $0x728] sm:$0xff] %v3225
        %3588 = vst [vmem:[#allocation2 + $0x730] sm:$0xff] %v3230
        %3589 = vst [vmem:[#allocation2 + $0x738] sm:$0xff] %v3235
        %3590 = vst [vmem:[#allocation2 + $0x740] sm:$0xff] %v3240
        %3591 = vst [vmem:[#allocation2 + $0x748] sm:$0xff] %v3245
        %3592 = vst [vmem:[#allocation2 + $0x750] sm:$0xff] %v3250
        %3593 = vst [vmem:[#allocation2 + $0x758] sm:$0xff] %v3255
        %3594 = vst [vmem:[#allocation2 + $0x760] sm:$0xff] %v3260
        %3595 = vst [vmem:[#allocation2 + $0x768] sm:$0xff] %v3265
        %3596 = vst [vmem:[#allocation2 + $0x770] sm:$0xff] %v3270
        %3597 = vst [vmem:[#allocation2 + $0x778] sm:$0xff] %v3275
        %3598 = vst [vmem:[#allocation2 + $0x780] sm:$0xff] %v3280
        %3599 = vst [vmem:[#allocation2 + $0x788] sm:$0xff] %v3285
        %3600 = vst [vmem:[#allocation2 + $0x790] sm:$0xff] %v3290
        %3601 = vst [vmem:[#allocation2 + $0x798] sm:$0xff] %v3295
        %3602 = vst [vmem:[#allocation2 + $0x7a0] sm:$0xff] %v3300
        %3603 = vst [vmem:[#allocation2 + $0x7a8] sm:$0xff] %v3305
        %3604 = vst [vmem:[#allocation2 + $0x7b0] sm:$0xff] %v3310
        %3605 = vst [vmem:[#allocation2 + $0x7b8] sm:$0xff] %v3315
        %3606 = vst [vmem:[#allocation2 + $0x7c0] sm:$0xff] %v3320
        %3607 = vst [vmem:[#allocation2 + $0x7c8] sm:$0xff] %v3325
        %3608 = vst [vmem:[#allocation2 + $0x7d0] sm:$0xff] %v3330
        %3609 = vst [vmem:[#allocation2 + $0x7d8] sm:$0xff] %v3335
        %3610 = vst [vmem:[#allocation2 + $0x7e0] sm:$0xff] %v3340
        %3611 = vst [vmem:[#allocation2 + $0x7e8] sm:$0xff] %v3345
        %3612 = vst [vmem:[#allocation2 + $0x7f0] sm:$0xff] %v3350
        %3613 = vst [vmem:[#allocation2 + $0x7f8] sm:$0xff] %v3355
        %v3614 = vld [vmem:[#allocation2] sm:$0xff]
        %v3615 = vld [vmem:[#allocation2 + $0x8] sm:$0xff]
        %v3616 = vld [vmem:[#allocation2 + $0x10] sm:$0xff]
        %v3617 = vld [vmem:[#allocation2 + $0x18] sm:$0xff]
        %v3618 = vld [vmem:[#allocation2 + $0x20] sm:$0xff]
        %v3619 = vld [vmem:[#allocation2 + $0x28] sm:$0xff]
        %v3620 = vld [vmem:[#allocation2 + $0x30] sm:$0xff]
        %v3621 = vld [vmem:[#allocation2 + $0x38] sm:$0xff]
        %v3622 = vld [vmem:[#allocation2 + $0x40] sm:$0xff]
        %v3623 = vld [vmem:[#allocation2 + $0x48] sm:$0xff]
        %v3624 = vld [vmem:[#allocation2 + $0x50] sm:$0xff]
        %v3625 = vld [vmem:[#allocation2 + $0x58] sm:$0xff]
        %v3626 = vld [vmem:[#allocation2 + $0x60] sm:$0xff]
        %v3627 = vld [vmem:[#allocation2 + $0x68] sm:$0xff]
        %v3628 = vld [vmem:[#allocation2 + $0x70] sm:$0xff]
        %v3629 = vld [vmem:[#allocation2 + $0x78] sm:$0xff]
        %v3630 = vld [vmem:[#allocation2 + $0x80] sm:$0xff]
        %v3631 = vld [vmem:[#allocation2 + $0x88] sm:$0xff]
        %v3632 = vld [vmem:[#allocation2 + $0x90] sm:$0xff]
        %v3633 = vld [vmem:[#allocation2 + $0x98] sm:$0xff]
        %v3634 = vld [vmem:[#allocation2 + $0xa0] sm:$0xff]
        %v3635 = vld [vmem:[#allocation2 + $0xa8] sm:$0xff]
        %v3636 = vld [vmem:[#allocation2 + $0xb0] sm:$0xff]
        %v3637 = vld [vmem:[#allocation2 + $0xb8] sm:$0xff]
        %v3638 = vld [vmem:[#allocation2 + $0xc0] sm:$0xff]
        %v3639 = vld [vmem:[#allocation2 + $0xc8] sm:$0xff]
        %v3640 = vld [vmem:[#allocation2 + $0xd0] sm:$0xff]
        %v3641 = vld [vmem:[#allocation2 + $0xd8] sm:$0xff]
        %v3642 = vld [vmem:[#allocation2 + $0xe0] sm:$0xff]
        %v3643 = vld [vmem:[#allocation2 + $0xe8] sm:$0xff]
        %v3644 = vld [vmem:[#allocation2 + $0xf0] sm:$0xff]
        %v3645 = vld [vmem:[#allocation2 + $0xf8] sm:$0xff]
        %v3646 = vsel %vm277, 0.0, %v3614
        %v3647 = vsel %vm277, 0.0, %v3615
        %v3648 = vsel %vm277, 0.0, %v3616
        %v3649 = vsel %vm277, 0.0, %v3617
        %v3650 = vsel %vm277, 0.0, %v3618
        %v3651 = vsel %vm277, 0.0, %v3619
        %v3652 = vsel %vm277, 0.0, %v3620
        %v3653 = vsel %vm277, 0.0, %v3621
        %v3654 = vsel %vm277, 0.0, %v3622
        %v3655 = vsel %vm277, 0.0, %v3623
        %v3656 = vsel %vm277, 0.0, %v3624
        %v3657 = vsel %vm277, 0.0, %v3625
        %v3658 = vsel %vm277, 0.0, %v3626
        %v3659 = vsel %vm277, 0.0, %v3627
        %v3660 = vsel %vm277, 0.0, %v3628
        %v3661 = vsel %vm277, 0.0, %v3629
        %v3662 = vsel %vm277, 0.0, %v3630
        %v3663 = vsel %vm277, 0.0, %v3631
        %v3664 = vsel %vm277, 0.0, %v3632
        %v3665 = vsel %vm277, 0.0, %v3633
        %v3666 = vsel %vm277, 0.0, %v3634
        %v3667 = vsel %vm277, 0.0, %v3635
        %v3668 = vsel %vm277, 0.0, %v3636
        %v3669 = vsel %vm277, 0.0, %v3637
        %v3670 = vsel %vm277, 0.0, %v3638
        %v3671 = vsel %vm277, 0.0, %v3639
        %v3672 = vsel %vm277, 0.0, %v3640
        %v3673 = vsel %vm277, 0.0, %v3641
        %v3674 = vsel %vm277, 0.0, %v3642
        %v3675 = vsel %vm277, 0.0, %v3643
        %v3676 = vsel %vm277, 0.0, %v3644
        %v3677 = vsel %vm277, 0.0, %v3645
        %s3678 = scalar_lea.vmem [#allocation2], 256
        %v3679 = vld [vmem:[%s3678] sm:$0xff]
        %v3680 = vld [vmem:[%s3678 + $0x8] sm:$0xff]
        %v3681 = vld [vmem:[%s3678 + $0x10] sm:$0xff]
        %v3682 = vld [vmem:[%s3678 + $0x18] sm:$0xff]
        %v3683 = vld [vmem:[%s3678 + $0x20] sm:$0xff]
        %v3684 = vld [vmem:[%s3678 + $0x28] sm:$0xff]
        %v3685 = vld [vmem:[%s3678 + $0x30] sm:$0xff]
        %v3686 = vld [vmem:[%s3678 + $0x38] sm:$0xff]
        %v3687 = vld [vmem:[%s3678 + $0x40] sm:$0xff]
        %v3688 = vld [vmem:[%s3678 + $0x48] sm:$0xff]
        %v3689 = vld [vmem:[%s3678 + $0x50] sm:$0xff]
        %v3690 = vld [vmem:[%s3678 + $0x58] sm:$0xff]
        %v3691 = vld [vmem:[%s3678 + $0x60] sm:$0xff]
        %v3692 = vld [vmem:[%s3678 + $0x68] sm:$0xff]
        %v3693 = vld [vmem:[%s3678 + $0x70] sm:$0xff]
        %v3694 = vld [vmem:[%s3678 + $0x78] sm:$0xff]
        %v3695 = vld [vmem:[%s3678 + $0x80] sm:$0xff]
        %v3696 = vld [vmem:[%s3678 + $0x88] sm:$0xff]
        %v3697 = vld [vmem:[%s3678 + $0x90] sm:$0xff]
        %v3698 = vld [vmem:[%s3678 + $0x98] sm:$0xff]
        %v3699 = vld [vmem:[%s3678 + $0xa0] sm:$0xff]
        %v3700 = vld [vmem:[%s3678 + $0xa8] sm:$0xff]
        %v3701 = vld [vmem:[%s3678 + $0xb0] sm:$0xff]
        %v3702 = vld [vmem:[%s3678 + $0xb8] sm:$0xff]
        %v3703 = vld [vmem:[%s3678 + $0xc0] sm:$0xff]
        %v3704 = vld [vmem:[%s3678 + $0xc8] sm:$0xff]
        %v3705 = vld [vmem:[%s3678 + $0xd0] sm:$0xff]
        %v3706 = vld [vmem:[%s3678 + $0xd8] sm:$0xff]
        %v3707 = vld [vmem:[%s3678 + $0xe0] sm:$0xff]
        %v3708 = vld [vmem:[%s3678 + $0xe8] sm:$0xff]
        %v3709 = vld [vmem:[%s3678 + $0xf0] sm:$0xff]
        %v3710 = vld [vmem:[%s3678 + $0xf8] sm:$0xff]
        %v3711 = vsel %vm344, %v3679, %v3646
        %v3712 = vsel %vm344, %v3680, %v3647
        %v3713 = vsel %vm344, %v3681, %v3648
        %v3714 = vsel %vm344, %v3682, %v3649
        %v3715 = vsel %vm344, %v3683, %v3650
        %v3716 = vsel %vm344, %v3684, %v3651
        %v3717 = vsel %vm344, %v3685, %v3652
        %v3718 = vsel %vm344, %v3686, %v3653
        %v3719 = vsel %vm344, %v3687, %v3654
        %v3720 = vsel %vm344, %v3688, %v3655
        %v3721 = vsel %vm344, %v3689, %v3656
        %v3722 = vsel %vm344, %v3690, %v3657
        %v3723 = vsel %vm344, %v3691, %v3658
        %v3724 = vsel %vm344, %v3692, %v3659
        %v3725 = vsel %vm344, %v3693, %v3660
        %v3726 = vsel %vm344, %v3694, %v3661
        %v3727 = vsel %vm344, %v3695, %v3662
        %v3728 = vsel %vm344, %v3696, %v3663
        %v3729 = vsel %vm344, %v3697, %v3664
        %v3730 = vsel %vm344, %v3698, %v3665
        %v3731 = vsel %vm344, %v3699, %v3666
        %v3732 = vsel %vm344, %v3700, %v3667
        %v3733 = vsel %vm344, %v3701, %v3668
        %v3734 = vsel %vm344, %v3702, %v3669
        %v3735 = vsel %vm344, %v3703, %v3670
        %v3736 = vsel %vm344, %v3704, %v3671
        %v3737 = vsel %vm344, %v3705, %v3672
        %v3738 = vsel %vm344, %v3706, %v3673
        %v3739 = vsel %vm344, %v3707, %v3674
        %v3740 = vsel %vm344, %v3708, %v3675
        %v3741 = vsel %vm344, %v3709, %v3676
        %v3742 = vsel %vm344, %v3710, %v3677
        %3743 = vst [vmem:[#allocation3] sm:$0xff] %v3711
        %3744 = vst [vmem:[#allocation3 + $0x8] sm:$0xff] %v3712
        %3745 = vst [vmem:[#allocation3 + $0x10] sm:$0xff] %v3713
        %3746 = vst [vmem:[#allocation3 + $0x18] sm:$0xff] %v3714
        %3747 = vst [vmem:[#allocation3 + $0x20] sm:$0xff] %v3715
        %3748 = vst [vmem:[#allocation3 + $0x28] sm:$0xff] %v3716
        %3749 = vst [vmem:[#allocation3 + $0x30] sm:$0xff] %v3717
        %3750 = vst [vmem:[#allocation3 + $0x38] sm:$0xff] %v3718
        %3751 = vst [vmem:[#allocation3 + $0x40] sm:$0xff] %v3719
        %3752 = vst [vmem:[#allocation3 + $0x48] sm:$0xff] %v3720
        %3753 = vst [vmem:[#allocation3 + $0x50] sm:$0xff] %v3721
        %3754 = vst [vmem:[#allocation3 + $0x58] sm:$0xff] %v3722
        %3755 = vst [vmem:[#allocation3 + $0x60] sm:$0xff] %v3723
        %3756 = vst [vmem:[#allocation3 + $0x68] sm:$0xff] %v3724
        %3757 = vst [vmem:[#allocation3 + $0x70] sm:$0xff] %v3725
        %3758 = vst [vmem:[#allocation3 + $0x78] sm:$0xff] %v3726
        %3759 = vst [vmem:[#allocation3 + $0x80] sm:$0xff] %v3727
        %3760 = vst [vmem:[#allocation3 + $0x88] sm:$0xff] %v3728
        %3761 = vst [vmem:[#allocation3 + $0x90] sm:$0xff] %v3729
        %3762 = vst [vmem:[#allocation3 + $0x98] sm:$0xff] %v3730
        %3763 = vst [vmem:[#allocation3 + $0xa0] sm:$0xff] %v3731
        %3764 = vst [vmem:[#allocation3 + $0xa8] sm:$0xff] %v3732
        %3765 = vst [vmem:[#allocation3 + $0xb0] sm:$0xff] %v3733
        %3766 = vst [vmem:[#allocation3 + $0xb8] sm:$0xff] %v3734
        %3767 = vst [vmem:[#allocation3 + $0xc0] sm:$0xff] %v3735
        %3768 = vst [vmem:[#allocation3 + $0xc8] sm:$0xff] %v3736
        %3769 = vst [vmem:[#allocation3 + $0xd0] sm:$0xff] %v3737
        %3770 = vst [vmem:[#allocation3 + $0xd8] sm:$0xff] %v3738
        %3771 = vst [vmem:[#allocation3 + $0xe0] sm:$0xff] %v3739
        %3772 = vst [vmem:[#allocation3 + $0xe8] sm:$0xff] %v3740
        %3773 = vst [vmem:[#allocation3 + $0xf0] sm:$0xff] %v3741
        %3774 = vst [vmem:[#allocation3 + $0xf8] sm:$0xff] %v3742
        %v3775 = vld [vmem:[%s3678] sm:$0xff]
        %v3776 = vld [vmem:[%s3678 + $0x8] sm:$0xff]
        %v3777 = vld [vmem:[%s3678 + $0x10] sm:$0xff]
        %v3778 = vld [vmem:[%s3678 + $0x18] sm:$0xff]
        %v3779 = vld [vmem:[%s3678 + $0x20] sm:$0xff]
        %v3780 = vld [vmem:[%s3678 + $0x28] sm:$0xff]
        %v3781 = vld [vmem:[%s3678 + $0x30] sm:$0xff]
        %v3782 = vld [vmem:[%s3678 + $0x38] sm:$0xff]
        %v3783 = vld [vmem:[%s3678 + $0x40] sm:$0xff]
        %v3784 = vld [vmem:[%s3678 + $0x48] sm:$0xff]
        %v3785 = vld [vmem:[%s3678 + $0x50] sm:$0xff]
        %v3786 = vld [vmem:[%s3678 + $0x58] sm:$0xff]
        %v3787 = vld [vmem:[%s3678 + $0x60] sm:$0xff]
        %v3788 = vld [vmem:[%s3678 + $0x68] sm:$0xff]
        %v3789 = vld [vmem:[%s3678 + $0x70] sm:$0xff]
        %v3790 = vld [vmem:[%s3678 + $0x78] sm:$0xff]
        %v3791 = vld [vmem:[%s3678 + $0x80] sm:$0xff]
        %v3792 = vld [vmem:[%s3678 + $0x88] sm:$0xff]
        %v3793 = vld [vmem:[%s3678 + $0x90] sm:$0xff]
        %v3794 = vld [vmem:[%s3678 + $0x98] sm:$0xff]
        %v3795 = vld [vmem:[%s3678 + $0xa0] sm:$0xff]
        %v3796 = vld [vmem:[%s3678 + $0xa8] sm:$0xff]
        %v3797 = vld [vmem:[%s3678 + $0xb0] sm:$0xff]
        %v3798 = vld [vmem:[%s3678 + $0xb8] sm:$0xff]
        %v3799 = vld [vmem:[%s3678 + $0xc0] sm:$0xff]
        %v3800 = vld [vmem:[%s3678 + $0xc8] sm:$0xff]
        %v3801 = vld [vmem:[%s3678 + $0xd0] sm:$0xff]
        %v3802 = vld [vmem:[%s3678 + $0xd8] sm:$0xff]
        %v3803 = vld [vmem:[%s3678 + $0xe0] sm:$0xff]
        %v3804 = vld [vmem:[%s3678 + $0xe8] sm:$0xff]
        %v3805 = vld [vmem:[%s3678 + $0xf0] sm:$0xff]
        %v3806 = vld [vmem:[%s3678 + $0xf8] sm:$0xff]
        %v3807 = vld [vmem:[#allocation2] sm:$0xff]
        %v3808 = vld [vmem:[#allocation2 + $0x8] sm:$0xff]
        %v3809 = vld [vmem:[#allocation2 + $0x10] sm:$0xff]
        %v3810 = vld [vmem:[#allocation2 + $0x18] sm:$0xff]
        %v3811 = vld [vmem:[#allocation2 + $0x20] sm:$0xff]
        %v3812 = vld [vmem:[#allocation2 + $0x28] sm:$0xff]
        %v3813 = vld [vmem:[#allocation2 + $0x30] sm:$0xff]
        %v3814 = vld [vmem:[#allocation2 + $0x38] sm:$0xff]
        %v3815 = vld [vmem:[#allocation2 + $0x40] sm:$0xff]
        %v3816 = vld [vmem:[#allocation2 + $0x48] sm:$0xff]
        %v3817 = vld [vmem:[#allocation2 + $0x50] sm:$0xff]
        %v3818 = vld [vmem:[#allocation2 + $0x58] sm:$0xff]
        %v3819 = vld [vmem:[#allocation2 + $0x60] sm:$0xff]
        %v3820 = vld [vmem:[#allocation2 + $0x68] sm:$0xff]
        %v3821 = vld [vmem:[#allocation2 + $0x70] sm:$0xff]
        %v3822 = vld [vmem:[#allocation2 + $0x78] sm:$0xff]
        %v3823 = vld [vmem:[#allocation2 + $0x80] sm:$0xff]
        %v3824 = vld [vmem:[#allocation2 + $0x88] sm:$0xff]
        %v3825 = vld [vmem:[#allocation2 + $0x90] sm:$0xff]
        %v3826 = vld [vmem:[#allocation2 + $0x98] sm:$0xff]
        %v3827 = vld [vmem:[#allocation2 + $0xa0] sm:$0xff]
        %v3828 = vld [vmem:[#allocation2 + $0xa8] sm:$0xff]
        %v3829 = vld [vmem:[#allocation2 + $0xb0] sm:$0xff]
        %v3830 = vld [vmem:[#allocation2 + $0xb8] sm:$0xff]
        %v3831 = vld [vmem:[#allocation2 + $0xc0] sm:$0xff]
        %v3832 = vld [vmem:[#allocation2 + $0xc8] sm:$0xff]
        %v3833 = vld [vmem:[#allocation2 + $0xd0] sm:$0xff]
        %v3834 = vld [vmem:[#allocation2 + $0xd8] sm:$0xff]
        %v3835 = vld [vmem:[#allocation2 + $0xe0] sm:$0xff]
        %v3836 = vld [vmem:[#allocation2 + $0xe8] sm:$0xff]
        %v3837 = vld [vmem:[#allocation2 + $0xf0] sm:$0xff]
        %v3838 = vld [vmem:[#allocation2 + $0xf8] sm:$0xff]
        %v3839 = vsel %vm277, %v3807, %v3775
        %v3840 = vsel %vm277, %v3808, %v3776
        %v3841 = vsel %vm277, %v3809, %v3777
        %v3842 = vsel %vm277, %v3810, %v3778
        %v3843 = vsel %vm277, %v3811, %v3779
        %v3844 = vsel %vm277, %v3812, %v3780
        %v3845 = vsel %vm277, %v3813, %v3781
        %v3846 = vsel %vm277, %v3814, %v3782
        %v3847 = vsel %vm277, %v3815, %v3783
        %v3848 = vsel %vm277, %v3816, %v3784
        %v3849 = vsel %vm277, %v3817, %v3785
        %v3850 = vsel %vm277, %v3818, %v3786
        %v3851 = vsel %vm277, %v3819, %v3787
        %v3852 = vsel %vm277, %v3820, %v3788
        %v3853 = vsel %vm277, %v3821, %v3789
        %v3854 = vsel %vm277, %v3822, %v3790
        %v3855 = vsel %vm277, %v3823, %v3791
        %v3856 = vsel %vm277, %v3824, %v3792
        %v3857 = vsel %vm277, %v3825, %v3793
        %v3858 = vsel %vm277, %v3826, %v3794
        %v3859 = vsel %vm277, %v3827, %v3795
        %v3860 = vsel %vm277, %v3828, %v3796
        %v3861 = vsel %vm277, %v3829, %v3797
        %v3862 = vsel %vm277, %v3830, %v3798
        %v3863 = vsel %vm277, %v3831, %v3799
        %v3864 = vsel %vm277, %v3832, %v3800
        %v3865 = vsel %vm277, %v3833, %v3801
        %v3866 = vsel %vm277, %v3834, %v3802
        %v3867 = vsel %vm277, %v3835, %v3803
        %v3868 = vsel %vm277, %v3836, %v3804
        %v3869 = vsel %vm277, %v3837, %v3805
        %v3870 = vsel %vm277, %v3838, %v3806
        %s3871 = scalar_lea.vmem [#allocation2], 512
        %v3872 = vld [vmem:[%s3871] sm:$0xff]
        %v3873 = vld [vmem:[%s3871 + $0x8] sm:$0xff]
        %v3874 = vld [vmem:[%s3871 + $0x10] sm:$0xff]
        %v3875 = vld [vmem:[%s3871 + $0x18] sm:$0xff]
        %v3876 = vld [vmem:[%s3871 + $0x20] sm:$0xff]
        %v3877 = vld [vmem:[%s3871 + $0x28] sm:$0xff]
        %v3878 = vld [vmem:[%s3871 + $0x30] sm:$0xff]
        %v3879 = vld [vmem:[%s3871 + $0x38] sm:$0xff]
        %v3880 = vld [vmem:[%s3871 + $0x40] sm:$0xff]
        %v3881 = vld [vmem:[%s3871 + $0x48] sm:$0xff]
        %v3882 = vld [vmem:[%s3871 + $0x50] sm:$0xff]
        %v3883 = vld [vmem:[%s3871 + $0x58] sm:$0xff]
        %v3884 = vld [vmem:[%s3871 + $0x60] sm:$0xff]
        %v3885 = vld [vmem:[%s3871 + $0x68] sm:$0xff]
        %v3886 = vld [vmem:[%s3871 + $0x70] sm:$0xff]
        %v3887 = vld [vmem:[%s3871 + $0x78] sm:$0xff]
        %v3888 = vld [vmem:[%s3871 + $0x80] sm:$0xff]
        %v3889 = vld [vmem:[%s3871 + $0x88] sm:$0xff]
        %v3890 = vld [vmem:[%s3871 + $0x90] sm:$0xff]
        %v3891 = vld [vmem:[%s3871 + $0x98] sm:$0xff]
        %v3892 = vld [vmem:[%s3871 + $0xa0] sm:$0xff]
        %v3893 = vld [vmem:[%s3871 + $0xa8] sm:$0xff]
        %v3894 = vld [vmem:[%s3871 + $0xb0] sm:$0xff]
        %v3895 = vld [vmem:[%s3871 + $0xb8] sm:$0xff]
        %v3896 = vld [vmem:[%s3871 + $0xc0] sm:$0xff]
        %v3897 = vld [vmem:[%s3871 + $0xc8] sm:$0xff]
        %v3898 = vld [vmem:[%s3871 + $0xd0] sm:$0xff]
        %v3899 = vld [vmem:[%s3871 + $0xd8] sm:$0xff]
        %v3900 = vld [vmem:[%s3871 + $0xe0] sm:$0xff]
        %v3901 = vld [vmem:[%s3871 + $0xe8] sm:$0xff]
        %v3902 = vld [vmem:[%s3871 + $0xf0] sm:$0xff]
        %v3903 = vld [vmem:[%s3871 + $0xf8] sm:$0xff]
        %v3904 = vsel %vm344, %v3872, %v3839
        %v3905 = vsel %vm344, %v3873, %v3840
        %v3906 = vsel %vm344, %v3874, %v3841
        %v3907 = vsel %vm344, %v3875, %v3842
        %v3908 = vsel %vm344, %v3876, %v3843
        %v3909 = vsel %vm344, %v3877, %v3844
        %v3910 = vsel %vm344, %v3878, %v3845
        %v3911 = vsel %vm344, %v3879, %v3846
        %v3912 = vsel %vm344, %v3880, %v3847
        %v3913 = vsel %vm344, %v3881, %v3848
        %v3914 = vsel %vm344, %v3882, %v3849
        %v3915 = vsel %vm344, %v3883, %v3850
        %v3916 = vsel %vm344, %v3884, %v3851
        %v3917 = vsel %vm344, %v3885, %v3852
        %v3918 = vsel %vm344, %v3886, %v3853
        %v3919 = vsel %vm344, %v3887, %v3854
        %v3920 = vsel %vm344, %v3888, %v3855
        %v3921 = vsel %vm344, %v3889, %v3856
        %v3922 = vsel %vm344, %v3890, %v3857
        %v3923 = vsel %vm344, %v3891, %v3858
        %v3924 = vsel %vm344, %v3892, %v3859
        %v3925 = vsel %vm344, %v3893, %v3860
        %v3926 = vsel %vm344, %v3894, %v3861
        %v3927 = vsel %vm344, %v3895, %v3862
        %v3928 = vsel %vm344, %v3896, %v3863
        %v3929 = vsel %vm344, %v3897, %v3864
        %v3930 = vsel %vm344, %v3898, %v3865
        %v3931 = vsel %vm344, %v3899, %v3866
        %v3932 = vsel %vm344, %v3900, %v3867
        %v3933 = vsel %vm344, %v3901, %v3868
        %v3934 = vsel %vm344, %v3902, %v3869
        %v3935 = vsel %vm344, %v3903, %v3870
        %3936 = vst [vmem:[%s570] sm:$0xff] %v3904
        %3937 = vst [vmem:[%s570 + $0x8] sm:$0xff] %v3905
        %3938 = vst [vmem:[%s570 + $0x10] sm:$0xff] %v3906
        %3939 = vst [vmem:[%s570 + $0x18] sm:$0xff] %v3907
        %3940 = vst [vmem:[%s570 + $0x20] sm:$0xff] %v3908
        %3941 = vst [vmem:[%s570 + $0x28] sm:$0xff] %v3909
        %3942 = vst [vmem:[%s570 + $0x30] sm:$0xff] %v3910
        %3943 = vst [vmem:[%s570 + $0x38] sm:$0xff] %v3911
        %3944 = vst [vmem:[%s570 + $0x40] sm:$0xff] %v3912
        %3945 = vst [vmem:[%s570 + $0x48] sm:$0xff] %v3913
        %3946 = vst [vmem:[%s570 + $0x50] sm:$0xff] %v3914
        %3947 = vst [vmem:[%s570 + $0x58] sm:$0xff] %v3915
        %3948 = vst [vmem:[%s570 + $0x60] sm:$0xff] %v3916
        %3949 = vst [vmem:[%s570 + $0x68] sm:$0xff] %v3917
        %3950 = vst [vmem:[%s570 + $0x70] sm:$0xff] %v3918
        %3951 = vst [vmem:[%s570 + $0x78] sm:$0xff] %v3919
        %3952 = vst [vmem:[%s570 + $0x80] sm:$0xff] %v3920
        %3953 = vst [vmem:[%s570 + $0x88] sm:$0xff] %v3921
        %3954 = vst [vmem:[%s570 + $0x90] sm:$0xff] %v3922
        %3955 = vst [vmem:[%s570 + $0x98] sm:$0xff] %v3923
        %3956 = vst [vmem:[%s570 + $0xa0] sm:$0xff] %v3924
        %3957 = vst [vmem:[%s570 + $0xa8] sm:$0xff] %v3925
        %3958 = vst [vmem:[%s570 + $0xb0] sm:$0xff] %v3926
        %3959 = vst [vmem:[%s570 + $0xb8] sm:$0xff] %v3927
        %3960 = vst [vmem:[%s570 + $0xc0] sm:$0xff] %v3928
        %3961 = vst [vmem:[%s570 + $0xc8] sm:$0xff] %v3929
        %3962 = vst [vmem:[%s570 + $0xd0] sm:$0xff] %v3930
        %3963 = vst [vmem:[%s570 + $0xd8] sm:$0xff] %v3931
        %3964 = vst [vmem:[%s570 + $0xe0] sm:$0xff] %v3932
        %3965 = vst [vmem:[%s570 + $0xe8] sm:$0xff] %v3933
        %3966 = vst [vmem:[%s570 + $0xf0] sm:$0xff] %v3934
        %3967 = vst [vmem:[%s570 + $0xf8] sm:$0xff] %v3935
        %v3968 = vld [vmem:[%s3871] sm:$0xff]
        %v3969 = vld [vmem:[%s3871 + $0x8] sm:$0xff]
        %v3970 = vld [vmem:[%s3871 + $0x10] sm:$0xff]
        %v3971 = vld [vmem:[%s3871 + $0x18] sm:$0xff]
        %v3972 = vld [vmem:[%s3871 + $0x20] sm:$0xff]
        %v3973 = vld [vmem:[%s3871 + $0x28] sm:$0xff]
        %v3974 = vld [vmem:[%s3871 + $0x30] sm:$0xff]
        %v3975 = vld [vmem:[%s3871 + $0x38] sm:$0xff]
        %v3976 = vld [vmem:[%s3871 + $0x40] sm:$0xff]
        %v3977 = vld [vmem:[%s3871 + $0x48] sm:$0xff]
        %v3978 = vld [vmem:[%s3871 + $0x50] sm:$0xff]
        %v3979 = vld [vmem:[%s3871 + $0x58] sm:$0xff]
        %v3980 = vld [vmem:[%s3871 + $0x60] sm:$0xff]
        %v3981 = vld [vmem:[%s3871 + $0x68] sm:$0xff]
        %v3982 = vld [vmem:[%s3871 + $0x70] sm:$0xff]
        %v3983 = vld [vmem:[%s3871 + $0x78] sm:$0xff]
        %v3984 = vld [vmem:[%s3871 + $0x80] sm:$0xff]
        %v3985 = vld [vmem:[%s3871 + $0x88] sm:$0xff]
        %v3986 = vld [vmem:[%s3871 + $0x90] sm:$0xff]
        %v3987 = vld [vmem:[%s3871 + $0x98] sm:$0xff]
        %v3988 = vld [vmem:[%s3871 + $0xa0] sm:$0xff]
        %v3989 = vld [vmem:[%s3871 + $0xa8] sm:$0xff]
        %v3990 = vld [vmem:[%s3871 + $0xb0] sm:$0xff]
        %v3991 = vld [vmem:[%s3871 + $0xb8] sm:$0xff]
        %v3992 = vld [vmem:[%s3871 + $0xc0] sm:$0xff]
        %v3993 = vld [vmem:[%s3871 + $0xc8] sm:$0xff]
        %v3994 = vld [vmem:[%s3871 + $0xd0] sm:$0xff]
        %v3995 = vld [vmem:[%s3871 + $0xd8] sm:$0xff]
        %v3996 = vld [vmem:[%s3871 + $0xe0] sm:$0xff]
        %v3997 = vld [vmem:[%s3871 + $0xe8] sm:$0xff]
        %v3998 = vld [vmem:[%s3871 + $0xf0] sm:$0xff]
        %v3999 = vld [vmem:[%s3871 + $0xf8] sm:$0xff]
        %v4000 = vld [vmem:[%s3678] sm:$0xff]
        %v4001 = vld [vmem:[%s3678 + $0x8] sm:$0xff]
        %v4002 = vld [vmem:[%s3678 + $0x10] sm:$0xff]
        %v4003 = vld [vmem:[%s3678 + $0x18] sm:$0xff]
        %v4004 = vld [vmem:[%s3678 + $0x20] sm:$0xff]
        %v4005 = vld [vmem:[%s3678 + $0x28] sm:$0xff]
        %v4006 = vld [vmem:[%s3678 + $0x30] sm:$0xff]
        %v4007 = vld [vmem:[%s3678 + $0x38] sm:$0xff]
        %v4008 = vld [vmem:[%s3678 + $0x40] sm:$0xff]
        %v4009 = vld [vmem:[%s3678 + $0x48] sm:$0xff]
        %v4010 = vld [vmem:[%s3678 + $0x50] sm:$0xff]
        %v4011 = vld [vmem:[%s3678 + $0x58] sm:$0xff]
        %v4012 = vld [vmem:[%s3678 + $0x60] sm:$0xff]
        %v4013 = vld [vmem:[%s3678 + $0x68] sm:$0xff]
        %v4014 = vld [vmem:[%s3678 + $0x70] sm:$0xff]
        %v4015 = vld [vmem:[%s3678 + $0x78] sm:$0xff]
        %v4016 = vld [vmem:[%s3678 + $0x80] sm:$0xff]
        %v4017 = vld [vmem:[%s3678 + $0x88] sm:$0xff]
        %v4018 = vld [vmem:[%s3678 + $0x90] sm:$0xff]
        %v4019 = vld [vmem:[%s3678 + $0x98] sm:$0xff]
        %v4020 = vld [vmem:[%s3678 + $0xa0] sm:$0xff]
        %v4021 = vld [vmem:[%s3678 + $0xa8] sm:$0xff]
        %v4022 = vld [vmem:[%s3678 + $0xb0] sm:$0xff]
        %v4023 = vld [vmem:[%s3678 + $0xb8] sm:$0xff]
        %v4024 = vld [vmem:[%s3678 + $0xc0] sm:$0xff]
        %v4025 = vld [vmem:[%s3678 + $0xc8] sm:$0xff]
        %v4026 = vld [vmem:[%s3678 + $0xd0] sm:$0xff]
        %v4027 = vld [vmem:[%s3678 + $0xd8] sm:$0xff]
        %v4028 = vld [vmem:[%s3678 + $0xe0] sm:$0xff]
        %v4029 = vld [vmem:[%s3678 + $0xe8] sm:$0xff]
        %v4030 = vld [vmem:[%s3678 + $0xf0] sm:$0xff]
        %v4031 = vld [vmem:[%s3678 + $0xf8] sm:$0xff]
        %v4032 = vsel %vm277, %v4000, %v3968
        %v4033 = vsel %vm277, %v4001, %v3969
        %v4034 = vsel %vm277, %v4002, %v3970
        %v4035 = vsel %vm277, %v4003, %v3971
        %v4036 = vsel %vm277, %v4004, %v3972
        %v4037 = vsel %vm277, %v4005, %v3973
        %v4038 = vsel %vm277, %v4006, %v3974
        %v4039 = vsel %vm277, %v4007, %v3975
        %v4040 = vsel %vm277, %v4008, %v3976
        %v4041 = vsel %vm277, %v4009, %v3977
        %v4042 = vsel %vm277, %v4010, %v3978
        %v4043 = vsel %vm277, %v4011, %v3979
        %v4044 = vsel %vm277, %v4012, %v3980
        %v4045 = vsel %vm277, %v4013, %v3981
        %v4046 = vsel %vm277, %v4014, %v3982
        %v4047 = vsel %vm277, %v4015, %v3983
        %v4048 = vsel %vm277, %v4016, %v3984
        %v4049 = vsel %vm277, %v4017, %v3985
        %v4050 = vsel %vm277, %v4018, %v3986
        %v4051 = vsel %vm277, %v4019, %v3987
        %v4052 = vsel %vm277, %v4020, %v3988
        %v4053 = vsel %vm277, %v4021, %v3989
        %v4054 = vsel %vm277, %v4022, %v3990
        %v4055 = vsel %vm277, %v4023, %v3991
        %v4056 = vsel %vm277, %v4024, %v3992
        %v4057 = vsel %vm277, %v4025, %v3993
        %v4058 = vsel %vm277, %v4026, %v3994
        %v4059 = vsel %vm277, %v4027, %v3995
        %v4060 = vsel %vm277, %v4028, %v3996
        %v4061 = vsel %vm277, %v4029, %v3997
        %v4062 = vsel %vm277, %v4030, %v3998
        %v4063 = vsel %vm277, %v4031, %v3999
        %s4064 = scalar_lea.vmem [#allocation2], 768
        %v4065 = vld [vmem:[%s4064] sm:$0xff]
        %v4066 = vld [vmem:[%s4064 + $0x8] sm:$0xff]
        %v4067 = vld [vmem:[%s4064 + $0x10] sm:$0xff]
        %v4068 = vld [vmem:[%s4064 + $0x18] sm:$0xff]
        %v4069 = vld [vmem:[%s4064 + $0x20] sm:$0xff]
        %v4070 = vld [vmem:[%s4064 + $0x28] sm:$0xff]
        %v4071 = vld [vmem:[%s4064 + $0x30] sm:$0xff]
        %v4072 = vld [vmem:[%s4064 + $0x38] sm:$0xff]
        %v4073 = vld [vmem:[%s4064 + $0x40] sm:$0xff]
        %v4074 = vld [vmem:[%s4064 + $0x48] sm:$0xff]
        %v4075 = vld [vmem:[%s4064 + $0x50] sm:$0xff]
        %v4076 = vld [vmem:[%s4064 + $0x58] sm:$0xff]
        %v4077 = vld [vmem:[%s4064 + $0x60] sm:$0xff]
        %v4078 = vld [vmem:[%s4064 + $0x68] sm:$0xff]
        %v4079 = vld [vmem:[%s4064 + $0x70] sm:$0xff]
        %v4080 = vld [vmem:[%s4064 + $0x78] sm:$0xff]
        %v4081 = vld [vmem:[%s4064 + $0x80] sm:$0xff]
        %v4082 = vld [vmem:[%s4064 + $0x88] sm:$0xff]
        %v4083 = vld [vmem:[%s4064 + $0x90] sm:$0xff]
        %v4084 = vld [vmem:[%s4064 + $0x98] sm:$0xff]
        %v4085 = vld [vmem:[%s4064 + $0xa0] sm:$0xff]
        %v4086 = vld [vmem:[%s4064 + $0xa8] sm:$0xff]
        %v4087 = vld [vmem:[%s4064 + $0xb0] sm:$0xff]
        %v4088 = vld [vmem:[%s4064 + $0xb8] sm:$0xff]
        %v4089 = vld [vmem:[%s4064 + $0xc0] sm:$0xff]
        %v4090 = vld [vmem:[%s4064 + $0xc8] sm:$0xff]
        %v4091 = vld [vmem:[%s4064 + $0xd0] sm:$0xff]
        %v4092 = vld [vmem:[%s4064 + $0xd8] sm:$0xff]
        %v4093 = vld [vmem:[%s4064 + $0xe0] sm:$0xff]
        %v4094 = vld [vmem:[%s4064 + $0xe8] sm:$0xff]
        %v4095 = vld [vmem:[%s4064 + $0xf0] sm:$0xff]
        %v4096 = vld [vmem:[%s4064 + $0xf8] sm:$0xff]
        %v4097 = vsel %vm344, %v4065, %v4032
        %v4098 = vsel %vm344, %v4066, %v4033
        %v4099 = vsel %vm344, %v4067, %v4034
        %v4100 = vsel %vm344, %v4068, %v4035
        %v4101 = vsel %vm344, %v4069, %v4036
        %v4102 = vsel %vm344, %v4070, %v4037
        %v4103 = vsel %vm344, %v4071, %v4038
        %v4104 = vsel %vm344, %v4072, %v4039
        %v4105 = vsel %vm344, %v4073, %v4040
        %v4106 = vsel %vm344, %v4074, %v4041
        %v4107 = vsel %vm344, %v4075, %v4042
        %v4108 = vsel %vm344, %v4076, %v4043
        %v4109 = vsel %vm344, %v4077, %v4044
        %v4110 = vsel %vm344, %v4078, %v4045
        %v4111 = vsel %vm344, %v4079, %v4046
        %v4112 = vsel %vm344, %v4080, %v4047
        %v4113 = vsel %vm344, %v4081, %v4048
        %v4114 = vsel %vm344, %v4082, %v4049
        %v4115 = vsel %vm344, %v4083, %v4050
        %v4116 = vsel %vm344, %v4084, %v4051
        %v4117 = vsel %vm344, %v4085, %v4052
        %v4118 = vsel %vm344, %v4086, %v4053
        %v4119 = vsel %vm344, %v4087, %v4054
        %v4120 = vsel %vm344, %v4088, %v4055
        %v4121 = vsel %vm344, %v4089, %v4056
        %v4122 = vsel %vm344, %v4090, %v4057
        %v4123 = vsel %vm344, %v4091, %v4058
        %v4124 = vsel %vm344, %v4092, %v4059
        %v4125 = vsel %vm344, %v4093, %v4060
        %v4126 = vsel %vm344, %v4094, %v4061
        %v4127 = vsel %vm344, %v4095, %v4062
        %v4128 = vsel %vm344, %v4096, %v4063
        %4129 = vst [vmem:[%s764] sm:$0xff] %v4097
        %4130 = vst [vmem:[%s764 + $0x8] sm:$0xff] %v4098
        %4131 = vst [vmem:[%s764 + $0x10] sm:$0xff] %v4099
        %4132 = vst [vmem:[%s764 + $0x18] sm:$0xff] %v4100
        %4133 = vst [vmem:[%s764 + $0x20] sm:$0xff] %v4101
        %4134 = vst [vmem:[%s764 + $0x28] sm:$0xff] %v4102
        %4135 = vst [vmem:[%s764 + $0x30] sm:$0xff] %v4103
        %4136 = vst [vmem:[%s764 + $0x38] sm:$0xff] %v4104
        %4137 = vst [vmem:[%s764 + $0x40] sm:$0xff] %v4105
        %4138 = vst [vmem:[%s764 + $0x48] sm:$0xff] %v4106
        %4139 = vst [vmem:[%s764 + $0x50] sm:$0xff] %v4107
        %4140 = vst [vmem:[%s764 + $0x58] sm:$0xff] %v4108
        %4141 = vst [vmem:[%s764 + $0x60] sm:$0xff] %v4109
        %4142 = vst [vmem:[%s764 + $0x68] sm:$0xff] %v4110
        %4143 = vst [vmem:[%s764 + $0x70] sm:$0xff] %v4111
        %4144 = vst [vmem:[%s764 + $0x78] sm:$0xff] %v4112
        %4145 = vst [vmem:[%s764 + $0x80] sm:$0xff] %v4113
        %4146 = vst [vmem:[%s764 + $0x88] sm:$0xff] %v4114
        %4147 = vst [vmem:[%s764 + $0x90] sm:$0xff] %v4115
        %4148 = vst [vmem:[%s764 + $0x98] sm:$0xff] %v4116
        %4149 = vst [vmem:[%s764 + $0xa0] sm:$0xff] %v4117
        %4150 = vst [vmem:[%s764 + $0xa8] sm:$0xff] %v4118
        %4151 = vst [vmem:[%s764 + $0xb0] sm:$0xff] %v4119
        %4152 = vst [vmem:[%s764 + $0xb8] sm:$0xff] %v4120
        %4153 = vst [vmem:[%s764 + $0xc0] sm:$0xff] %v4121
        %4154 = vst [vmem:[%s764 + $0xc8] sm:$0xff] %v4122
        %4155 = vst [vmem:[%s764 + $0xd0] sm:$0xff] %v4123
        %4156 = vst [vmem:[%s764 + $0xd8] sm:$0xff] %v4124
        %4157 = vst [vmem:[%s764 + $0xe0] sm:$0xff] %v4125
        %4158 = vst [vmem:[%s764 + $0xe8] sm:$0xff] %v4126
        %4159 = vst [vmem:[%s764 + $0xf0] sm:$0xff] %v4127
        %4160 = vst [vmem:[%s764 + $0xf8] sm:$0xff] %v4128
        %v4161 = vld [vmem:[%s4064] sm:$0xff]
        %v4162 = vld [vmem:[%s4064 + $0x8] sm:$0xff]
        %v4163 = vld [vmem:[%s4064 + $0x10] sm:$0xff]
        %v4164 = vld [vmem:[%s4064 + $0x18] sm:$0xff]
        %v4165 = vld [vmem:[%s4064 + $0x20] sm:$0xff]
        %v4166 = vld [vmem:[%s4064 + $0x28] sm:$0xff]
        %v4167 = vld [vmem:[%s4064 + $0x30] sm:$0xff]
        %v4168 = vld [vmem:[%s4064 + $0x38] sm:$0xff]
        %v4169 = vld [vmem:[%s4064 + $0x40] sm:$0xff]
        %v4170 = vld [vmem:[%s4064 + $0x48] sm:$0xff]
        %v4171 = vld [vmem:[%s4064 + $0x50] sm:$0xff]
        %v4172 = vld [vmem:[%s4064 + $0x58] sm:$0xff]
        %v4173 = vld [vmem:[%s4064 + $0x60] sm:$0xff]
        %v4174 = vld [vmem:[%s4064 + $0x68] sm:$0xff]
        %v4175 = vld [vmem:[%s4064 + $0x70] sm:$0xff]
        %v4176 = vld [vmem:[%s4064 + $0x78] sm:$0xff]
        %v4177 = vld [vmem:[%s4064 + $0x80] sm:$0xff]
        %v4178 = vld [vmem:[%s4064 + $0x88] sm:$0xff]
        %v4179 = vld [vmem:[%s4064 + $0x90] sm:$0xff]
        %v4180 = vld [vmem:[%s4064 + $0x98] sm:$0xff]
        %v4181 = vld [vmem:[%s4064 + $0xa0] sm:$0xff]
        %v4182 = vld [vmem:[%s4064 + $0xa8] sm:$0xff]
        %v4183 = vld [vmem:[%s4064 + $0xb0] sm:$0xff]
        %v4184 = vld [vmem:[%s4064 + $0xb8] sm:$0xff]
        %v4185 = vld [vmem:[%s4064 + $0xc0] sm:$0xff]
        %v4186 = vld [vmem:[%s4064 + $0xc8] sm:$0xff]
        %v4187 = vld [vmem:[%s4064 + $0xd0] sm:$0xff]
        %v4188 = vld [vmem:[%s4064 + $0xd8] sm:$0xff]
        %v4189 = vld [vmem:[%s4064 + $0xe0] sm:$0xff]
        %v4190 = vld [vmem:[%s4064 + $0xe8] sm:$0xff]
        %v4191 = vld [vmem:[%s4064 + $0xf0] sm:$0xff]
        %v4192 = vld [vmem:[%s4064 + $0xf8] sm:$0xff]
        %v4193 = vld [vmem:[%s3871] sm:$0xff]
        %v4194 = vld [vmem:[%s3871 + $0x8] sm:$0xff]
        %v4195 = vld [vmem:[%s3871 + $0x10] sm:$0xff]
        %v4196 = vld [vmem:[%s3871 + $0x18] sm:$0xff]
        %v4197 = vld [vmem:[%s3871 + $0x20] sm:$0xff]
        %v4198 = vld [vmem:[%s3871 + $0x28] sm:$0xff]
        %v4199 = vld [vmem:[%s3871 + $0x30] sm:$0xff]
        %v4200 = vld [vmem:[%s3871 + $0x38] sm:$0xff]
        %v4201 = vld [vmem:[%s3871 + $0x40] sm:$0xff]
        %v4202 = vld [vmem:[%s3871 + $0x48] sm:$0xff]
        %v4203 = vld [vmem:[%s3871 + $0x50] sm:$0xff]
        %v4204 = vld [vmem:[%s3871 + $0x58] sm:$0xff]
        %v4205 = vld [vmem:[%s3871 + $0x60] sm:$0xff]
        %v4206 = vld [vmem:[%s3871 + $0x68] sm:$0xff]
        %v4207 = vld [vmem:[%s3871 + $0x70] sm:$0xff]
        %v4208 = vld [vmem:[%s3871 + $0x78] sm:$0xff]
        %v4209 = vld [vmem:[%s3871 + $0x80] sm:$0xff]
        %v4210 = vld [vmem:[%s3871 + $0x88] sm:$0xff]
        %v4211 = vld [vmem:[%s3871 + $0x90] sm:$0xff]
        %v4212 = vld [vmem:[%s3871 + $0x98] sm:$0xff]
        %v4213 = vld [vmem:[%s3871 + $0xa0] sm:$0xff]
        %v4214 = vld [vmem:[%s3871 + $0xa8] sm:$0xff]
        %v4215 = vld [vmem:[%s3871 + $0xb0] sm:$0xff]
        %v4216 = vld [vmem:[%s3871 + $0xb8] sm:$0xff]
        %v4217 = vld [vmem:[%s3871 + $0xc0] sm:$0xff]
        %v4218 = vld [vmem:[%s3871 + $0xc8] sm:$0xff]
        %v4219 = vld [vmem:[%s3871 + $0xd0] sm:$0xff]
        %v4220 = vld [vmem:[%s3871 + $0xd8] sm:$0xff]
        %v4221 = vld [vmem:[%s3871 + $0xe0] sm:$0xff]
        %v4222 = vld [vmem:[%s3871 + $0xe8] sm:$0xff]
        %v4223 = vld [vmem:[%s3871 + $0xf0] sm:$0xff]
        %v4224 = vld [vmem:[%s3871 + $0xf8] sm:$0xff]
        %v4225 = vsel %vm277, %v4193, %v4161
        %v4226 = vsel %vm277, %v4194, %v4162
        %v4227 = vsel %vm277, %v4195, %v4163
        %v4228 = vsel %vm277, %v4196, %v4164
        %v4229 = vsel %vm277, %v4197, %v4165
        %v4230 = vsel %vm277, %v4198, %v4166
        %v4231 = vsel %vm277, %v4199, %v4167
        %v4232 = vsel %vm277, %v4200, %v4168
        %v4233 = vsel %vm277, %v4201, %v4169
        %v4234 = vsel %vm277, %v4202, %v4170
        %v4235 = vsel %vm277, %v4203, %v4171
        %v4236 = vsel %vm277, %v4204, %v4172
        %v4237 = vsel %vm277, %v4205, %v4173
        %v4238 = vsel %vm277, %v4206, %v4174
        %v4239 = vsel %vm277, %v4207, %v4175
        %v4240 = vsel %vm277, %v4208, %v4176
        %v4241 = vsel %vm277, %v4209, %v4177
        %v4242 = vsel %vm277, %v4210, %v4178
        %v4243 = vsel %vm277, %v4211, %v4179
        %v4244 = vsel %vm277, %v4212, %v4180
        %v4245 = vsel %vm277, %v4213, %v4181
        %v4246 = vsel %vm277, %v4214, %v4182
        %v4247 = vsel %vm277, %v4215, %v4183
        %v4248 = vsel %vm277, %v4216, %v4184
        %v4249 = vsel %vm277, %v4217, %v4185
        %v4250 = vsel %vm277, %v4218, %v4186
        %v4251 = vsel %vm277, %v4219, %v4187
        %v4252 = vsel %vm277, %v4220, %v4188
        %v4253 = vsel %vm277, %v4221, %v4189
        %v4254 = vsel %vm277, %v4222, %v4190
        %v4255 = vsel %vm277, %v4223, %v4191
        %v4256 = vsel %vm277, %v4224, %v4192
        %s4257 = scalar_lea.vmem [#allocation2], 1024
        %v4258 = vld [vmem:[%s4257] sm:$0xff]
        %v4259 = vld [vmem:[%s4257 + $0x8] sm:$0xff]
        %v4260 = vld [vmem:[%s4257 + $0x10] sm:$0xff]
        %v4261 = vld [vmem:[%s4257 + $0x18] sm:$0xff]
        %v4262 = vld [vmem:[%s4257 + $0x20] sm:$0xff]
        %v4263 = vld [vmem:[%s4257 + $0x28] sm:$0xff]
        %v4264 = vld [vmem:[%s4257 + $0x30] sm:$0xff]
        %v4265 = vld [vmem:[%s4257 + $0x38] sm:$0xff]
        %v4266 = vld [vmem:[%s4257 + $0x40] sm:$0xff]
        %v4267 = vld [vmem:[%s4257 + $0x48] sm:$0xff]
        %v4268 = vld [vmem:[%s4257 + $0x50] sm:$0xff]
        %v4269 = vld [vmem:[%s4257 + $0x58] sm:$0xff]
        %v4270 = vld [vmem:[%s4257 + $0x60] sm:$0xff]
        %v4271 = vld [vmem:[%s4257 + $0x68] sm:$0xff]
        %v4272 = vld [vmem:[%s4257 + $0x70] sm:$0xff]
        %v4273 = vld [vmem:[%s4257 + $0x78] sm:$0xff]
        %v4274 = vld [vmem:[%s4257 + $0x80] sm:$0xff]
        %v4275 = vld [vmem:[%s4257 + $0x88] sm:$0xff]
        %v4276 = vld [vmem:[%s4257 + $0x90] sm:$0xff]
        %v4277 = vld [vmem:[%s4257 + $0x98] sm:$0xff]
        %v4278 = vld [vmem:[%s4257 + $0xa0] sm:$0xff]
        %v4279 = vld [vmem:[%s4257 + $0xa8] sm:$0xff]
        %v4280 = vld [vmem:[%s4257 + $0xb0] sm:$0xff]
        %v4281 = vld [vmem:[%s4257 + $0xb8] sm:$0xff]
        %v4282 = vld [vmem:[%s4257 + $0xc0] sm:$0xff]
        %v4283 = vld [vmem:[%s4257 + $0xc8] sm:$0xff]
        %v4284 = vld [vmem:[%s4257 + $0xd0] sm:$0xff]
        %v4285 = vld [vmem:[%s4257 + $0xd8] sm:$0xff]
        %v4286 = vld [vmem:[%s4257 + $0xe0] sm:$0xff]
        %v4287 = vld [vmem:[%s4257 + $0xe8] sm:$0xff]
        %v4288 = vld [vmem:[%s4257 + $0xf0] sm:$0xff]
        %v4289 = vld [vmem:[%s4257 + $0xf8] sm:$0xff]
        %v4290 = vsel %vm344, %v4258, %v4225
        %v4291 = vsel %vm344, %v4259, %v4226
        %v4292 = vsel %vm344, %v4260, %v4227
        %v4293 = vsel %vm344, %v4261, %v4228
        %v4294 = vsel %vm344, %v4262, %v4229
        %v4295 = vsel %vm344, %v4263, %v4230
        %v4296 = vsel %vm344, %v4264, %v4231
        %v4297 = vsel %vm344, %v4265, %v4232
        %v4298 = vsel %vm344, %v4266, %v4233
        %v4299 = vsel %vm344, %v4267, %v4234
        %v4300 = vsel %vm344, %v4268, %v4235
        %v4301 = vsel %vm344, %v4269, %v4236
        %v4302 = vsel %vm344, %v4270, %v4237
        %v4303 = vsel %vm344, %v4271, %v4238
        %v4304 = vsel %vm344, %v4272, %v4239
        %v4305 = vsel %vm344, %v4273, %v4240
        %v4306 = vsel %vm344, %v4274, %v4241
        %v4307 = vsel %vm344, %v4275, %v4242
        %v4308 = vsel %vm344, %v4276, %v4243
        %v4309 = vsel %vm344, %v4277, %v4244
        %v4310 = vsel %vm344, %v4278, %v4245
        %v4311 = vsel %vm344, %v4279, %v4246
        %v4312 = vsel %vm344, %v4280, %v4247
        %v4313 = vsel %vm344, %v4281, %v4248
        %v4314 = vsel %vm344, %v4282, %v4249
        %v4315 = vsel %vm344, %v4283, %v4250
        %v4316 = vsel %vm344, %v4284, %v4251
        %v4317 = vsel %vm344, %v4285, %v4252
        %v4318 = vsel %vm344, %v4286, %v4253
        %v4319 = vsel %vm344, %v4287, %v4254
        %v4320 = vsel %vm344, %v4288, %v4255
        %v4321 = vsel %vm344, %v4289, %v4256
        %4322 = vst [vmem:[%s958] sm:$0xff] %v4290
        %4323 = vst [vmem:[%s958 + $0x8] sm:$0xff] %v4291
        %4324 = vst [vmem:[%s958 + $0x10] sm:$0xff] %v4292
        %4325 = vst [vmem:[%s958 + $0x18] sm:$0xff] %v4293
        %4326 = vst [vmem:[%s958 + $0x20] sm:$0xff] %v4294
        %4327 = vst [vmem:[%s958 + $0x28] sm:$0xff] %v4295
        %4328 = vst [vmem:[%s958 + $0x30] sm:$0xff] %v4296
        %4329 = vst [vmem:[%s958 + $0x38] sm:$0xff] %v4297
        %4330 = vst [vmem:[%s958 + $0x40] sm:$0xff] %v4298
        %4331 = vst [vmem:[%s958 + $0x48] sm:$0xff] %v4299
        %4332 = vst [vmem:[%s958 + $0x50] sm:$0xff] %v4300
        %4333 = vst [vmem:[%s958 + $0x58] sm:$0xff] %v4301
        %4334 = vst [vmem:[%s958 + $0x60] sm:$0xff] %v4302
        %4335 = vst [vmem:[%s958 + $0x68] sm:$0xff] %v4303
        %4336 = vst [vmem:[%s958 + $0x70] sm:$0xff] %v4304
        %4337 = vst [vmem:[%s958 + $0x78] sm:$0xff] %v4305
        %4338 = vst [vmem:[%s958 + $0x80] sm:$0xff] %v4306
        %4339 = vst [vmem:[%s958 + $0x88] sm:$0xff] %v4307
        %4340 = vst [vmem:[%s958 + $0x90] sm:$0xff] %v4308
        %4341 = vst [vmem:[%s958 + $0x98] sm:$0xff] %v4309
        %4342 = vst [vmem:[%s958 + $0xa0] sm:$0xff] %v4310
        %4343 = vst [vmem:[%s958 + $0xa8] sm:$0xff] %v4311
        %4344 = vst [vmem:[%s958 + $0xb0] sm:$0xff] %v4312
        %4345 = vst [vmem:[%s958 + $0xb8] sm:$0xff] %v4313
        %4346 = vst [vmem:[%s958 + $0xc0] sm:$0xff] %v4314
        %4347 = vst [vmem:[%s958 + $0xc8] sm:$0xff] %v4315
        %4348 = vst [vmem:[%s958 + $0xd0] sm:$0xff] %v4316
        %4349 = vst [vmem:[%s958 + $0xd8] sm:$0xff] %v4317
        %4350 = vst [vmem:[%s958 + $0xe0] sm:$0xff] %v4318
        %4351 = vst [vmem:[%s958 + $0xe8] sm:$0xff] %v4319
        %4352 = vst [vmem:[%s958 + $0xf0] sm:$0xff] %v4320
        %4353 = vst [vmem:[%s958 + $0xf8] sm:$0xff] %v4321
        %v4354 = vld [vmem:[%s4257] sm:$0xff]
        %v4355 = vld [vmem:[%s4257 + $0x8] sm:$0xff]
        %v4356 = vld [vmem:[%s4257 + $0x10] sm:$0xff]
        %v4357 = vld [vmem:[%s4257 + $0x18] sm:$0xff]
        %v4358 = vld [vmem:[%s4257 + $0x20] sm:$0xff]
        %v4359 = vld [vmem:[%s4257 + $0x28] sm:$0xff]
        %v4360 = vld [vmem:[%s4257 + $0x30] sm:$0xff]
        %v4361 = vld [vmem:[%s4257 + $0x38] sm:$0xff]
        %v4362 = vld [vmem:[%s4257 + $0x40] sm:$0xff]
        %v4363 = vld [vmem:[%s4257 + $0x48] sm:$0xff]
        %v4364 = vld [vmem:[%s4257 + $0x50] sm:$0xff]
        %v4365 = vld [vmem:[%s4257 + $0x58] sm:$0xff]
        %v4366 = vld [vmem:[%s4257 + $0x60] sm:$0xff]
        %v4367 = vld [vmem:[%s4257 + $0x68] sm:$0xff]
        %v4368 = vld [vmem:[%s4257 + $0x70] sm:$0xff]
        %v4369 = vld [vmem:[%s4257 + $0x78] sm:$0xff]
        %v4370 = vld [vmem:[%s4257 + $0x80] sm:$0xff]
        %v4371 = vld [vmem:[%s4257 + $0x88] sm:$0xff]
        %v4372 = vld [vmem:[%s4257 + $0x90] sm:$0xff]
        %v4373 = vld [vmem:[%s4257 + $0x98] sm:$0xff]
        %v4374 = vld [vmem:[%s4257 + $0xa0] sm:$0xff]
        %v4375 = vld [vmem:[%s4257 + $0xa8] sm:$0xff]
        %v4376 = vld [vmem:[%s4257 + $0xb0] sm:$0xff]
        %v4377 = vld [vmem:[%s4257 + $0xb8] sm:$0xff]
        %v4378 = vld [vmem:[%s4257 + $0xc0] sm:$0xff]
        %v4379 = vld [vmem:[%s4257 + $0xc8] sm:$0xff]
        %v4380 = vld [vmem:[%s4257 + $0xd0] sm:$0xff]
        %v4381 = vld [vmem:[%s4257 + $0xd8] sm:$0xff]
        %v4382 = vld [vmem:[%s4257 + $0xe0] sm:$0xff]
        %v4383 = vld [vmem:[%s4257 + $0xe8] sm:$0xff]
        %v4384 = vld [vmem:[%s4257 + $0xf0] sm:$0xff]
        %v4385 = vld [vmem:[%s4257 + $0xf8] sm:$0xff]
        %v4386 = vld [vmem:[%s4064] sm:$0xff]
        %v4387 = vld [vmem:[%s4064 + $0x8] sm:$0xff]
        %v4388 = vld [vmem:[%s4064 + $0x10] sm:$0xff]
        %v4389 = vld [vmem:[%s4064 + $0x18] sm:$0xff]
        %v4390 = vld [vmem:[%s4064 + $0x20] sm:$0xff]
        %v4391 = vld [vmem:[%s4064 + $0x28] sm:$0xff]
        %v4392 = vld [vmem:[%s4064 + $0x30] sm:$0xff]
        %v4393 = vld [vmem:[%s4064 + $0x38] sm:$0xff]
        %v4394 = vld [vmem:[%s4064 + $0x40] sm:$0xff]
        %v4395 = vld [vmem:[%s4064 + $0x48] sm:$0xff]
        %v4396 = vld [vmem:[%s4064 + $0x50] sm:$0xff]
        %v4397 = vld [vmem:[%s4064 + $0x58] sm:$0xff]
        %v4398 = vld [vmem:[%s4064 + $0x60] sm:$0xff]
        %v4399 = vld [vmem:[%s4064 + $0x68] sm:$0xff]
        %v4400 = vld [vmem:[%s4064 + $0x70] sm:$0xff]
        %v4401 = vld [vmem:[%s4064 + $0x78] sm:$0xff]
        %v4402 = vld [vmem:[%s4064 + $0x80] sm:$0xff]
        %v4403 = vld [vmem:[%s4064 + $0x88] sm:$0xff]
        %v4404 = vld [vmem:[%s4064 + $0x90] sm:$0xff]
        %v4405 = vld [vmem:[%s4064 + $0x98] sm:$0xff]
        %v4406 = vld [vmem:[%s4064 + $0xa0] sm:$0xff]
        %v4407 = vld [vmem:[%s4064 + $0xa8] sm:$0xff]
        %v4408 = vld [vmem:[%s4064 + $0xb0] sm:$0xff]
        %v4409 = vld [vmem:[%s4064 + $0xb8] sm:$0xff]
        %v4410 = vld [vmem:[%s4064 + $0xc0] sm:$0xff]
        %v4411 = vld [vmem:[%s4064 + $0xc8] sm:$0xff]
        %v4412 = vld [vmem:[%s4064 + $0xd0] sm:$0xff]
        %v4413 = vld [vmem:[%s4064 + $0xd8] sm:$0xff]
        %v4414 = vld [vmem:[%s4064 + $0xe0] sm:$0xff]
        %v4415 = vld [vmem:[%s4064 + $0xe8] sm:$0xff]
        %v4416 = vld [vmem:[%s4064 + $0xf0] sm:$0xff]
        %v4417 = vld [vmem:[%s4064 + $0xf8] sm:$0xff]
        %v4418 = vsel %vm277, %v4386, %v4354
        %v4419 = vsel %vm277, %v4387, %v4355
        %v4420 = vsel %vm277, %v4388, %v4356
        %v4421 = vsel %vm277, %v4389, %v4357
        %v4422 = vsel %vm277, %v4390, %v4358
        %v4423 = vsel %vm277, %v4391, %v4359
        %v4424 = vsel %vm277, %v4392, %v4360
        %v4425 = vsel %vm277, %v4393, %v4361
        %v4426 = vsel %vm277, %v4394, %v4362
        %v4427 = vsel %vm277, %v4395, %v4363
        %v4428 = vsel %vm277, %v4396, %v4364
        %v4429 = vsel %vm277, %v4397, %v4365
        %v4430 = vsel %vm277, %v4398, %v4366
        %v4431 = vsel %vm277, %v4399, %v4367
        %v4432 = vsel %vm277, %v4400, %v4368
        %v4433 = vsel %vm277, %v4401, %v4369
        %v4434 = vsel %vm277, %v4402, %v4370
        %v4435 = vsel %vm277, %v4403, %v4371
        %v4436 = vsel %vm277, %v4404, %v4372
        %v4437 = vsel %vm277, %v4405, %v4373
        %v4438 = vsel %vm277, %v4406, %v4374
        %v4439 = vsel %vm277, %v4407, %v4375
        %v4440 = vsel %vm277, %v4408, %v4376
        %v4441 = vsel %vm277, %v4409, %v4377
        %v4442 = vsel %vm277, %v4410, %v4378
        %v4443 = vsel %vm277, %v4411, %v4379
        %v4444 = vsel %vm277, %v4412, %v4380
        %v4445 = vsel %vm277, %v4413, %v4381
        %v4446 = vsel %vm277, %v4414, %v4382
        %v4447 = vsel %vm277, %v4415, %v4383
        %v4448 = vsel %vm277, %v4416, %v4384
        %v4449 = vsel %vm277, %v4417, %v4385
        %s4450 = scalar_lea.vmem [#allocation2], 1280
        %v4451 = vld [vmem:[%s4450] sm:$0xff]
        %v4452 = vld [vmem:[%s4450 + $0x8] sm:$0xff]
        %v4453 = vld [vmem:[%s4450 + $0x10] sm:$0xff]
        %v4454 = vld [vmem:[%s4450 + $0x18] sm:$0xff]
        %v4455 = vld [vmem:[%s4450 + $0x20] sm:$0xff]
        %v4456 = vld [vmem:[%s4450 + $0x28] sm:$0xff]
        %v4457 = vld [vmem:[%s4450 + $0x30] sm:$0xff]
        %v4458 = vld [vmem:[%s4450 + $0x38] sm:$0xff]
        %v4459 = vld [vmem:[%s4450 + $0x40] sm:$0xff]
        %v4460 = vld [vmem:[%s4450 + $0x48] sm:$0xff]
        %v4461 = vld [vmem:[%s4450 + $0x50] sm:$0xff]
        %v4462 = vld [vmem:[%s4450 + $0x58] sm:$0xff]
        %v4463 = vld [vmem:[%s4450 + $0x60] sm:$0xff]
        %v4464 = vld [vmem:[%s4450 + $0x68] sm:$0xff]
        %v4465 = vld [vmem:[%s4450 + $0x70] sm:$0xff]
        %v4466 = vld [vmem:[%s4450 + $0x78] sm:$0xff]
        %v4467 = vld [vmem:[%s4450 + $0x80] sm:$0xff]
        %v4468 = vld [vmem:[%s4450 + $0x88] sm:$0xff]
        %v4469 = vld [vmem:[%s4450 + $0x90] sm:$0xff]
        %v4470 = vld [vmem:[%s4450 + $0x98] sm:$0xff]
        %v4471 = vld [vmem:[%s4450 + $0xa0] sm:$0xff]
        %v4472 = vld [vmem:[%s4450 + $0xa8] sm:$0xff]
        %v4473 = vld [vmem:[%s4450 + $0xb0] sm:$0xff]
        %v4474 = vld [vmem:[%s4450 + $0xb8] sm:$0xff]
        %v4475 = vld [vmem:[%s4450 + $0xc0] sm:$0xff]
        %v4476 = vld [vmem:[%s4450 + $0xc8] sm:$0xff]
        %v4477 = vld [vmem:[%s4450 + $0xd0] sm:$0xff]
        %v4478 = vld [vmem:[%s4450 + $0xd8] sm:$0xff]
        %v4479 = vld [vmem:[%s4450 + $0xe0] sm:$0xff]
        %v4480 = vld [vmem:[%s4450 + $0xe8] sm:$0xff]
        %v4481 = vld [vmem:[%s4450 + $0xf0] sm:$0xff]
        %v4482 = vld [vmem:[%s4450 + $0xf8] sm:$0xff]
        %v4483 = vsel %vm344, %v4451, %v4418
        %v4484 = vsel %vm344, %v4452, %v4419
        %v4485 = vsel %vm344, %v4453, %v4420
        %v4486 = vsel %vm344, %v4454, %v4421
        %v4487 = vsel %vm344, %v4455, %v4422
        %v4488 = vsel %vm344, %v4456, %v4423
        %v4489 = vsel %vm344, %v4457, %v4424
        %v4490 = vsel %vm344, %v4458, %v4425
        %v4491 = vsel %vm344, %v4459, %v4426
        %v4492 = vsel %vm344, %v4460, %v4427
        %v4493 = vsel %vm344, %v4461, %v4428
        %v4494 = vsel %vm344, %v4462, %v4429
        %v4495 = vsel %vm344, %v4463, %v4430
        %v4496 = vsel %vm344, %v4464, %v4431
        %v4497 = vsel %vm344, %v4465, %v4432
        %v4498 = vsel %vm344, %v4466, %v4433
        %v4499 = vsel %vm344, %v4467, %v4434
        %v4500 = vsel %vm344, %v4468, %v4435
        %v4501 = vsel %vm344, %v4469, %v4436
        %v4502 = vsel %vm344, %v4470, %v4437
        %v4503 = vsel %vm344, %v4471, %v4438
        %v4504 = vsel %vm344, %v4472, %v4439
        %v4505 = vsel %vm344, %v4473, %v4440
        %v4506 = vsel %vm344, %v4474, %v4441
        %v4507 = vsel %vm344, %v4475, %v4442
        %v4508 = vsel %vm344, %v4476, %v4443
        %v4509 = vsel %vm344, %v4477, %v4444
        %v4510 = vsel %vm344, %v4478, %v4445
        %v4511 = vsel %vm344, %v4479, %v4446
        %v4512 = vsel %vm344, %v4480, %v4447
        %v4513 = vsel %vm344, %v4481, %v4448
        %v4514 = vsel %vm344, %v4482, %v4449
        %4515 = vst [vmem:[%s1152] sm:$0xff] %v4483
        %4516 = vst [vmem:[%s1152 + $0x8] sm:$0xff] %v4484
        %4517 = vst [vmem:[%s1152 + $0x10] sm:$0xff] %v4485
        %4518 = vst [vmem:[%s1152 + $0x18] sm:$0xff] %v4486
        %4519 = vst [vmem:[%s1152 + $0x20] sm:$0xff] %v4487
        %4520 = vst [vmem:[%s1152 + $0x28] sm:$0xff] %v4488
        %4521 = vst [vmem:[%s1152 + $0x30] sm:$0xff] %v4489
        %4522 = vst [vmem:[%s1152 + $0x38] sm:$0xff] %v4490
        %4523 = vst [vmem:[%s1152 + $0x40] sm:$0xff] %v4491
        %4524 = vst [vmem:[%s1152 + $0x48] sm:$0xff] %v4492
        %4525 = vst [vmem:[%s1152 + $0x50] sm:$0xff] %v4493
        %4526 = vst [vmem:[%s1152 + $0x58] sm:$0xff] %v4494
        %4527 = vst [vmem:[%s1152 + $0x60] sm:$0xff] %v4495
        %4528 = vst [vmem:[%s1152 + $0x68] sm:$0xff] %v4496
        %4529 = vst [vmem:[%s1152 + $0x70] sm:$0xff] %v4497
        %4530 = vst [vmem:[%s1152 + $0x78] sm:$0xff] %v4498
        %4531 = vst [vmem:[%s1152 + $0x80] sm:$0xff] %v4499
        %4532 = vst [vmem:[%s1152 + $0x88] sm:$0xff] %v4500
        %4533 = vst [vmem:[%s1152 + $0x90] sm:$0xff] %v4501
        %4534 = vst [vmem:[%s1152 + $0x98] sm:$0xff] %v4502
        %4535 = vst [vmem:[%s1152 + $0xa0] sm:$0xff] %v4503
        %4536 = vst [vmem:[%s1152 + $0xa8] sm:$0xff] %v4504
        %4537 = vst [vmem:[%s1152 + $0xb0] sm:$0xff] %v4505
        %4538 = vst [vmem:[%s1152 + $0xb8] sm:$0xff] %v4506
        %4539 = vst [vmem:[%s1152 + $0xc0] sm:$0xff] %v4507
        %4540 = vst [vmem:[%s1152 + $0xc8] sm:$0xff] %v4508
        %4541 = vst [vmem:[%s1152 + $0xd0] sm:$0xff] %v4509
        %4542 = vst [vmem:[%s1152 + $0xd8] sm:$0xff] %v4510
        %4543 = vst [vmem:[%s1152 + $0xe0] sm:$0xff] %v4511
        %4544 = vst [vmem:[%s1152 + $0xe8] sm:$0xff] %v4512
        %4545 = vst [vmem:[%s1152 + $0xf0] sm:$0xff] %v4513
        %4546 = vst [vmem:[%s1152 + $0xf8] sm:$0xff] %v4514
        %v4547 = vld [vmem:[%s4450] sm:$0xff]
        %v4548 = vld [vmem:[%s4450 + $0x8] sm:$0xff]
        %v4549 = vld [vmem:[%s4450 + $0x10] sm:$0xff]
        %v4550 = vld [vmem:[%s4450 + $0x18] sm:$0xff]
        %v4551 = vld [vmem:[%s4450 + $0x20] sm:$0xff]
        %v4552 = vld [vmem:[%s4450 + $0x28] sm:$0xff]
        %v4553 = vld [vmem:[%s4450 + $0x30] sm:$0xff]
        %v4554 = vld [vmem:[%s4450 + $0x38] sm:$0xff]
        %v4555 = vld [vmem:[%s4450 + $0x40] sm:$0xff]
        %v4556 = vld [vmem:[%s4450 + $0x48] sm:$0xff]
        %v4557 = vld [vmem:[%s4450 + $0x50] sm:$0xff]
        %v4558 = vld [vmem:[%s4450 + $0x58] sm:$0xff]
        %v4559 = vld [vmem:[%s4450 + $0x60] sm:$0xff]
        %v4560 = vld [vmem:[%s4450 + $0x68] sm:$0xff]
        %v4561 = vld [vmem:[%s4450 + $0x70] sm:$0xff]
        %v4562 = vld [vmem:[%s4450 + $0x78] sm:$0xff]
        %v4563 = vld [vmem:[%s4450 + $0x80] sm:$0xff]
        %v4564 = vld [vmem:[%s4450 + $0x88] sm:$0xff]
        %v4565 = vld [vmem:[%s4450 + $0x90] sm:$0xff]
        %v4566 = vld [vmem:[%s4450 + $0x98] sm:$0xff]
        %v4567 = vld [vmem:[%s4450 + $0xa0] sm:$0xff]
        %v4568 = vld [vmem:[%s4450 + $0xa8] sm:$0xff]
        %v4569 = vld [vmem:[%s4450 + $0xb0] sm:$0xff]
        %v4570 = vld [vmem:[%s4450 + $0xb8] sm:$0xff]
        %v4571 = vld [vmem:[%s4450 + $0xc0] sm:$0xff]
        %v4572 = vld [vmem:[%s4450 + $0xc8] sm:$0xff]
        %v4573 = vld [vmem:[%s4450 + $0xd0] sm:$0xff]
        %v4574 = vld [vmem:[%s4450 + $0xd8] sm:$0xff]
        %v4575 = vld [vmem:[%s4450 + $0xe0] sm:$0xff]
        %v4576 = vld [vmem:[%s4450 + $0xe8] sm:$0xff]
        %v4577 = vld [vmem:[%s4450 + $0xf0] sm:$0xff]
        %v4578 = vld [vmem:[%s4450 + $0xf8] sm:$0xff]
        %v4579 = vld [vmem:[%s4257] sm:$0xff]
        %v4580 = vld [vmem:[%s4257 + $0x8] sm:$0xff]
        %v4581 = vld [vmem:[%s4257 + $0x10] sm:$0xff]
        %v4582 = vld [vmem:[%s4257 + $0x18] sm:$0xff]
        %v4583 = vld [vmem:[%s4257 + $0x20] sm:$0xff]
        %v4584 = vld [vmem:[%s4257 + $0x28] sm:$0xff]
        %v4585 = vld [vmem:[%s4257 + $0x30] sm:$0xff]
        %v4586 = vld [vmem:[%s4257 + $0x38] sm:$0xff]
        %v4587 = vld [vmem:[%s4257 + $0x40] sm:$0xff]
        %v4588 = vld [vmem:[%s4257 + $0x48] sm:$0xff]
        %v4589 = vld [vmem:[%s4257 + $0x50] sm:$0xff]
        %v4590 = vld [vmem:[%s4257 + $0x58] sm:$0xff]
        %v4591 = vld [vmem:[%s4257 + $0x60] sm:$0xff]
        %v4592 = vld [vmem:[%s4257 + $0x68] sm:$0xff]
        %v4593 = vld [vmem:[%s4257 + $0x70] sm:$0xff]
        %v4594 = vld [vmem:[%s4257 + $0x78] sm:$0xff]
        %v4595 = vld [vmem:[%s4257 + $0x80] sm:$0xff]
        %v4596 = vld [vmem:[%s4257 + $0x88] sm:$0xff]
        %v4597 = vld [vmem:[%s4257 + $0x90] sm:$0xff]
        %v4598 = vld [vmem:[%s4257 + $0x98] sm:$0xff]
        %v4599 = vld [vmem:[%s4257 + $0xa0] sm:$0xff]
        %v4600 = vld [vmem:[%s4257 + $0xa8] sm:$0xff]
        %v4601 = vld [vmem:[%s4257 + $0xb0] sm:$0xff]
        %v4602 = vld [vmem:[%s4257 + $0xb8] sm:$0xff]
        %v4603 = vld [vmem:[%s4257 + $0xc0] sm:$0xff]
        %v4604 = vld [vmem:[%s4257 + $0xc8] sm:$0xff]
        %v4605 = vld [vmem:[%s4257 + $0xd0] sm:$0xff]
        %v4606 = vld [vmem:[%s4257 + $0xd8] sm:$0xff]
        %v4607 = vld [vmem:[%s4257 + $0xe0] sm:$0xff]
        %v4608 = vld [vmem:[%s4257 + $0xe8] sm:$0xff]
        %v4609 = vld [vmem:[%s4257 + $0xf0] sm:$0xff]
        %v4610 = vld [vmem:[%s4257 + $0xf8] sm:$0xff]
        %v4611 = vsel %vm277, %v4579, %v4547
        %v4612 = vsel %vm277, %v4580, %v4548
        %v4613 = vsel %vm277, %v4581, %v4549
        %v4614 = vsel %vm277, %v4582, %v4550
        %v4615 = vsel %vm277, %v4583, %v4551
        %v4616 = vsel %vm277, %v4584, %v4552
        %v4617 = vsel %vm277, %v4585, %v4553
        %v4618 = vsel %vm277, %v4586, %v4554
        %v4619 = vsel %vm277, %v4587, %v4555
        %v4620 = vsel %vm277, %v4588, %v4556
        %v4621 = vsel %vm277, %v4589, %v4557
        %v4622 = vsel %vm277, %v4590, %v4558
        %v4623 = vsel %vm277, %v4591, %v4559
        %v4624 = vsel %vm277, %v4592, %v4560
        %v4625 = vsel %vm277, %v4593, %v4561
        %v4626 = vsel %vm277, %v4594, %v4562
        %v4627 = vsel %vm277, %v4595, %v4563
        %v4628 = vsel %vm277, %v4596, %v4564
        %v4629 = vsel %vm277, %v4597, %v4565
        %v4630 = vsel %vm277, %v4598, %v4566
        %v4631 = vsel %vm277, %v4599, %v4567
        %v4632 = vsel %vm277, %v4600, %v4568
        %v4633 = vsel %vm277, %v4601, %v4569
        %v4634 = vsel %vm277, %v4602, %v4570
        %v4635 = vsel %vm277, %v4603, %v4571
        %v4636 = vsel %vm277, %v4604, %v4572
        %v4637 = vsel %vm277, %v4605, %v4573
        %v4638 = vsel %vm277, %v4606, %v4574
        %v4639 = vsel %vm277, %v4607, %v4575
        %v4640 = vsel %vm277, %v4608, %v4576
        %v4641 = vsel %vm277, %v4609, %v4577
        %v4642 = vsel %vm277, %v4610, %v4578
        %s4643 = scalar_lea.vmem [#allocation2], 1536
        %v4644 = vld [vmem:[%s4643] sm:$0xff]
        %v4645 = vld [vmem:[%s4643 + $0x8] sm:$0xff]
        %v4646 = vld [vmem:[%s4643 + $0x10] sm:$0xff]
        %v4647 = vld [vmem:[%s4643 + $0x18] sm:$0xff]
        %v4648 = vld [vmem:[%s4643 + $0x20] sm:$0xff]
        %v4649 = vld [vmem:[%s4643 + $0x28] sm:$0xff]
        %v4650 = vld [vmem:[%s4643 + $0x30] sm:$0xff]
        %v4651 = vld [vmem:[%s4643 + $0x38] sm:$0xff]
        %v4652 = vld [vmem:[%s4643 + $0x40] sm:$0xff]
        %v4653 = vld [vmem:[%s4643 + $0x48] sm:$0xff]
        %v4654 = vld [vmem:[%s4643 + $0x50] sm:$0xff]
        %v4655 = vld [vmem:[%s4643 + $0x58] sm:$0xff]
        %v4656 = vld [vmem:[%s4643 + $0x60] sm:$0xff]
        %v4657 = vld [vmem:[%s4643 + $0x68] sm:$0xff]
        %v4658 = vld [vmem:[%s4643 + $0x70] sm:$0xff]
        %v4659 = vld [vmem:[%s4643 + $0x78] sm:$0xff]
        %v4660 = vld [vmem:[%s4643 + $0x80] sm:$0xff]
        %v4661 = vld [vmem:[%s4643 + $0x88] sm:$0xff]
        %v4662 = vld [vmem:[%s4643 + $0x90] sm:$0xff]
        %v4663 = vld [vmem:[%s4643 + $0x98] sm:$0xff]
        %v4664 = vld [vmem:[%s4643 + $0xa0] sm:$0xff]
        %v4665 = vld [vmem:[%s4643 + $0xa8] sm:$0xff]
        %v4666 = vld [vmem:[%s4643 + $0xb0] sm:$0xff]
        %v4667 = vld [vmem:[%s4643 + $0xb8] sm:$0xff]
        %v4668 = vld [vmem:[%s4643 + $0xc0] sm:$0xff]
        %v4669 = vld [vmem:[%s4643 + $0xc8] sm:$0xff]
        %v4670 = vld [vmem:[%s4643 + $0xd0] sm:$0xff]
        %v4671 = vld [vmem:[%s4643 + $0xd8] sm:$0xff]
        %v4672 = vld [vmem:[%s4643 + $0xe0] sm:$0xff]
        %v4673 = vld [vmem:[%s4643 + $0xe8] sm:$0xff]
        %v4674 = vld [vmem:[%s4643 + $0xf0] sm:$0xff]
        %v4675 = vld [vmem:[%s4643 + $0xf8] sm:$0xff]
        %v4676 = vsel %vm344, %v4644, %v4611
        %v4677 = vsel %vm344, %v4645, %v4612
        %v4678 = vsel %vm344, %v4646, %v4613
        %v4679 = vsel %vm344, %v4647, %v4614
        %v4680 = vsel %vm344, %v4648, %v4615
        %v4681 = vsel %vm344, %v4649, %v4616
        %v4682 = vsel %vm344, %v4650, %v4617
        %v4683 = vsel %vm344, %v4651, %v4618
        %v4684 = vsel %vm344, %v4652, %v4619
        %v4685 = vsel %vm344, %v4653, %v4620
        %v4686 = vsel %vm344, %v4654, %v4621
        %v4687 = vsel %vm344, %v4655, %v4622
        %v4688 = vsel %vm344, %v4656, %v4623
        %v4689 = vsel %vm344, %v4657, %v4624
        %v4690 = vsel %vm344, %v4658, %v4625
        %v4691 = vsel %vm344, %v4659, %v4626
        %v4692 = vsel %vm344, %v4660, %v4627
        %v4693 = vsel %vm344, %v4661, %v4628
        %v4694 = vsel %vm344, %v4662, %v4629
        %v4695 = vsel %vm344, %v4663, %v4630
        %v4696 = vsel %vm344, %v4664, %v4631
        %v4697 = vsel %vm344, %v4665, %v4632
        %v4698 = vsel %vm344, %v4666, %v4633
        %v4699 = vsel %vm344, %v4667, %v4634
        %v4700 = vsel %vm344, %v4668, %v4635
        %v4701 = vsel %vm344, %v4669, %v4636
        %v4702 = vsel %vm344, %v4670, %v4637
        %v4703 = vsel %vm344, %v4671, %v4638
        %v4704 = vsel %vm344, %v4672, %v4639
        %v4705 = vsel %vm344, %v4673, %v4640
        %v4706 = vsel %vm344, %v4674, %v4641
        %v4707 = vsel %vm344, %v4675, %v4642
        %4708 = vst [vmem:[%s1346] sm:$0xff] %v4676
        %4709 = vst [vmem:[%s1346 + $0x8] sm:$0xff] %v4677
        %4710 = vst [vmem:[%s1346 + $0x10] sm:$0xff] %v4678
        %4711 = vst [vmem:[%s1346 + $0x18] sm:$0xff] %v4679
        %4712 = vst [vmem:[%s1346 + $0x20] sm:$0xff] %v4680
        %4713 = vst [vmem:[%s1346 + $0x28] sm:$0xff] %v4681
        %4714 = vst [vmem:[%s1346 + $0x30] sm:$0xff] %v4682
        %4715 = vst [vmem:[%s1346 + $0x38] sm:$0xff] %v4683
        %4716 = vst [vmem:[%s1346 + $0x40] sm:$0xff] %v4684
        %4717 = vst [vmem:[%s1346 + $0x48] sm:$0xff] %v4685
        %4718 = vst [vmem:[%s1346 + $0x50] sm:$0xff] %v4686
        %4719 = vst [vmem:[%s1346 + $0x58] sm:$0xff] %v4687
        %4720 = vst [vmem:[%s1346 + $0x60] sm:$0xff] %v4688
        %4721 = vst [vmem:[%s1346 + $0x68] sm:$0xff] %v4689
        %4722 = vst [vmem:[%s1346 + $0x70] sm:$0xff] %v4690
        %4723 = vst [vmem:[%s1346 + $0x78] sm:$0xff] %v4691
        %4724 = vst [vmem:[%s1346 + $0x80] sm:$0xff] %v4692
        %4725 = vst [vmem:[%s1346 + $0x88] sm:$0xff] %v4693
        %4726 = vst [vmem:[%s1346 + $0x90] sm:$0xff] %v4694
        %4727 = vst [vmem:[%s1346 + $0x98] sm:$0xff] %v4695
        %4728 = vst [vmem:[%s1346 + $0xa0] sm:$0xff] %v4696
        %4729 = vst [vmem:[%s1346 + $0xa8] sm:$0xff] %v4697
        %4730 = vst [vmem:[%s1346 + $0xb0] sm:$0xff] %v4698
        %4731 = vst [vmem:[%s1346 + $0xb8] sm:$0xff] %v4699
        %4732 = vst [vmem:[%s1346 + $0xc0] sm:$0xff] %v4700
        %4733 = vst [vmem:[%s1346 + $0xc8] sm:$0xff] %v4701
        %4734 = vst [vmem:[%s1346 + $0xd0] sm:$0xff] %v4702
        %4735 = vst [vmem:[%s1346 + $0xd8] sm:$0xff] %v4703
        %4736 = vst [vmem:[%s1346 + $0xe0] sm:$0xff] %v4704
        %4737 = vst [vmem:[%s1346 + $0xe8] sm:$0xff] %v4705
        %4738 = vst [vmem:[%s1346 + $0xf0] sm:$0xff] %v4706
        %4739 = vst [vmem:[%s1346 + $0xf8] sm:$0xff] %v4707
        %v4740 = vld [vmem:[%s4643] sm:$0xff]
        %v4741 = vld [vmem:[%s4643 + $0x8] sm:$0xff]
        %v4742 = vld [vmem:[%s4643 + $0x10] sm:$0xff]
        %v4743 = vld [vmem:[%s4643 + $0x18] sm:$0xff]
        %v4744 = vld [vmem:[%s4643 + $0x20] sm:$0xff]
        %v4745 = vld [vmem:[%s4643 + $0x28] sm:$0xff]
        %v4746 = vld [vmem:[%s4643 + $0x30] sm:$0xff]
        %v4747 = vld [vmem:[%s4643 + $0x38] sm:$0xff]
        %v4748 = vld [vmem:[%s4643 + $0x40] sm:$0xff]
        %v4749 = vld [vmem:[%s4643 + $0x48] sm:$0xff]
        %v4750 = vld [vmem:[%s4643 + $0x50] sm:$0xff]
        %v4751 = vld [vmem:[%s4643 + $0x58] sm:$0xff]
        %v4752 = vld [vmem:[%s4643 + $0x60] sm:$0xff]
        %v4753 = vld [vmem:[%s4643 + $0x68] sm:$0xff]
        %v4754 = vld [vmem:[%s4643 + $0x70] sm:$0xff]
        %v4755 = vld [vmem:[%s4643 + $0x78] sm:$0xff]
        %v4756 = vld [vmem:[%s4643 + $0x80] sm:$0xff]
        %v4757 = vld [vmem:[%s4643 + $0x88] sm:$0xff]
        %v4758 = vld [vmem:[%s4643 + $0x90] sm:$0xff]
        %v4759 = vld [vmem:[%s4643 + $0x98] sm:$0xff]
        %v4760 = vld [vmem:[%s4643 + $0xa0] sm:$0xff]
        %v4761 = vld [vmem:[%s4643 + $0xa8] sm:$0xff]
        %v4762 = vld [vmem:[%s4643 + $0xb0] sm:$0xff]
        %v4763 = vld [vmem:[%s4643 + $0xb8] sm:$0xff]
        %v4764 = vld [vmem:[%s4643 + $0xc0] sm:$0xff]
        %v4765 = vld [vmem:[%s4643 + $0xc8] sm:$0xff]
        %v4766 = vld [vmem:[%s4643 + $0xd0] sm:$0xff]
        %v4767 = vld [vmem:[%s4643 + $0xd8] sm:$0xff]
        %v4768 = vld [vmem:[%s4643 + $0xe0] sm:$0xff]
        %v4769 = vld [vmem:[%s4643 + $0xe8] sm:$0xff]
        %v4770 = vld [vmem:[%s4643 + $0xf0] sm:$0xff]
        %v4771 = vld [vmem:[%s4643 + $0xf8] sm:$0xff]
        %v4772 = vld [vmem:[%s4450] sm:$0xff]
        %v4773 = vld [vmem:[%s4450 + $0x8] sm:$0xff]
        %v4774 = vld [vmem:[%s4450 + $0x10] sm:$0xff]
        %v4775 = vld [vmem:[%s4450 + $0x18] sm:$0xff]
        %v4776 = vld [vmem:[%s4450 + $0x20] sm:$0xff]
        %v4777 = vld [vmem:[%s4450 + $0x28] sm:$0xff]
        %v4778 = vld [vmem:[%s4450 + $0x30] sm:$0xff]
        %v4779 = vld [vmem:[%s4450 + $0x38] sm:$0xff]
        %v4780 = vld [vmem:[%s4450 + $0x40] sm:$0xff]
        %v4781 = vld [vmem:[%s4450 + $0x48] sm:$0xff]
        %v4782 = vld [vmem:[%s4450 + $0x50] sm:$0xff]
        %v4783 = vld [vmem:[%s4450 + $0x58] sm:$0xff]
        %v4784 = vld [vmem:[%s4450 + $0x60] sm:$0xff]
        %v4785 = vld [vmem:[%s4450 + $0x68] sm:$0xff]
        %v4786 = vld [vmem:[%s4450 + $0x70] sm:$0xff]
        %v4787 = vld [vmem:[%s4450 + $0x78] sm:$0xff]
        %v4788 = vld [vmem:[%s4450 + $0x80] sm:$0xff]
        %v4789 = vld [vmem:[%s4450 + $0x88] sm:$0xff]
        %v4790 = vld [vmem:[%s4450 + $0x90] sm:$0xff]
        %v4791 = vld [vmem:[%s4450 + $0x98] sm:$0xff]
        %v4792 = vld [vmem:[%s4450 + $0xa0] sm:$0xff]
        %v4793 = vld [vmem:[%s4450 + $0xa8] sm:$0xff]
        %v4794 = vld [vmem:[%s4450 + $0xb0] sm:$0xff]
        %v4795 = vld [vmem:[%s4450 + $0xb8] sm:$0xff]
        %v4796 = vld [vmem:[%s4450 + $0xc0] sm:$0xff]
        %v4797 = vld [vmem:[%s4450 + $0xc8] sm:$0xff]
        %v4798 = vld [vmem:[%s4450 + $0xd0] sm:$0xff]
        %v4799 = vld [vmem:[%s4450 + $0xd8] sm:$0xff]
        %v4800 = vld [vmem:[%s4450 + $0xe0] sm:$0xff]
        %v4801 = vld [vmem:[%s4450 + $0xe8] sm:$0xff]
        %v4802 = vld [vmem:[%s4450 + $0xf0] sm:$0xff]
        %v4803 = vld [vmem:[%s4450 + $0xf8] sm:$0xff]
        %v4804 = vsel %vm277, %v4772, %v4740
        %v4805 = vsel %vm277, %v4773, %v4741
        %v4806 = vsel %vm277, %v4774, %v4742
        %v4807 = vsel %vm277, %v4775, %v4743
        %v4808 = vsel %vm277, %v4776, %v4744
        %v4809 = vsel %vm277, %v4777, %v4745
        %v4810 = vsel %vm277, %v4778, %v4746
        %v4811 = vsel %vm277, %v4779, %v4747
        %v4812 = vsel %vm277, %v4780, %v4748
        %v4813 = vsel %vm277, %v4781, %v4749
        %v4814 = vsel %vm277, %v4782, %v4750
        %v4815 = vsel %vm277, %v4783, %v4751
        %v4816 = vsel %vm277, %v4784, %v4752
        %v4817 = vsel %vm277, %v4785, %v4753
        %v4818 = vsel %vm277, %v4786, %v4754
        %v4819 = vsel %vm277, %v4787, %v4755
        %v4820 = vsel %vm277, %v4788, %v4756
        %v4821 = vsel %vm277, %v4789, %v4757
        %v4822 = vsel %vm277, %v4790, %v4758
        %v4823 = vsel %vm277, %v4791, %v4759
        %v4824 = vsel %vm277, %v4792, %v4760
        %v4825 = vsel %vm277, %v4793, %v4761
        %v4826 = vsel %vm277, %v4794, %v4762
        %v4827 = vsel %vm277, %v4795, %v4763
        %v4828 = vsel %vm277, %v4796, %v4764
        %v4829 = vsel %vm277, %v4797, %v4765
        %v4830 = vsel %vm277, %v4798, %v4766
        %v4831 = vsel %vm277, %v4799, %v4767
        %v4832 = vsel %vm277, %v4800, %v4768
        %v4833 = vsel %vm277, %v4801, %v4769
        %v4834 = vsel %vm277, %v4802, %v4770
        %v4835 = vsel %vm277, %v4803, %v4771
        %s4836 = scalar_lea.vmem [#allocation2], 1792
        %v4837 = vld [vmem:[%s4836] sm:$0xff]
        %v4838 = vld [vmem:[%s4836 + $0x8] sm:$0xff]
        %v4839 = vld [vmem:[%s4836 + $0x10] sm:$0xff]
        %v4840 = vld [vmem:[%s4836 + $0x18] sm:$0xff]
        %v4841 = vld [vmem:[%s4836 + $0x20] sm:$0xff]
        %v4842 = vld [vmem:[%s4836 + $0x28] sm:$0xff]
        %v4843 = vld [vmem:[%s4836 + $0x30] sm:$0xff]
        %v4844 = vld [vmem:[%s4836 + $0x38] sm:$0xff]
        %v4845 = vld [vmem:[%s4836 + $0x40] sm:$0xff]
        %v4846 = vld [vmem:[%s4836 + $0x48] sm:$0xff]
        %v4847 = vld [vmem:[%s4836 + $0x50] sm:$0xff]
        %v4848 = vld [vmem:[%s4836 + $0x58] sm:$0xff]
        %v4849 = vld [vmem:[%s4836 + $0x60] sm:$0xff]
        %v4850 = vld [vmem:[%s4836 + $0x68] sm:$0xff]
        %v4851 = vld [vmem:[%s4836 + $0x70] sm:$0xff]
        %v4852 = vld [vmem:[%s4836 + $0x78] sm:$0xff]
        %v4853 = vld [vmem:[%s4836 + $0x80] sm:$0xff]
        %v4854 = vld [vmem:[%s4836 + $0x88] sm:$0xff]
        %v4855 = vld [vmem:[%s4836 + $0x90] sm:$0xff]
        %v4856 = vld [vmem:[%s4836 + $0x98] sm:$0xff]
        %v4857 = vld [vmem:[%s4836 + $0xa0] sm:$0xff]
        %v4858 = vld [vmem:[%s4836 + $0xa8] sm:$0xff]
        %v4859 = vld [vmem:[%s4836 + $0xb0] sm:$0xff]
        %v4860 = vld [vmem:[%s4836 + $0xb8] sm:$0xff]
        %v4861 = vld [vmem:[%s4836 + $0xc0] sm:$0xff]
        %v4862 = vld [vmem:[%s4836 + $0xc8] sm:$0xff]
        %v4863 = vld [vmem:[%s4836 + $0xd0] sm:$0xff]
        %v4864 = vld [vmem:[%s4836 + $0xd8] sm:$0xff]
        %v4865 = vld [vmem:[%s4836 + $0xe0] sm:$0xff]
        %v4866 = vld [vmem:[%s4836 + $0xe8] sm:$0xff]
        %v4867 = vld [vmem:[%s4836 + $0xf0] sm:$0xff]
        %v4868 = vld [vmem:[%s4836 + $0xf8] sm:$0xff]
        %v4869 = vsel %vm344, %v4837, %v4804
        %v4870 = vsel %vm344, %v4838, %v4805
        %v4871 = vsel %vm344, %v4839, %v4806
        %v4872 = vsel %vm344, %v4840, %v4807
        %v4873 = vsel %vm344, %v4841, %v4808
        %v4874 = vsel %vm344, %v4842, %v4809
        %v4875 = vsel %vm344, %v4843, %v4810
        %v4876 = vsel %vm344, %v4844, %v4811
        %v4877 = vsel %vm344, %v4845, %v4812
        %v4878 = vsel %vm344, %v4846, %v4813
        %v4879 = vsel %vm344, %v4847, %v4814
        %v4880 = vsel %vm344, %v4848, %v4815
        %v4881 = vsel %vm344, %v4849, %v4816
        %v4882 = vsel %vm344, %v4850, %v4817
        %v4883 = vsel %vm344, %v4851, %v4818
        %v4884 = vsel %vm344, %v4852, %v4819
        %v4885 = vsel %vm344, %v4853, %v4820
        %v4886 = vsel %vm344, %v4854, %v4821
        %v4887 = vsel %vm344, %v4855, %v4822
        %v4888 = vsel %vm344, %v4856, %v4823
        %v4889 = vsel %vm344, %v4857, %v4824
        %v4890 = vsel %vm344, %v4858, %v4825
        %v4891 = vsel %vm344, %v4859, %v4826
        %v4892 = vsel %vm344, %v4860, %v4827
        %v4893 = vsel %vm344, %v4861, %v4828
        %v4894 = vsel %vm344, %v4862, %v4829
        %v4895 = vsel %vm344, %v4863, %v4830
        %v4896 = vsel %vm344, %v4864, %v4831
        %v4897 = vsel %vm344, %v4865, %v4832
        %v4898 = vsel %vm344, %v4866, %v4833
        %v4899 = vsel %vm344, %v4867, %v4834
        %v4900 = vsel %vm344, %v4868, %v4835
        %4901 = vst [vmem:[%s1540] sm:$0xff] %v4869
        %4902 = vst [vmem:[%s1540 + $0x8] sm:$0xff] %v4870
        %4903 = vst [vmem:[%s1540 + $0x10] sm:$0xff] %v4871
        %4904 = vst [vmem:[%s1540 + $0x18] sm:$0xff] %v4872
        %4905 = vst [vmem:[%s1540 + $0x20] sm:$0xff] %v4873
        %4906 = vst [vmem:[%s1540 + $0x28] sm:$0xff] %v4874
        %4907 = vst [vmem:[%s1540 + $0x30] sm:$0xff] %v4875
        %4908 = vst [vmem:[%s1540 + $0x38] sm:$0xff] %v4876
        %4909 = vst [vmem:[%s1540 + $0x40] sm:$0xff] %v4877
        %4910 = vst [vmem:[%s1540 + $0x48] sm:$0xff] %v4878
        %4911 = vst [vmem:[%s1540 + $0x50] sm:$0xff] %v4879
        %4912 = vst [vmem:[%s1540 + $0x58] sm:$0xff] %v4880
        %4913 = vst [vmem:[%s1540 + $0x60] sm:$0xff] %v4881
        %4914 = vst [vmem:[%s1540 + $0x68] sm:$0xff] %v4882
        %4915 = vst [vmem:[%s1540 + $0x70] sm:$0xff] %v4883
        %4916 = vst [vmem:[%s1540 + $0x78] sm:$0xff] %v4884
        %4917 = vst [vmem:[%s1540 + $0x80] sm:$0xff] %v4885
        %4918 = vst [vmem:[%s1540 + $0x88] sm:$0xff] %v4886
        %4919 = vst [vmem:[%s1540 + $0x90] sm:$0xff] %v4887
        %4920 = vst [vmem:[%s1540 + $0x98] sm:$0xff] %v4888
        %4921 = vst [vmem:[%s1540 + $0xa0] sm:$0xff] %v4889
        %4922 = vst [vmem:[%s1540 + $0xa8] sm:$0xff] %v4890
        %4923 = vst [vmem:[%s1540 + $0xb0] sm:$0xff] %v4891
        %4924 = vst [vmem:[%s1540 + $0xb8] sm:$0xff] %v4892
        %4925 = vst [vmem:[%s1540 + $0xc0] sm:$0xff] %v4893
        %4926 = vst [vmem:[%s1540 + $0xc8] sm:$0xff] %v4894
        %4927 = vst [vmem:[%s1540 + $0xd0] sm:$0xff] %v4895
        %4928 = vst [vmem:[%s1540 + $0xd8] sm:$0xff] %v4896
        %4929 = vst [vmem:[%s1540 + $0xe0] sm:$0xff] %v4897
        %4930 = vst [vmem:[%s1540 + $0xe8] sm:$0xff] %v4898
        %4931 = vst [vmem:[%s1540 + $0xf0] sm:$0xff] %v4899
        %4932 = vst [vmem:[%s1540 + $0xf8] sm:$0xff] %v4900
        %v4933 = vld [vmem:[%s4836] sm:$0xff]
        %v4934 = vld [vmem:[%s4836 + $0x8] sm:$0xff]
        %v4935 = vld [vmem:[%s4836 + $0x10] sm:$0xff]
        %v4936 = vld [vmem:[%s4836 + $0x18] sm:$0xff]
        %v4937 = vld [vmem:[%s4836 + $0x20] sm:$0xff]
        %v4938 = vld [vmem:[%s4836 + $0x28] sm:$0xff]
        %v4939 = vld [vmem:[%s4836 + $0x30] sm:$0xff]
        %v4940 = vld [vmem:[%s4836 + $0x38] sm:$0xff]
        %v4941 = vld [vmem:[%s4836 + $0x40] sm:$0xff]
        %v4942 = vld [vmem:[%s4836 + $0x48] sm:$0xff]
        %v4943 = vld [vmem:[%s4836 + $0x50] sm:$0xff]
        %v4944 = vld [vmem:[%s4836 + $0x58] sm:$0xff]
        %v4945 = vld [vmem:[%s4836 + $0x60] sm:$0xff]
        %v4946 = vld [vmem:[%s4836 + $0x68] sm:$0xff]
        %v4947 = vld [vmem:[%s4836 + $0x70] sm:$0xff]
        %v4948 = vld [vmem:[%s4836 + $0x78] sm:$0xff]
        %v4949 = vld [vmem:[%s4836 + $0x80] sm:$0xff]
        %v4950 = vld [vmem:[%s4836 + $0x88] sm:$0xff]
        %v4951 = vld [vmem:[%s4836 + $0x90] sm:$0xff]
        %v4952 = vld [vmem:[%s4836 + $0x98] sm:$0xff]
        %v4953 = vld [vmem:[%s4836 + $0xa0] sm:$0xff]
        %v4954 = vld [vmem:[%s4836 + $0xa8] sm:$0xff]
        %v4955 = vld [vmem:[%s4836 + $0xb0] sm:$0xff]
        %v4956 = vld [vmem:[%s4836 + $0xb8] sm:$0xff]
        %v4957 = vld [vmem:[%s4836 + $0xc0] sm:$0xff]
        %v4958 = vld [vmem:[%s4836 + $0xc8] sm:$0xff]
        %v4959 = vld [vmem:[%s4836 + $0xd0] sm:$0xff]
        %v4960 = vld [vmem:[%s4836 + $0xd8] sm:$0xff]
        %v4961 = vld [vmem:[%s4836 + $0xe0] sm:$0xff]
        %v4962 = vld [vmem:[%s4836 + $0xe8] sm:$0xff]
        %v4963 = vld [vmem:[%s4836 + $0xf0] sm:$0xff]
        %v4964 = vld [vmem:[%s4836 + $0xf8] sm:$0xff]
        %v4965 = vld [vmem:[%s4643] sm:$0xff]
        %v4966 = vld [vmem:[%s4643 + $0x8] sm:$0xff]
        %v4967 = vld [vmem:[%s4643 + $0x10] sm:$0xff]
        %v4968 = vld [vmem:[%s4643 + $0x18] sm:$0xff]
        %v4969 = vld [vmem:[%s4643 + $0x20] sm:$0xff]
        %v4970 = vld [vmem:[%s4643 + $0x28] sm:$0xff]
        %v4971 = vld [vmem:[%s4643 + $0x30] sm:$0xff]
        %v4972 = vld [vmem:[%s4643 + $0x38] sm:$0xff]
        %v4973 = vld [vmem:[%s4643 + $0x40] sm:$0xff]
        %v4974 = vld [vmem:[%s4643 + $0x48] sm:$0xff]
        %v4975 = vld [vmem:[%s4643 + $0x50] sm:$0xff]
        %v4976 = vld [vmem:[%s4643 + $0x58] sm:$0xff]
        %v4977 = vld [vmem:[%s4643 + $0x60] sm:$0xff]
        %v4978 = vld [vmem:[%s4643 + $0x68] sm:$0xff]
        %v4979 = vld [vmem:[%s4643 + $0x70] sm:$0xff]
        %v4980 = vld [vmem:[%s4643 + $0x78] sm:$0xff]
        %v4981 = vld [vmem:[%s4643 + $0x80] sm:$0xff]
        %v4982 = vld [vmem:[%s4643 + $0x88] sm:$0xff]
        %v4983 = vld [vmem:[%s4643 + $0x90] sm:$0xff]
        %v4984 = vld [vmem:[%s4643 + $0x98] sm:$0xff]
        %v4985 = vld [vmem:[%s4643 + $0xa0] sm:$0xff]
        %v4986 = vld [vmem:[%s4643 + $0xa8] sm:$0xff]
        %v4987 = vld [vmem:[%s4643 + $0xb0] sm:$0xff]
        %v4988 = vld [vmem:[%s4643 + $0xb8] sm:$0xff]
        %v4989 = vld [vmem:[%s4643 + $0xc0] sm:$0xff]
        %v4990 = vld [vmem:[%s4643 + $0xc8] sm:$0xff]
        %v4991 = vld [vmem:[%s4643 + $0xd0] sm:$0xff]
        %v4992 = vld [vmem:[%s4643 + $0xd8] sm:$0xff]
        %v4993 = vld [vmem:[%s4643 + $0xe0] sm:$0xff]
        %v4994 = vld [vmem:[%s4643 + $0xe8] sm:$0xff]
        %v4995 = vld [vmem:[%s4643 + $0xf0] sm:$0xff]
        %v4996 = vld [vmem:[%s4643 + $0xf8] sm:$0xff]
        %v4997 = vsel %vm277, %v4965, %v4933
        %v4998 = vsel %vm277, %v4966, %v4934
        %v4999 = vsel %vm277, %v4967, %v4935
        %v5000 = vsel %vm277, %v4968, %v4936
        %v5001 = vsel %vm277, %v4969, %v4937
        %v5002 = vsel %vm277, %v4970, %v4938
        %v5003 = vsel %vm277, %v4971, %v4939
        %v5004 = vsel %vm277, %v4972, %v4940
        %v5005 = vsel %vm277, %v4973, %v4941
        %v5006 = vsel %vm277, %v4974, %v4942
        %v5007 = vsel %vm277, %v4975, %v4943
        %v5008 = vsel %vm277, %v4976, %v4944
        %v5009 = vsel %vm277, %v4977, %v4945
        %v5010 = vsel %vm277, %v4978, %v4946
        %v5011 = vsel %vm277, %v4979, %v4947
        %v5012 = vsel %vm277, %v4980, %v4948
        %v5013 = vsel %vm277, %v4981, %v4949
        %v5014 = vsel %vm277, %v4982, %v4950
        %v5015 = vsel %vm277, %v4983, %v4951
        %v5016 = vsel %vm277, %v4984, %v4952
        %v5017 = vsel %vm277, %v4985, %v4953
        %v5018 = vsel %vm277, %v4986, %v4954
        %v5019 = vsel %vm277, %v4987, %v4955
        %v5020 = vsel %vm277, %v4988, %v4956
        %v5021 = vsel %vm277, %v4989, %v4957
        %v5022 = vsel %vm277, %v4990, %v4958
        %v5023 = vsel %vm277, %v4991, %v4959
        %v5024 = vsel %vm277, %v4992, %v4960
        %v5025 = vsel %vm277, %v4993, %v4961
        %v5026 = vsel %vm277, %v4994, %v4962
        %v5027 = vsel %vm277, %v4995, %v4963
        %v5028 = vsel %vm277, %v4996, %v4964
        %v5029 = vsel %vm344, 0.0, %v4997
        %v5030 = vsel %vm344, 0.0, %v4998
        %v5031 = vsel %vm344, 0.0, %v4999
        %v5032 = vsel %vm344, 0.0, %v5000
        %v5033 = vsel %vm344, 0.0, %v5001
        %v5034 = vsel %vm344, 0.0, %v5002
        %v5035 = vsel %vm344, 0.0, %v5003
        %v5036 = vsel %vm344, 0.0, %v5004
        %v5037 = vsel %vm344, 0.0, %v5005
        %v5038 = vsel %vm344, 0.0, %v5006
        %v5039 = vsel %vm344, 0.0, %v5007
        %v5040 = vsel %vm344, 0.0, %v5008
        %v5041 = vsel %vm344, 0.0, %v5009
        %v5042 = vsel %vm344, 0.0, %v5010
        %v5043 = vsel %vm344, 0.0, %v5011
        %v5044 = vsel %vm344, 0.0, %v5012
        %v5045 = vsel %vm344, 0.0, %v5013
        %v5046 = vsel %vm344, 0.0, %v5014
        %v5047 = vsel %vm344, 0.0, %v5015
        %v5048 = vsel %vm344, 0.0, %v5016
        %v5049 = vsel %vm344, 0.0, %v5017
        %v5050 = vsel %vm344, 0.0, %v5018
        %v5051 = vsel %vm344, 0.0, %v5019
        %v5052 = vsel %vm344, 0.0, %v5020
        %v5053 = vsel %vm344, 0.0, %v5021
        %v5054 = vsel %vm344, 0.0, %v5022
        %v5055 = vsel %vm344, 0.0, %v5023
        %v5056 = vsel %vm344, 0.0, %v5024
        %v5057 = vsel %vm344, 0.0, %v5025
        %v5058 = vsel %vm344, 0.0, %v5026
        %v5059 = vsel %vm344, 0.0, %v5027
        %v5060 = vsel %vm344, 0.0, %v5028
        %5061 = vst [vmem:[%s1701] sm:$0xff] %v5029
        %5062 = vst [vmem:[%s1701 + $0x8] sm:$0xff] %v5030
        %5063 = vst [vmem:[%s1701 + $0x10] sm:$0xff] %v5031
        %5064 = vst [vmem:[%s1701 + $0x18] sm:$0xff] %v5032
        %5065 = vst [vmem:[%s1701 + $0x20] sm:$0xff] %v5033
        %5066 = vst [vmem:[%s1701 + $0x28] sm:$0xff] %v5034
        %5067 = vst [vmem:[%s1701 + $0x30] sm:$0xff] %v5035
        %5068 = vst [vmem:[%s1701 + $0x38] sm:$0xff] %v5036
        %5069 = vst [vmem:[%s1701 + $0x40] sm:$0xff] %v5037
        %5070 = vst [vmem:[%s1701 + $0x48] sm:$0xff] %v5038
        %5071 = vst [vmem:[%s1701 + $0x50] sm:$0xff] %v5039
        %5072 = vst [vmem:[%s1701 + $0x58] sm:$0xff] %v5040
        %5073 = vst [vmem:[%s1701 + $0x60] sm:$0xff] %v5041
        %5074 = vst [vmem:[%s1701 + $0x68] sm:$0xff] %v5042
        %5075 = vst [vmem:[%s1701 + $0x70] sm:$0xff] %v5043
        %5076 = vst [vmem:[%s1701 + $0x78] sm:$0xff] %v5044
        %5077 = vst [vmem:[%s1701 + $0x80] sm:$0xff] %v5045
        %5078 = vst [vmem:[%s1701 + $0x88] sm:$0xff] %v5046
        %5079 = vst [vmem:[%s1701 + $0x90] sm:$0xff] %v5047
        %5080 = vst [vmem:[%s1701 + $0x98] sm:$0xff] %v5048
        %5081 = vst [vmem:[%s1701 + $0xa0] sm:$0xff] %v5049
        %5082 = vst [vmem:[%s1701 + $0xa8] sm:$0xff] %v5050
        %5083 = vst [vmem:[%s1701 + $0xb0] sm:$0xff] %v5051
        %5084 = vst [vmem:[%s1701 + $0xb8] sm:$0xff] %v5052
        %5085 = vst [vmem:[%s1701 + $0xc0] sm:$0xff] %v5053
        %5086 = vst [vmem:[%s1701 + $0xc8] sm:$0xff] %v5054
        %5087 = vst [vmem:[%s1701 + $0xd0] sm:$0xff] %v5055
        %5088 = vst [vmem:[%s1701 + $0xd8] sm:$0xff] %v5056
        %5089 = vst [vmem:[%s1701 + $0xe0] sm:$0xff] %v5057
        %5090 = vst [vmem:[%s1701 + $0xe8] sm:$0xff] %v5058
        %5091 = vst [vmem:[%s1701 + $0xf0] sm:$0xff] %v5059
        %5092 = vst [vmem:[%s1701 + $0xf8] sm:$0xff] %v5060
        %v5093 = vld [vmem:[#allocation3] sm:$0xff]
        %v5094 = vld [vmem:[#allocation3 + $0x8] sm:$0xff]
        %v5095 = vld [vmem:[#allocation3 + $0x10] sm:$0xff]
        %v5096 = vld [vmem:[#allocation3 + $0x18] sm:$0xff]
        %v5097 = vld [vmem:[#allocation3 + $0x20] sm:$0xff]
        %v5098 = vld [vmem:[#allocation3 + $0x28] sm:$0xff]
        %v5099 = vld [vmem:[#allocation3 + $0x30] sm:$0xff]
        %v5100 = vld [vmem:[#allocation3 + $0x38] sm:$0xff]
        %v5101 = vld [vmem:[#allocation3 + $0x40] sm:$0xff]
        %v5102 = vld [vmem:[#allocation3 + $0x48] sm:$0xff]
        %v5103 = vld [vmem:[#allocation3 + $0x50] sm:$0xff]
        %v5104 = vld [vmem:[#allocation3 + $0x58] sm:$0xff]
        %v5105 = vld [vmem:[#allocation3 + $0x60] sm:$0xff]
        %v5106 = vld [vmem:[#allocation3 + $0x68] sm:$0xff]
        %v5107 = vld [vmem:[#allocation3 + $0x70] sm:$0xff]
        %v5108 = vld [vmem:[#allocation3 + $0x78] sm:$0xff]
        %v5109 = vld [vmem:[#allocation3 + $0x80] sm:$0xff]
        %v5110 = vld [vmem:[#allocation3 + $0x88] sm:$0xff]
        %v5111 = vld [vmem:[#allocation3 + $0x90] sm:$0xff]
        %v5112 = vld [vmem:[#allocation3 + $0x98] sm:$0xff]
        %v5113 = vld [vmem:[#allocation3 + $0xa0] sm:$0xff]
        %v5114 = vld [vmem:[#allocation3 + $0xa8] sm:$0xff]
        %v5115 = vld [vmem:[#allocation3 + $0xb0] sm:$0xff]
        %v5116 = vld [vmem:[#allocation3 + $0xb8] sm:$0xff]
        %v5117 = vld [vmem:[#allocation3 + $0xc0] sm:$0xff]
        %v5118 = vld [vmem:[#allocation3 + $0xc8] sm:$0xff]
        %v5119 = vld [vmem:[#allocation3 + $0xd0] sm:$0xff]
        %v5120 = vld [vmem:[#allocation3 + $0xd8] sm:$0xff]
        %v5121 = vld [vmem:[#allocation3 + $0xe0] sm:$0xff]
        %v5122 = vld [vmem:[#allocation3 + $0xe8] sm:$0xff]
        %v5123 = vld [vmem:[#allocation3 + $0xf0] sm:$0xff]
        %v5124 = vld [vmem:[#allocation3 + $0xf8] sm:$0xff]
        %v5125 = vld [vmem:[#allocation3 + $0x100] sm:$0xff]
        %v5126 = vld [vmem:[#allocation3 + $0x108] sm:$0xff]
        %v5127 = vld [vmem:[#allocation3 + $0x110] sm:$0xff]
        %v5128 = vld [vmem:[#allocation3 + $0x118] sm:$0xff]
        %v5129 = vld [vmem:[#allocation3 + $0x120] sm:$0xff]
        %v5130 = vld [vmem:[#allocation3 + $0x128] sm:$0xff]
        %v5131 = vld [vmem:[#allocation3 + $0x130] sm:$0xff]
        %v5132 = vld [vmem:[#allocation3 + $0x138] sm:$0xff]
        %v5133 = vld [vmem:[#allocation3 + $0x140] sm:$0xff]
        %v5134 = vld [vmem:[#allocation3 + $0x148] sm:$0xff]
        %v5135 = vld [vmem:[#allocation3 + $0x150] sm:$0xff]
        %v5136 = vld [vmem:[#allocation3 + $0x158] sm:$0xff]
        %v5137 = vld [vmem:[#allocation3 + $0x160] sm:$0xff]
        %v5138 = vld [vmem:[#allocation3 + $0x168] sm:$0xff]
        %v5139 = vld [vmem:[#allocation3 + $0x170] sm:$0xff]
        %v5140 = vld [vmem:[#allocation3 + $0x178] sm:$0xff]
        %v5141 = vld [vmem:[#allocation3 + $0x180] sm:$0xff]
        %v5142 = vld [vmem:[#allocation3 + $0x188] sm:$0xff]
        %v5143 = vld [vmem:[#allocation3 + $0x190] sm:$0xff]
        %v5144 = vld [vmem:[#allocation3 + $0x198] sm:$0xff]
        %v5145 = vld [vmem:[#allocation3 + $0x1a0] sm:$0xff]
        %v5146 = vld [vmem:[#allocation3 + $0x1a8] sm:$0xff]
        %v5147 = vld [vmem:[#allocation3 + $0x1b0] sm:$0xff]
        %v5148 = vld [vmem:[#allocation3 + $0x1b8] sm:$0xff]
        %v5149 = vld [vmem:[#allocation3 + $0x1c0] sm:$0xff]
        %v5150 = vld [vmem:[#allocation3 + $0x1c8] sm:$0xff]
        %v5151 = vld [vmem:[#allocation3 + $0x1d0] sm:$0xff]
        %v5152 = vld [vmem:[#allocation3 + $0x1d8] sm:$0xff]
        %v5153 = vld [vmem:[#allocation3 + $0x1e0] sm:$0xff]
        %v5154 = vld [vmem:[#allocation3 + $0x1e8] sm:$0xff]
        %v5155 = vld [vmem:[#allocation3 + $0x1f0] sm:$0xff]
        %v5156 = vld [vmem:[#allocation3 + $0x1f8] sm:$0xff]
        %v5157 = vld [vmem:[#allocation3 + $0x200] sm:$0xff]
        %v5158 = vld [vmem:[#allocation3 + $0x208] sm:$0xff]
        %v5159 = vld [vmem:[#allocation3 + $0x210] sm:$0xff]
        %v5160 = vld [vmem:[#allocation3 + $0x218] sm:$0xff]
        %v5161 = vld [vmem:[#allocation3 + $0x220] sm:$0xff]
        %v5162 = vld [vmem:[#allocation3 + $0x228] sm:$0xff]
        %v5163 = vld [vmem:[#allocation3 + $0x230] sm:$0xff]
        %v5164 = vld [vmem:[#allocation3 + $0x238] sm:$0xff]
        %v5165 = vld [vmem:[#allocation3 + $0x240] sm:$0xff]
        %v5166 = vld [vmem:[#allocation3 + $0x248] sm:$0xff]
        %v5167 = vld [vmem:[#allocation3 + $0x250] sm:$0xff]
        %v5168 = vld [vmem:[#allocation3 + $0x258] sm:$0xff]
        %v5169 = vld [vmem:[#allocation3 + $0x260] sm:$0xff]
        %v5170 = vld [vmem:[#allocation3 + $0x268] sm:$0xff]
        %v5171 = vld [vmem:[#allocation3 + $0x270] sm:$0xff]
        %v5172 = vld [vmem:[#allocation3 + $0x278] sm:$0xff]
        %v5173 = vld [vmem:[#allocation3 + $0x280] sm:$0xff]
        %v5174 = vld [vmem:[#allocation3 + $0x288] sm:$0xff]
        %v5175 = vld [vmem:[#allocation3 + $0x290] sm:$0xff]
        %v5176 = vld [vmem:[#allocation3 + $0x298] sm:$0xff]
        %v5177 = vld [vmem:[#allocation3 + $0x2a0] sm:$0xff]
        %v5178 = vld [vmem:[#allocation3 + $0x2a8] sm:$0xff]
        %v5179 = vld [vmem:[#allocation3 + $0x2b0] sm:$0xff]
        %v5180 = vld [vmem:[#allocation3 + $0x2b8] sm:$0xff]
        %v5181 = vld [vmem:[#allocation3 + $0x2c0] sm:$0xff]
        %v5182 = vld [vmem:[#allocation3 + $0x2c8] sm:$0xff]
        %v5183 = vld [vmem:[#allocation3 + $0x2d0] sm:$0xff]
        %v5184 = vld [vmem:[#allocation3 + $0x2d8] sm:$0xff]
        %v5185 = vld [vmem:[#allocation3 + $0x2e0] sm:$0xff]
        %v5186 = vld [vmem:[#allocation3 + $0x2e8] sm:$0xff]
        %v5187 = vld [vmem:[#allocation3 + $0x2f0] sm:$0xff]
        %v5188 = vld [vmem:[#allocation3 + $0x2f8] sm:$0xff]
        %v5189 = vld [vmem:[#allocation3 + $0x300] sm:$0xff]
        %v5190 = vld [vmem:[#allocation3 + $0x308] sm:$0xff]
        %v5191 = vld [vmem:[#allocation3 + $0x310] sm:$0xff]
        %v5192 = vld [vmem:[#allocation3 + $0x318] sm:$0xff]
        %v5193 = vld [vmem:[#allocation3 + $0x320] sm:$0xff]
        %v5194 = vld [vmem:[#allocation3 + $0x328] sm:$0xff]
        %v5195 = vld [vmem:[#allocation3 + $0x330] sm:$0xff]
        %v5196 = vld [vmem:[#allocation3 + $0x338] sm:$0xff]
        %v5197 = vld [vmem:[#allocation3 + $0x340] sm:$0xff]
        %v5198 = vld [vmem:[#allocation3 + $0x348] sm:$0xff]
        %v5199 = vld [vmem:[#allocation3 + $0x350] sm:$0xff]
        %v5200 = vld [vmem:[#allocation3 + $0x358] sm:$0xff]
        %v5201 = vld [vmem:[#allocation3 + $0x360] sm:$0xff]
        %v5202 = vld [vmem:[#allocation3 + $0x368] sm:$0xff]
        %v5203 = vld [vmem:[#allocation3 + $0x370] sm:$0xff]
        %v5204 = vld [vmem:[#allocation3 + $0x378] sm:$0xff]
        %v5205 = vld [vmem:[#allocation3 + $0x380] sm:$0xff]
        %v5206 = vld [vmem:[#allocation3 + $0x388] sm:$0xff]
        %v5207 = vld [vmem:[#allocation3 + $0x390] sm:$0xff]
        %v5208 = vld [vmem:[#allocation3 + $0x398] sm:$0xff]
        %v5209 = vld [vmem:[#allocation3 + $0x3a0] sm:$0xff]
        %v5210 = vld [vmem:[#allocation3 + $0x3a8] sm:$0xff]
        %v5211 = vld [vmem:[#allocation3 + $0x3b0] sm:$0xff]
        %v5212 = vld [vmem:[#allocation3 + $0x3b8] sm:$0xff]
        %v5213 = vld [vmem:[#allocation3 + $0x3c0] sm:$0xff]
        %v5214 = vld [vmem:[#allocation3 + $0x3c8] sm:$0xff]
        %v5215 = vld [vmem:[#allocation3 + $0x3d0] sm:$0xff]
        %v5216 = vld [vmem:[#allocation3 + $0x3d8] sm:$0xff]
        %v5217 = vld [vmem:[#allocation3 + $0x3e0] sm:$0xff]
        %v5218 = vld [vmem:[#allocation3 + $0x3e8] sm:$0xff]
        %v5219 = vld [vmem:[#allocation3 + $0x3f0] sm:$0xff]
        %v5220 = vld [vmem:[#allocation3 + $0x3f8] sm:$0xff]
        %v5221 = vld [vmem:[#allocation3 + $0x400] sm:$0xff]
        %v5222 = vld [vmem:[#allocation3 + $0x408] sm:$0xff]
        %v5223 = vld [vmem:[#allocation3 + $0x410] sm:$0xff]
        %v5224 = vld [vmem:[#allocation3 + $0x418] sm:$0xff]
        %v5225 = vld [vmem:[#allocation3 + $0x420] sm:$0xff]
        %v5226 = vld [vmem:[#allocation3 + $0x428] sm:$0xff]
        %v5227 = vld [vmem:[#allocation3 + $0x430] sm:$0xff]
        %v5228 = vld [vmem:[#allocation3 + $0x438] sm:$0xff]
        %v5229 = vld [vmem:[#allocation3 + $0x440] sm:$0xff]
        %v5230 = vld [vmem:[#allocation3 + $0x448] sm:$0xff]
        %v5231 = vld [vmem:[#allocation3 + $0x450] sm:$0xff]
        %v5232 = vld [vmem:[#allocation3 + $0x458] sm:$0xff]
        %v5233 = vld [vmem:[#allocation3 + $0x460] sm:$0xff]
        %v5234 = vld [vmem:[#allocation3 + $0x468] sm:$0xff]
        %v5235 = vld [vmem:[#allocation3 + $0x470] sm:$0xff]
        %v5236 = vld [vmem:[#allocation3 + $0x478] sm:$0xff]
        %v5237 = vld [vmem:[#allocation3 + $0x480] sm:$0xff]
        %v5238 = vld [vmem:[#allocation3 + $0x488] sm:$0xff]
        %v5239 = vld [vmem:[#allocation3 + $0x490] sm:$0xff]
        %v5240 = vld [vmem:[#allocation3 + $0x498] sm:$0xff]
        %v5241 = vld [vmem:[#allocation3 + $0x4a0] sm:$0xff]
        %v5242 = vld [vmem:[#allocation3 + $0x4a8] sm:$0xff]
        %v5243 = vld [vmem:[#allocation3 + $0x4b0] sm:$0xff]
        %v5244 = vld [vmem:[#allocation3 + $0x4b8] sm:$0xff]
        %v5245 = vld [vmem:[#allocation3 + $0x4c0] sm:$0xff]
        %v5246 = vld [vmem:[#allocation3 + $0x4c8] sm:$0xff]
        %v5247 = vld [vmem:[#allocation3 + $0x4d0] sm:$0xff]
        %v5248 = vld [vmem:[#allocation3 + $0x4d8] sm:$0xff]
        %v5249 = vld [vmem:[#allocation3 + $0x4e0] sm:$0xff]
        %v5250 = vld [vmem:[#allocation3 + $0x4e8] sm:$0xff]
        %v5251 = vld [vmem:[#allocation3 + $0x4f0] sm:$0xff]
        %v5252 = vld [vmem:[#allocation3 + $0x4f8] sm:$0xff]
        %v5253 = vld [vmem:[#allocation3 + $0x500] sm:$0xff]
        %v5254 = vld [vmem:[#allocation3 + $0x508] sm:$0xff]
        %v5255 = vld [vmem:[#allocation3 + $0x510] sm:$0xff]
        %v5256 = vld [vmem:[#allocation3 + $0x518] sm:$0xff]
        %v5257 = vld [vmem:[#allocation3 + $0x520] sm:$0xff]
        %v5258 = vld [vmem:[#allocation3 + $0x528] sm:$0xff]
        %v5259 = vld [vmem:[#allocation3 + $0x530] sm:$0xff]
        %v5260 = vld [vmem:[#allocation3 + $0x538] sm:$0xff]
        %v5261 = vld [vmem:[#allocation3 + $0x540] sm:$0xff]
        %v5262 = vld [vmem:[#allocation3 + $0x548] sm:$0xff]
        %v5263 = vld [vmem:[#allocation3 + $0x550] sm:$0xff]
        %v5264 = vld [vmem:[#allocation3 + $0x558] sm:$0xff]
        %v5265 = vld [vmem:[#allocation3 + $0x560] sm:$0xff]
        %v5266 = vld [vmem:[#allocation3 + $0x568] sm:$0xff]
        %v5267 = vld [vmem:[#allocation3 + $0x570] sm:$0xff]
        %v5268 = vld [vmem:[#allocation3 + $0x578] sm:$0xff]
        %v5269 = vld [vmem:[#allocation3 + $0x580] sm:$0xff]
        %v5270 = vld [vmem:[#allocation3 + $0x588] sm:$0xff]
        %v5271 = vld [vmem:[#allocation3 + $0x590] sm:$0xff]
        %v5272 = vld [vmem:[#allocation3 + $0x598] sm:$0xff]
        %v5273 = vld [vmem:[#allocation3 + $0x5a0] sm:$0xff]
        %v5274 = vld [vmem:[#allocation3 + $0x5a8] sm:$0xff]
        %v5275 = vld [vmem:[#allocation3 + $0x5b0] sm:$0xff]
        %v5276 = vld [vmem:[#allocation3 + $0x5b8] sm:$0xff]
        %v5277 = vld [vmem:[#allocation3 + $0x5c0] sm:$0xff]
        %v5278 = vld [vmem:[#allocation3 + $0x5c8] sm:$0xff]
        %v5279 = vld [vmem:[#allocation3 + $0x5d0] sm:$0xff]
        %v5280 = vld [vmem:[#allocation3 + $0x5d8] sm:$0xff]
        %v5281 = vld [vmem:[#allocation3 + $0x5e0] sm:$0xff]
        %v5282 = vld [vmem:[#allocation3 + $0x5e8] sm:$0xff]
        %v5283 = vld [vmem:[#allocation3 + $0x5f0] sm:$0xff]
        %v5284 = vld [vmem:[#allocation3 + $0x5f8] sm:$0xff]
        %v5285 = vld [vmem:[#allocation3 + $0x600] sm:$0xff]
        %v5286 = vld [vmem:[#allocation3 + $0x608] sm:$0xff]
        %v5287 = vld [vmem:[#allocation3 + $0x610] sm:$0xff]
        %v5288 = vld [vmem:[#allocation3 + $0x618] sm:$0xff]
        %v5289 = vld [vmem:[#allocation3 + $0x620] sm:$0xff]
        %v5290 = vld [vmem:[#allocation3 + $0x628] sm:$0xff]
        %v5291 = vld [vmem:[#allocation3 + $0x630] sm:$0xff]
        %v5292 = vld [vmem:[#allocation3 + $0x638] sm:$0xff]
        %v5293 = vld [vmem:[#allocation3 + $0x640] sm:$0xff]
        %v5294 = vld [vmem:[#allocation3 + $0x648] sm:$0xff]
        %v5295 = vld [vmem:[#allocation3 + $0x650] sm:$0xff]
        %v5296 = vld [vmem:[#allocation3 + $0x658] sm:$0xff]
        %v5297 = vld [vmem:[#allocation3 + $0x660] sm:$0xff]
        %v5298 = vld [vmem:[#allocation3 + $0x668] sm:$0xff]
        %v5299 = vld [vmem:[#allocation3 + $0x670] sm:$0xff]
        %v5300 = vld [vmem:[#allocation3 + $0x678] sm:$0xff]
        %v5301 = vld [vmem:[#allocation3 + $0x680] sm:$0xff]
        %v5302 = vld [vmem:[#allocation3 + $0x688] sm:$0xff]
        %v5303 = vld [vmem:[#allocation3 + $0x690] sm:$0xff]
        %v5304 = vld [vmem:[#allocation3 + $0x698] sm:$0xff]
        %v5305 = vld [vmem:[#allocation3 + $0x6a0] sm:$0xff]
        %v5306 = vld [vmem:[#allocation3 + $0x6a8] sm:$0xff]
        %v5307 = vld [vmem:[#allocation3 + $0x6b0] sm:$0xff]
        %v5308 = vld [vmem:[#allocation3 + $0x6b8] sm:$0xff]
        %v5309 = vld [vmem:[#allocation3 + $0x6c0] sm:$0xff]
        %v5310 = vld [vmem:[#allocation3 + $0x6c8] sm:$0xff]
        %v5311 = vld [vmem:[#allocation3 + $0x6d0] sm:$0xff]
        %v5312 = vld [vmem:[#allocation3 + $0x6d8] sm:$0xff]
        %v5313 = vld [vmem:[#allocation3 + $0x6e0] sm:$0xff]
        %v5314 = vld [vmem:[#allocation3 + $0x6e8] sm:$0xff]
        %v5315 = vld [vmem:[#allocation3 + $0x6f0] sm:$0xff]
        %v5316 = vld [vmem:[#allocation3 + $0x6f8] sm:$0xff]
        %v5317 = vld [vmem:[#allocation3 + $0x700] sm:$0xff]
        %v5318 = vld [vmem:[#allocation3 + $0x708] sm:$0xff]
        %v5319 = vld [vmem:[#allocation3 + $0x710] sm:$0xff]
        %v5320 = vld [vmem:[#allocation3 + $0x718] sm:$0xff]
        %v5321 = vld [vmem:[#allocation3 + $0x720] sm:$0xff]
        %v5322 = vld [vmem:[#allocation3 + $0x728] sm:$0xff]
        %v5323 = vld [vmem:[#allocation3 + $0x730] sm:$0xff]
        %v5324 = vld [vmem:[#allocation3 + $0x738] sm:$0xff]
        %v5325 = vld [vmem:[#allocation3 + $0x740] sm:$0xff]
        %v5326 = vld [vmem:[#allocation3 + $0x748] sm:$0xff]
        %v5327 = vld [vmem:[#allocation3 + $0x750] sm:$0xff]
        %v5328 = vld [vmem:[#allocation3 + $0x758] sm:$0xff]
        %v5329 = vld [vmem:[#allocation3 + $0x760] sm:$0xff]
        %v5330 = vld [vmem:[#allocation3 + $0x768] sm:$0xff]
        %v5331 = vld [vmem:[#allocation3 + $0x770] sm:$0xff]
        %v5332 = vld [vmem:[#allocation3 + $0x778] sm:$0xff]
        %v5333 = vld [vmem:[#allocation3 + $0x780] sm:$0xff]
        %v5334 = vld [vmem:[#allocation3 + $0x788] sm:$0xff]
        %v5335 = vld [vmem:[#allocation3 + $0x790] sm:$0xff]
        %v5336 = vld [vmem:[#allocation3 + $0x798] sm:$0xff]
        %v5337 = vld [vmem:[#allocation3 + $0x7a0] sm:$0xff]
        %v5338 = vld [vmem:[#allocation3 + $0x7a8] sm:$0xff]
        %v5339 = vld [vmem:[#allocation3 + $0x7b0] sm:$0xff]
        %v5340 = vld [vmem:[#allocation3 + $0x7b8] sm:$0xff]
        %v5341 = vld [vmem:[#allocation3 + $0x7c0] sm:$0xff]
        %v5342 = vld [vmem:[#allocation3 + $0x7c8] sm:$0xff]
        %v5343 = vld [vmem:[#allocation3 + $0x7d0] sm:$0xff]
        %v5344 = vld [vmem:[#allocation3 + $0x7d8] sm:$0xff]
        %v5345 = vld [vmem:[#allocation3 + $0x7e0] sm:$0xff]
        %v5346 = vld [vmem:[#allocation3 + $0x7e8] sm:$0xff]
        %v5347 = vld [vmem:[#allocation3 + $0x7f0] sm:$0xff]
        %v5348 = vld [vmem:[#allocation3 + $0x7f8] sm:$0xff]
        %s5349 = scalar_lea.vmem [#allocation7], 128
        %v5350 = vld [vmem:[%s5349] sm:$0xff]
        %v5351 = vld [vmem:[%s5349 + $0x8] sm:$0xff]
        %v5352 = vld [vmem:[%s5349 + $0x10] sm:$0xff]
        %v5353 = vld [vmem:[%s5349 + $0x18] sm:$0xff]
        %v5354 = vld [vmem:[%s5349 + $0x20] sm:$0xff]
        %v5355 = vld [vmem:[%s5349 + $0x28] sm:$0xff]
        %v5356 = vld [vmem:[%s5349 + $0x30] sm:$0xff]
        %v5357 = vld [vmem:[%s5349 + $0x38] sm:$0xff]
        %v5358 = vld [vmem:[%s5349 + $0x40] sm:$0xff]
        %v5359 = vld [vmem:[%s5349 + $0x48] sm:$0xff]
        %v5360 = vld [vmem:[%s5349 + $0x50] sm:$0xff]
        %v5361 = vld [vmem:[%s5349 + $0x58] sm:$0xff]
        %v5362 = vld [vmem:[%s5349 + $0x60] sm:$0xff]
        %v5363 = vld [vmem:[%s5349 + $0x68] sm:$0xff]
        %v5364 = vld [vmem:[%s5349 + $0x70] sm:$0xff]
        %v5365 = vld [vmem:[%s5349 + $0x78] sm:$0xff]
        %s5366 = scalar_lea.vmem [#allocation9], 1
        %v5367 = vld [vmem:[%s5366] sm:$0x1]
        %v5369 = vlaneseq
        %v5370 = vshrl.u32 %v5369, 7
        %v5371 = vsub.s32 0, %v5370
        %v5372 = vrot.slane %v5367, %v5371
        %5374 = vmatprep.subr.mxu0 0.0
        %5375 = vmatpush1.msra.mxu0 %v5350
        %5376 = vmatprep.subr.mxu0 0.0
        %5377 = vmatpush1.msra.mxu0 %v5351
        %5378 = vmatprep.subr.mxu0 0.0
        %5379 = vmatpush1.msra.mxu0 %v5352
        %5380 = vmatprep.subr.mxu0 0.0
        %5381 = vmatpush1.msra.mxu0 %v5353
        %5382 = vmatprep.subr.mxu0 0.0
        %5383 = vmatpush1.msra.mxu0 %v5354
        %5384 = vmatprep.subr.mxu0 0.0
        %5385 = vmatpush1.msra.mxu0 %v5355
        %5386 = vmatprep.subr.mxu0 0.0
        %5387 = vmatpush1.msra.mxu0 %v5356
        %5388 = vmatprep.subr.mxu0 0.0
        %5389 = vmatpush1.msra.mxu0 %v5357
        %5390 = vmatprep.subr.mxu0 0.0
        %5391 = vmatpush1.msra.mxu0 %v5358
        %5392 = vmatprep.subr.mxu0 0.0
        %5393 = vmatpush1.msra.mxu0 %v5359
        %5394 = vmatprep.subr.mxu0 0.0
        %5395 = vmatpush1.msra.mxu0 %v5360
        %5396 = vmatprep.subr.mxu0 0.0
        %5397 = vmatpush1.msra.mxu0 %v5361
        %5398 = vmatprep.subr.mxu0 0.0
        %5399 = vmatpush1.msra.mxu0 %v5362
        %5400 = vmatprep.subr.mxu0 0.0
        %5401 = vmatpush1.msra.mxu0 %v5363
        %5402 = vmatprep.subr.mxu0 0.0
        %5403 = vmatpush1.msra.mxu0 %v5364
        %5404 = vmatprep.subr.mxu0 0.0
        %5405 = vmatpush1.msra.mxu0 %v5365
        %5406 = vmatprep.subr.mxu0 0.0
        %5407 = vmatpush1.msra.mxu0 0.0
        %5408 = vmatprep.subr.mxu0 0.0
        %5409 = vmatpush1.msra.mxu0 0.0
        %5410 = vmatprep.subr.mxu0 0.0
        %5411 = vmatpush1.msra.mxu0 0.0
        %5412 = vmatprep.subr.mxu0 0.0
        %5413 = vmatpush1.msra.mxu0 0.0
        %5414 = vmatprep.subr.mxu0 0.0
        %5415 = vmatpush1.msra.mxu0 0.0
        %5416 = vmatprep.subr.mxu0 0.0
        %5417 = vmatpush1.msra.mxu0 0.0
        %5418 = vmatprep.subr.mxu0 0.0
        %5419 = vmatpush1.msra.mxu0 0.0
        %5420 = vmatprep.subr.mxu0 0.0
        %5421 = vmatpush1.msra.mxu0 0.0
        %5422 = vmatprep.subr.mxu0 0.0
        %5423 = vmatpush1.msra.mxu0 0.0
        %5424 = vmatprep.subr.mxu0 0.0
        %5425 = vmatpush1.msra.mxu0 0.0
        %5426 = vmatprep.subr.mxu0 0.0
        %5427 = vmatpush1.msra.mxu0 0.0
        %5428 = vmatprep.subr.mxu0 0.0
        %5429 = vmatpush1.msra.mxu0 0.0
        %5430 = vmatprep.subr.mxu0 0.0
        %5431 = vmatpush1.msra.mxu0 0.0
        %5432 = vmatprep.subr.mxu0 0.0
        %5433 = vmatpush1.msra.mxu0 0.0
        %5434 = vmatprep.subr.mxu0 0.0
        %5435 = vmatpush1.msra.mxu0 0.0
        %5436 = vmatprep.subr.mxu0 0.0
        %5437 = vmatpush1.msra.mxu0 0.0
        %5438 = vmatprep.mubr.f32.mxu0 0.0
        %5439 = vmatmul.mubr.f32.gmra.mrb[0].mxu0 %v5093
        %v5440 = vpop.f32.mrb[0].mxu0
        %v5441 = vadd.f32 %v5372, %v5440
        %v5442 = vpop.f32.mrb[0].mxu0
        %5443 = vmatprep.mubr.f32.mxu0 0.0
        %5444 = vmatmul.mubr.f32.gmra.mrb[0].mxu0 %v5094
        %v5445 = vpop.f32.mrb[0].mxu0
        %v5446 = vadd.f32 %v5372, %v5445
        %v5447 = vpop.f32.mrb[0].mxu0
        %5448 = vmatprep.mubr.f32.mxu0 0.0
        %5449 = vmatmul.mubr.f32.gmra.mrb[0].mxu0 %v5095
        %v5450 = vpop.f32.mrb[0].mxu0
        %v5451 = vadd.f32 %v5372, %v5450
        %v5452 = vpop.f32.mrb[0].mxu0
        %5453 = vmatprep.mubr.f32.mxu0 0.0
        %5454 = vmatmul.mubr.f32.gmra.mrb[0].mxu0 %v5096
        %v5455 = vpop.f32.mrb[0].mxu0
        %v5456 = vadd.f32 %v5372, %v5455
        %v5457 = vpop.f32.mrb[0].mxu0
        %5458 = vmatprep.mubr.f32.mxu0 0.0
        %5459 = vmatmul.mubr.f32.gmra.mrb[0].mxu0 %v5097
        %v5460 = vpop.f32.mrb[0].mxu0
        %v5461 = vadd.f32 %v5372, %v5460
        %v5462 = vpop.f32.mrb[0].mxu0
        %5463 = vmatprep.mubr.f32.mxu0 0.0
        %5464 = vmatmul.mubr.f32.gmra.mrb[0].mxu0 %v5098
        %v5465 = vpop.f32.mrb[0].mxu0
        %v5466 = vadd.f32 %v5372, %v5465
        %v5467 = vpop.f32.mrb[0].mxu0
        %5468 = vmatprep.mubr.f32.mxu0 0.0
        %5469 = vmatmul.mubr.f32.gmra.mrb[0].mxu0 %v5099
        %v5470 = vpop.f32.mrb[0].mxu0
        %v5471 = vadd.f32 %v5372, %v5470
        %v5472 = vpop.f32.mrb[0].mxu0
        %5473 = vmatprep.mubr.f32.mxu0 0.0
        %5474 = vmatmul.mubr.f32.gmra.mrb[0].mxu0 %v5100
        %v5475 = vpop.f32.mrb[0].mxu0
        %v5476 = vadd.f32 %v5372, %v5475
        %v5477 = vpop.f32.mrb[0].mxu0
        %5478 = vmatprep.mubr.f32.mxu0 0.0
        %5479 = vmatmul.mubr.f32.gmra.mrb[0].mxu0 %v5101
        %v5480 = vpop.f32.mrb[0].mxu0
        %v5481 = vadd.f32 %v5372, %v5480
        %v5482 = vpop.f32.mrb[0].mxu0
        %5483 = vmatprep.mubr.f32.mxu0 0.0
        %5484 = vmatmul.mubr.f32.gmra.mrb[0].mxu0 %v5102
        %v5485 = vpop.f32.mrb[0].mxu0
        %v5486 = vadd.f32 %v5372, %v5485
        %v5487 = vpop.f32.mrb[0].mxu0
        %5488 = vmatprep.mubr.f32.mxu0 0.0
        %5489 = vmatmul.mubr.f32.gmra.mrb[0].mxu0 %v5103
        %v5490 = vpop.f32.mrb[0].mxu0
        %v5491 = vadd.f32 %v5372, %v5490
        %v5492 = vpop.f32.mrb[0].mxu0
        %5493 = vmatprep.mubr.f32.mxu0 0.0
        %5494 = vmatmul.mubr.f32.gmra.mrb[0].mxu0 %v5104
        %v5495 = vpop.f32.mrb[0].mxu0
        %v5496 = vadd.f32 %v5372, %v5495
        %v5497 = vpop.f32.mrb[0].mxu0
        %5498 = vmatprep.mubr.f32.mxu0 0.0
        %5499 = vmatmul.mubr.f32.gmra.mrb[0].mxu0 %v5105
        %v5500 = vpop.f32.mrb[0].mxu0
        %v5501 = vadd.f32 %v5372, %v5500
        %v5502 = vpop.f32.mrb[0].mxu0
        %5503 = vmatprep.mubr.f32.mxu0 0.0
        %5504 = vmatmul.mubr.f32.gmra.mrb[0].mxu0 %v5106
        %v5505 = vpop.f32.mrb[0].mxu0
        %v5506 = vadd.f32 %v5372, %v5505
        %v5507 = vpop.f32.mrb[0].mxu0
        %5508 = vmatprep.mubr.f32.mxu0 0.0
        %5509 = vmatmul.mubr.f32.gmra.mrb[0].mxu0 %v5107
        %v5510 = vpop.f32.mrb[0].mxu0
        %v5511 = vadd.f32 %v5372, %v5510
        %v5512 = vpop.f32.mrb[0].mxu0
        %5513 = vmatprep.mubr.f32.mxu0 0.0
        %5514 = vmatmul.mubr.f32.gmra.mrb[0].mxu0 %v5108
        %v5515 = vpop.f32.mrb[0].mxu0
        %v5516 = vadd.f32 %v5372, %v5515
        %v5517 = vpop.f32.mrb[0].mxu0
        %5518 = vmatprep.mubr.f32.mxu0 0.0
        %5519 = vmatmul.mubr.f32.gmra.mrb[0].mxu0 %v5109
        %v5520 = vpop.f32.mrb[0].mxu0
        %v5521 = vadd.f32 %v5372, %v5520
        %v5522 = vpop.f32.mrb[0].mxu0
        %5523 = vmatprep.mubr.f32.mxu0 0.0
        %5524 = vmatmul.mubr.f32.gmra.mrb[0].mxu0 %v5110
        %v5525 = vpop.f32.mrb[0].mxu0
        %v5526 = vadd.f32 %v5372, %v5525
        %v5527 = vpop.f32.mrb[0].mxu0
        %5528 = vmatprep.mubr.f32.mxu0 0.0
        %5529 = vmatmul.mubr.f32.gmra.mrb[0].mxu0 %v5111
        %v5530 = vpop.f32.mrb[0].mxu0
        %v5531 = vadd.f32 %v5372, %v5530
        %v5532 = vpop.f32.mrb[0].mxu0
        %5533 = vmatprep.mubr.f32.mxu0 0.0
        %5534 = vmatmul.mubr.f32.gmra.mrb[0].mxu0 %v5112
        %v5535 = vpop.f32.mrb[0].mxu0
        %v5536 = vadd.f32 %v5372, %v5535
        %v5537 = vpop.f32.mrb[0].mxu0
        %5538 = vmatprep.mubr.f32.mxu0 0.0
        %5539 = vmatmul.mubr.f32.gmra.mrb[0].mxu0 %v5113
        %v5540 = vpop.f32.mrb[0].mxu0
        %v5541 = vadd.f32 %v5372, %v5540
        %v5542 = vpop.f32.mrb[0].mxu0
        %5543 = vmatprep.mubr.f32.mxu0 0.0
        %5544 = vmatmul.mubr.f32.gmra.mrb[0].mxu0 %v5114
        %v5545 = vpop.f32.mrb[0].mxu0
        %v5546 = vadd.f32 %v5372, %v5545
        %v5547 = vpop.f32.mrb[0].mxu0
        %5548 = vmatprep.mubr.f32.mxu0 0.0
        %5549 = vmatmul.mubr.f32.gmra.mrb[0].mxu0 %v5115
        %v5550 = vpop.f32.mrb[0].mxu0
        %v5551 = vadd.f32 %v5372, %v5550
        %v5552 = vpop.f32.mrb[0].mxu0
        %5553 = vmatprep.mubr.f32.mxu0 0.0
        %5554 = vmatmul.mubr.f32.gmra.mrb[0].mxu0 %v5116
        %v5555 = vpop.f32.mrb[0].mxu0
        %v5556 = vadd.f32 %v5372, %v5555
        %v5557 = vpop.f32.mrb[0].mxu0
        %5558 = vmatprep.mubr.f32.mxu0 0.0
        %5559 = vmatmul.mubr.f32.gmra.mrb[0].mxu0 %v5117
        %v5560 = vpop.f32.mrb[0].mxu0
        %v5561 = vadd.f32 %v5372, %v5560
        %v5562 = vpop.f32.mrb[0].mxu0
        %5563 = vmatprep.mubr.f32.mxu0 0.0
        %5564 = vmatmul.mubr.f32.gmra.mrb[0].mxu0 %v5118
        %v5565 = vpop.f32.mrb[0].mxu0
        %v5566 = vadd.f32 %v5372, %v5565
        %v5567 = vpop.f32.mrb[0].mxu0
        %5568 = vmatprep.mubr.f32.mxu0 0.0
        %5569 = vmatmul.mubr.f32.gmra.mrb[0].mxu0 %v5119
        %v5570 = vpop.f32.mrb[0].mxu0
        %v5571 = vadd.f32 %v5372, %v5570
        %v5572 = vpop.f32.mrb[0].mxu0
        %5573 = vmatprep.mubr.f32.mxu0 0.0
        %5574 = vmatmul.mubr.f32.gmra.mrb[0].mxu0 %v5120
        %v5575 = vpop.f32.mrb[0].mxu0
        %v5576 = vadd.f32 %v5372, %v5575
        %v5577 = vpop.f32.mrb[0].mxu0
        %5578 = vmatprep.mubr.f32.mxu0 0.0
        %5579 = vmatmul.mubr.f32.gmra.mrb[0].mxu0 %v5121
        %v5580 = vpop.f32.mrb[0].mxu0
        %v5581 = vadd.f32 %v5372, %v5580
        %v5582 = vpop.f32.mrb[0].mxu0
        %5583 = vmatprep.mubr.f32.mxu0 0.0
        %5584 = vmatmul.mubr.f32.gmra.mrb[0].mxu0 %v5122
        %v5585 = vpop.f32.mrb[0].mxu0
        %v5586 = vadd.f32 %v5372, %v5585
        %v5587 = vpop.f32.mrb[0].mxu0
        %5588 = vmatprep.mubr.f32.mxu0 0.0
        %5589 = vmatmul.mubr.f32.gmra.mrb[0].mxu0 %v5123
        %v5590 = vpop.f32.mrb[0].mxu0
        %v5591 = vadd.f32 %v5372, %v5590
        %v5592 = vpop.f32.mrb[0].mxu0
        %5593 = vmatprep.mubr.f32.mxu0 0.0
        %5594 = vmatmul.mubr.f32.gmra.mrb[0].mxu0 %v5124
        %v5595 = vpop.f32.mrb[0].mxu0
        %v5596 = vadd.f32 %v5372, %v5595
        %v5597 = vpop.f32.mrb[0].mxu0
        %5598 = vmatprep.mubr.f32.mxu0 0.0
        %5599 = vmatmul.mubr.f32.gmra.mrb[0].mxu0 %v5125
        %v5600 = vpop.f32.mrb[0].mxu0
        %v5601 = vadd.f32 %v5372, %v5600
        %v5602 = vpop.f32.mrb[0].mxu0
        %5603 = vmatprep.mubr.f32.mxu0 0.0
        %5604 = vmatmul.mubr.f32.gmra.mrb[0].mxu0 %v5126
        %v5605 = vpop.f32.mrb[0].mxu0
        %v5606 = vadd.f32 %v5372, %v5605
        %v5607 = vpop.f32.mrb[0].mxu0
        %5608 = vmatprep.mubr.f32.mxu0 0.0
        %5609 = vmatmul.mubr.f32.gmra.mrb[0].mxu0 %v5127
        %v5610 = vpop.f32.mrb[0].mxu0
        %v5611 = vadd.f32 %v5372, %v5610
        %v5612 = vpop.f32.mrb[0].mxu0
        %5613 = vmatprep.mubr.f32.mxu0 0.0
        %5614 = vmatmul.mubr.f32.gmra.mrb[0].mxu0 %v5128
        %v5615 = vpop.f32.mrb[0].mxu0
        %v5616 = vadd.f32 %v5372, %v5615
        %v5617 = vpop.f32.mrb[0].mxu0
        %5618 = vmatprep.mubr.f32.mxu0 0.0
        %5619 = vmatmul.mubr.f32.gmra.mrb[0].mxu0 %v5129
        %v5620 = vpop.f32.mrb[0].mxu0
        %v5621 = vadd.f32 %v5372, %v5620
        %v5622 = vpop.f32.mrb[0].mxu0
        %5623 = vmatprep.mubr.f32.mxu0 0.0
        %5624 = vmatmul.mubr.f32.gmra.mrb[0].mxu0 %v5130
        %v5625 = vpop.f32.mrb[0].mxu0
        %v5626 = vadd.f32 %v5372, %v5625
        %v5627 = vpop.f32.mrb[0].mxu0
        %5628 = vmatprep.mubr.f32.mxu0 0.0
        %5629 = vmatmul.mubr.f32.gmra.mrb[0].mxu0 %v5131
        %v5630 = vpop.f32.mrb[0].mxu0
        %v5631 = vadd.f32 %v5372, %v5630
        %v5632 = vpop.f32.mrb[0].mxu0
        %5633 = vmatprep.mubr.f32.mxu0 0.0
        %5634 = vmatmul.mubr.f32.gmra.mrb[0].mxu0 %v5132
        %v5635 = vpop.f32.mrb[0].mxu0
        %v5636 = vadd.f32 %v5372, %v5635
        %v5637 = vpop.f32.mrb[0].mxu0
        %5638 = vmatprep.mubr.f32.mxu0 0.0
        %5639 = vmatmul.mubr.f32.gmra.mrb[0].mxu0 %v5133
        %v5640 = vpop.f32.mrb[0].mxu0
        %v5641 = vadd.f32 %v5372, %v5640
        %v5642 = vpop.f32.mrb[0].mxu0
        %5643 = vmatprep.mubr.f32.mxu0 0.0
        %5644 = vmatmul.mubr.f32.gmra.mrb[0].mxu0 %v5134
        %v5645 = vpop.f32.mrb[0].mxu0
        %v5646 = vadd.f32 %v5372, %v5645
        %v5647 = vpop.f32.mrb[0].mxu0
        %5648 = vmatprep.mubr.f32.mxu0 0.0
        %5649 = vmatmul.mubr.f32.gmra.mrb[0].mxu0 %v5135
        %v5650 = vpop.f32.mrb[0].mxu0
        %v5651 = vadd.f32 %v5372, %v5650
        %v5652 = vpop.f32.mrb[0].mxu0
        %5653 = vmatprep.mubr.f32.mxu0 0.0
        %5654 = vmatmul.mubr.f32.gmra.mrb[0].mxu0 %v5136
        %v5655 = vpop.f32.mrb[0].mxu0
        %v5656 = vadd.f32 %v5372, %v5655
        %v5657 = vpop.f32.mrb[0].mxu0
        %5658 = vmatprep.mubr.f32.mxu0 0.0
        %5659 = vmatmul.mubr.f32.gmra.mrb[0].mxu0 %v5137
        %v5660 = vpop.f32.mrb[0].mxu0
        %v5661 = vadd.f32 %v5372, %v5660
        %v5662 = vpop.f32.mrb[0].mxu0
        %5663 = vmatprep.mubr.f32.mxu0 0.0
        %5664 = vmatmul.mubr.f32.gmra.mrb[0].mxu0 %v5138
        %v5665 = vpop.f32.mrb[0].mxu0
        %v5666 = vadd.f32 %v5372, %v5665
        %v5667 = vpop.f32.mrb[0].mxu0
        %5668 = vmatprep.mubr.f32.mxu0 0.0
        %5669 = vmatmul.mubr.f32.gmra.mrb[0].mxu0 %v5139
        %v5670 = vpop.f32.mrb[0].mxu0
        %v5671 = vadd.f32 %v5372, %v5670
        %v5672 = vpop.f32.mrb[0].mxu0
        %5673 = vmatprep.mubr.f32.mxu0 0.0
        %5674 = vmatmul.mubr.f32.gmra.mrb[0].mxu0 %v5140
        %v5675 = vpop.f32.mrb[0].mxu0
        %v5676 = vadd.f32 %v5372, %v5675
        %v5677 = vpop.f32.mrb[0].mxu0
        %5678 = vmatprep.mubr.f32.mxu0 0.0
        %5679 = vmatmul.mubr.f32.gmra.mrb[0].mxu0 %v5141
        %v5680 = vpop.f32.mrb[0].mxu0
        %v5681 = vadd.f32 %v5372, %v5680
        %v5682 = vpop.f32.mrb[0].mxu0
        %5683 = vmatprep.mubr.f32.mxu0 0.0
        %5684 = vmatmul.mubr.f32.gmra.mrb[0].mxu0 %v5142
        %v5685 = vpop.f32.mrb[0].mxu0
        %v5686 = vadd.f32 %v5372, %v5685
        %v5687 = vpop.f32.mrb[0].mxu0
        %5688 = vmatprep.mubr.f32.mxu0 0.0
        %5689 = vmatmul.mubr.f32.gmra.mrb[0].mxu0 %v5143
        %v5690 = vpop.f32.mrb[0].mxu0
        %v5691 = vadd.f32 %v5372, %v5690
        %v5692 = vpop.f32.mrb[0].mxu0
        %5693 = vmatprep.mubr.f32.mxu0 0.0
        %5694 = vmatmul.mubr.f32.gmra.mrb[0].mxu0 %v5144
        %v5695 = vpop.f32.mrb[0].mxu0
        %v5696 = vadd.f32 %v5372, %v5695
        %v5697 = vpop.f32.mrb[0].mxu0
        %5698 = vmatprep.mubr.f32.mxu0 0.0
        %5699 = vmatmul.mubr.f32.gmra.mrb[0].mxu0 %v5145
        %v5700 = vpop.f32.mrb[0].mxu0
        %v5701 = vadd.f32 %v5372, %v5700
        %v5702 = vpop.f32.mrb[0].mxu0
        %5703 = vmatprep.mubr.f32.mxu0 0.0
        %5704 = vmatmul.mubr.f32.gmra.mrb[0].mxu0 %v5146
        %v5705 = vpop.f32.mrb[0].mxu0
        %v5706 = vadd.f32 %v5372, %v5705
        %v5707 = vpop.f32.mrb[0].mxu0
        %5708 = vmatprep.mubr.f32.mxu0 0.0
        %5709 = vmatmul.mubr.f32.gmra.mrb[0].mxu0 %v5147
        %v5710 = vpop.f32.mrb[0].mxu0
        %v5711 = vadd.f32 %v5372, %v5710
        %v5712 = vpop.f32.mrb[0].mxu0
        %5713 = vmatprep.mubr.f32.mxu0 0.0
        %5714 = vmatmul.mubr.f32.gmra.mrb[0].mxu0 %v5148
        %v5715 = vpop.f32.mrb[0].mxu0
        %v5716 = vadd.f32 %v5372, %v5715
        %v5717 = vpop.f32.mrb[0].mxu0
        %5718 = vmatprep.mubr.f32.mxu0 0.0
        %5719 = vmatmul.mubr.f32.gmra.mrb[0].mxu0 %v5149
        %v5720 = vpop.f32.mrb[0].mxu0
        %v5721 = vadd.f32 %v5372, %v5720
        %v5722 = vpop.f32.mrb[0].mxu0
        %5723 = vmatprep.mubr.f32.mxu0 0.0
        %5724 = vmatmul.mubr.f32.gmra.mrb[0].mxu0 %v5150
        %v5725 = vpop.f32.mrb[0].mxu0
        %v5726 = vadd.f32 %v5372, %v5725
        %v5727 = vpop.f32.mrb[0].mxu0
        %5728 = vmatprep.mubr.f32.mxu0 0.0
        %5729 = vmatmul.mubr.f32.gmra.mrb[0].mxu0 %v5151
        %v5730 = vpop.f32.mrb[0].mxu0
        %v5731 = vadd.f32 %v5372, %v5730
        %v5732 = vpop.f32.mrb[0].mxu0
        %5733 = vmatprep.mubr.f32.mxu0 0.0
        %5734 = vmatmul.mubr.f32.gmra.mrb[0].mxu0 %v5152
        %v5735 = vpop.f32.mrb[0].mxu0
        %v5736 = vadd.f32 %v5372, %v5735
        %v5737 = vpop.f32.mrb[0].mxu0
        %5738 = vmatprep.mubr.f32.mxu0 0.0
        %5739 = vmatmul.mubr.f32.gmra.mrb[0].mxu0 %v5153
        %v5740 = vpop.f32.mrb[0].mxu0
        %v5741 = vadd.f32 %v5372, %v5740
        %v5742 = vpop.f32.mrb[0].mxu0
        %5743 = vmatprep.mubr.f32.mxu0 0.0
        %5744 = vmatmul.mubr.f32.gmra.mrb[0].mxu0 %v5154
        %v5745 = vpop.f32.mrb[0].mxu0
        %v5746 = vadd.f32 %v5372, %v5745
        %v5747 = vpop.f32.mrb[0].mxu0
        %5748 = vmatprep.mubr.f32.mxu0 0.0
        %5749 = vmatmul.mubr.f32.gmra.mrb[0].mxu0 %v5155
        %v5750 = vpop.f32.mrb[0].mxu0
        %v5751 = vadd.f32 %v5372, %v5750
        %v5752 = vpop.f32.mrb[0].mxu0
        %5753 = vmatprep.mubr.f32.mxu0 0.0
        %5754 = vmatmul.mubr.f32.gmra.mrb[0].mxu0 %v5156
        %v5755 = vpop.f32.mrb[0].mxu0
        %v5756 = vadd.f32 %v5372, %v5755
        %v5757 = vpop.f32.mrb[0].mxu0
        %5758 = vmatprep.mubr.f32.mxu0 0.0
        %5759 = vmatmul.mubr.f32.gmra.mrb[0].mxu0 %v5157
        %v5760 = vpop.f32.mrb[0].mxu0
        %v5761 = vadd.f32 %v5372, %v5760
        %v5762 = vpop.f32.mrb[0].mxu0
        %5763 = vmatprep.mubr.f32.mxu0 0.0
        %5764 = vmatmul.mubr.f32.gmra.mrb[0].mxu0 %v5158
        %v5765 = vpop.f32.mrb[0].mxu0
        %v5766 = vadd.f32 %v5372, %v5765
        %v5767 = vpop.f32.mrb[0].mxu0
        %5768 = vmatprep.mubr.f32.mxu0 0.0
        %5769 = vmatmul.mubr.f32.gmra.mrb[0].mxu0 %v5159
        %v5770 = vpop.f32.mrb[0].mxu0
        %v5771 = vadd.f32 %v5372, %v5770
        %v5772 = vpop.f32.mrb[0].mxu0
        %5773 = vmatprep.mubr.f32.mxu0 0.0
        %5774 = vmatmul.mubr.f32.gmra.mrb[0].mxu0 %v5160
        %v5775 = vpop.f32.mrb[0].mxu0
        %v5776 = vadd.f32 %v5372, %v5775
        %v5777 = vpop.f32.mrb[0].mxu0
        %5778 = vmatprep.mubr.f32.mxu0 0.0
        %5779 = vmatmul.mubr.f32.gmra.mrb[0].mxu0 %v5161
        %v5780 = vpop.f32.mrb[0].mxu0
        %v5781 = vadd.f32 %v5372, %v5780
        %v5782 = vpop.f32.mrb[0].mxu0
        %5783 = vmatprep.mubr.f32.mxu0 0.0
        %5784 = vmatmul.mubr.f32.gmra.mrb[0].mxu0 %v5162
        %v5785 = vpop.f32.mrb[0].mxu0
        %v5786 = vadd.f32 %v5372, %v5785
        %v5787 = vpop.f32.mrb[0].mxu0
        %5788 = vmatprep.mubr.f32.mxu0 0.0
        %5789 = vmatmul.mubr.f32.gmra.mrb[0].mxu0 %v5163
        %v5790 = vpop.f32.mrb[0].mxu0
        %v5791 = vadd.f32 %v5372, %v5790
        %v5792 = vpop.f32.mrb[0].mxu0
        %5793 = vmatprep.mubr.f32.mxu0 0.0
        %5794 = vmatmul.mubr.f32.gmra.mrb[0].mxu0 %v5164
        %v5795 = vpop.f32.mrb[0].mxu0
        %v5796 = vadd.f32 %v5372, %v5795
        %v5797 = vpop.f32.mrb[0].mxu0
        %5798 = vmatprep.mubr.f32.mxu0 0.0
        %5799 = vmatmul.mubr.f32.gmra.mrb[0].mxu0 %v5165
        %v5800 = vpop.f32.mrb[0].mxu0
        %v5801 = vadd.f32 %v5372, %v5800
        %v5802 = vpop.f32.mrb[0].mxu0
        %5803 = vmatprep.mubr.f32.mxu0 0.0
        %5804 = vmatmul.mubr.f32.gmra.mrb[0].mxu0 %v5166
        %v5805 = vpop.f32.mrb[0].mxu0
        %v5806 = vadd.f32 %v5372, %v5805
        %v5807 = vpop.f32.mrb[0].mxu0
        %5808 = vmatprep.mubr.f32.mxu0 0.0
        %5809 = vmatmul.mubr.f32.gmra.mrb[0].mxu0 %v5167
        %v5810 = vpop.f32.mrb[0].mxu0
        %v5811 = vadd.f32 %v5372, %v5810
        %v5812 = vpop.f32.mrb[0].mxu0
        %5813 = vmatprep.mubr.f32.mxu0 0.0
        %5814 = vmatmul.mubr.f32.gmra.mrb[0].mxu0 %v5168
        %v5815 = vpop.f32.mrb[0].mxu0
        %v5816 = vadd.f32 %v5372, %v5815
        %v5817 = vpop.f32.mrb[0].mxu0
        %5818 = vmatprep.mubr.f32.mxu0 0.0
        %5819 = vmatmul.mubr.f32.gmra.mrb[0].mxu0 %v5169
        %v5820 = vpop.f32.mrb[0].mxu0
        %v5821 = vadd.f32 %v5372, %v5820
        %v5822 = vpop.f32.mrb[0].mxu0
        %5823 = vmatprep.mubr.f32.mxu0 0.0
        %5824 = vmatmul.mubr.f32.gmra.mrb[0].mxu0 %v5170
        %v5825 = vpop.f32.mrb[0].mxu0
        %v5826 = vadd.f32 %v5372, %v5825
        %v5827 = vpop.f32.mrb[0].mxu0
        %5828 = vmatprep.mubr.f32.mxu0 0.0
        %5829 = vmatmul.mubr.f32.gmra.mrb[0].mxu0 %v5171
        %v5830 = vpop.f32.mrb[0].mxu0
        %v5831 = vadd.f32 %v5372, %v5830
        %v5832 = vpop.f32.mrb[0].mxu0
        %5833 = vmatprep.mubr.f32.mxu0 0.0
        %5834 = vmatmul.mubr.f32.gmra.mrb[0].mxu0 %v5172
        %v5835 = vpop.f32.mrb[0].mxu0
        %v5836 = vadd.f32 %v5372, %v5835
        %v5837 = vpop.f32.mrb[0].mxu0
        %5838 = vmatprep.mubr.f32.mxu0 0.0
        %5839 = vmatmul.mubr.f32.gmra.mrb[0].mxu0 %v5173
        %v5840 = vpop.f32.mrb[0].mxu0
        %v5841 = vadd.f32 %v5372, %v5840
        %v5842 = vpop.f32.mrb[0].mxu0
        %5843 = vmatprep.mubr.f32.mxu0 0.0
        %5844 = vmatmul.mubr.f32.gmra.mrb[0].mxu0 %v5174
        %v5845 = vpop.f32.mrb[0].mxu0
        %v5846 = vadd.f32 %v5372, %v5845
        %v5847 = vpop.f32.mrb[0].mxu0
        %5848 = vmatprep.mubr.f32.mxu0 0.0
        %5849 = vmatmul.mubr.f32.gmra.mrb[0].mxu0 %v5175
        %v5850 = vpop.f32.mrb[0].mxu0
        %v5851 = vadd.f32 %v5372, %v5850
        %v5852 = vpop.f32.mrb[0].mxu0
        %5853 = vmatprep.mubr.f32.mxu0 0.0
        %5854 = vmatmul.mubr.f32.gmra.mrb[0].mxu0 %v5176
        %v5855 = vpop.f32.mrb[0].mxu0
        %v5856 = vadd.f32 %v5372, %v5855
        %v5857 = vpop.f32.mrb[0].mxu0
        %5858 = vmatprep.mubr.f32.mxu0 0.0
        %5859 = vmatmul.mubr.f32.gmra.mrb[0].mxu0 %v5177
        %v5860 = vpop.f32.mrb[0].mxu0
        %v5861 = vadd.f32 %v5372, %v5860
        %v5862 = vpop.f32.mrb[0].mxu0
        %5863 = vmatprep.mubr.f32.mxu0 0.0
        %5864 = vmatmul.mubr.f32.gmra.mrb[0].mxu0 %v5178
        %v5865 = vpop.f32.mrb[0].mxu0
        %v5866 = vadd.f32 %v5372, %v5865
        %v5867 = vpop.f32.mrb[0].mxu0
        %5868 = vmatprep.mubr.f32.mxu0 0.0
        %5869 = vmatmul.mubr.f32.gmra.mrb[0].mxu0 %v5179
        %v5870 = vpop.f32.mrb[0].mxu0
        %v5871 = vadd.f32 %v5372, %v5870
        %v5872 = vpop.f32.mrb[0].mxu0
        %5873 = vmatprep.mubr.f32.mxu0 0.0
        %5874 = vmatmul.mubr.f32.gmra.mrb[0].mxu0 %v5180
        %v5875 = vpop.f32.mrb[0].mxu0
        %v5876 = vadd.f32 %v5372, %v5875
        %v5877 = vpop.f32.mrb[0].mxu0
        %5878 = vmatprep.mubr.f32.mxu0 0.0
        %5879 = vmatmul.mubr.f32.gmra.mrb[0].mxu0 %v5181
        %v5880 = vpop.f32.mrb[0].mxu0
        %v5881 = vadd.f32 %v5372, %v5880
        %v5882 = vpop.f32.mrb[0].mxu0
        %5883 = vmatprep.mubr.f32.mxu0 0.0
        %5884 = vmatmul.mubr.f32.gmra.mrb[0].mxu0 %v5182
        %v5885 = vpop.f32.mrb[0].mxu0
        %v5886 = vadd.f32 %v5372, %v5885
        %v5887 = vpop.f32.mrb[0].mxu0
        %5888 = vmatprep.mubr.f32.mxu0 0.0
        %5889 = vmatmul.mubr.f32.gmra.mrb[0].mxu0 %v5183
        %v5890 = vpop.f32.mrb[0].mxu0
        %v5891 = vadd.f32 %v5372, %v5890
        %v5892 = vpop.f32.mrb[0].mxu0
        %5893 = vmatprep.mubr.f32.mxu0 0.0
        %5894 = vmatmul.mubr.f32.gmra.mrb[0].mxu0 %v5184
        %v5895 = vpop.f32.mrb[0].mxu0
        %v5896 = vadd.f32 %v5372, %v5895
        %v5897 = vpop.f32.mrb[0].mxu0
        %5898 = vmatprep.mubr.f32.mxu0 0.0
        %5899 = vmatmul.mubr.f32.gmra.mrb[0].mxu0 %v5185
        %v5900 = vpop.f32.mrb[0].mxu0
        %v5901 = vadd.f32 %v5372, %v5900
        %v5902 = vpop.f32.mrb[0].mxu0
        %5903 = vmatprep.mubr.f32.mxu0 0.0
        %5904 = vmatmul.mubr.f32.gmra.mrb[0].mxu0 %v5186
        %v5905 = vpop.f32.mrb[0].mxu0
        %v5906 = vadd.f32 %v5372, %v5905
        %v5907 = vpop.f32.mrb[0].mxu0
        %5908 = vmatprep.mubr.f32.mxu0 0.0
        %5909 = vmatmul.mubr.f32.gmra.mrb[0].mxu0 %v5187
        %v5910 = vpop.f32.mrb[0].mxu0
        %v5911 = vadd.f32 %v5372, %v5910
        %v5912 = vpop.f32.mrb[0].mxu0
        %5913 = vmatprep.mubr.f32.mxu0 0.0
        %5914 = vmatmul.mubr.f32.gmra.mrb[0].mxu0 %v5188
        %v5915 = vpop.f32.mrb[0].mxu0
        %v5916 = vadd.f32 %v5372, %v5915
        %v5917 = vpop.f32.mrb[0].mxu0
        %5918 = vmatprep.mubr.f32.mxu0 0.0
        %5919 = vmatmul.mubr.f32.gmra.mrb[0].mxu0 %v5189
        %v5920 = vpop.f32.mrb[0].mxu0
        %v5921 = vadd.f32 %v5372, %v5920
        %v5922 = vpop.f32.mrb[0].mxu0
        %5923 = vmatprep.mubr.f32.mxu0 0.0
        %5924 = vmatmul.mubr.f32.gmra.mrb[0].mxu0 %v5190
        %v5925 = vpop.f32.mrb[0].mxu0
        %v5926 = vadd.f32 %v5372, %v5925
        %v5927 = vpop.f32.mrb[0].mxu0
        %5928 = vmatprep.mubr.f32.mxu0 0.0
        %5929 = vmatmul.mubr.f32.gmra.mrb[0].mxu0 %v5191
        %v5930 = vpop.f32.mrb[0].mxu0
        %v5931 = vadd.f32 %v5372, %v5930
        %v5932 = vpop.f32.mrb[0].mxu0
        %5933 = vmatprep.mubr.f32.mxu0 0.0
        %5934 = vmatmul.mubr.f32.gmra.mrb[0].mxu0 %v5192
        %v5935 = vpop.f32.mrb[0].mxu0
        %v5936 = vadd.f32 %v5372, %v5935
        %v5937 = vpop.f32.mrb[0].mxu0
        %5938 = vmatprep.mubr.f32.mxu0 0.0
        %5939 = vmatmul.mubr.f32.gmra.mrb[0].mxu0 %v5193
        %v5940 = vpop.f32.mrb[0].mxu0
        %v5941 = vadd.f32 %v5372, %v5940
        %v5942 = vpop.f32.mrb[0].mxu0
        %5943 = vmatprep.mubr.f32.mxu0 0.0
        %5944 = vmatmul.mubr.f32.gmra.mrb[0].mxu0 %v5194
        %v5945 = vpop.f32.mrb[0].mxu0
        %v5946 = vadd.f32 %v5372, %v5945
        %v5947 = vpop.f32.mrb[0].mxu0
        %5948 = vmatprep.mubr.f32.mxu0 0.0
        %5949 = vmatmul.mubr.f32.gmra.mrb[0].mxu0 %v5195
        %v5950 = vpop.f32.mrb[0].mxu0
        %v5951 = vadd.f32 %v5372, %v5950
        %v5952 = vpop.f32.mrb[0].mxu0
        %5953 = vmatprep.mubr.f32.mxu0 0.0
        %5954 = vmatmul.mubr.f32.gmra.mrb[0].mxu0 %v5196
        %v5955 = vpop.f32.mrb[0].mxu0
        %v5956 = vadd.f32 %v5372, %v5955
        %v5957 = vpop.f32.mrb[0].mxu0
        %5958 = vmatprep.mubr.f32.mxu0 0.0
        %5959 = vmatmul.mubr.f32.gmra.mrb[0].mxu0 %v5197
        %v5960 = vpop.f32.mrb[0].mxu0
        %v5961 = vadd.f32 %v5372, %v5960
        %v5962 = vpop.f32.mrb[0].mxu0
        %5963 = vmatprep.mubr.f32.mxu0 0.0
        %5964 = vmatmul.mubr.f32.gmra.mrb[0].mxu0 %v5198
        %v5965 = vpop.f32.mrb[0].mxu0
        %v5966 = vadd.f32 %v5372, %v5965
        %v5967 = vpop.f32.mrb[0].mxu0
        %5968 = vmatprep.mubr.f32.mxu0 0.0
        %5969 = vmatmul.mubr.f32.gmra.mrb[0].mxu0 %v5199
        %v5970 = vpop.f32.mrb[0].mxu0
        %v5971 = vadd.f32 %v5372, %v5970
        %v5972 = vpop.f32.mrb[0].mxu0
        %5973 = vmatprep.mubr.f32.mxu0 0.0
        %5974 = vmatmul.mubr.f32.gmra.mrb[0].mxu0 %v5200
        %v5975 = vpop.f32.mrb[0].mxu0
        %v5976 = vadd.f32 %v5372, %v5975
        %v5977 = vpop.f32.mrb[0].mxu0
        %5978 = vmatprep.mubr.f32.mxu0 0.0
        %5979 = vmatmul.mubr.f32.gmra.mrb[0].mxu0 %v5201
        %v5980 = vpop.f32.mrb[0].mxu0
        %v5981 = vadd.f32 %v5372, %v5980
        %v5982 = vpop.f32.mrb[0].mxu0
        %5983 = vmatprep.mubr.f32.mxu0 0.0
        %5984 = vmatmul.mubr.f32.gmra.mrb[0].mxu0 %v5202
        %v5985 = vpop.f32.mrb[0].mxu0
        %v5986 = vadd.f32 %v5372, %v5985
        %v5987 = vpop.f32.mrb[0].mxu0
        %5988 = vmatprep.mubr.f32.mxu0 0.0
        %5989 = vmatmul.mubr.f32.gmra.mrb[0].mxu0 %v5203
        %v5990 = vpop.f32.mrb[0].mxu0
        %v5991 = vadd.f32 %v5372, %v5990
        %v5992 = vpop.f32.mrb[0].mxu0
        %5993 = vmatprep.mubr.f32.mxu0 0.0
        %5994 = vmatmul.mubr.f32.gmra.mrb[0].mxu0 %v5204
        %v5995 = vpop.f32.mrb[0].mxu0
        %v5996 = vadd.f32 %v5372, %v5995
        %v5997 = vpop.f32.mrb[0].mxu0
        %5998 = vmatprep.mubr.f32.mxu0 0.0
        %5999 = vmatmul.mubr.f32.gmra.mrb[0].mxu0 %v5205
        %v6000 = vpop.f32.mrb[0].mxu0
        %v6001 = vadd.f32 %v5372, %v6000
        %v6002 = vpop.f32.mrb[0].mxu0
        %6003 = vmatprep.mubr.f32.mxu0 0.0
        %6004 = vmatmul.mubr.f32.gmra.mrb[0].mxu0 %v5206
        %v6005 = vpop.f32.mrb[0].mxu0
        %v6006 = vadd.f32 %v5372, %v6005
        %v6007 = vpop.f32.mrb[0].mxu0
        %6008 = vmatprep.mubr.f32.mxu0 0.0
        %6009 = vmatmul.mubr.f32.gmra.mrb[0].mxu0 %v5207
        %v6010 = vpop.f32.mrb[0].mxu0
        %v6011 = vadd.f32 %v5372, %v6010
        %v6012 = vpop.f32.mrb[0].mxu0
        %6013 = vmatprep.mubr.f32.mxu0 0.0
        %6014 = vmatmul.mubr.f32.gmra.mrb[0].mxu0 %v5208
        %v6015 = vpop.f32.mrb[0].mxu0
        %v6016 = vadd.f32 %v5372, %v6015
        %v6017 = vpop.f32.mrb[0].mxu0
        %6018 = vmatprep.mubr.f32.mxu0 0.0
        %6019 = vmatmul.mubr.f32.gmra.mrb[0].mxu0 %v5209
        %v6020 = vpop.f32.mrb[0].mxu0
        %v6021 = vadd.f32 %v5372, %v6020
        %v6022 = vpop.f32.mrb[0].mxu0
        %6023 = vmatprep.mubr.f32.mxu0 0.0
        %6024 = vmatmul.mubr.f32.gmra.mrb[0].mxu0 %v5210
        %v6025 = vpop.f32.mrb[0].mxu0
        %v6026 = vadd.f32 %v5372, %v6025
        %v6027 = vpop.f32.mrb[0].mxu0
        %6028 = vmatprep.mubr.f32.mxu0 0.0
        %6029 = vmatmul.mubr.f32.gmra.mrb[0].mxu0 %v5211
        %v6030 = vpop.f32.mrb[0].mxu0
        %v6031 = vadd.f32 %v5372, %v6030
        %v6032 = vpop.f32.mrb[0].mxu0
        %6033 = vmatprep.mubr.f32.mxu0 0.0
        %6034 = vmatmul.mubr.f32.gmra.mrb[0].mxu0 %v5212
        %v6035 = vpop.f32.mrb[0].mxu0
        %v6036 = vadd.f32 %v5372, %v6035
        %v6037 = vpop.f32.mrb[0].mxu0
        %6038 = vmatprep.mubr.f32.mxu0 0.0
        %6039 = vmatmul.mubr.f32.gmra.mrb[0].mxu0 %v5213
        %v6040 = vpop.f32.mrb[0].mxu0
        %v6041 = vadd.f32 %v5372, %v6040
        %v6042 = vpop.f32.mrb[0].mxu0
        %6043 = vmatprep.mubr.f32.mxu0 0.0
        %6044 = vmatmul.mubr.f32.gmra.mrb[0].mxu0 %v5214
        %v6045 = vpop.f32.mrb[0].mxu0
        %v6046 = vadd.f32 %v5372, %v6045
        %v6047 = vpop.f32.mrb[0].mxu0
        %6048 = vmatprep.mubr.f32.mxu0 0.0
        %6049 = vmatmul.mubr.f32.gmra.mrb[0].mxu0 %v5215
        %v6050 = vpop.f32.mrb[0].mxu0
        %v6051 = vadd.f32 %v5372, %v6050
        %v6052 = vpop.f32.mrb[0].mxu0
        %6053 = vmatprep.mubr.f32.mxu0 0.0
        %6054 = vmatmul.mubr.f32.gmra.mrb[0].mxu0 %v5216
        %v6055 = vpop.f32.mrb[0].mxu0
        %v6056 = vadd.f32 %v5372, %v6055
        %v6057 = vpop.f32.mrb[0].mxu0
        %6058 = vmatprep.mubr.f32.mxu0 0.0
        %6059 = vmatmul.mubr.f32.gmra.mrb[0].mxu0 %v5217
        %v6060 = vpop.f32.mrb[0].mxu0
        %v6061 = vadd.f32 %v5372, %v6060
        %v6062 = vpop.f32.mrb[0].mxu0
        %6063 = vmatprep.mubr.f32.mxu0 0.0
        %6064 = vmatmul.mubr.f32.gmra.mrb[0].mxu0 %v5218
        %v6065 = vpop.f32.mrb[0].mxu0
        %v6066 = vadd.f32 %v5372, %v6065
        %v6067 = vpop.f32.mrb[0].mxu0
        %6068 = vmatprep.mubr.f32.mxu0 0.0
        %6069 = vmatmul.mubr.f32.gmra.mrb[0].mxu0 %v5219
        %v6070 = vpop.f32.mrb[0].mxu0
        %v6071 = vadd.f32 %v5372, %v6070
        %v6072 = vpop.f32.mrb[0].mxu0
        %6073 = vmatprep.mubr.f32.mxu0 0.0
        %6074 = vmatmul.mubr.f32.gmra.mrb[0].mxu0 %v5220
        %v6075 = vpop.f32.mrb[0].mxu0
        %v6076 = vadd.f32 %v5372, %v6075
        %v6077 = vpop.f32.mrb[0].mxu0
        %6078 = vmatprep.mubr.f32.mxu0 0.0
        %6079 = vmatmul.mubr.f32.gmra.mrb[0].mxu0 %v5221
        %v6080 = vpop.f32.mrb[0].mxu0
        %v6081 = vadd.f32 %v5372, %v6080
        %v6082 = vpop.f32.mrb[0].mxu0
        %6083 = vmatprep.mubr.f32.mxu0 0.0
        %6084 = vmatmul.mubr.f32.gmra.mrb[0].mxu0 %v5222
        %v6085 = vpop.f32.mrb[0].mxu0
        %v6086 = vadd.f32 %v5372, %v6085
        %v6087 = vpop.f32.mrb[0].mxu0
        %6088 = vmatprep.mubr.f32.mxu0 0.0
        %6089 = vmatmul.mubr.f32.gmra.mrb[0].mxu0 %v5223
        %v6090 = vpop.f32.mrb[0].mxu0
        %v6091 = vadd.f32 %v5372, %v6090
        %v6092 = vpop.f32.mrb[0].mxu0
        %6093 = vmatprep.mubr.f32.mxu0 0.0
        %6094 = vmatmul.mubr.f32.gmra.mrb[0].mxu0 %v5224
        %v6095 = vpop.f32.mrb[0].mxu0
        %v6096 = vadd.f32 %v5372, %v6095
        %v6097 = vpop.f32.mrb[0].mxu0
        %6098 = vmatprep.mubr.f32.mxu0 0.0
        %6099 = vmatmul.mubr.f32.gmra.mrb[0].mxu0 %v5225
        %v6100 = vpop.f32.mrb[0].mxu0
        %v6101 = vadd.f32 %v5372, %v6100
        %v6102 = vpop.f32.mrb[0].mxu0
        %6103 = vmatprep.mubr.f32.mxu0 0.0
        %6104 = vmatmul.mubr.f32.gmra.mrb[0].mxu0 %v5226
        %v6105 = vpop.f32.mrb[0].mxu0
        %v6106 = vadd.f32 %v5372, %v6105
        %v6107 = vpop.f32.mrb[0].mxu0
        %6108 = vmatprep.mubr.f32.mxu0 0.0
        %6109 = vmatmul.mubr.f32.gmra.mrb[0].mxu0 %v5227
        %v6110 = vpop.f32.mrb[0].mxu0
        %v6111 = vadd.f32 %v5372, %v6110
        %v6112 = vpop.f32.mrb[0].mxu0
        %6113 = vmatprep.mubr.f32.mxu0 0.0
        %6114 = vmatmul.mubr.f32.gmra.mrb[0].mxu0 %v5228
        %v6115 = vpop.f32.mrb[0].mxu0
        %v6116 = vadd.f32 %v5372, %v6115
        %v6117 = vpop.f32.mrb[0].mxu0
        %6118 = vmatprep.mubr.f32.mxu0 0.0
        %6119 = vmatmul.mubr.f32.gmra.mrb[0].mxu0 %v5229
        %v6120 = vpop.f32.mrb[0].mxu0
        %v6121 = vadd.f32 %v5372, %v6120
        %v6122 = vpop.f32.mrb[0].mxu0
        %6123 = vmatprep.mubr.f32.mxu0 0.0
        %6124 = vmatmul.mubr.f32.gmra.mrb[0].mxu0 %v5230
        %v6125 = vpop.f32.mrb[0].mxu0
        %v6126 = vadd.f32 %v5372, %v6125
        %v6127 = vpop.f32.mrb[0].mxu0
        %6128 = vmatprep.mubr.f32.mxu0 0.0
        %6129 = vmatmul.mubr.f32.gmra.mrb[0].mxu0 %v5231
        %v6130 = vpop.f32.mrb[0].mxu0
        %v6131 = vadd.f32 %v5372, %v6130
        %v6132 = vpop.f32.mrb[0].mxu0
        %6133 = vmatprep.mubr.f32.mxu0 0.0
        %6134 = vmatmul.mubr.f32.gmra.mrb[0].mxu0 %v5232
        %v6135 = vpop.f32.mrb[0].mxu0
        %v6136 = vadd.f32 %v5372, %v6135
        %v6137 = vpop.f32.mrb[0].mxu0
        %6138 = vmatprep.mubr.f32.mxu0 0.0
        %6139 = vmatmul.mubr.f32.gmra.mrb[0].mxu0 %v5233
        %v6140 = vpop.f32.mrb[0].mxu0
        %v6141 = vadd.f32 %v5372, %v6140
        %v6142 = vpop.f32.mrb[0].mxu0
        %6143 = vmatprep.mubr.f32.mxu0 0.0
        %6144 = vmatmul.mubr.f32.gmra.mrb[0].mxu0 %v5234
        %v6145 = vpop.f32.mrb[0].mxu0
        %v6146 = vadd.f32 %v5372, %v6145
        %v6147 = vpop.f32.mrb[0].mxu0
        %6148 = vmatprep.mubr.f32.mxu0 0.0
        %6149 = vmatmul.mubr.f32.gmra.mrb[0].mxu0 %v5235
        %v6150 = vpop.f32.mrb[0].mxu0
        %v6151 = vadd.f32 %v5372, %v6150
        %v6152 = vpop.f32.mrb[0].mxu0
        %6153 = vmatprep.mubr.f32.mxu0 0.0
        %6154 = vmatmul.mubr.f32.gmra.mrb[0].mxu0 %v5236
        %v6155 = vpop.f32.mrb[0].mxu0
        %v6156 = vadd.f32 %v5372, %v6155
        %v6157 = vpop.f32.mrb[0].mxu0
        %6158 = vmatprep.mubr.f32.mxu0 0.0
        %6159 = vmatmul.mubr.f32.gmra.mrb[0].mxu0 %v5237
        %v6160 = vpop.f32.mrb[0].mxu0
        %v6161 = vadd.f32 %v5372, %v6160
        %v6162 = vpop.f32.mrb[0].mxu0
        %6163 = vmatprep.mubr.f32.mxu0 0.0
        %6164 = vmatmul.mubr.f32.gmra.mrb[0].mxu0 %v5238
        %v6165 = vpop.f32.mrb[0].mxu0
        %v6166 = vadd.f32 %v5372, %v6165
        %v6167 = vpop.f32.mrb[0].mxu0
        %6168 = vmatprep.mubr.f32.mxu0 0.0
        %6169 = vmatmul.mubr.f32.gmra.mrb[0].mxu0 %v5239
        %v6170 = vpop.f32.mrb[0].mxu0
        %v6171 = vadd.f32 %v5372, %v6170
        %v6172 = vpop.f32.mrb[0].mxu0
        %6173 = vmatprep.mubr.f32.mxu0 0.0
        %6174 = vmatmul.mubr.f32.gmra.mrb[0].mxu0 %v5240
        %v6175 = vpop.f32.mrb[0].mxu0
        %v6176 = vadd.f32 %v5372, %v6175
        %v6177 = vpop.f32.mrb[0].mxu0
        %6178 = vmatprep.mubr.f32.mxu0 0.0
        %6179 = vmatmul.mubr.f32.gmra.mrb[0].mxu0 %v5241
        %v6180 = vpop.f32.mrb[0].mxu0
        %v6181 = vadd.f32 %v5372, %v6180
        %v6182 = vpop.f32.mrb[0].mxu0
        %6183 = vmatprep.mubr.f32.mxu0 0.0
        %6184 = vmatmul.mubr.f32.gmra.mrb[0].mxu0 %v5242
        %v6185 = vpop.f32.mrb[0].mxu0
        %v6186 = vadd.f32 %v5372, %v6185
        %v6187 = vpop.f32.mrb[0].mxu0
        %6188 = vmatprep.mubr.f32.mxu0 0.0
        %6189 = vmatmul.mubr.f32.gmra.mrb[0].mxu0 %v5243
        %v6190 = vpop.f32.mrb[0].mxu0
        %v6191 = vadd.f32 %v5372, %v6190
        %v6192 = vpop.f32.mrb[0].mxu0
        %6193 = vmatprep.mubr.f32.mxu0 0.0
        %6194 = vmatmul.mubr.f32.gmra.mrb[0].mxu0 %v5244
        %v6195 = vpop.f32.mrb[0].mxu0
        %v6196 = vadd.f32 %v5372, %v6195
        %v6197 = vpop.f32.mrb[0].mxu0
        %6198 = vmatprep.mubr.f32.mxu0 0.0
        %6199 = vmatmul.mubr.f32.gmra.mrb[0].mxu0 %v5245
        %v6200 = vpop.f32.mrb[0].mxu0
        %v6201 = vadd.f32 %v5372, %v6200
        %v6202 = vpop.f32.mrb[0].mxu0
        %6203 = vmatprep.mubr.f32.mxu0 0.0
        %6204 = vmatmul.mubr.f32.gmra.mrb[0].mxu0 %v5246
        %v6205 = vpop.f32.mrb[0].mxu0
        %v6206 = vadd.f32 %v5372, %v6205
        %v6207 = vpop.f32.mrb[0].mxu0
        %6208 = vmatprep.mubr.f32.mxu0 0.0
        %6209 = vmatmul.mubr.f32.gmra.mrb[0].mxu0 %v5247
        %v6210 = vpop.f32.mrb[0].mxu0
        %v6211 = vadd.f32 %v5372, %v6210
        %v6212 = vpop.f32.mrb[0].mxu0
        %6213 = vmatprep.mubr.f32.mxu0 0.0
        %6214 = vmatmul.mubr.f32.gmra.mrb[0].mxu0 %v5248
        %v6215 = vpop.f32.mrb[0].mxu0
        %v6216 = vadd.f32 %v5372, %v6215
        %v6217 = vpop.f32.mrb[0].mxu0
        %6218 = vmatprep.mubr.f32.mxu0 0.0
        %6219 = vmatmul.mubr.f32.gmra.mrb[0].mxu0 %v5249
        %v6220 = vpop.f32.mrb[0].mxu0
        %v6221 = vadd.f32 %v5372, %v6220
        %v6222 = vpop.f32.mrb[0].mxu0
        %6223 = vmatprep.mubr.f32.mxu0 0.0
        %6224 = vmatmul.mubr.f32.gmra.mrb[0].mxu0 %v5250
        %v6225 = vpop.f32.mrb[0].mxu0
        %v6226 = vadd.f32 %v5372, %v6225
        %v6227 = vpop.f32.mrb[0].mxu0
        %6228 = vmatprep.mubr.f32.mxu0 0.0
        %6229 = vmatmul.mubr.f32.gmra.mrb[0].mxu0 %v5251
        %v6230 = vpop.f32.mrb[0].mxu0
        %v6231 = vadd.f32 %v5372, %v6230
        %v6232 = vpop.f32.mrb[0].mxu0
        %6233 = vmatprep.mubr.f32.mxu0 0.0
        %6234 = vmatmul.mubr.f32.gmra.mrb[0].mxu0 %v5252
        %v6235 = vpop.f32.mrb[0].mxu0
        %v6236 = vadd.f32 %v5372, %v6235
        %v6237 = vpop.f32.mrb[0].mxu0
        %6238 = vmatprep.mubr.f32.mxu0 0.0
        %6239 = vmatmul.mubr.f32.gmra.mrb[0].mxu0 %v5253
        %v6240 = vpop.f32.mrb[0].mxu0
        %v6241 = vadd.f32 %v5372, %v6240
        %v6242 = vpop.f32.mrb[0].mxu0
        %6243 = vmatprep.mubr.f32.mxu0 0.0
        %6244 = vmatmul.mubr.f32.gmra.mrb[0].mxu0 %v5254
        %v6245 = vpop.f32.mrb[0].mxu0
        %v6246 = vadd.f32 %v5372, %v6245
        %v6247 = vpop.f32.mrb[0].mxu0
        %6248 = vmatprep.mubr.f32.mxu0 0.0
        %6249 = vmatmul.mubr.f32.gmra.mrb[0].mxu0 %v5255
        %v6250 = vpop.f32.mrb[0].mxu0
        %v6251 = vadd.f32 %v5372, %v6250
        %v6252 = vpop.f32.mrb[0].mxu0
        %6253 = vmatprep.mubr.f32.mxu0 0.0
        %6254 = vmatmul.mubr.f32.gmra.mrb[0].mxu0 %v5256
        %v6255 = vpop.f32.mrb[0].mxu0
        %v6256 = vadd.f32 %v5372, %v6255
        %v6257 = vpop.f32.mrb[0].mxu0
        %6258 = vmatprep.mubr.f32.mxu0 0.0
        %6259 = vmatmul.mubr.f32.gmra.mrb[0].mxu0 %v5257
        %v6260 = vpop.f32.mrb[0].mxu0
        %v6261 = vadd.f32 %v5372, %v6260
        %v6262 = vpop.f32.mrb[0].mxu0
        %6263 = vmatprep.mubr.f32.mxu0 0.0
        %6264 = vmatmul.mubr.f32.gmra.mrb[0].mxu0 %v5258
        %v6265 = vpop.f32.mrb[0].mxu0
        %v6266 = vadd.f32 %v5372, %v6265
        %v6267 = vpop.f32.mrb[0].mxu0
        %6268 = vmatprep.mubr.f32.mxu0 0.0
        %6269 = vmatmul.mubr.f32.gmra.mrb[0].mxu0 %v5259
        %v6270 = vpop.f32.mrb[0].mxu0
        %v6271 = vadd.f32 %v5372, %v6270
        %v6272 = vpop.f32.mrb[0].mxu0
        %6273 = vmatprep.mubr.f32.mxu0 0.0
        %6274 = vmatmul.mubr.f32.gmra.mrb[0].mxu0 %v5260
        %v6275 = vpop.f32.mrb[0].mxu0
        %v6276 = vadd.f32 %v5372, %v6275
        %v6277 = vpop.f32.mrb[0].mxu0
        %6278 = vmatprep.mubr.f32.mxu0 0.0
        %6279 = vmatmul.mubr.f32.gmra.mrb[0].mxu0 %v5261
        %v6280 = vpop.f32.mrb[0].mxu0
        %v6281 = vadd.f32 %v5372, %v6280
        %v6282 = vpop.f32.mrb[0].mxu0
        %6283 = vmatprep.mubr.f32.mxu0 0.0
        %6284 = vmatmul.mubr.f32.gmra.mrb[0].mxu0 %v5262
        %v6285 = vpop.f32.mrb[0].mxu0
        %v6286 = vadd.f32 %v5372, %v6285
        %v6287 = vpop.f32.mrb[0].mxu0
        %6288 = vmatprep.mubr.f32.mxu0 0.0
        %6289 = vmatmul.mubr.f32.gmra.mrb[0].mxu0 %v5263
        %v6290 = vpop.f32.mrb[0].mxu0
        %v6291 = vadd.f32 %v5372, %v6290
        %v6292 = vpop.f32.mrb[0].mxu0
        %6293 = vmatprep.mubr.f32.mxu0 0.0
        %6294 = vmatmul.mubr.f32.gmra.mrb[0].mxu0 %v5264
        %v6295 = vpop.f32.mrb[0].mxu0
        %v6296 = vadd.f32 %v5372, %v6295
        %v6297 = vpop.f32.mrb[0].mxu0
        %6298 = vmatprep.mubr.f32.mxu0 0.0
        %6299 = vmatmul.mubr.f32.gmra.mrb[0].mxu0 %v5265
        %v6300 = vpop.f32.mrb[0].mxu0
        %v6301 = vadd.f32 %v5372, %v6300
        %v6302 = vpop.f32.mrb[0].mxu0
        %6303 = vmatprep.mubr.f32.mxu0 0.0
        %6304 = vmatmul.mubr.f32.gmra.mrb[0].mxu0 %v5266
        %v6305 = vpop.f32.mrb[0].mxu0
        %v6306 = vadd.f32 %v5372, %v6305
        %v6307 = vpop.f32.mrb[0].mxu0
        %6308 = vmatprep.mubr.f32.mxu0 0.0
        %6309 = vmatmul.mubr.f32.gmra.mrb[0].mxu0 %v5267
        %v6310 = vpop.f32.mrb[0].mxu0
        %v6311 = vadd.f32 %v5372, %v6310
        %v6312 = vpop.f32.mrb[0].mxu0
        %6313 = vmatprep.mubr.f32.mxu0 0.0
        %6314 = vmatmul.mubr.f32.gmra.mrb[0].mxu0 %v5268
        %v6315 = vpop.f32.mrb[0].mxu0
        %v6316 = vadd.f32 %v5372, %v6315
        %v6317 = vpop.f32.mrb[0].mxu0
        %6318 = vmatprep.mubr.f32.mxu0 0.0
        %6319 = vmatmul.mubr.f32.gmra.mrb[0].mxu0 %v5269
        %v6320 = vpop.f32.mrb[0].mxu0
        %v6321 = vadd.f32 %v5372, %v6320
        %v6322 = vpop.f32.mrb[0].mxu0
        %6323 = vmatprep.mubr.f32.mxu0 0.0
        %6324 = vmatmul.mubr.f32.gmra.mrb[0].mxu0 %v5270
        %v6325 = vpop.f32.mrb[0].mxu0
        %v6326 = vadd.f32 %v5372, %v6325
        %v6327 = vpop.f32.mrb[0].mxu0
        %6328 = vmatprep.mubr.f32.mxu0 0.0
        %6329 = vmatmul.mubr.f32.gmra.mrb[0].mxu0 %v5271
        %v6330 = vpop.f32.mrb[0].mxu0
        %v6331 = vadd.f32 %v5372, %v6330
        %v6332 = vpop.f32.mrb[0].mxu0
        %6333 = vmatprep.mubr.f32.mxu0 0.0
        %6334 = vmatmul.mubr.f32.gmra.mrb[0].mxu0 %v5272
        %v6335 = vpop.f32.mrb[0].mxu0
        %v6336 = vadd.f32 %v5372, %v6335
        %v6337 = vpop.f32.mrb[0].mxu0
        %6338 = vmatprep.mubr.f32.mxu0 0.0
        %6339 = vmatmul.mubr.f32.gmra.mrb[0].mxu0 %v5273
        %v6340 = vpop.f32.mrb[0].mxu0
        %v6341 = vadd.f32 %v5372, %v6340
        %v6342 = vpop.f32.mrb[0].mxu0
        %6343 = vmatprep.mubr.f32.mxu0 0.0
        %6344 = vmatmul.mubr.f32.gmra.mrb[0].mxu0 %v5274
        %v6345 = vpop.f32.mrb[0].mxu0
        %v6346 = vadd.f32 %v5372, %v6345
        %v6347 = vpop.f32.mrb[0].mxu0
        %6348 = vmatprep.mubr.f32.mxu0 0.0
        %6349 = vmatmul.mubr.f32.gmra.mrb[0].mxu0 %v5275
        %v6350 = vpop.f32.mrb[0].mxu0
        %v6351 = vadd.f32 %v5372, %v6350
        %v6352 = vpop.f32.mrb[0].mxu0
        %6353 = vmatprep.mubr.f32.mxu0 0.0
        %6354 = vmatmul.mubr.f32.gmra.mrb[0].mxu0 %v5276
        %v6355 = vpop.f32.mrb[0].mxu0
        %v6356 = vadd.f32 %v5372, %v6355
        %v6357 = vpop.f32.mrb[0].mxu0
        %6358 = vmatprep.mubr.f32.mxu0 0.0
        %6359 = vmatmul.mubr.f32.gmra.mrb[0].mxu0 %v5277
        %v6360 = vpop.f32.mrb[0].mxu0
        %v6361 = vadd.f32 %v5372, %v6360
        %v6362 = vpop.f32.mrb[0].mxu0
        %6363 = vmatprep.mubr.f32.mxu0 0.0
        %6364 = vmatmul.mubr.f32.gmra.mrb[0].mxu0 %v5278
        %v6365 = vpop.f32.mrb[0].mxu0
        %v6366 = vadd.f32 %v5372, %v6365
        %v6367 = vpop.f32.mrb[0].mxu0
        %6368 = vmatprep.mubr.f32.mxu0 0.0
        %6369 = vmatmul.mubr.f32.gmra.mrb[0].mxu0 %v5279
        %v6370 = vpop.f32.mrb[0].mxu0
        %v6371 = vadd.f32 %v5372, %v6370
        %v6372 = vpop.f32.mrb[0].mxu0
        %6373 = vmatprep.mubr.f32.mxu0 0.0
        %6374 = vmatmul.mubr.f32.gmra.mrb[0].mxu0 %v5280
        %v6375 = vpop.f32.mrb[0].mxu0
        %v6376 = vadd.f32 %v5372, %v6375
        %v6377 = vpop.f32.mrb[0].mxu0
        %6378 = vmatprep.mubr.f32.mxu0 0.0
        %6379 = vmatmul.mubr.f32.gmra.mrb[0].mxu0 %v5281
        %v6380 = vpop.f32.mrb[0].mxu0
        %v6381 = vadd.f32 %v5372, %v6380
        %v6382 = vpop.f32.mrb[0].mxu0
        %6383 = vmatprep.mubr.f32.mxu0 0.0
        %6384 = vmatmul.mubr.f32.gmra.mrb[0].mxu0 %v5282
        %v6385 = vpop.f32.mrb[0].mxu0
        %v6386 = vadd.f32 %v5372, %v6385
        %v6387 = vpop.f32.mrb[0].mxu0
        %6388 = vmatprep.mubr.f32.mxu0 0.0
        %6389 = vmatmul.mubr.f32.gmra.mrb[0].mxu0 %v5283
        %v6390 = vpop.f32.mrb[0].mxu0
        %v6391 = vadd.f32 %v5372, %v6390
        %v6392 = vpop.f32.mrb[0].mxu0
        %6393 = vmatprep.mubr.f32.mxu0 0.0
        %6394 = vmatmul.mubr.f32.gmra.mrb[0].mxu0 %v5284
        %v6395 = vpop.f32.mrb[0].mxu0
        %v6396 = vadd.f32 %v5372, %v6395
        %v6397 = vpop.f32.mrb[0].mxu0
        %6398 = vmatprep.mubr.f32.mxu0 0.0
        %6399 = vmatmul.mubr.f32.gmra.mrb[0].mxu0 %v5285
        %v6400 = vpop.f32.mrb[0].mxu0
        %v6401 = vadd.f32 %v5372, %v6400
        %v6402 = vpop.f32.mrb[0].mxu0
        %6403 = vmatprep.mubr.f32.mxu0 0.0
        %6404 = vmatmul.mubr.f32.gmra.mrb[0].mxu0 %v5286
        %v6405 = vpop.f32.mrb[0].mxu0
        %v6406 = vadd.f32 %v5372, %v6405
        %v6407 = vpop.f32.mrb[0].mxu0
        %6408 = vmatprep.mubr.f32.mxu0 0.0
        %6409 = vmatmul.mubr.f32.gmra.mrb[0].mxu0 %v5287
        %v6410 = vpop.f32.mrb[0].mxu0
        %v6411 = vadd.f32 %v5372, %v6410
        %v6412 = vpop.f32.mrb[0].mxu0
        %6413 = vmatprep.mubr.f32.mxu0 0.0
        %6414 = vmatmul.mubr.f32.gmra.mrb[0].mxu0 %v5288
        %v6415 = vpop.f32.mrb[0].mxu0
        %v6416 = vadd.f32 %v5372, %v6415
        %v6417 = vpop.f32.mrb[0].mxu0
        %6418 = vmatprep.mubr.f32.mxu0 0.0
        %6419 = vmatmul.mubr.f32.gmra.mrb[0].mxu0 %v5289
        %v6420 = vpop.f32.mrb[0].mxu0
        %v6421 = vadd.f32 %v5372, %v6420
        %v6422 = vpop.f32.mrb[0].mxu0
        %6423 = vmatprep.mubr.f32.mxu0 0.0
        %6424 = vmatmul.mubr.f32.gmra.mrb[0].mxu0 %v5290
        %v6425 = vpop.f32.mrb[0].mxu0
        %v6426 = vadd.f32 %v5372, %v6425
        %v6427 = vpop.f32.mrb[0].mxu0
        %6428 = vmatprep.mubr.f32.mxu0 0.0
        %6429 = vmatmul.mubr.f32.gmra.mrb[0].mxu0 %v5291
        %v6430 = vpop.f32.mrb[0].mxu0
        %v6431 = vadd.f32 %v5372, %v6430
        %v6432 = vpop.f32.mrb[0].mxu0
        %6433 = vmatprep.mubr.f32.mxu0 0.0
        %6434 = vmatmul.mubr.f32.gmra.mrb[0].mxu0 %v5292
        %v6435 = vpop.f32.mrb[0].mxu0
        %v6436 = vadd.f32 %v5372, %v6435
        %v6437 = vpop.f32.mrb[0].mxu0
        %6438 = vmatprep.mubr.f32.mxu0 0.0
        %6439 = vmatmul.mubr.f32.gmra.mrb[0].mxu0 %v5293
        %v6440 = vpop.f32.mrb[0].mxu0
        %v6441 = vadd.f32 %v5372, %v6440
        %v6442 = vpop.f32.mrb[0].mxu0
        %6443 = vmatprep.mubr.f32.mxu0 0.0
        %6444 = vmatmul.mubr.f32.gmra.mrb[0].mxu0 %v5294
        %v6445 = vpop.f32.mrb[0].mxu0
        %v6446 = vadd.f32 %v5372, %v6445
        %v6447 = vpop.f32.mrb[0].mxu0
        %6448 = vmatprep.mubr.f32.mxu0 0.0
        %6449 = vmatmul.mubr.f32.gmra.mrb[0].mxu0 %v5295
        %v6450 = vpop.f32.mrb[0].mxu0
        %v6451 = vadd.f32 %v5372, %v6450
        %v6452 = vpop.f32.mrb[0].mxu0
        %6453 = vmatprep.mubr.f32.mxu0 0.0
        %6454 = vmatmul.mubr.f32.gmra.mrb[0].mxu0 %v5296
        %v6455 = vpop.f32.mrb[0].mxu0
        %v6456 = vadd.f32 %v5372, %v6455
        %v6457 = vpop.f32.mrb[0].mxu0
        %6458 = vmatprep.mubr.f32.mxu0 0.0
        %6459 = vmatmul.mubr.f32.gmra.mrb[0].mxu0 %v5297
        %v6460 = vpop.f32.mrb[0].mxu0
        %v6461 = vadd.f32 %v5372, %v6460
        %v6462 = vpop.f32.mrb[0].mxu0
        %6463 = vmatprep.mubr.f32.mxu0 0.0
        %6464 = vmatmul.mubr.f32.gmra.mrb[0].mxu0 %v5298
        %v6465 = vpop.f32.mrb[0].mxu0
        %v6466 = vadd.f32 %v5372, %v6465
        %v6467 = vpop.f32.mrb[0].mxu0
        %6468 = vmatprep.mubr.f32.mxu0 0.0
        %6469 = vmatmul.mubr.f32.gmra.mrb[0].mxu0 %v5299
        %v6470 = vpop.f32.mrb[0].mxu0
        %v6471 = vadd.f32 %v5372, %v6470
        %v6472 = vpop.f32.mrb[0].mxu0
        %6473 = vmatprep.mubr.f32.mxu0 0.0
        %6474 = vmatmul.mubr.f32.gmra.mrb[0].mxu0 %v5300
        %v6475 = vpop.f32.mrb[0].mxu0
        %v6476 = vadd.f32 %v5372, %v6475
        %v6477 = vpop.f32.mrb[0].mxu0
        %6478 = vmatprep.mubr.f32.mxu0 0.0
        %6479 = vmatmul.mubr.f32.gmra.mrb[0].mxu0 %v5301
        %v6480 = vpop.f32.mrb[0].mxu0
        %v6481 = vadd.f32 %v5372, %v6480
        %v6482 = vpop.f32.mrb[0].mxu0
        %6483 = vmatprep.mubr.f32.mxu0 0.0
        %6484 = vmatmul.mubr.f32.gmra.mrb[0].mxu0 %v5302
        %v6485 = vpop.f32.mrb[0].mxu0
        %v6486 = vadd.f32 %v5372, %v6485
        %v6487 = vpop.f32.mrb[0].mxu0
        %6488 = vmatprep.mubr.f32.mxu0 0.0
        %6489 = vmatmul.mubr.f32.gmra.mrb[0].mxu0 %v5303
        %v6490 = vpop.f32.mrb[0].mxu0
        %v6491 = vadd.f32 %v5372, %v6490
        %v6492 = vpop.f32.mrb[0].mxu0
        %6493 = vmatprep.mubr.f32.mxu0 0.0
        %6494 = vmatmul.mubr.f32.gmra.mrb[0].mxu0 %v5304
        %v6495 = vpop.f32.mrb[0].mxu0
        %v6496 = vadd.f32 %v5372, %v6495
        %v6497 = vpop.f32.mrb[0].mxu0
        %6498 = vmatprep.mubr.f32.mxu0 0.0
        %6499 = vmatmul.mubr.f32.gmra.mrb[0].mxu0 %v5305
        %v6500 = vpop.f32.mrb[0].mxu0
        %v6501 = vadd.f32 %v5372, %v6500
        %v6502 = vpop.f32.mrb[0].mxu0
        %6503 = vmatprep.mubr.f32.mxu0 0.0
        %6504 = vmatmul.mubr.f32.gmra.mrb[0].mxu0 %v5306
        %v6505 = vpop.f32.mrb[0].mxu0
        %v6506 = vadd.f32 %v5372, %v6505
        %v6507 = vpop.f32.mrb[0].mxu0
        %6508 = vmatprep.mubr.f32.mxu0 0.0
        %6509 = vmatmul.mubr.f32.gmra.mrb[0].mxu0 %v5307
        %v6510 = vpop.f32.mrb[0].mxu0
        %v6511 = vadd.f32 %v5372, %v6510
        %v6512 = vpop.f32.mrb[0].mxu0
        %6513 = vmatprep.mubr.f32.mxu0 0.0
        %6514 = vmatmul.mubr.f32.gmra.mrb[0].mxu0 %v5308
        %v6515 = vpop.f32.mrb[0].mxu0
        %v6516 = vadd.f32 %v5372, %v6515
        %v6517 = vpop.f32.mrb[0].mxu0
        %6518 = vmatprep.mubr.f32.mxu0 0.0
        %6519 = vmatmul.mubr.f32.gmra.mrb[0].mxu0 %v5309
        %v6520 = vpop.f32.mrb[0].mxu0
        %v6521 = vadd.f32 %v5372, %v6520
        %v6522 = vpop.f32.mrb[0].mxu0
        %6523 = vmatprep.mubr.f32.mxu0 0.0
        %6524 = vmatmul.mubr.f32.gmra.mrb[0].mxu0 %v5310
        %v6525 = vpop.f32.mrb[0].mxu0
        %v6526 = vadd.f32 %v5372, %v6525
        %v6527 = vpop.f32.mrb[0].mxu0
        %6528 = vmatprep.mubr.f32.mxu0 0.0
        %6529 = vmatmul.mubr.f32.gmra.mrb[0].mxu0 %v5311
        %v6530 = vpop.f32.mrb[0].mxu0
        %v6531 = vadd.f32 %v5372, %v6530
        %v6532 = vpop.f32.mrb[0].mxu0
        %6533 = vmatprep.mubr.f32.mxu0 0.0
        %6534 = vmatmul.mubr.f32.gmra.mrb[0].mxu0 %v5312
        %v6535 = vpop.f32.mrb[0].mxu0
        %v6536 = vadd.f32 %v5372, %v6535
        %v6537 = vpop.f32.mrb[0].mxu0
        %6538 = vmatprep.mubr.f32.mxu0 0.0
        %6539 = vmatmul.mubr.f32.gmra.mrb[0].mxu0 %v5313
        %v6540 = vpop.f32.mrb[0].mxu0
        %v6541 = vadd.f32 %v5372, %v6540
        %v6542 = vpop.f32.mrb[0].mxu0
        %6543 = vmatprep.mubr.f32.mxu0 0.0
        %6544 = vmatmul.mubr.f32.gmra.mrb[0].mxu0 %v5314
        %v6545 = vpop.f32.mrb[0].mxu0
        %v6546 = vadd.f32 %v5372, %v6545
        %v6547 = vpop.f32.mrb[0].mxu0
        %6548 = vmatprep.mubr.f32.mxu0 0.0
        %6549 = vmatmul.mubr.f32.gmra.mrb[0].mxu0 %v5315
        %v6550 = vpop.f32.mrb[0].mxu0
        %v6551 = vadd.f32 %v5372, %v6550
        %v6552 = vpop.f32.mrb[0].mxu0
        %6553 = vmatprep.mubr.f32.mxu0 0.0
        %6554 = vmatmul.mubr.f32.gmra.mrb[0].mxu0 %v5316
        %v6555 = vpop.f32.mrb[0].mxu0
        %v6556 = vadd.f32 %v5372, %v6555
        %v6557 = vpop.f32.mrb[0].mxu0
        %6558 = vmatprep.mubr.f32.mxu0 0.0
        %6559 = vmatmul.mubr.f32.gmra.mrb[0].mxu0 %v5317
        %v6560 = vpop.f32.mrb[0].mxu0
        %v6561 = vadd.f32 %v5372, %v6560
        %v6562 = vpop.f32.mrb[0].mxu0
        %6563 = vmatprep.mubr.f32.mxu0 0.0
        %6564 = vmatmul.mubr.f32.gmra.mrb[0].mxu0 %v5318
        %v6565 = vpop.f32.mrb[0].mxu0
        %v6566 = vadd.f32 %v5372, %v6565
        %v6567 = vpop.f32.mrb[0].mxu0
        %6568 = vmatprep.mubr.f32.mxu0 0.0
        %6569 = vmatmul.mubr.f32.gmra.mrb[0].mxu0 %v5319
        %v6570 = vpop.f32.mrb[0].mxu0
        %v6571 = vadd.f32 %v5372, %v6570
        %v6572 = vpop.f32.mrb[0].mxu0
        %6573 = vmatprep.mubr.f32.mxu0 0.0
        %6574 = vmatmul.mubr.f32.gmra.mrb[0].mxu0 %v5320
        %v6575 = vpop.f32.mrb[0].mxu0
        %v6576 = vadd.f32 %v5372, %v6575
        %v6577 = vpop.f32.mrb[0].mxu0
        %6578 = vmatprep.mubr.f32.mxu0 0.0
        %6579 = vmatmul.mubr.f32.gmra.mrb[0].mxu0 %v5321
        %v6580 = vpop.f32.mrb[0].mxu0
        %v6581 = vadd.f32 %v5372, %v6580
        %v6582 = vpop.f32.mrb[0].mxu0
        %6583 = vmatprep.mubr.f32.mxu0 0.0
        %6584 = vmatmul.mubr.f32.gmra.mrb[0].mxu0 %v5322
        %v6585 = vpop.f32.mrb[0].mxu0
        %v6586 = vadd.f32 %v5372, %v6585
        %v6587 = vpop.f32.mrb[0].mxu0
        %6588 = vmatprep.mubr.f32.mxu0 0.0
        %6589 = vmatmul.mubr.f32.gmra.mrb[0].mxu0 %v5323
        %v6590 = vpop.f32.mrb[0].mxu0
        %v6591 = vadd.f32 %v5372, %v6590
        %v6592 = vpop.f32.mrb[0].mxu0
        %6593 = vmatprep.mubr.f32.mxu0 0.0
        %6594 = vmatmul.mubr.f32.gmra.mrb[0].mxu0 %v5324
        %v6595 = vpop.f32.mrb[0].mxu0
        %v6596 = vadd.f32 %v5372, %v6595
        %v6597 = vpop.f32.mrb[0].mxu0
        %6598 = vmatprep.mubr.f32.mxu0 0.0
        %6599 = vmatmul.mubr.f32.gmra.mrb[0].mxu0 %v5325
        %v6600 = vpop.f32.mrb[0].mxu0
        %v6601 = vadd.f32 %v5372, %v6600
        %v6602 = vpop.f32.mrb[0].mxu0
        %6603 = vmatprep.mubr.f32.mxu0 0.0
        %6604 = vmatmul.mubr.f32.gmra.mrb[0].mxu0 %v5326
        %v6605 = vpop.f32.mrb[0].mxu0
        %v6606 = vadd.f32 %v5372, %v6605
        %v6607 = vpop.f32.mrb[0].mxu0
        %6608 = vmatprep.mubr.f32.mxu0 0.0
        %6609 = vmatmul.mubr.f32.gmra.mrb[0].mxu0 %v5327
        %v6610 = vpop.f32.mrb[0].mxu0
        %v6611 = vadd.f32 %v5372, %v6610
        %v6612 = vpop.f32.mrb[0].mxu0
        %6613 = vmatprep.mubr.f32.mxu0 0.0
        %6614 = vmatmul.mubr.f32.gmra.mrb[0].mxu0 %v5328
        %v6615 = vpop.f32.mrb[0].mxu0
        %v6616 = vadd.f32 %v5372, %v6615
        %v6617 = vpop.f32.mrb[0].mxu0
        %6618 = vmatprep.mubr.f32.mxu0 0.0
        %6619 = vmatmul.mubr.f32.gmra.mrb[0].mxu0 %v5329
        %v6620 = vpop.f32.mrb[0].mxu0
        %v6621 = vadd.f32 %v5372, %v6620
        %v6622 = vpop.f32.mrb[0].mxu0
        %6623 = vmatprep.mubr.f32.mxu0 0.0
        %6624 = vmatmul.mubr.f32.gmra.mrb[0].mxu0 %v5330
        %v6625 = vpop.f32.mrb[0].mxu0
        %v6626 = vadd.f32 %v5372, %v6625
        %v6627 = vpop.f32.mrb[0].mxu0
        %6628 = vmatprep.mubr.f32.mxu0 0.0
        %6629 = vmatmul.mubr.f32.gmra.mrb[0].mxu0 %v5331
        %v6630 = vpop.f32.mrb[0].mxu0
        %v6631 = vadd.f32 %v5372, %v6630
        %v6632 = vpop.f32.mrb[0].mxu0
        %6633 = vmatprep.mubr.f32.mxu0 0.0
        %6634 = vmatmul.mubr.f32.gmra.mrb[0].mxu0 %v5332
        %v6635 = vpop.f32.mrb[0].mxu0
        %v6636 = vadd.f32 %v5372, %v6635
        %v6637 = vpop.f32.mrb[0].mxu0
        %6638 = vmatprep.mubr.f32.mxu0 0.0
        %6639 = vmatmul.mubr.f32.gmra.mrb[0].mxu0 %v5333
        %v6640 = vpop.f32.mrb[0].mxu0
        %v6641 = vadd.f32 %v5372, %v6640
        %v6642 = vpop.f32.mrb[0].mxu0
        %6643 = vmatprep.mubr.f32.mxu0 0.0
        %6644 = vmatmul.mubr.f32.gmra.mrb[0].mxu0 %v5334
        %v6645 = vpop.f32.mrb[0].mxu0
        %v6646 = vadd.f32 %v5372, %v6645
        %v6647 = vpop.f32.mrb[0].mxu0
        %6648 = vmatprep.mubr.f32.mxu0 0.0
        %6649 = vmatmul.mubr.f32.gmra.mrb[0].mxu0 %v5335
        %v6650 = vpop.f32.mrb[0].mxu0
        %v6651 = vadd.f32 %v5372, %v6650
        %v6652 = vpop.f32.mrb[0].mxu0
        %6653 = vmatprep.mubr.f32.mxu0 0.0
        %6654 = vmatmul.mubr.f32.gmra.mrb[0].mxu0 %v5336
        %v6655 = vpop.f32.mrb[0].mxu0
        %v6656 = vadd.f32 %v5372, %v6655
        %v6657 = vpop.f32.mrb[0].mxu0
        %6658 = vmatprep.mubr.f32.mxu0 0.0
        %6659 = vmatmul.mubr.f32.gmra.mrb[0].mxu0 %v5337
        %v6660 = vpop.f32.mrb[0].mxu0
        %v6661 = vadd.f32 %v5372, %v6660
        %v6662 = vpop.f32.mrb[0].mxu0
        %6663 = vmatprep.mubr.f32.mxu0 0.0
        %6664 = vmatmul.mubr.f32.gmra.mrb[0].mxu0 %v5338
        %v6665 = vpop.f32.mrb[0].mxu0
        %v6666 = vadd.f32 %v5372, %v6665
        %v6667 = vpop.f32.mrb[0].mxu0
        %6668 = vmatprep.mubr.f32.mxu0 0.0
        %6669 = vmatmul.mubr.f32.gmra.mrb[0].mxu0 %v5339
        %v6670 = vpop.f32.mrb[0].mxu0
        %v6671 = vadd.f32 %v5372, %v6670
        %v6672 = vpop.f32.mrb[0].mxu0
        %6673 = vmatprep.mubr.f32.mxu0 0.0
        %6674 = vmatmul.mubr.f32.gmra.mrb[0].mxu0 %v5340
        %v6675 = vpop.f32.mrb[0].mxu0
        %v6676 = vadd.f32 %v5372, %v6675
        %v6677 = vpop.f32.mrb[0].mxu0
        %6678 = vmatprep.mubr.f32.mxu0 0.0
        %6679 = vmatmul.mubr.f32.gmra.mrb[0].mxu0 %v5341
        %v6680 = vpop.f32.mrb[0].mxu0
        %v6681 = vadd.f32 %v5372, %v6680
        %v6682 = vpop.f32.mrb[0].mxu0
        %6683 = vmatprep.mubr.f32.mxu0 0.0
        %6684 = vmatmul.mubr.f32.gmra.mrb[0].mxu0 %v5342
        %v6685 = vpop.f32.mrb[0].mxu0
        %v6686 = vadd.f32 %v5372, %v6685
        %v6687 = vpop.f32.mrb[0].mxu0
        %6688 = vmatprep.mubr.f32.mxu0 0.0
        %6689 = vmatmul.mubr.f32.gmra.mrb[0].mxu0 %v5343
        %v6690 = vpop.f32.mrb[0].mxu0
        %v6691 = vadd.f32 %v5372, %v6690
        %v6692 = vpop.f32.mrb[0].mxu0
        %6693 = vmatprep.mubr.f32.mxu0 0.0
        %6694 = vmatmul.mubr.f32.gmra.mrb[0].mxu0 %v5344
        %v6695 = vpop.f32.mrb[0].mxu0
        %v6696 = vadd.f32 %v5372, %v6695
        %v6697 = vpop.f32.mrb[0].mxu0
        %6698 = vmatprep.mubr.f32.mxu0 0.0
        %6699 = vmatmul.mubr.f32.gmra.mrb[0].mxu0 %v5345
        %v6700 = vpop.f32.mrb[0].mxu0
        %v6701 = vadd.f32 %v5372, %v6700
        %v6702 = vpop.f32.mrb[0].mxu0
        %6703 = vmatprep.mubr.f32.mxu0 0.0
        %6704 = vmatmul.mubr.f32.gmra.mrb[0].mxu0 %v5346
        %v6705 = vpop.f32.mrb[0].mxu0
        %v6706 = vadd.f32 %v5372, %v6705
        %v6707 = vpop.f32.mrb[0].mxu0
        %6708 = vmatprep.mubr.f32.mxu0 0.0
        %6709 = vmatmul.mubr.f32.gmra.mrb[0].mxu0 %v5347
        %v6710 = vpop.f32.mrb[0].mxu0
        %v6711 = vadd.f32 %v5372, %v6710
        %v6712 = vpop.f32.mrb[0].mxu0
        %6713 = vmatprep.mubr.f32.mxu0 0.0
        %6714 = vmatmul.mubr.f32.gmra.mrb[0].mxu0 %v5348
        %v6715 = vpop.f32.mrb[0].mxu0
        %v6716 = vadd.f32 %v5372, %v6715
        %v6717 = vpop.f32.mrb[0].mxu0
        %6718 = vdwg.mxu0
        %6719 = vst [vmem:[%s235] sm:$0xff] %v5441
        %6720 = vst [vmem:[%s235 + $0x8] sm:$0xff] %v5446
        %6721 = vst [vmem:[%s235 + $0x10] sm:$0xff] %v5451
        %6722 = vst [vmem:[%s235 + $0x18] sm:$0xff] %v5456
        %6723 = vst [vmem:[%s235 + $0x20] sm:$0xff] %v5461
        %6724 = vst [vmem:[%s235 + $0x28] sm:$0xff] %v5466
        %6725 = vst [vmem:[%s235 + $0x30] sm:$0xff] %v5471
        %6726 = vst [vmem:[%s235 + $0x38] sm:$0xff] %v5476
        %6727 = vst [vmem:[%s235 + $0x40] sm:$0xff] %v5481
        %6728 = vst [vmem:[%s235 + $0x48] sm:$0xff] %v5486
        %6729 = vst [vmem:[%s235 + $0x50] sm:$0xff] %v5491
        %6730 = vst [vmem:[%s235 + $0x58] sm:$0xff] %v5496
        %6731 = vst [vmem:[%s235 + $0x60] sm:$0xff] %v5501
        %6732 = vst [vmem:[%s235 + $0x68] sm:$0xff] %v5506
        %6733 = vst [vmem:[%s235 + $0x70] sm:$0xff] %v5511
        %6734 = vst [vmem:[%s235 + $0x78] sm:$0xff] %v5516
        %6735 = vst [vmem:[%s235 + $0x80] sm:$0xff] %v5521
        %6736 = vst [vmem:[%s235 + $0x88] sm:$0xff] %v5526
        %6737 = vst [vmem:[%s235 + $0x90] sm:$0xff] %v5531
        %6738 = vst [vmem:[%s235 + $0x98] sm:$0xff] %v5536
        %6739 = vst [vmem:[%s235 + $0xa0] sm:$0xff] %v5541
        %6740 = vst [vmem:[%s235 + $0xa8] sm:$0xff] %v5546
        %6741 = vst [vmem:[%s235 + $0xb0] sm:$0xff] %v5551
        %6742 = vst [vmem:[%s235 + $0xb8] sm:$0xff] %v5556
        %6743 = vst [vmem:[%s235 + $0xc0] sm:$0xff] %v5561
        %6744 = vst [vmem:[%s235 + $0xc8] sm:$0xff] %v5566
        %6745 = vst [vmem:[%s235 + $0xd0] sm:$0xff] %v5571
        %6746 = vst [vmem:[%s235 + $0xd8] sm:$0xff] %v5576
        %6747 = vst [vmem:[%s235 + $0xe0] sm:$0xff] %v5581
        %6748 = vst [vmem:[%s235 + $0xe8] sm:$0xff] %v5586
        %6749 = vst [vmem:[%s235 + $0xf0] sm:$0xff] %v5591
        %6750 = vst [vmem:[%s235 + $0xf8] sm:$0xff] %v5596
        %6751 = vst [vmem:[%s235 + $0x100] sm:$0xff] %v5601
        %6752 = vst [vmem:[%s235 + $0x108] sm:$0xff] %v5606
        %6753 = vst [vmem:[%s235 + $0x110] sm:$0xff] %v5611
        %6754 = vst [vmem:[%s235 + $0x118] sm:$0xff] %v5616
        %6755 = vst [vmem:[%s235 + $0x120] sm:$0xff] %v5621
        %6756 = vst [vmem:[%s235 + $0x128] sm:$0xff] %v5626
        %6757 = vst [vmem:[%s235 + $0x130] sm:$0xff] %v5631
        %6758 = vst [vmem:[%s235 + $0x138] sm:$0xff] %v5636
        %6759 = vst [vmem:[%s235 + $0x140] sm:$0xff] %v5641
        %6760 = vst [vmem:[%s235 + $0x148] sm:$0xff] %v5646
        %6761 = vst [vmem:[%s235 + $0x150] sm:$0xff] %v5651
        %6762 = vst [vmem:[%s235 + $0x158] sm:$0xff] %v5656
        %6763 = vst [vmem:[%s235 + $0x160] sm:$0xff] %v5661
        %6764 = vst [vmem:[%s235 + $0x168] sm:$0xff] %v5666
        %6765 = vst [vmem:[%s235 + $0x170] sm:$0xff] %v5671
        %6766 = vst [vmem:[%s235 + $0x178] sm:$0xff] %v5676
        %6767 = vst [vmem:[%s235 + $0x180] sm:$0xff] %v5681
        %6768 = vst [vmem:[%s235 + $0x188] sm:$0xff] %v5686
        %6769 = vst [vmem:[%s235 + $0x190] sm:$0xff] %v5691
        %6770 = vst [vmem:[%s235 + $0x198] sm:$0xff] %v5696
        %6771 = vst [vmem:[%s235 + $0x1a0] sm:$0xff] %v5701
        %6772 = vst [vmem:[%s235 + $0x1a8] sm:$0xff] %v5706
        %6773 = vst [vmem:[%s235 + $0x1b0] sm:$0xff] %v5711
        %6774 = vst [vmem:[%s235 + $0x1b8] sm:$0xff] %v5716
        %6775 = vst [vmem:[%s235 + $0x1c0] sm:$0xff] %v5721
        %6776 = vst [vmem:[%s235 + $0x1c8] sm:$0xff] %v5726
        %6777 = vst [vmem:[%s235 + $0x1d0] sm:$0xff] %v5731
        %6778 = vst [vmem:[%s235 + $0x1d8] sm:$0xff] %v5736
        %6779 = vst [vmem:[%s235 + $0x1e0] sm:$0xff] %v5741
        %6780 = vst [vmem:[%s235 + $0x1e8] sm:$0xff] %v5746
        %6781 = vst [vmem:[%s235 + $0x1f0] sm:$0xff] %v5751
        %6782 = vst [vmem:[%s235 + $0x1f8] sm:$0xff] %v5756
        %6783 = vst [vmem:[%s235 + $0x200] sm:$0xff] %v5761
        %6784 = vst [vmem:[%s235 + $0x208] sm:$0xff] %v5766
        %6785 = vst [vmem:[%s235 + $0x210] sm:$0xff] %v5771
        %6786 = vst [vmem:[%s235 + $0x218] sm:$0xff] %v5776
        %6787 = vst [vmem:[%s235 + $0x220] sm:$0xff] %v5781
        %6788 = vst [vmem:[%s235 + $0x228] sm:$0xff] %v5786
        %6789 = vst [vmem:[%s235 + $0x230] sm:$0xff] %v5791
        %6790 = vst [vmem:[%s235 + $0x238] sm:$0xff] %v5796
        %6791 = vst [vmem:[%s235 + $0x240] sm:$0xff] %v5801
        %6792 = vst [vmem:[%s235 + $0x248] sm:$0xff] %v5806
        %6793 = vst [vmem:[%s235 + $0x250] sm:$0xff] %v5811
        %6794 = vst [vmem:[%s235 + $0x258] sm:$0xff] %v5816
        %6795 = vst [vmem:[%s235 + $0x260] sm:$0xff] %v5821
        %6796 = vst [vmem:[%s235 + $0x268] sm:$0xff] %v5826
        %6797 = vst [vmem:[%s235 + $0x270] sm:$0xff] %v5831
        %6798 = vst [vmem:[%s235 + $0x278] sm:$0xff] %v5836
        %6799 = vst [vmem:[%s235 + $0x280] sm:$0xff] %v5841
        %6800 = vst [vmem:[%s235 + $0x288] sm:$0xff] %v5846
        %6801 = vst [vmem:[%s235 + $0x290] sm:$0xff] %v5851
        %6802 = vst [vmem:[%s235 + $0x298] sm:$0xff] %v5856
        %6803 = vst [vmem:[%s235 + $0x2a0] sm:$0xff] %v5861
        %6804 = vst [vmem:[%s235 + $0x2a8] sm:$0xff] %v5866
        %6805 = vst [vmem:[%s235 + $0x2b0] sm:$0xff] %v5871
        %6806 = vst [vmem:[%s235 + $0x2b8] sm:$0xff] %v5876
        %6807 = vst [vmem:[%s235 + $0x2c0] sm:$0xff] %v5881
        %6808 = vst [vmem:[%s235 + $0x2c8] sm:$0xff] %v5886
        %6809 = vst [vmem:[%s235 + $0x2d0] sm:$0xff] %v5891
        %6810 = vst [vmem:[%s235 + $0x2d8] sm:$0xff] %v5896
        %6811 = vst [vmem:[%s235 + $0x2e0] sm:$0xff] %v5901
        %6812 = vst [vmem:[%s235 + $0x2e8] sm:$0xff] %v5906
        %6813 = vst [vmem:[%s235 + $0x2f0] sm:$0xff] %v5911
        %6814 = vst [vmem:[%s235 + $0x2f8] sm:$0xff] %v5916
        %6815 = vst [vmem:[%s235 + $0x300] sm:$0xff] %v5921
        %6816 = vst [vmem:[%s235 + $0x308] sm:$0xff] %v5926
        %6817 = vst [vmem:[%s235 + $0x310] sm:$0xff] %v5931
        %6818 = vst [vmem:[%s235 + $0x318] sm:$0xff] %v5936
        %6819 = vst [vmem:[%s235 + $0x320] sm:$0xff] %v5941
        %6820 = vst [vmem:[%s235 + $0x328] sm:$0xff] %v5946
        %6821 = vst [vmem:[%s235 + $0x330] sm:$0xff] %v5951
        %6822 = vst [vmem:[%s235 + $0x338] sm:$0xff] %v5956
        %6823 = vst [vmem:[%s235 + $0x340] sm:$0xff] %v5961
        %6824 = vst [vmem:[%s235 + $0x348] sm:$0xff] %v5966
        %6825 = vst [vmem:[%s235 + $0x350] sm:$0xff] %v5971
        %6826 = vst [vmem:[%s235 + $0x358] sm:$0xff] %v5976
        %6827 = vst [vmem:[%s235 + $0x360] sm:$0xff] %v5981
        %6828 = vst [vmem:[%s235 + $0x368] sm:$0xff] %v5986
        %6829 = vst [vmem:[%s235 + $0x370] sm:$0xff] %v5991
        %6830 = vst [vmem:[%s235 + $0x378] sm:$0xff] %v5996
        %6831 = vst [vmem:[%s235 + $0x380] sm:$0xff] %v6001
        %6832 = vst [vmem:[%s235 + $0x388] sm:$0xff] %v6006
        %6833 = vst [vmem:[%s235 + $0x390] sm:$0xff] %v6011
        %6834 = vst [vmem:[%s235 + $0x398] sm:$0xff] %v6016
        %6835 = vst [vmem:[%s235 + $0x3a0] sm:$0xff] %v6021
        %6836 = vst [vmem:[%s235 + $0x3a8] sm:$0xff] %v6026
        %6837 = vst [vmem:[%s235 + $0x3b0] sm:$0xff] %v6031
        %6838 = vst [vmem:[%s235 + $0x3b8] sm:$0xff] %v6036
        %6839 = vst [vmem:[%s235 + $0x3c0] sm:$0xff] %v6041
        %6840 = vst [vmem:[%s235 + $0x3c8] sm:$0xff] %v6046
        %6841 = vst [vmem:[%s235 + $0x3d0] sm:$0xff] %v6051
        %6842 = vst [vmem:[%s235 + $0x3d8] sm:$0xff] %v6056
        %6843 = vst [vmem:[%s235 + $0x3e0] sm:$0xff] %v6061
        %6844 = vst [vmem:[%s235 + $0x3e8] sm:$0xff] %v6066
        %6845 = vst [vmem:[%s235 + $0x3f0] sm:$0xff] %v6071
        %6846 = vst [vmem:[%s235 + $0x3f8] sm:$0xff] %v6076
        %6847 = vst [vmem:[%s235 + $0x400] sm:$0xff] %v6081
        %6848 = vst [vmem:[%s235 + $0x408] sm:$0xff] %v6086
        %6849 = vst [vmem:[%s235 + $0x410] sm:$0xff] %v6091
        %6850 = vst [vmem:[%s235 + $0x418] sm:$0xff] %v6096
        %6851 = vst [vmem:[%s235 + $0x420] sm:$0xff] %v6101
        %6852 = vst [vmem:[%s235 + $0x428] sm:$0xff] %v6106
        %6853 = vst [vmem:[%s235 + $0x430] sm:$0xff] %v6111
        %6854 = vst [vmem:[%s235 + $0x438] sm:$0xff] %v6116
        %6855 = vst [vmem:[%s235 + $0x440] sm:$0xff] %v6121
        %6856 = vst [vmem:[%s235 + $0x448] sm:$0xff] %v6126
        %6857 = vst [vmem:[%s235 + $0x450] sm:$0xff] %v6131
        %6858 = vst [vmem:[%s235 + $0x458] sm:$0xff] %v6136
        %6859 = vst [vmem:[%s235 + $0x460] sm:$0xff] %v6141
        %6860 = vst [vmem:[%s235 + $0x468] sm:$0xff] %v6146
        %6861 = vst [vmem:[%s235 + $0x470] sm:$0xff] %v6151
        %6862 = vst [vmem:[%s235 + $0x478] sm:$0xff] %v6156
        %6863 = vst [vmem:[%s235 + $0x480] sm:$0xff] %v6161
        %6864 = vst [vmem:[%s235 + $0x488] sm:$0xff] %v6166
        %6865 = vst [vmem:[%s235 + $0x490] sm:$0xff] %v6171
        %6866 = vst [vmem:[%s235 + $0x498] sm:$0xff] %v6176
        %6867 = vst [vmem:[%s235 + $0x4a0] sm:$0xff] %v6181
        %6868 = vst [vmem:[%s235 + $0x4a8] sm:$0xff] %v6186
        %6869 = vst [vmem:[%s235 + $0x4b0] sm:$0xff] %v6191
        %6870 = vst [vmem:[%s235 + $0x4b8] sm:$0xff] %v6196
        %6871 = vst [vmem:[%s235 + $0x4c0] sm:$0xff] %v6201
        %6872 = vst [vmem:[%s235 + $0x4c8] sm:$0xff] %v6206
        %6873 = vst [vmem:[%s235 + $0x4d0] sm:$0xff] %v6211
        %6874 = vst [vmem:[%s235 + $0x4d8] sm:$0xff] %v6216
        %6875 = vst [vmem:[%s235 + $0x4e0] sm:$0xff] %v6221
        %6876 = vst [vmem:[%s235 + $0x4e8] sm:$0xff] %v6226
        %6877 = vst [vmem:[%s235 + $0x4f0] sm:$0xff] %v6231
        %6878 = vst [vmem:[%s235 + $0x4f8] sm:$0xff] %v6236
        %6879 = vst [vmem:[%s235 + $0x500] sm:$0xff] %v6241
        %6880 = vst [vmem:[%s235 + $0x508] sm:$0xff] %v6246
        %6881 = vst [vmem:[%s235 + $0x510] sm:$0xff] %v6251
        %6882 = vst [vmem:[%s235 + $0x518] sm:$0xff] %v6256
        %6883 = vst [vmem:[%s235 + $0x520] sm:$0xff] %v6261
        %6884 = vst [vmem:[%s235 + $0x528] sm:$0xff] %v6266
        %6885 = vst [vmem:[%s235 + $0x530] sm:$0xff] %v6271
        %6886 = vst [vmem:[%s235 + $0x538] sm:$0xff] %v6276
        %6887 = vst [vmem:[%s235 + $0x540] sm:$0xff] %v6281
        %6888 = vst [vmem:[%s235 + $0x548] sm:$0xff] %v6286
        %6889 = vst [vmem:[%s235 + $0x550] sm:$0xff] %v6291
        %6890 = vst [vmem:[%s235 + $0x558] sm:$0xff] %v6296
        %6891 = vst [vmem:[%s235 + $0x560] sm:$0xff] %v6301
        %6892 = vst [vmem:[%s235 + $0x568] sm:$0xff] %v6306
        %6893 = vst [vmem:[%s235 + $0x570] sm:$0xff] %v6311
        %6894 = vst [vmem:[%s235 + $0x578] sm:$0xff] %v6316
        %6895 = vst [vmem:[%s235 + $0x580] sm:$0xff] %v6321
        %6896 = vst [vmem:[%s235 + $0x588] sm:$0xff] %v6326
        %6897 = vst [vmem:[%s235 + $0x590] sm:$0xff] %v6331
        %6898 = vst [vmem:[%s235 + $0x598] sm:$0xff] %v6336
        %6899 = vst [vmem:[%s235 + $0x5a0] sm:$0xff] %v6341
        %6900 = vst [vmem:[%s235 + $0x5a8] sm:$0xff] %v6346
        %6901 = vst [vmem:[%s235 + $0x5b0] sm:$0xff] %v6351
        %6902 = vst [vmem:[%s235 + $0x5b8] sm:$0xff] %v6356
        %6903 = vst [vmem:[%s235 + $0x5c0] sm:$0xff] %v6361
        %6904 = vst [vmem:[%s235 + $0x5c8] sm:$0xff] %v6366
        %6905 = vst [vmem:[%s235 + $0x5d0] sm:$0xff] %v6371
        %6906 = vst [vmem:[%s235 + $0x5d8] sm:$0xff] %v6376
        %6907 = vst [vmem:[%s235 + $0x5e0] sm:$0xff] %v6381
        %6908 = vst [vmem:[%s235 + $0x5e8] sm:$0xff] %v6386
        %6909 = vst [vmem:[%s235 + $0x5f0] sm:$0xff] %v6391
        %6910 = vst [vmem:[%s235 + $0x5f8] sm:$0xff] %v6396
        %6911 = vst [vmem:[%s235 + $0x600] sm:$0xff] %v6401
        %6912 = vst [vmem:[%s235 + $0x608] sm:$0xff] %v6406
        %6913 = vst [vmem:[%s235 + $0x610] sm:$0xff] %v6411
        %6914 = vst [vmem:[%s235 + $0x618] sm:$0xff] %v6416
        %6915 = vst [vmem:[%s235 + $0x620] sm:$0xff] %v6421
        %6916 = vst [vmem:[%s235 + $0x628] sm:$0xff] %v6426
        %6917 = vst [vmem:[%s235 + $0x630] sm:$0xff] %v6431
        %6918 = vst [vmem:[%s235 + $0x638] sm:$0xff] %v6436
        %6919 = vst [vmem:[%s235 + $0x640] sm:$0xff] %v6441
        %6920 = vst [vmem:[%s235 + $0x648] sm:$0xff] %v6446
        %6921 = vst [vmem:[%s235 + $0x650] sm:$0xff] %v6451
        %6922 = vst [vmem:[%s235 + $0x658] sm:$0xff] %v6456
        %6923 = vst [vmem:[%s235 + $0x660] sm:$0xff] %v6461
        %6924 = vst [vmem:[%s235 + $0x668] sm:$0xff] %v6466
        %6925 = vst [vmem:[%s235 + $0x670] sm:$0xff] %v6471
        %6926 = vst [vmem:[%s235 + $0x678] sm:$0xff] %v6476
        %6927 = vst [vmem:[%s235 + $0x680] sm:$0xff] %v6481
        %6928 = vst [vmem:[%s235 + $0x688] sm:$0xff] %v6486
        %6929 = vst [vmem:[%s235 + $0x690] sm:$0xff] %v6491
        %6930 = vst [vmem:[%s235 + $0x698] sm:$0xff] %v6496
        %6931 = vst [vmem:[%s235 + $0x6a0] sm:$0xff] %v6501
        %6932 = vst [vmem:[%s235 + $0x6a8] sm:$0xff] %v6506
        %6933 = vst [vmem:[%s235 + $0x6b0] sm:$0xff] %v6511
        %6934 = vst [vmem:[%s235 + $0x6b8] sm:$0xff] %v6516
        %6935 = vst [vmem:[%s235 + $0x6c0] sm:$0xff] %v6521
        %6936 = vst [vmem:[%s235 + $0x6c8] sm:$0xff] %v6526
        %6937 = vst [vmem:[%s235 + $0x6d0] sm:$0xff] %v6531
        %6938 = vst [vmem:[%s235 + $0x6d8] sm:$0xff] %v6536
        %6939 = vst [vmem:[%s235 + $0x6e0] sm:$0xff] %v6541
        %6940 = vst [vmem:[%s235 + $0x6e8] sm:$0xff] %v6546
        %6941 = vst [vmem:[%s235 + $0x6f0] sm:$0xff] %v6551
        %6942 = vst [vmem:[%s235 + $0x6f8] sm:$0xff] %v6556
        %6943 = vst [vmem:[%s235 + $0x700] sm:$0xff] %v6561
        %6944 = vst [vmem:[%s235 + $0x708] sm:$0xff] %v6566
        %6945 = vst [vmem:[%s235 + $0x710] sm:$0xff] %v6571
        %6946 = vst [vmem:[%s235 + $0x718] sm:$0xff] %v6576
        %6947 = vst [vmem:[%s235 + $0x720] sm:$0xff] %v6581
        %6948 = vst [vmem:[%s235 + $0x728] sm:$0xff] %v6586
        %6949 = vst [vmem:[%s235 + $0x730] sm:$0xff] %v6591
        %6950 = vst [vmem:[%s235 + $0x738] sm:$0xff] %v6596
        %6951 = vst [vmem:[%s235 + $0x740] sm:$0xff] %v6601
        %6952 = vst [vmem:[%s235 + $0x748] sm:$0xff] %v6606
        %6953 = vst [vmem:[%s235 + $0x750] sm:$0xff] %v6611
        %6954 = vst [vmem:[%s235 + $0x758] sm:$0xff] %v6616
        %6955 = vst [vmem:[%s235 + $0x760] sm:$0xff] %v6621
        %6956 = vst [vmem:[%s235 + $0x768] sm:$0xff] %v6626
        %6957 = vst [vmem:[%s235 + $0x770] sm:$0xff] %v6631
        %6958 = vst [vmem:[%s235 + $0x778] sm:$0xff] %v6636
        %6959 = vst [vmem:[%s235 + $0x780] sm:$0xff] %v6641
        %6960 = vst [vmem:[%s235 + $0x788] sm:$0xff] %v6646
        %6961 = vst [vmem:[%s235 + $0x790] sm:$0xff] %v6651
        %6962 = vst [vmem:[%s235 + $0x798] sm:$0xff] %v6656
        %6963 = vst [vmem:[%s235 + $0x7a0] sm:$0xff] %v6661
        %6964 = vst [vmem:[%s235 + $0x7a8] sm:$0xff] %v6666
        %6965 = vst [vmem:[%s235 + $0x7b0] sm:$0xff] %v6671
        %6966 = vst [vmem:[%s235 + $0x7b8] sm:$0xff] %v6676
        %6967 = vst [vmem:[%s235 + $0x7c0] sm:$0xff] %v6681
        %6968 = vst [vmem:[%s235 + $0x7c8] sm:$0xff] %v6686
        %6969 = vst [vmem:[%s235 + $0x7d0] sm:$0xff] %v6691
        %6970 = vst [vmem:[%s235 + $0x7d8] sm:$0xff] %v6696
        %6971 = vst [vmem:[%s235 + $0x7e0] sm:$0xff] %v6701
        %6972 = vst [vmem:[%s235 + $0x7e8] sm:$0xff] %v6706
        %6973 = vst [vmem:[%s235 + $0x7f0] sm:$0xff] %v6711
        %6974 = vst [vmem:[%s235 + $0x7f8] sm:$0xff] %v6716
        %s6975 = sand.u32 %s113, 1
        %s6976 = scalar_lea.sflag [#allocation6], %s6975
        %s6977 = sand.u32 %s113, 1
        %s6978 = smul.addr %s6977, 2048
        %s6979 = scalar_lea.vmem [#allocation10], %s6978
        // Predicated region
        $region45: #{tpu_custom_call.1} parent=31 // pred_check
          %p6980 = pneg %p123
        $region46: #{tpu_custom_call.1} parent=31 // pred_check_branch
          %6982 = sbr.rel (%p6980) target = $region48
        $region47: #{tpu_custom_call.1} parent=31 // pred_region
          %s6983 = smul.u32 32, %s26
          %s6985 = ssub.s32 32768, 32768
          %6986 = vsyncadd %s6976, %s6985
          %s6987 = smul.addr %s25, 256
          %s6988 = sadd.s32 %s6983, %s6987
          %s6989 = smul.addr %s6988, 128
          %s6990 = scalar_lea.hbm %s3, %s6989
          %s6991 = sshll.u32 %s6979, 4
          %s6992 = int_to_ptr.vmem [resolvable:$true] %s6991
          %6997 = dma.vmem_to_hbm [thread:$0]  %s6992, 32768, %s6990, %s6976, 128, 128, 8
        $region48: #{tpu_custom_call.1} parent=31 // pred_fallthru
          _
      $region32: #{tpu_custom_call.1} parent=5 // pred_fallthru
        _
      %p6998 = scmp.le.s32.totalorder 2, %s16
      // Predicated region
      $region49: #{tpu_custom_call.1} parent=5 // pred_check
        %p6999 = pneg %p6998
      $region50: #{tpu_custom_call.1} parent=5 // pred_check_branch
        %7001 = sbr.rel (%p6999) target = $region52
      $region51: #{tpu_custom_call.1} parent=5 // pred_region
        %s7002 = ssub.s32 %s16, 2
        // Predicated region
        $region53: #{tpu_custom_call.1} parent=51 // pred_check
          %p7003 = pneg %p129
        $region54: #{tpu_custom_call.1} parent=51 // pred_check_branch
          %7005 = sbr.rel (%p7003) target = $region56
        $region55: #{tpu_custom_call.1} parent=51 // pred_region
          %s7006 = sand.u32 %s114, 1
          %s7007 = scalar_lea.sflag [#allocation6], %s7006
          %s7008 = sand.u32 %s114, 1
          %s7009 = smul.addr %s7008, 2048
          %s7010 = scalar_lea.vmem [#allocation10], %s7009
          %7011 = dma.done %s7007, 32768
        $region56: #{tpu_custom_call.1} parent=51 // pred_fallthru
          _
      $region52: #{tpu_custom_call.1} parent=5 // pred_fallthru
        _
    $region6: #{tpu_custom_call.1} parent=1 // loop_footer
      %s20 = sadd.s32 1, %s16
    $region7: #{tpu_custom_call.1} parent=1 // loop_footer_branch
      %15 = sbr.rel target = $region3
    $region8: #{tpu_custom_call.1} parent=1 // loop_exit
      _
    %7012 = vsyncpa [#allocation5], 1
    %s7013 = scalar_lea.sflag [#allocation5], 1
    %7014 = vsyncpa %s7013, 1
    %7015 = vsyncpa [#allocation8], 1
    %7016 = vsyncpa [#allocation6], 1
    %s7017 = scalar_lea.sflag [#allocation6], 1
    %7018 = vsyncpa %s7017, 1

</llo_original>
